<compile_context>
chip_gen: v6e
topology: v6e:2x2x1
jax: 0.10.0
libtpu: 0.0.40
codegen_flags: <defaults>
</compile_context>

<pallas_src>
import jax
import jax.numpy as jnp
from jax.experimental import pallas as pl
from jax.experimental.pallas import tpu as pltpu


# ---------------------------------------------------------------------------
# Module constants (from the PyTorch spec) and chip-adaptive padded layout.
# ---------------------------------------------------------------------------
C_IN = 726
C_OUT = 2904

WEIGHT_DTYPE = jnp.bfloat16      # set to jnp.float32 for bit-exact f32 math
_W_BYTES = 2 if WEIGHT_DTYPE == jnp.bfloat16 else 4

LANE = 128
SUBLANE_PACK = 16                # bf16 packs sublanes in pairs -> pad K to 16


def _detect_num_tensorcores() -> int:
    """2 for dual-TensorCore / megacore chips (v7x, v4, v5p), else 1."""
    try:
        kind = jax.devices()[0].device_kind.lower()
    except Exception:  # pragma: no cover - no TPU visible at import time
        return 1
    return 2 if any(tag in kind for tag in ("v7", "v4", "v5p")) else 1


N_CORES = _detect_num_tensorcores()
N_COUT_TILES = 2 if N_CORES == 2 else 1

# K (sublane dim of the weight): multiple of 16 -> 736.
C_IN_PAD = ((C_IN + SUBLANE_PACK - 1) // SUBLANE_PACK) * SUBLANE_PACK
# C_out (lane dim): multiple of 128 per tile; dual-core needs 2 equal tiles.
_ALIGN = LANE * N_COUT_TILES
C_OUT_PAD = ((C_OUT + _ALIGN - 1) // _ALIGN) * _ALIGN      # 2944 (1 TC) / 3072 (2 TC)
TILE_COUT = C_OUT_PAD // N_COUT_TILES

# Actual VMEM footprint: double-buffered weight tile + tiny x/bias/out + slack.
VMEM_LIMIT_BYTES = 2 * C_IN_PAD * TILE_COUT * _W_BYTES + (4 << 20)


# ---------------------------------------------------------------------------
# Kernel: fused ReLU -> MXU matmul (f32 accumulate) -> bias add.
# ---------------------------------------------------------------------------
def _relu_matmul_bias_kernel(x_ref, w_ref, b_ref, o_ref):
    x = jnp.maximum(x_ref[...], 0.0).astype(w_ref.dtype)   # ReLU, then match weight dtype
    acc = jnp.dot(x, w_ref[...], preferred_element_type=jnp.float32)
    o_ref[...] = (acc + b_ref[...]).astype(o_ref.dtype)


# ---------------------------------------------------------------------------
# One-time parameter preparation (transpose + pad + cast), outside hot path.
# ---------------------------------------------------------------------------
def prepare_conv_params(weight, bias):
    """weight: (C_out, C_in, 1, 1); bias: (C_out,).

    Returns (w_prepared (C_IN_PAD, C_OUT_PAD) in WEIGHT_DTYPE,
             b_prepared (1, C_OUT_PAD) in float32).
    """
    assert weight.shape[2:] == (1, 1), "this kernel specializes 1x1 convolution"
    c_out, c_in = weight.shape[0], weight.shape[1]
    w2d = weight.reshape(c_out, c_in).T                          # (C_in, C_out), once
    w_pad = jnp.pad(w2d, ((0, C_IN_PAD - c_in), (0, C_OUT_PAD - c_out)))
    w_pad = w_pad.astype(WEIGHT_DTYPE)                           # stream weight in bf16
    b_pad = jnp.pad(bias.reshape(1, c_out).astype(jnp.float32),
                    ((0, 0), (0, C_OUT_PAD - c_out)))
    return jax.device_put(w_pad), jax.device_put(b_pad)


# ---------------------------------------------------------------------------
# Forward (jit'd): reshape/pad + pallas_call + slice back.
# ---------------------------------------------------------------------------
@jax.jit
def relu_conv2d_1x1(x_nchw, w_prepared, b_prepared):
    """x_nchw: (N, C_in, 1, 1); params from prepare_conv_params."""
    n, c_in, h, w = x_nchw.shape
    assert h == 1 and w == 1, "this kernel specializes the 1x1-spatial case"

    x2d = x_nchw.reshape(n, c_in)
    # Tiny (KB-scale) pad of the activation; zero columns contribute nothing.
    x_pad = jnp.pad(x2d, ((0, 0), (0, C_IN_PAD - c_in)))

    out_pad = pl.pallas_call(
        _relu_matmul_bias_kernel,
        out_shape=jax.ShapeDtypeStruct((n, C_OUT_PAD), jnp.float32),
        grid=(N_COUT_TILES,),
        in_specs=[
            pl.BlockSpec((n, C_IN_PAD), lambda j: (0, 0)),          # X: whole (f32)
            pl.BlockSpec((C_IN_PAD, TILE_COUT), lambda j: (0, j)),  # W tile (bf16)
            pl.BlockSpec((1, TILE_COUT), lambda j: (0, j)),         # bias tile (f32)
        ],
        out_specs=pl.BlockSpec((n, TILE_COUT), lambda j: (0, j)),
        compiler_params=pltpu.CompilerParams(
            # "parallel" shards the 2 C_out tiles across the 2 TensorCores on
            # dual-core chips; on single-TC chips the grid is (1,) anyway.
            # (pltpu.CORE_PARALLEL is the escalation if plain parallel ever
            #  fails to split on v7x.)
            dimension_semantics=(
                ("parallel",) if N_COUT_TILES == 2 else ("arbitrary",)),
            vmem_limit_bytes=VMEM_LIMIT_BYTES,
        ),
        cost_estimate=pl.CostEstimate(
            flops=2 * n * C_IN * C_OUT,
            transcendentals=0,
            bytes_accessed=(C_IN_PAD * C_OUT_PAD * _W_BYTES          # weight (bf16)
                            + n * C_IN_PAD * 4                       # x (f32)
                            + C_OUT_PAD * 4                          # bias (f32)
                            + n * C_OUT_PAD * 4),                    # out (f32)
        ),
    )(x_pad, w_prepared, b_prepared)

    return out_pad[:, :C_OUT].reshape(n, C_OUT, 1, 1)


if __name__ == "__main__":
    key = jax.random.PRNGKey(0)
    k_x, k_w, k_b = jax.random.split(key, 3)

    N = 1  # matches the module's input shape [1, 726, 1, 1]

    # Deterministic synthetic parameters matching the module's shapes.
    x = jax.random.normal(k_x, (N, C_IN, 1, 1), dtype=jnp.float32)
    weight = jax.random.normal(k_w, (C_OUT, C_IN, 1, 1), dtype=jnp.float32) * (
        1.0 / jnp.sqrt(float(C_IN))
    )
    bias = jax.random.normal(k_b, (C_OUT,), dtype=jnp.float32) * 0.01

    # One-time parameter preparation (transpose + pad + bf16 cast).
    w_prep, b_prep = prepare_conv_params(weight, bias)
    out = relu_conv2d_1x1(x, w_prep, b_prep)
    jax.block_until_ready(out)

    # References: exact f32 semantics, and the kernel's mixed precision.
    x2 = jnp.maximum(x.reshape(N, C_IN), 0.0)
    w2 = weight.reshape(C_OUT, C_IN).T
    ref_exact = (x2 @ w2 + bias).reshape(N, C_OUT, 1, 1)
    ref_mixed = (
        jnp.dot(x2.astype(WEIGHT_DTYPE), w2.astype(WEIGHT_DTYPE),
                preferred_element_type=jnp.float32) + bias
    ).reshape(N, C_OUT, 1, 1)

    assert out.shape == (N, C_OUT, 1, 1)
    # Tight check against the same-precision reference (kernel correctness).
    assert jnp.allclose(out, ref_mixed, atol=2e-3, rtol=2e-3)
    # Loose check against the f32 PyTorch-equivalent reference (bf16 weights).
    assert jnp.allclose(out, ref_exact, atol=3e-2, rtol=3e-2)

    print("KERNEL_OK")
</pallas_src>

<mosaic_0001>
module attributes {stable_mosaic.version = 11 : i64} {
  func.func @_relu_matmul_bias_kernel(%arg0: i32, %arg1: memref<1x736xf32, #tpu.memory_space<vmem>>, %arg2: memref<736x2944xbf16, #tpu.memory_space<vmem>>, %arg3: memref<1x2944xf32, #tpu.memory_space<vmem>>, %arg4: memref<1x2944xf32, #tpu.memory_space<vmem>>) attributes {dimension_semantics = [#tpu.dimension_semantics<arbitrary>], iteration_bounds = array<i64: 1>, scalar_prefetch = 0 : i64, scratch_operands = 0 : i64, tpu.core_type = #tpu.core_type<tc>, window_params = [{pipeline_mode = #tpu.pipeline_mode<synchronous>, transform_indices = @transform_0, window_bounds = array<i64: 1, 736>}, {transform_indices = @transform_1, window_bounds = array<i64: 736, 2944>}, {transform_indices = @transform_2, window_bounds = array<i64: 1, 2944>}, {transform_indices = @transform_3, window_bounds = array<i64: 1, 2944>}]} {
    %c0 = arith.constant 0 : index
    %c0_0 = arith.constant 0 : index
    %0 = vector.load %arg1[%c0, %c0_0] : memref<1x736xf32, #tpu.memory_space<vmem>>, vector<1x736xf32>
    %cst = arith.constant 0.000000e+00 : f32
    %1 = vector.broadcast %cst : f32 to vector<1x736xf32>
    %2 = arith.maximumf %0, %1 : vector<1x736xf32>
    %3 = arith.truncf %2 : vector<1x736xf32> to vector<1x736xbf16>
    %c0_1 = arith.constant 0 : index
    %c0_2 = arith.constant 0 : index
    %4 = vector.load %arg2[%c0_1, %c0_2] : memref<736x2944xbf16, #tpu.memory_space<vmem>>, vector<736x2944xbf16>
    %cst_3 = arith.constant dense<0.000000e+00> : vector<1x2944xf32>
    %5 = tpu.matmul %3, %4, %cst_3 {dimension_numbers = #tpu.dot_dimension_numbers<[1], [0], [0], [1], [0, 0, 1, 1], [], []>} : vector<1x736xbf16>, vector<736x2944xbf16>, vector<1x2944xf32> -> vector<1x2944xf32>
    %c0_4 = arith.constant 0 : index
    %c0_5 = arith.constant 0 : index
    %6 = vector.load %arg3[%c0_4, %c0_5] : memref<1x2944xf32, #tpu.memory_space<vmem>>, vector<1x2944xf32>
    %7 = arith.addf %5, %6 : vector<1x2944xf32>
    %c0_6 = arith.constant 0 : index
    %c0_7 = arith.constant 0 : index
    %8 = vector.load %arg4[%c0_6, %c0_7] : memref<1x2944xf32, #tpu.memory_space<vmem>>, vector<1x2944xf32>
    tpu.vector_store %arg4[%c0_6, %c0_7], %7 {strides = array<i32>} : memref<1x2944xf32, #tpu.memory_space<vmem>>, vector<1x2944xf32>,
    return
  }
  func.func @transform_0(%arg0: i32) -> (i32, i32) {
    %c0_i32 = arith.constant 0 : i32
    %c0_i32_0 = arith.constant 0 : i32
    %c0_i32_1 = arith.constant 0 : i32
    return %c0_i32, %c0_i32_0 : i32, i32
  }
  func.func @transform_1(%arg0: i32) -> (i32, i32) {
    %c0_i32 = arith.constant 0 : i32
    %c0_i32_0 = arith.constant 0 : i32
    return %c0_i32, %arg0 : i32, i32
  }
  func.func @transform_2(%arg0: i32) -> (i32, i32) {
    %c0_i32 = arith.constant 0 : i32
    %c0_i32_0 = arith.constant 0 : i32
    return %c0_i32, %arg0 : i32, i32
  }
  func.func @transform_3(%arg0: i32) -> (i32, i32) {
    %c0_i32 = arith.constant 0 : i32
    %c0_i32_0 = arith.constant 0 : i32
    return %c0_i32, %arg0 : i32, i32
  }
}

</mosaic_0001>

<llo_original>
// kernel: relu_conv2d_1x1.1
$region0: #{relu_conv2d_1x1.1}
  #allocation0 [shape = 'u32[]', space=smem, size = 0x4, offset = 0x4, fixed_abs, tag = 'smem constant byte address 0x4 - core index']
  #allocation1 [shape = 'u32[144,128]{1,0:T(1,128)}', space=vmem, size = 0x12000, scoped, tag = 'internal scratch']
  %s0 = inlined_call_operand.vmem [shape: f32[1,736], index: 0, kind: input, shape index: {}]
  %s1 = inlined_call_operand.hbm [shape: bf16[736,2944], index: 1, kind: input, shape index: {}]
  %s2 = inlined_call_operand.hbm [shape: f32[1,2944], index: 2, kind: input, shape index: {}]
  %s3 = inlined_call_operand.vmem [shape: f32[1,2944], index: 3, kind: output, shape index: {}]
  %s4 = sld [smem:[#allocation0]]
  $region30: #{relu_conv2d_1x1.1} parent=0
    _
  %s6 = ssub.s32 1, %s4
  %s7 = scalar_select 0, %s6, %s4
  $region1: #{relu_conv2d_1x1.1} parent=0
    #allocation2 [shape = 'u8[4333568]{0}', space=vmem, size = 0x422000, scoped, tag = 'input window, operand 1, single buffered']
    #allocation3 [shape = 's32[1]{0}', space=sflag, size = 0x4, scoped, tag = 'scoped memory for relu_conv2d_1x1.1']
    #allocation4 [shape = 'u8[11776]{0}', space=vmem, size = 0x3000, scoped, tag = 'input window, operand 2, single buffered']
    #allocation5 [shape = 's32[1]{0}', space=sflag, size = 0x4, scoped, tag = 'scoped memory for relu_conv2d_1x1.1']
    %8 = vsyncpa [#allocation3], 0
    %9 = vsyncpa [#allocation5], 0
    // Predicated region
    $region2: #{relu_conv2d_1x1.1} parent=1 // pred_check
      _
    $region3: #{relu_conv2d_1x1.1} parent=1 // pred_check_branch
      %11 = sbr.rel (0) target = $region5
    $region4: #{relu_conv2d_1x1.1} parent=1 // pred_region
      _
    $region5: #{relu_conv2d_1x1.1} parent=1 // pred_fallthru
      _
    // Predicated region
    $region6: #{relu_conv2d_1x1.1} parent=1 // pred_check
      _
    $region7: #{relu_conv2d_1x1.1} parent=1 // pred_check_branch
      %13 = sbr.rel (0) target = $region9
    $region8: #{relu_conv2d_1x1.1} parent=1 // pred_region
      %s15 = ssub.s32 135424, 135424
      %16 = vsyncadd [#allocation3], %s15
      %s17 = sshll.u32 [#allocation2], 4
      %s18 = int_to_ptr.vmem [resolvable:$true] %s17
      %23 = dma.hbm_to_vmem [thread:$0]  %s1, 135424, %s18, [#allocation3], 1472, 1472, 92
    $region9: #{relu_conv2d_1x1.1} parent=1 // pred_fallthru
      _
    // Predicated region
    $region10: #{relu_conv2d_1x1.1} parent=1 // pred_check
      _
    $region11: #{relu_conv2d_1x1.1} parent=1 // pred_check_branch
      %25 = sbr.rel (0) target = $region13
    $region12: #{relu_conv2d_1x1.1} parent=1 // pred_region
      %s27 = ssub.s32 368, 368
      %28 = vsyncadd [#allocation5], %s27
      %s30 = sshll.u32 [#allocation4], 4
      %s31 = int_to_ptr.vmem [resolvable:$true] %s30
      %33 = dma.hbm_to_vmem [thread:$0]  %s2, 368, %s31, [#allocation5]
    $region13: #{relu_conv2d_1x1.1} parent=1 // pred_fallthru
      _
    // Predicated region
    $region14: #{relu_conv2d_1x1.1} parent=1 // pred_check
      _
    $region15: #{relu_conv2d_1x1.1} parent=1 // pred_check_branch
      %35 = sbr.rel (0) target = $region17
    $region16: #{relu_conv2d_1x1.1} parent=1 // pred_region
      %36 = dma.done [#allocation3], 135424
    $region17: #{relu_conv2d_1x1.1} parent=1 // pred_fallthru
      _
    // Predicated region
    $region18: #{relu_conv2d_1x1.1} parent=1 // pred_check
      _
    $region19: #{relu_conv2d_1x1.1} parent=1 // pred_check_branch
      %38 = sbr.rel (0) target = $region21
    $region20: #{relu_conv2d_1x1.1} parent=1 // pred_region
      %39 = dma.done [#allocation5], 368
    $region21: #{relu_conv2d_1x1.1} parent=1 // pred_fallthru
      _
    %v41 = vld [vmem:[%s0] sm:$0x3f]
    %v42 = vmax.f32 %v41, 0.0
    %v44 = vlaneseq
    %v45 = vshrl.u32 %v44, 7
    %v46 = vsub.s32 0, %v45
    %v47 = vrot.slane %v42, %v46
    %v48 = vlaneseq
    %v49 = vshrl.u32 %v48, 7
    %v50 = vsub.s32 1, %v49
    %v51 = vrot.slane %v42, %v50
    %v52 = vlaneseq
    %v53 = vshrl.u32 %v52, 7
    %v54 = vsub.s32 2, %v53
    %v55 = vrot.slane %v42, %v54
    %v56 = vlaneseq
    %v57 = vshrl.u32 %v56, 7
    %v58 = vsub.s32 3, %v57
    %v59 = vrot.slane %v42, %v58
    %v60 = vlaneseq
    %v61 = vshrl.u32 %v60, 7
    %v62 = vsub.s32 4, %v61
    %v63 = vrot.slane %v42, %v62
    %v64 = vlaneseq
    %v65 = vshrl.u32 %v64, 7
    %v66 = vsub.s32 5, %v65
    %v67 = vrot.slane %v42, %v66
    %v74 = vpack.c.bf16 %v47, %v47
    %v75 = vpack.c.bf16 %v51, %v51
    %v76 = vpack.c.bf16 %v55, %v55
    %v77 = vpack.c.bf16 %v59, %v59
    %v78 = vpack.c.bf16 %v63, %v63
    %v79 = vpack.c.bf16 %v67, %v67
    %v80 = vld [vmem:[#allocation2] sm:$0xff]
    %v81 = vld [vmem:[#allocation2 + $0x8] sm:$0xff]
    %v82 = vld [vmem:[#allocation2 + $0x10] sm:$0xff]
    %v83 = vld [vmem:[#allocation2 + $0x18] sm:$0xff]
    %v84 = vld [vmem:[#allocation2 + $0x20] sm:$0xff]
    %v85 = vld [vmem:[#allocation2 + $0x28] sm:$0xff]
    %v86 = vld [vmem:[#allocation2 + $0x30] sm:$0xff]
    %v87 = vld [vmem:[#allocation2 + $0x38] sm:$0xff]
    %v88 = vld [vmem:[#allocation2 + $0x40] sm:$0xff]
    %v89 = vld [vmem:[#allocation2 + $0x48] sm:$0xff]
    %v90 = vld [vmem:[#allocation2 + $0x50] sm:$0xff]
    %v91 = vld [vmem:[#allocation2 + $0x58] sm:$0xf]
    %v92 = vld [vmem:[#allocation2 + $0x5c] sm:$0xff]
    %v93 = vld [vmem:[#allocation2 + $0x64] sm:$0xff]
    %v94 = vld [vmem:[#allocation2 + $0x6c] sm:$0xff]
    %v95 = vld [vmem:[#allocation2 + $0x74] sm:$0xff]
    %v96 = vld [vmem:[#allocation2 + $0x7c] sm:$0xff]
    %v97 = vld [vmem:[#allocation2 + $0x84] sm:$0xff]
    %v98 = vld [vmem:[#allocation2 + $0x8c] sm:$0xff]
    %v99 = vld [vmem:[#allocation2 + $0x94] sm:$0xff]
    %v100 = vld [vmem:[#allocation2 + $0x9c] sm:$0xff]
    %v101 = vld [vmem:[#allocation2 + $0xa4] sm:$0xff]
    %v102 = vld [vmem:[#allocation2 + $0xac] sm:$0xff]
    %v103 = vld [vmem:[#allocation2 + $0xb4] sm:$0xf]
    %v104 = vld [vmem:[#allocation2 + $0xb8] sm:$0xff]
    %v105 = vld [vmem:[#allocation2 + $0xc0] sm:$0xff]
    %v106 = vld [vmem:[#allocation2 + $0xc8] sm:$0xff]
    %v107 = vld [vmem:[#allocation2 + $0xd0] sm:$0xff]
    %v108 = vld [vmem:[#allocation2 + $0xd8] sm:$0xff]
    %v109 = vld [vmem:[#allocation2 + $0xe0] sm:$0xff]
    %v110 = vld [vmem:[#allocation2 + $0xe8] sm:$0xff]
    %v111 = vld [vmem:[#allocation2 + $0xf0] sm:$0xff]
    %v112 = vld [vmem:[#allocation2 + $0xf8] sm:$0xff]
    %v113 = vld [vmem:[#allocation2 + $0x100] sm:$0xff]
    %v114 = vld [vmem:[#allocation2 + $0x108] sm:$0xff]
    %v115 = vld [vmem:[#allocation2 + $0x110] sm:$0xf]
    %v116 = vld [vmem:[#allocation2 + $0x114] sm:$0xff]
    %v117 = vld [vmem:[#allocation2 + $0x11c] sm:$0xff]
    %v118 = vld [vmem:[#allocation2 + $0x124] sm:$0xff]
    %v119 = vld [vmem:[#allocation2 + $0x12c] sm:$0xff]
    %v120 = vld [vmem:[#allocation2 + $0x134] sm:$0xff]
    %v121 = vld [vmem:[#allocation2 + $0x13c] sm:$0xff]
    %v122 = vld [vmem:[#allocation2 + $0x144] sm:$0xff]
    %v123 = vld [vmem:[#allocation2 + $0x14c] sm:$0xff]
    %v124 = vld [vmem:[#allocation2 + $0x154] sm:$0xff]
    %v125 = vld [vmem:[#allocation2 + $0x15c] sm:$0xff]
    %v126 = vld [vmem:[#allocation2 + $0x164] sm:$0xff]
    %v127 = vld [vmem:[#allocation2 + $0x16c] sm:$0xf]
    %v128 = vld [vmem:[#allocation2 + $0x170] sm:$0xff]
    %v129 = vld [vmem:[#allocation2 + $0x178] sm:$0xff]
    %v130 = vld [vmem:[#allocation2 + $0x180] sm:$0xff]
    %v131 = vld [vmem:[#allocation2 + $0x188] sm:$0xff]
    %v132 = vld [vmem:[#allocation2 + $0x190] sm:$0xff]
    %v133 = vld [vmem:[#allocation2 + $0x198] sm:$0xff]
    %v134 = vld [vmem:[#allocation2 + $0x1a0] sm:$0xff]
    %v135 = vld [vmem:[#allocation2 + $0x1a8] sm:$0xff]
    %v136 = vld [vmem:[#allocation2 + $0x1b0] sm:$0xff]
    %v137 = vld [vmem:[#allocation2 + $0x1b8] sm:$0xff]
    %v138 = vld [vmem:[#allocation2 + $0x1c0] sm:$0xff]
    %v139 = vld [vmem:[#allocation2 + $0x1c8] sm:$0xf]
    %v140 = vld [vmem:[#allocation2 + $0x1cc] sm:$0xff]
    %v141 = vld [vmem:[#allocation2 + $0x1d4] sm:$0xff]
    %v142 = vld [vmem:[#allocation2 + $0x1dc] sm:$0xff]
    %v143 = vld [vmem:[#allocation2 + $0x1e4] sm:$0xff]
    %v144 = vld [vmem:[#allocation2 + $0x1ec] sm:$0xff]
    %v145 = vld [vmem:[#allocation2 + $0x1f4] sm:$0xff]
    %v146 = vld [vmem:[#allocation2 + $0x1fc] sm:$0xff]
    %v147 = vld [vmem:[#allocation2 + $0x204] sm:$0xff]
    %v148 = vld [vmem:[#allocation2 + $0x20c] sm:$0xff]
    %v149 = vld [vmem:[#allocation2 + $0x214] sm:$0xff]
    %v150 = vld [vmem:[#allocation2 + $0x21c] sm:$0xff]
    %v151 = vld [vmem:[#allocation2 + $0x224] sm:$0xf]
    %v152 = vld [vmem:[#allocation2 + $0x228] sm:$0xff]
    %v153 = vld [vmem:[#allocation2 + $0x230] sm:$0xff]
    %v154 = vld [vmem:[#allocation2 + $0x238] sm:$0xff]
    %v155 = vld [vmem:[#allocation2 + $0x240] sm:$0xff]
    %v156 = vld [vmem:[#allocation2 + $0x248] sm:$0xff]
    %v157 = vld [vmem:[#allocation2 + $0x250] sm:$0xff]
    %v158 = vld [vmem:[#allocation2 + $0x258] sm:$0xff]
    %v159 = vld [vmem:[#allocation2 + $0x260] sm:$0xff]
    %v160 = vld [vmem:[#allocation2 + $0x268] sm:$0xff]
    %v161 = vld [vmem:[#allocation2 + $0x270] sm:$0xff]
    %v162 = vld [vmem:[#allocation2 + $0x278] sm:$0xff]
    %v163 = vld [vmem:[#allocation2 + $0x280] sm:$0xf]
    %v164 = vld [vmem:[#allocation2 + $0x284] sm:$0xff]
    %v165 = vld [vmem:[#allocation2 + $0x28c] sm:$0xff]
    %v166 = vld [vmem:[#allocation2 + $0x294] sm:$0xff]
    %v167 = vld [vmem:[#allocation2 + $0x29c] sm:$0xff]
    %v168 = vld [vmem:[#allocation2 + $0x2a4] sm:$0xff]
    %v169 = vld [vmem:[#allocation2 + $0x2ac] sm:$0xff]
    %v170 = vld [vmem:[#allocation2 + $0x2b4] sm:$0xff]
    %v171 = vld [vmem:[#allocation2 + $0x2bc] sm:$0xff]
    %v172 = vld [vmem:[#allocation2 + $0x2c4] sm:$0xff]
    %v173 = vld [vmem:[#allocation2 + $0x2cc] sm:$0xff]
    %v174 = vld [vmem:[#allocation2 + $0x2d4] sm:$0xff]
    %v175 = vld [vmem:[#allocation2 + $0x2dc] sm:$0xf]
    %v176 = vld [vmem:[#allocation2 + $0x2e0] sm:$0xff]
    %v177 = vld [vmem:[#allocation2 + $0x2e8] sm:$0xff]
    %v178 = vld [vmem:[#allocation2 + $0x2f0] sm:$0xff]
    %v179 = vld [vmem:[#allocation2 + $0x2f8] sm:$0xff]
    %v180 = vld [vmem:[#allocation2 + $0x300] sm:$0xff]
    %v181 = vld [vmem:[#allocation2 + $0x308] sm:$0xff]
    %v182 = vld [vmem:[#allocation2 + $0x310] sm:$0xff]
    %v183 = vld [vmem:[#allocation2 + $0x318] sm:$0xff]
    %v184 = vld [vmem:[#allocation2 + $0x320] sm:$0xff]
    %v185 = vld [vmem:[#allocation2 + $0x328] sm:$0xff]
    %v186 = vld [vmem:[#allocation2 + $0x330] sm:$0xff]
    %v187 = vld [vmem:[#allocation2 + $0x338] sm:$0xf]
    %v188 = vld [vmem:[#allocation2 + $0x33c] sm:$0xff]
    %v189 = vld [vmem:[#allocation2 + $0x344] sm:$0xff]
    %v190 = vld [vmem:[#allocation2 + $0x34c] sm:$0xff]
    %v191 = vld [vmem:[#allocation2 + $0x354] sm:$0xff]
    %v192 = vld [vmem:[#allocation2 + $0x35c] sm:$0xff]
    %v193 = vld [vmem:[#allocation2 + $0x364] sm:$0xff]
    %v194 = vld [vmem:[#allocation2 + $0x36c] sm:$0xff]
    %v195 = vld [vmem:[#allocation2 + $0x374] sm:$0xff]
    %v196 = vld [vmem:[#allocation2 + $0x37c] sm:$0xff]
    %v197 = vld [vmem:[#allocation2 + $0x384] sm:$0xff]
    %v198 = vld [vmem:[#allocation2 + $0x38c] sm:$0xff]
    %v199 = vld [vmem:[#allocation2 + $0x394] sm:$0xf]
    %v200 = vld [vmem:[#allocation2 + $0x398] sm:$0xff]
    %v201 = vld [vmem:[#allocation2 + $0x3a0] sm:$0xff]
    %v202 = vld [vmem:[#allocation2 + $0x3a8] sm:$0xff]
    %v203 = vld [vmem:[#allocation2 + $0x3b0] sm:$0xff]
    %v204 = vld [vmem:[#allocation2 + $0x3b8] sm:$0xff]
    %v205 = vld [vmem:[#allocation2 + $0x3c0] sm:$0xff]
    %v206 = vld [vmem:[#allocation2 + $0x3c8] sm:$0xff]
    %v207 = vld [vmem:[#allocation2 + $0x3d0] sm:$0xff]
    %v208 = vld [vmem:[#allocation2 + $0x3d8] sm:$0xff]
    %v209 = vld [vmem:[#allocation2 + $0x3e0] sm:$0xff]
    %v210 = vld [vmem:[#allocation2 + $0x3e8] sm:$0xff]
    %v211 = vld [vmem:[#allocation2 + $0x3f0] sm:$0xf]
    %v212 = vld [vmem:[#allocation2 + $0x3f4] sm:$0xff]
    %v213 = vld [vmem:[#allocation2 + $0x3fc] sm:$0xff]
    %v214 = vld [vmem:[#allocation2 + $0x404] sm:$0xff]
    %v215 = vld [vmem:[#allocation2 + $0x40c] sm:$0xff]
    %v216 = vld [vmem:[#allocation2 + $0x414] sm:$0xff]
    %v217 = vld [vmem:[#allocation2 + $0x41c] sm:$0xff]
    %v218 = vld [vmem:[#allocation2 + $0x424] sm:$0xff]
    %v219 = vld [vmem:[#allocation2 + $0x42c] sm:$0xff]
    %v220 = vld [vmem:[#allocation2 + $0x434] sm:$0xff]
    %v221 = vld [vmem:[#allocation2 + $0x43c] sm:$0xff]
    %v222 = vld [vmem:[#allocation2 + $0x444] sm:$0xff]
    %v223 = vld [vmem:[#allocation2 + $0x44c] sm:$0xf]
    %v224 = vld [vmem:[#allocation2 + $0x450] sm:$0xff]
    %v225 = vld [vmem:[#allocation2 + $0x458] sm:$0xff]
    %v226 = vld [vmem:[#allocation2 + $0x460] sm:$0xff]
    %v227 = vld [vmem:[#allocation2 + $0x468] sm:$0xff]
    %v228 = vld [vmem:[#allocation2 + $0x470] sm:$0xff]
    %v229 = vld [vmem:[#allocation2 + $0x478] sm:$0xff]
    %v230 = vld [vmem:[#allocation2 + $0x480] sm:$0xff]
    %v231 = vld [vmem:[#allocation2 + $0x488] sm:$0xff]
    %v232 = vld [vmem:[#allocation2 + $0x490] sm:$0xff]
    %v233 = vld [vmem:[#allocation2 + $0x498] sm:$0xff]
    %v234 = vld [vmem:[#allocation2 + $0x4a0] sm:$0xff]
    %v235 = vld [vmem:[#allocation2 + $0x4a8] sm:$0xf]
    %v236 = vld [vmem:[#allocation2 + $0x4ac] sm:$0xff]
    %v237 = vld [vmem:[#allocation2 + $0x4b4] sm:$0xff]
    %v238 = vld [vmem:[#allocation2 + $0x4bc] sm:$0xff]
    %v239 = vld [vmem:[#allocation2 + $0x4c4] sm:$0xff]
    %v240 = vld [vmem:[#allocation2 + $0x4cc] sm:$0xff]
    %v241 = vld [vmem:[#allocation2 + $0x4d4] sm:$0xff]
    %v242 = vld [vmem:[#allocation2 + $0x4dc] sm:$0xff]
    %v243 = vld [vmem:[#allocation2 + $0x4e4] sm:$0xff]
    %v244 = vld [vmem:[#allocation2 + $0x4ec] sm:$0xff]
    %v245 = vld [vmem:[#allocation2 + $0x4f4] sm:$0xff]
    %v246 = vld [vmem:[#allocation2 + $0x4fc] sm:$0xff]
    %v247 = vld [vmem:[#allocation2 + $0x504] sm:$0xf]
    %v248 = vld [vmem:[#allocation2 + $0x508] sm:$0xff]
    %v249 = vld [vmem:[#allocation2 + $0x510] sm:$0xff]
    %v250 = vld [vmem:[#allocation2 + $0x518] sm:$0xff]
    %v251 = vld [vmem:[#allocation2 + $0x520] sm:$0xff]
    %v252 = vld [vmem:[#allocation2 + $0x528] sm:$0xff]
    %v253 = vld [vmem:[#allocation2 + $0x530] sm:$0xff]
    %v254 = vld [vmem:[#allocation2 + $0x538] sm:$0xff]
    %v255 = vld [vmem:[#allocation2 + $0x540] sm:$0xff]
    %v256 = vld [vmem:[#allocation2 + $0x548] sm:$0xff]
    %v257 = vld [vmem:[#allocation2 + $0x550] sm:$0xff]
    %v258 = vld [vmem:[#allocation2 + $0x558] sm:$0xff]
    %v259 = vld [vmem:[#allocation2 + $0x560] sm:$0xf]
    %v260 = vld [vmem:[#allocation2 + $0x564] sm:$0xff]
    %v261 = vld [vmem:[#allocation2 + $0x56c] sm:$0xff]
    %v262 = vld [vmem:[#allocation2 + $0x574] sm:$0xff]
    %v263 = vld [vmem:[#allocation2 + $0x57c] sm:$0xff]
    %v264 = vld [vmem:[#allocation2 + $0x584] sm:$0xff]
    %v265 = vld [vmem:[#allocation2 + $0x58c] sm:$0xff]
    %v266 = vld [vmem:[#allocation2 + $0x594] sm:$0xff]
    %v267 = vld [vmem:[#allocation2 + $0x59c] sm:$0xff]
    %v268 = vld [vmem:[#allocation2 + $0x5a4] sm:$0xff]
    %v269 = vld [vmem:[#allocation2 + $0x5ac] sm:$0xff]
    %v270 = vld [vmem:[#allocation2 + $0x5b4] sm:$0xff]
    %v271 = vld [vmem:[#allocation2 + $0x5bc] sm:$0xf]
    %v272 = vld [vmem:[#allocation2 + $0x5c0] sm:$0xff]
    %v273 = vld [vmem:[#allocation2 + $0x5c8] sm:$0xff]
    %v274 = vld [vmem:[#allocation2 + $0x5d0] sm:$0xff]
    %v275 = vld [vmem:[#allocation2 + $0x5d8] sm:$0xff]
    %v276 = vld [vmem:[#allocation2 + $0x5e0] sm:$0xff]
    %v277 = vld [vmem:[#allocation2 + $0x5e8] sm:$0xff]
    %v278 = vld [vmem:[#allocation2 + $0x5f0] sm:$0xff]
    %v279 = vld [vmem:[#allocation2 + $0x5f8] sm:$0xff]
    %v280 = vld [vmem:[#allocation2 + $0x600] sm:$0xff]
    %v281 = vld [vmem:[#allocation2 + $0x608] sm:$0xff]
    %v282 = vld [vmem:[#allocation2 + $0x610] sm:$0xff]
    %v283 = vld [vmem:[#allocation2 + $0x618] sm:$0xf]
    %v284 = vld [vmem:[#allocation2 + $0x61c] sm:$0xff]
    %v285 = vld [vmem:[#allocation2 + $0x624] sm:$0xff]
    %v286 = vld [vmem:[#allocation2 + $0x62c] sm:$0xff]
    %v287 = vld [vmem:[#allocation2 + $0x634] sm:$0xff]
    %v288 = vld [vmem:[#allocation2 + $0x63c] sm:$0xff]
    %v289 = vld [vmem:[#allocation2 + $0x644] sm:$0xff]
    %v290 = vld [vmem:[#allocation2 + $0x64c] sm:$0xff]
    %v291 = vld [vmem:[#allocation2 + $0x654] sm:$0xff]
    %v292 = vld [vmem:[#allocation2 + $0x65c] sm:$0xff]
    %v293 = vld [vmem:[#allocation2 + $0x664] sm:$0xff]
    %v294 = vld [vmem:[#allocation2 + $0x66c] sm:$0xff]
    %v295 = vld [vmem:[#allocation2 + $0x674] sm:$0xf]
    %v296 = vld [vmem:[#allocation2 + $0x678] sm:$0xff]
    %v297 = vld [vmem:[#allocation2 + $0x680] sm:$0xff]
    %v298 = vld [vmem:[#allocation2 + $0x688] sm:$0xff]
    %v299 = vld [vmem:[#allocation2 + $0x690] sm:$0xff]
    %v300 = vld [vmem:[#allocation2 + $0x698] sm:$0xff]
    %v301 = vld [vmem:[#allocation2 + $0x6a0] sm:$0xff]
    %v302 = vld [vmem:[#allocation2 + $0x6a8] sm:$0xff]
    %v303 = vld [vmem:[#allocation2 + $0x6b0] sm:$0xff]
    %v304 = vld [vmem:[#allocation2 + $0x6b8] sm:$0xff]
    %v305 = vld [vmem:[#allocation2 + $0x6c0] sm:$0xff]
    %v306 = vld [vmem:[#allocation2 + $0x6c8] sm:$0xff]
    %v307 = vld [vmem:[#allocation2 + $0x6d0] sm:$0xf]
    %v308 = vld [vmem:[#allocation2 + $0x6d4] sm:$0xff]
    %v309 = vld [vmem:[#allocation2 + $0x6dc] sm:$0xff]
    %v310 = vld [vmem:[#allocation2 + $0x6e4] sm:$0xff]
    %v311 = vld [vmem:[#allocation2 + $0x6ec] sm:$0xff]
    %v312 = vld [vmem:[#allocation2 + $0x6f4] sm:$0xff]
    %v313 = vld [vmem:[#allocation2 + $0x6fc] sm:$0xff]
    %v314 = vld [vmem:[#allocation2 + $0x704] sm:$0xff]
    %v315 = vld [vmem:[#allocation2 + $0x70c] sm:$0xff]
    %v316 = vld [vmem:[#allocation2 + $0x714] sm:$0xff]
    %v317 = vld [vmem:[#allocation2 + $0x71c] sm:$0xff]
    %v318 = vld [vmem:[#allocation2 + $0x724] sm:$0xff]
    %v319 = vld [vmem:[#allocation2 + $0x72c] sm:$0xf]
    %v320 = vld [vmem:[#allocation2 + $0x730] sm:$0xff]
    %v321 = vld [vmem:[#allocation2 + $0x738] sm:$0xff]
    %v322 = vld [vmem:[#allocation2 + $0x740] sm:$0xff]
    %v323 = vld [vmem:[#allocation2 + $0x748] sm:$0xff]
    %v324 = vld [vmem:[#allocation2 + $0x750] sm:$0xff]
    %v325 = vld [vmem:[#allocation2 + $0x758] sm:$0xff]
    %v326 = vld [vmem:[#allocation2 + $0x760] sm:$0xff]
    %v327 = vld [vmem:[#allocation2 + $0x768] sm:$0xff]
    %v328 = vld [vmem:[#allocation2 + $0x770] sm:$0xff]
    %v329 = vld [vmem:[#allocation2 + $0x778] sm:$0xff]
    %v330 = vld [vmem:[#allocation2 + $0x780] sm:$0xff]
    %v331 = vld [vmem:[#allocation2 + $0x788] sm:$0xf]
    %v332 = vld [vmem:[#allocation2 + $0x78c] sm:$0xff]
    %v333 = vld [vmem:[#allocation2 + $0x794] sm:$0xff]
    %v334 = vld [vmem:[#allocation2 + $0x79c] sm:$0xff]
    %v335 = vld [vmem:[#allocation2 + $0x7a4] sm:$0xff]
    %v336 = vld [vmem:[#allocation2 + $0x7ac] sm:$0xff]
    %v337 = vld [vmem:[#allocation2 + $0x7b4] sm:$0xff]
    %v338 = vld [vmem:[#allocation2 + $0x7bc] sm:$0xff]
    %v339 = vld [vmem:[#allocation2 + $0x7c4] sm:$0xff]
    %v340 = vld [vmem:[#allocation2 + $0x7cc] sm:$0xff]
    %v341 = vld [vmem:[#allocation2 + $0x7d4] sm:$0xff]
    %v342 = vld [vmem:[#allocation2 + $0x7dc] sm:$0xff]
    %v343 = vld [vmem:[#allocation2 + $0x7e4] sm:$0xf]
    %v344 = vld [vmem:[#allocation2 + $0x7e8] sm:$0xff]
    %v345 = vld [vmem:[#allocation2 + $0x7f0] sm:$0xff]
    %v346 = vld [vmem:[#allocation2 + $0x7f8] sm:$0xff]
    %v347 = vld [vmem:[#allocation2 + $0x800] sm:$0xff]
    %v348 = vld [vmem:[#allocation2 + $0x808] sm:$0xff]
    %v349 = vld [vmem:[#allocation2 + $0x810] sm:$0xff]
    %v350 = vld [vmem:[#allocation2 + $0x818] sm:$0xff]
    %v351 = vld [vmem:[#allocation2 + $0x820] sm:$0xff]
    %v352 = vld [vmem:[#allocation2 + $0x828] sm:$0xff]
    %v353 = vld [vmem:[#allocation2 + $0x830] sm:$0xff]
    %v354 = vld [vmem:[#allocation2 + $0x838] sm:$0xff]
    %v355 = vld [vmem:[#allocation2 + $0x840] sm:$0xf]
    %v356 = vld [vmem:[#allocation2 + $0x844] sm:$0xff]
    %v357 = vld [vmem:[#allocation2 + $0x84c] sm:$0xff]
    %v358 = vld [vmem:[#allocation2 + $0x854] sm:$0xff]
    %v359 = vld [vmem:[#allocation2 + $0x85c] sm:$0xff]
    %v360 = vld [vmem:[#allocation2 + $0x864] sm:$0xff]
    %v361 = vld [vmem:[#allocation2 + $0x86c] sm:$0xff]
    %v362 = vld [vmem:[#allocation2 + $0x874] sm:$0xff]
    %v363 = vld [vmem:[#allocation2 + $0x87c] sm:$0xff]
    %v364 = vld [vmem:[#allocation2 + $0x884] sm:$0xff]
    %v365 = vld [vmem:[#allocation2 + $0x88c] sm:$0xff]
    %v366 = vld [vmem:[#allocation2 + $0x894] sm:$0xff]
    %v367 = vld [vmem:[#allocation2 + $0x89c] sm:$0xf]
    %v368 = vld [vmem:[#allocation2 + $0x8a0] sm:$0xff]
    %v369 = vld [vmem:[#allocation2 + $0x8a8] sm:$0xff]
    %v370 = vld [vmem:[#allocation2 + $0x8b0] sm:$0xff]
    %v371 = vld [vmem:[#allocation2 + $0x8b8] sm:$0xff]
    %v372 = vld [vmem:[#allocation2 + $0x8c0] sm:$0xff]
    %v373 = vld [vmem:[#allocation2 + $0x8c8] sm:$0xff]
    %v374 = vld [vmem:[#allocation2 + $0x8d0] sm:$0xff]
    %v375 = vld [vmem:[#allocation2 + $0x8d8] sm:$0xff]
    %v376 = vld [vmem:[#allocation2 + $0x8e0] sm:$0xff]
    %v377 = vld [vmem:[#allocation2 + $0x8e8] sm:$0xff]
    %v378 = vld [vmem:[#allocation2 + $0x8f0] sm:$0xff]
    %v379 = vld [vmem:[#allocation2 + $0x8f8] sm:$0xf]
    %v380 = vld [vmem:[#allocation2 + $0x8fc] sm:$0xff]
    %v381 = vld [vmem:[#allocation2 + $0x904] sm:$0xff]
    %v382 = vld [vmem:[#allocation2 + $0x90c] sm:$0xff]
    %v383 = vld [vmem:[#allocation2 + $0x914] sm:$0xff]
    %v384 = vld [vmem:[#allocation2 + $0x91c] sm:$0xff]
    %v385 = vld [vmem:[#allocation2 + $0x924] sm:$0xff]
    %v386 = vld [vmem:[#allocation2 + $0x92c] sm:$0xff]
    %v387 = vld [vmem:[#allocation2 + $0x934] sm:$0xff]
    %v388 = vld [vmem:[#allocation2 + $0x93c] sm:$0xff]
    %v389 = vld [vmem:[#allocation2 + $0x944] sm:$0xff]
    %v390 = vld [vmem:[#allocation2 + $0x94c] sm:$0xff]
    %v391 = vld [vmem:[#allocation2 + $0x954] sm:$0xf]
    %v392 = vld [vmem:[#allocation2 + $0x958] sm:$0xff]
    %v393 = vld [vmem:[#allocation2 + $0x960] sm:$0xff]
    %v394 = vld [vmem:[#allocation2 + $0x968] sm:$0xff]
    %v395 = vld [vmem:[#allocation2 + $0x970] sm:$0xff]
    %v396 = vld [vmem:[#allocation2 + $0x978] sm:$0xff]
    %v397 = vld [vmem:[#allocation2 + $0x980] sm:$0xff]
    %v398 = vld [vmem:[#allocation2 + $0x988] sm:$0xff]
    %v399 = vld [vmem:[#allocation2 + $0x990] sm:$0xff]
    %v400 = vld [vmem:[#allocation2 + $0x998] sm:$0xff]
    %v401 = vld [vmem:[#allocation2 + $0x9a0] sm:$0xff]
    %v402 = vld [vmem:[#allocation2 + $0x9a8] sm:$0xff]
    %v403 = vld [vmem:[#allocation2 + $0x9b0] sm:$0xf]
    %v404 = vld [vmem:[#allocation2 + $0x9b4] sm:$0xff]
    %v405 = vld [vmem:[#allocation2 + $0x9bc] sm:$0xff]
    %v406 = vld [vmem:[#allocation2 + $0x9c4] sm:$0xff]
    %v407 = vld [vmem:[#allocation2 + $0x9cc] sm:$0xff]
    %v408 = vld [vmem:[#allocation2 + $0x9d4] sm:$0xff]
    %v409 = vld [vmem:[#allocation2 + $0x9dc] sm:$0xff]
    %v410 = vld [vmem:[#allocation2 + $0x9e4] sm:$0xff]
    %v411 = vld [vmem:[#allocation2 + $0x9ec] sm:$0xff]
    %v412 = vld [vmem:[#allocation2 + $0x9f4] sm:$0xff]
    %v413 = vld [vmem:[#allocation2 + $0x9fc] sm:$0xff]
    %v414 = vld [vmem:[#allocation2 + $0xa04] sm:$0xff]
    %v415 = vld [vmem:[#allocation2 + $0xa0c] sm:$0xf]
    %v416 = vld [vmem:[#allocation2 + $0xa10] sm:$0xff]
    %v417 = vld [vmem:[#allocation2 + $0xa18] sm:$0xff]
    %v418 = vld [vmem:[#allocation2 + $0xa20] sm:$0xff]
    %v419 = vld [vmem:[#allocation2 + $0xa28] sm:$0xff]
    %v420 = vld [vmem:[#allocation2 + $0xa30] sm:$0xff]
    %v421 = vld [vmem:[#allocation2 + $0xa38] sm:$0xff]
    %v422 = vld [vmem:[#allocation2 + $0xa40] sm:$0xff]
    %v423 = vld [vmem:[#allocation2 + $0xa48] sm:$0xff]
    %v424 = vld [vmem:[#allocation2 + $0xa50] sm:$0xff]
    %v425 = vld [vmem:[#allocation2 + $0xa58] sm:$0xff]
    %v426 = vld [vmem:[#allocation2 + $0xa60] sm:$0xff]
    %v427 = vld [vmem:[#allocation2 + $0xa68] sm:$0xf]
    %v428 = vld [vmem:[#allocation2 + $0xa6c] sm:$0xff]
    %v429 = vld [vmem:[#allocation2 + $0xa74] sm:$0xff]
    %v430 = vld [vmem:[#allocation2 + $0xa7c] sm:$0xff]
    %v431 = vld [vmem:[#allocation2 + $0xa84] sm:$0xff]
    %v432 = vld [vmem:[#allocation2 + $0xa8c] sm:$0xff]
    %v433 = vld [vmem:[#allocation2 + $0xa94] sm:$0xff]
    %v434 = vld [vmem:[#allocation2 + $0xa9c] sm:$0xff]
    %v435 = vld [vmem:[#allocation2 + $0xaa4] sm:$0xff]
    %v436 = vld [vmem:[#allocation2 + $0xaac] sm:$0xff]
    %v437 = vld [vmem:[#allocation2 + $0xab4] sm:$0xff]
    %v438 = vld [vmem:[#allocation2 + $0xabc] sm:$0xff]
    %v439 = vld [vmem:[#allocation2 + $0xac4] sm:$0xf]
    %v440 = vld [vmem:[#allocation2 + $0xac8] sm:$0xff]
    %v441 = vld [vmem:[#allocation2 + $0xad0] sm:$0xff]
    %v442 = vld [vmem:[#allocation2 + $0xad8] sm:$0xff]
    %v443 = vld [vmem:[#allocation2 + $0xae0] sm:$0xff]
    %v444 = vld [vmem:[#allocation2 + $0xae8] sm:$0xff]
    %v445 = vld [vmem:[#allocation2 + $0xaf0] sm:$0xff]
    %v446 = vld [vmem:[#allocation2 + $0xaf8] sm:$0xff]
    %v447 = vld [vmem:[#allocation2 + $0xb00] sm:$0xff]
    %v448 = vld [vmem:[#allocation2 + $0xb08] sm:$0xff]
    %v449 = vld [vmem:[#allocation2 + $0xb10] sm:$0xff]
    %v450 = vld [vmem:[#allocation2 + $0xb18] sm:$0xff]
    %v451 = vld [vmem:[#allocation2 + $0xb20] sm:$0xf]
    %v452 = vld [vmem:[#allocation2 + $0xb24] sm:$0xff]
    %v453 = vld [vmem:[#allocation2 + $0xb2c] sm:$0xff]
    %v454 = vld [vmem:[#allocation2 + $0xb34] sm:$0xff]
    %v455 = vld [vmem:[#allocation2 + $0xb3c] sm:$0xff]
    %v456 = vld [vmem:[#allocation2 + $0xb44] sm:$0xff]
    %v457 = vld [vmem:[#allocation2 + $0xb4c] sm:$0xff]
    %v458 = vld [vmem:[#allocation2 + $0xb54] sm:$0xff]
    %v459 = vld [vmem:[#allocation2 + $0xb5c] sm:$0xff]
    %v460 = vld [vmem:[#allocation2 + $0xb64] sm:$0xff]
    %v461 = vld [vmem:[#allocation2 + $0xb6c] sm:$0xff]
    %v462 = vld [vmem:[#allocation2 + $0xb74] sm:$0xff]
    %v463 = vld [vmem:[#allocation2 + $0xb7c] sm:$0xf]
    %v464 = vld [vmem:[#allocation2 + $0xb80] sm:$0xff]
    %v465 = vld [vmem:[#allocation2 + $0xb88] sm:$0xff]
    %v466 = vld [vmem:[#allocation2 + $0xb90] sm:$0xff]
    %v467 = vld [vmem:[#allocation2 + $0xb98] sm:$0xff]
    %v468 = vld [vmem:[#allocation2 + $0xba0] sm:$0xff]
    %v469 = vld [vmem:[#allocation2 + $0xba8] sm:$0xff]
    %v470 = vld [vmem:[#allocation2 + $0xbb0] sm:$0xff]
    %v471 = vld [vmem:[#allocation2 + $0xbb8] sm:$0xff]
    %v472 = vld [vmem:[#allocation2 + $0xbc0] sm:$0xff]
    %v473 = vld [vmem:[#allocation2 + $0xbc8] sm:$0xff]
    %v474 = vld [vmem:[#allocation2 + $0xbd0] sm:$0xff]
    %v475 = vld [vmem:[#allocation2 + $0xbd8] sm:$0xf]
    %v476 = vld [vmem:[#allocation2 + $0xbdc] sm:$0xff]
    %v477 = vld [vmem:[#allocation2 + $0xbe4] sm:$0xff]
    %v478 = vld [vmem:[#allocation2 + $0xbec] sm:$0xff]
    %v479 = vld [vmem:[#allocation2 + $0xbf4] sm:$0xff]
    %v480 = vld [vmem:[#allocation2 + $0xbfc] sm:$0xff]
    %v481 = vld [vmem:[#allocation2 + $0xc04] sm:$0xff]
    %v482 = vld [vmem:[#allocation2 + $0xc0c] sm:$0xff]
    %v483 = vld [vmem:[#allocation2 + $0xc14] sm:$0xff]
    %v484 = vld [vmem:[#allocation2 + $0xc1c] sm:$0xff]
    %v485 = vld [vmem:[#allocation2 + $0xc24] sm:$0xff]
    %v486 = vld [vmem:[#allocation2 + $0xc2c] sm:$0xff]
    %v487 = vld [vmem:[#allocation2 + $0xc34] sm:$0xf]
    %v488 = vld [vmem:[#allocation2 + $0xc38] sm:$0xff]
    %v489 = vld [vmem:[#allocation2 + $0xc40] sm:$0xff]
    %v490 = vld [vmem:[#allocation2 + $0xc48] sm:$0xff]
    %v491 = vld [vmem:[#allocation2 + $0xc50] sm:$0xff]
    %v492 = vld [vmem:[#allocation2 + $0xc58] sm:$0xff]
    %v493 = vld [vmem:[#allocation2 + $0xc60] sm:$0xff]
    %v494 = vld [vmem:[#allocation2 + $0xc68] sm:$0xff]
    %v495 = vld [vmem:[#allocation2 + $0xc70] sm:$0xff]
    %v496 = vld [vmem:[#allocation2 + $0xc78] sm:$0xff]
    %v497 = vld [vmem:[#allocation2 + $0xc80] sm:$0xff]
    %v498 = vld [vmem:[#allocation2 + $0xc88] sm:$0xff]
    %v499 = vld [vmem:[#allocation2 + $0xc90] sm:$0xf]
    %v500 = vld [vmem:[#allocation2 + $0xc94] sm:$0xff]
    %v501 = vld [vmem:[#allocation2 + $0xc9c] sm:$0xff]
    %v502 = vld [vmem:[#allocation2 + $0xca4] sm:$0xff]
    %v503 = vld [vmem:[#allocation2 + $0xcac] sm:$0xff]
    %v504 = vld [vmem:[#allocation2 + $0xcb4] sm:$0xff]
    %v505 = vld [vmem:[#allocation2 + $0xcbc] sm:$0xff]
    %v506 = vld [vmem:[#allocation2 + $0xcc4] sm:$0xff]
    %v507 = vld [vmem:[#allocation2 + $0xccc] sm:$0xff]
    %v508 = vld [vmem:[#allocation2 + $0xcd4] sm:$0xff]
    %v509 = vld [vmem:[#allocation2 + $0xcdc] sm:$0xff]
    %v510 = vld [vmem:[#allocation2 + $0xce4] sm:$0xff]
    %v511 = vld [vmem:[#allocation2 + $0xcec] sm:$0xf]
    %v512 = vld [vmem:[#allocation2 + $0xcf0] sm:$0xff]
    %v513 = vld [vmem:[#allocation2 + $0xcf8] sm:$0xff]
    %v514 = vld [vmem:[#allocation2 + $0xd00] sm:$0xff]
    %v515 = vld [vmem:[#allocation2 + $0xd08] sm:$0xff]
    %v516 = vld [vmem:[#allocation2 + $0xd10] sm:$0xff]
    %v517 = vld [vmem:[#allocation2 + $0xd18] sm:$0xff]
    %v518 = vld [vmem:[#allocation2 + $0xd20] sm:$0xff]
    %v519 = vld [vmem:[#allocation2 + $0xd28] sm:$0xff]
    %v520 = vld [vmem:[#allocation2 + $0xd30] sm:$0xff]
    %v521 = vld [vmem:[#allocation2 + $0xd38] sm:$0xff]
    %v522 = vld [vmem:[#allocation2 + $0xd40] sm:$0xff]
    %v523 = vld [vmem:[#allocation2 + $0xd48] sm:$0xf]
    %v524 = vld [vmem:[#allocation2 + $0xd4c] sm:$0xff]
    %v525 = vld [vmem:[#allocation2 + $0xd54] sm:$0xff]
    %v526 = vld [vmem:[#allocation2 + $0xd5c] sm:$0xff]
    %v527 = vld [vmem:[#allocation2 + $0xd64] sm:$0xff]
    %v528 = vld [vmem:[#allocation2 + $0xd6c] sm:$0xff]
    %v529 = vld [vmem:[#allocation2 + $0xd74] sm:$0xff]
    %v530 = vld [vmem:[#allocation2 + $0xd7c] sm:$0xff]
    %v531 = vld [vmem:[#allocation2 + $0xd84] sm:$0xff]
    %v532 = vld [vmem:[#allocation2 + $0xd8c] sm:$0xff]
    %v533 = vld [vmem:[#allocation2 + $0xd94] sm:$0xff]
    %v534 = vld [vmem:[#allocation2 + $0xd9c] sm:$0xff]
    %v535 = vld [vmem:[#allocation2 + $0xda4] sm:$0xf]
    %v536 = vld [vmem:[#allocation2 + $0xda8] sm:$0xff]
    %v537 = vld [vmem:[#allocation2 + $0xdb0] sm:$0xff]
    %v538 = vld [vmem:[#allocation2 + $0xdb8] sm:$0xff]
    %v539 = vld [vmem:[#allocation2 + $0xdc0] sm:$0xff]
    %v540 = vld [vmem:[#allocation2 + $0xdc8] sm:$0xff]
    %v541 = vld [vmem:[#allocation2 + $0xdd0] sm:$0xff]
    %v542 = vld [vmem:[#allocation2 + $0xdd8] sm:$0xff]
    %v543 = vld [vmem:[#allocation2 + $0xde0] sm:$0xff]
    %v544 = vld [vmem:[#allocation2 + $0xde8] sm:$0xff]
    %v545 = vld [vmem:[#allocation2 + $0xdf0] sm:$0xff]
    %v546 = vld [vmem:[#allocation2 + $0xdf8] sm:$0xff]
    %v547 = vld [vmem:[#allocation2 + $0xe00] sm:$0xf]
    %v548 = vld [vmem:[#allocation2 + $0xe04] sm:$0xff]
    %v549 = vld [vmem:[#allocation2 + $0xe0c] sm:$0xff]
    %v550 = vld [vmem:[#allocation2 + $0xe14] sm:$0xff]
    %v551 = vld [vmem:[#allocation2 + $0xe1c] sm:$0xff]
    %v552 = vld [vmem:[#allocation2 + $0xe24] sm:$0xff]
    %v553 = vld [vmem:[#allocation2 + $0xe2c] sm:$0xff]
    %v554 = vld [vmem:[#allocation2 + $0xe34] sm:$0xff]
    %v555 = vld [vmem:[#allocation2 + $0xe3c] sm:$0xff]
    %v556 = vld [vmem:[#allocation2 + $0xe44] sm:$0xff]
    %v557 = vld [vmem:[#allocation2 + $0xe4c] sm:$0xff]
    %v558 = vld [vmem:[#allocation2 + $0xe54] sm:$0xff]
    %v559 = vld [vmem:[#allocation2 + $0xe5c] sm:$0xf]
    %v560 = vld [vmem:[#allocation2 + $0xe60] sm:$0xff]
    %v561 = vld [vmem:[#allocation2 + $0xe68] sm:$0xff]
    %v562 = vld [vmem:[#allocation2 + $0xe70] sm:$0xff]
    %v563 = vld [vmem:[#allocation2 + $0xe78] sm:$0xff]
    %v564 = vld [vmem:[#allocation2 + $0xe80] sm:$0xff]
    %v565 = vld [vmem:[#allocation2 + $0xe88] sm:$0xff]
    %v566 = vld [vmem:[#allocation2 + $0xe90] sm:$0xff]
    %v567 = vld [vmem:[#allocation2 + $0xe98] sm:$0xff]
    %v568 = vld [vmem:[#allocation2 + $0xea0] sm:$0xff]
    %v569 = vld [vmem:[#allocation2 + $0xea8] sm:$0xff]
    %v570 = vld [vmem:[#allocation2 + $0xeb0] sm:$0xff]
    %v571 = vld [vmem:[#allocation2 + $0xeb8] sm:$0xf]
    %v572 = vld [vmem:[#allocation2 + $0xebc] sm:$0xff]
    %v573 = vld [vmem:[#allocation2 + $0xec4] sm:$0xff]
    %v574 = vld [vmem:[#allocation2 + $0xecc] sm:$0xff]
    %v575 = vld [vmem:[#allocation2 + $0xed4] sm:$0xff]
    %v576 = vld [vmem:[#allocation2 + $0xedc] sm:$0xff]
    %v577 = vld [vmem:[#allocation2 + $0xee4] sm:$0xff]
    %v578 = vld [vmem:[#allocation2 + $0xeec] sm:$0xff]
    %v579 = vld [vmem:[#allocation2 + $0xef4] sm:$0xff]
    %v580 = vld [vmem:[#allocation2 + $0xefc] sm:$0xff]
    %v581 = vld [vmem:[#allocation2 + $0xf04] sm:$0xff]
    %v582 = vld [vmem:[#allocation2 + $0xf0c] sm:$0xff]
    %v583 = vld [vmem:[#allocation2 + $0xf14] sm:$0xf]
    %v584 = vld [vmem:[#allocation2 + $0xf18] sm:$0xff]
    %v585 = vld [vmem:[#allocation2 + $0xf20] sm:$0xff]
    %v586 = vld [vmem:[#allocation2 + $0xf28] sm:$0xff]
    %v587 = vld [vmem:[#allocation2 + $0xf30] sm:$0xff]
    %v588 = vld [vmem:[#allocation2 + $0xf38] sm:$0xff]
    %v589 = vld [vmem:[#allocation2 + $0xf40] sm:$0xff]
    %v590 = vld [vmem:[#allocation2 + $0xf48] sm:$0xff]
    %v591 = vld [vmem:[#allocation2 + $0xf50] sm:$0xff]
    %v592 = vld [vmem:[#allocation2 + $0xf58] sm:$0xff]
    %v593 = vld [vmem:[#allocation2 + $0xf60] sm:$0xff]
    %v594 = vld [vmem:[#allocation2 + $0xf68] sm:$0xff]
    %v595 = vld [vmem:[#allocation2 + $0xf70] sm:$0xf]
    %v596 = vld [vmem:[#allocation2 + $0xf74] sm:$0xff]
    %v597 = vld [vmem:[#allocation2 + $0xf7c] sm:$0xff]
    %v598 = vld [vmem:[#allocation2 + $0xf84] sm:$0xff]
    %v599 = vld [vmem:[#allocation2 + $0xf8c] sm:$0xff]
    %v600 = vld [vmem:[#allocation2 + $0xf94] sm:$0xff]
    %v601 = vld [vmem:[#allocation2 + $0xf9c] sm:$0xff]
    %v602 = vld [vmem:[#allocation2 + $0xfa4] sm:$0xff]
    %v603 = vld [vmem:[#allocation2 + $0xfac] sm:$0xff]
    %v604 = vld [vmem:[#allocation2 + $0xfb4] sm:$0xff]
    %v605 = vld [vmem:[#allocation2 + $0xfbc] sm:$0xff]
    %v606 = vld [vmem:[#allocation2 + $0xfc4] sm:$0xff]
    %v607 = vld [vmem:[#allocation2 + $0xfcc] sm:$0xf]
    %v608 = vld [vmem:[#allocation2 + $0xfd0] sm:$0xff]
    %v609 = vld [vmem:[#allocation2 + $0xfd8] sm:$0xff]
    %v610 = vld [vmem:[#allocation2 + $0xfe0] sm:$0xff]
    %v611 = vld [vmem:[#allocation2 + $0xfe8] sm:$0xff]
    %v612 = vld [vmem:[#allocation2 + $0xff0] sm:$0xff]
    %v613 = vld [vmem:[#allocation2 + $0xff8] sm:$0xff]
    %v614 = vld [vmem:[#allocation2 + $0x1000] sm:$0xff]
    %v615 = vld [vmem:[#allocation2 + $0x1008] sm:$0xff]
    %v616 = vld [vmem:[#allocation2 + $0x1010] sm:$0xff]
    %v617 = vld [vmem:[#allocation2 + $0x1018] sm:$0xff]
    %v618 = vld [vmem:[#allocation2 + $0x1020] sm:$0xff]
    %v619 = vld [vmem:[#allocation2 + $0x1028] sm:$0xf]
    %v620 = vld [vmem:[#allocation2 + $0x102c] sm:$0xff]
    %v621 = vld [vmem:[#allocation2 + $0x1034] sm:$0xff]
    %v622 = vld [vmem:[#allocation2 + $0x103c] sm:$0xff]
    %v623 = vld [vmem:[#allocation2 + $0x1044] sm:$0xff]
    %v624 = vld [vmem:[#allocation2 + $0x104c] sm:$0xff]
    %v625 = vld [vmem:[#allocation2 + $0x1054] sm:$0xff]
    %v626 = vld [vmem:[#allocation2 + $0x105c] sm:$0xff]
    %v627 = vld [vmem:[#allocation2 + $0x1064] sm:$0xff]
    %v628 = vld [vmem:[#allocation2 + $0x106c] sm:$0xff]
    %v629 = vld [vmem:[#allocation2 + $0x1074] sm:$0xff]
    %v630 = vld [vmem:[#allocation2 + $0x107c] sm:$0xff]
    %v631 = vld [vmem:[#allocation2 + $0x1084] sm:$0xf]
    %v632 = vld [vmem:[#allocation2 + $0x1088] sm:$0xff]
    %v633 = vld [vmem:[#allocation2 + $0x1090] sm:$0xff]
    %v634 = vld [vmem:[#allocation2 + $0x1098] sm:$0xff]
    %v635 = vld [vmem:[#allocation2 + $0x10a0] sm:$0xff]
    %v636 = vld [vmem:[#allocation2 + $0x10a8] sm:$0xff]
    %v637 = vld [vmem:[#allocation2 + $0x10b0] sm:$0xff]
    %v638 = vld [vmem:[#allocation2 + $0x10b8] sm:$0xff]
    %v639 = vld [vmem:[#allocation2 + $0x10c0] sm:$0xff]
    %v640 = vld [vmem:[#allocation2 + $0x10c8] sm:$0xff]
    %v641 = vld [vmem:[#allocation2 + $0x10d0] sm:$0xff]
    %v642 = vld [vmem:[#allocation2 + $0x10d8] sm:$0xff]
    %v643 = vld [vmem:[#allocation2 + $0x10e0] sm:$0xf]
    %v644 = vld [vmem:[#allocation2 + $0x10e4] sm:$0xff]
    %v645 = vld [vmem:[#allocation2 + $0x10ec] sm:$0xff]
    %v646 = vld [vmem:[#allocation2 + $0x10f4] sm:$0xff]
    %v647 = vld [vmem:[#allocation2 + $0x10fc] sm:$0xff]
    %v648 = vld [vmem:[#allocation2 + $0x1104] sm:$0xff]
    %v649 = vld [vmem:[#allocation2 + $0x110c] sm:$0xff]
    %v650 = vld [vmem:[#allocation2 + $0x1114] sm:$0xff]
    %v651 = vld [vmem:[#allocation2 + $0x111c] sm:$0xff]
    %v652 = vld [vmem:[#allocation2 + $0x1124] sm:$0xff]
    %v653 = vld [vmem:[#allocation2 + $0x112c] sm:$0xff]
    %v654 = vld [vmem:[#allocation2 + $0x1134] sm:$0xff]
    %v655 = vld [vmem:[#allocation2 + $0x113c] sm:$0xf]
    %v656 = vld [vmem:[#allocation2 + $0x1140] sm:$0xff]
    %v657 = vld [vmem:[#allocation2 + $0x1148] sm:$0xff]
    %v658 = vld [vmem:[#allocation2 + $0x1150] sm:$0xff]
    %v659 = vld [vmem:[#allocation2 + $0x1158] sm:$0xff]
    %v660 = vld [vmem:[#allocation2 + $0x1160] sm:$0xff]
    %v661 = vld [vmem:[#allocation2 + $0x1168] sm:$0xff]
    %v662 = vld [vmem:[#allocation2 + $0x1170] sm:$0xff]
    %v663 = vld [vmem:[#allocation2 + $0x1178] sm:$0xff]
    %v664 = vld [vmem:[#allocation2 + $0x1180] sm:$0xff]
    %v665 = vld [vmem:[#allocation2 + $0x1188] sm:$0xff]
    %v666 = vld [vmem:[#allocation2 + $0x1190] sm:$0xff]
    %v667 = vld [vmem:[#allocation2 + $0x1198] sm:$0xf]
    %v668 = vld [vmem:[#allocation2 + $0x119c] sm:$0xff]
    %v669 = vld [vmem:[#allocation2 + $0x11a4] sm:$0xff]
    %v670 = vld [vmem:[#allocation2 + $0x11ac] sm:$0xff]
    %v671 = vld [vmem:[#allocation2 + $0x11b4] sm:$0xff]
    %v672 = vld [vmem:[#allocation2 + $0x11bc] sm:$0xff]
    %v673 = vld [vmem:[#allocation2 + $0x11c4] sm:$0xff]
    %v674 = vld [vmem:[#allocation2 + $0x11cc] sm:$0xff]
    %v675 = vld [vmem:[#allocation2 + $0x11d4] sm:$0xff]
    %v676 = vld [vmem:[#allocation2 + $0x11dc] sm:$0xff]
    %v677 = vld [vmem:[#allocation2 + $0x11e4] sm:$0xff]
    %v678 = vld [vmem:[#allocation2 + $0x11ec] sm:$0xff]
    %v679 = vld [vmem:[#allocation2 + $0x11f4] sm:$0xf]
    %v680 = vld [vmem:[#allocation2 + $0x11f8] sm:$0xff]
    %v681 = vld [vmem:[#allocation2 + $0x1200] sm:$0xff]
    %v682 = vld [vmem:[#allocation2 + $0x1208] sm:$0xff]
    %v683 = vld [vmem:[#allocation2 + $0x1210] sm:$0xff]
    %v684 = vld [vmem:[#allocation2 + $0x1218] sm:$0xff]
    %v685 = vld [vmem:[#allocation2 + $0x1220] sm:$0xff]
    %v686 = vld [vmem:[#allocation2 + $0x1228] sm:$0xff]
    %v687 = vld [vmem:[#allocation2 + $0x1230] sm:$0xff]
    %v688 = vld [vmem:[#allocation2 + $0x1238] sm:$0xff]
    %v689 = vld [vmem:[#allocation2 + $0x1240] sm:$0xff]
    %v690 = vld [vmem:[#allocation2 + $0x1248] sm:$0xff]
    %v691 = vld [vmem:[#allocation2 + $0x1250] sm:$0xf]
    %v692 = vld [vmem:[#allocation2 + $0x1254] sm:$0xff]
    %v693 = vld [vmem:[#allocation2 + $0x125c] sm:$0xff]
    %v694 = vld [vmem:[#allocation2 + $0x1264] sm:$0xff]
    %v695 = vld [vmem:[#allocation2 + $0x126c] sm:$0xff]
    %v696 = vld [vmem:[#allocation2 + $0x1274] sm:$0xff]
    %v697 = vld [vmem:[#allocation2 + $0x127c] sm:$0xff]
    %v698 = vld [vmem:[#allocation2 + $0x1284] sm:$0xff]
    %v699 = vld [vmem:[#allocation2 + $0x128c] sm:$0xff]
    %v700 = vld [vmem:[#allocation2 + $0x1294] sm:$0xff]
    %v701 = vld [vmem:[#allocation2 + $0x129c] sm:$0xff]
    %v702 = vld [vmem:[#allocation2 + $0x12a4] sm:$0xff]
    %v703 = vld [vmem:[#allocation2 + $0x12ac] sm:$0xf]
    %v704 = vld [vmem:[#allocation2 + $0x12b0] sm:$0xff]
    %v705 = vld [vmem:[#allocation2 + $0x12b8] sm:$0xff]
    %v706 = vld [vmem:[#allocation2 + $0x12c0] sm:$0xff]
    %v707 = vld [vmem:[#allocation2 + $0x12c8] sm:$0xff]
    %v708 = vld [vmem:[#allocation2 + $0x12d0] sm:$0xff]
    %v709 = vld [vmem:[#allocation2 + $0x12d8] sm:$0xff]
    %v710 = vld [vmem:[#allocation2 + $0x12e0] sm:$0xff]
    %v711 = vld [vmem:[#allocation2 + $0x12e8] sm:$0xff]
    %v712 = vld [vmem:[#allocation2 + $0x12f0] sm:$0xff]
    %v713 = vld [vmem:[#allocation2 + $0x12f8] sm:$0xff]
    %v714 = vld [vmem:[#allocation2 + $0x1300] sm:$0xff]
    %v715 = vld [vmem:[#allocation2 + $0x1308] sm:$0xf]
    %v716 = vld [vmem:[#allocation2 + $0x130c] sm:$0xff]
    %v717 = vld [vmem:[#allocation2 + $0x1314] sm:$0xff]
    %v718 = vld [vmem:[#allocation2 + $0x131c] sm:$0xff]
    %v719 = vld [vmem:[#allocation2 + $0x1324] sm:$0xff]
    %v720 = vld [vmem:[#allocation2 + $0x132c] sm:$0xff]
    %v721 = vld [vmem:[#allocation2 + $0x1334] sm:$0xff]
    %v722 = vld [vmem:[#allocation2 + $0x133c] sm:$0xff]
    %v723 = vld [vmem:[#allocation2 + $0x1344] sm:$0xff]
    %v724 = vld [vmem:[#allocation2 + $0x134c] sm:$0xff]
    %v725 = vld [vmem:[#allocation2 + $0x1354] sm:$0xff]
    %v726 = vld [vmem:[#allocation2 + $0x135c] sm:$0xff]
    %v727 = vld [vmem:[#allocation2 + $0x1364] sm:$0xf]
    %v728 = vld [vmem:[#allocation2 + $0x1368] sm:$0xff]
    %v729 = vld [vmem:[#allocation2 + $0x1370] sm:$0xff]
    %v730 = vld [vmem:[#allocation2 + $0x1378] sm:$0xff]
    %v731 = vld [vmem:[#allocation2 + $0x1380] sm:$0xff]
    %v732 = vld [vmem:[#allocation2 + $0x1388] sm:$0xff]
    %v733 = vld [vmem:[#allocation2 + $0x1390] sm:$0xff]
    %v734 = vld [vmem:[#allocation2 + $0x1398] sm:$0xff]
    %v735 = vld [vmem:[#allocation2 + $0x13a0] sm:$0xff]
    %v736 = vld [vmem:[#allocation2 + $0x13a8] sm:$0xff]
    %v737 = vld [vmem:[#allocation2 + $0x13b0] sm:$0xff]
    %v738 = vld [vmem:[#allocation2 + $0x13b8] sm:$0xff]
    %v739 = vld [vmem:[#allocation2 + $0x13c0] sm:$0xf]
    %v740 = vld [vmem:[#allocation2 + $0x13c4] sm:$0xff]
    %v741 = vld [vmem:[#allocation2 + $0x13cc] sm:$0xff]
    %v742 = vld [vmem:[#allocation2 + $0x13d4] sm:$0xff]
    %v743 = vld [vmem:[#allocation2 + $0x13dc] sm:$0xff]
    %v744 = vld [vmem:[#allocation2 + $0x13e4] sm:$0xff]
    %v745 = vld [vmem:[#allocation2 + $0x13ec] sm:$0xff]
    %v746 = vld [vmem:[#allocation2 + $0x13f4] sm:$0xff]
    %v747 = vld [vmem:[#allocation2 + $0x13fc] sm:$0xff]
    %v748 = vld [vmem:[#allocation2 + $0x1404] sm:$0xff]
    %v749 = vld [vmem:[#allocation2 + $0x140c] sm:$0xff]
    %v750 = vld [vmem:[#allocation2 + $0x1414] sm:$0xff]
    %v751 = vld [vmem:[#allocation2 + $0x141c] sm:$0xf]
    %v752 = vld [vmem:[#allocation2 + $0x1420] sm:$0xff]
    %v753 = vld [vmem:[#allocation2 + $0x1428] sm:$0xff]
    %v754 = vld [vmem:[#allocation2 + $0x1430] sm:$0xff]
    %v755 = vld [vmem:[#allocation2 + $0x1438] sm:$0xff]
    %v756 = vld [vmem:[#allocation2 + $0x1440] sm:$0xff]
    %v757 = vld [vmem:[#allocation2 + $0x1448] sm:$0xff]
    %v758 = vld [vmem:[#allocation2 + $0x1450] sm:$0xff]
    %v759 = vld [vmem:[#allocation2 + $0x1458] sm:$0xff]
    %v760 = vld [vmem:[#allocation2 + $0x1460] sm:$0xff]
    %v761 = vld [vmem:[#allocation2 + $0x1468] sm:$0xff]
    %v762 = vld [vmem:[#allocation2 + $0x1470] sm:$0xff]
    %v763 = vld [vmem:[#allocation2 + $0x1478] sm:$0xf]
    %v764 = vld [vmem:[#allocation2 + $0x147c] sm:$0xff]
    %v765 = vld [vmem:[#allocation2 + $0x1484] sm:$0xff]
    %v766 = vld [vmem:[#allocation2 + $0x148c] sm:$0xff]
    %v767 = vld [vmem:[#allocation2 + $0x1494] sm:$0xff]
    %v768 = vld [vmem:[#allocation2 + $0x149c] sm:$0xff]
    %v769 = vld [vmem:[#allocation2 + $0x14a4] sm:$0xff]
    %v770 = vld [vmem:[#allocation2 + $0x14ac] sm:$0xff]
    %v771 = vld [vmem:[#allocation2 + $0x14b4] sm:$0xff]
    %v772 = vld [vmem:[#allocation2 + $0x14bc] sm:$0xff]
    %v773 = vld [vmem:[#allocation2 + $0x14c4] sm:$0xff]
    %v774 = vld [vmem:[#allocation2 + $0x14cc] sm:$0xff]
    %v775 = vld [vmem:[#allocation2 + $0x14d4] sm:$0xf]
    %v776 = vld [vmem:[#allocation2 + $0x14d8] sm:$0xff]
    %v777 = vld [vmem:[#allocation2 + $0x14e0] sm:$0xff]
    %v778 = vld [vmem:[#allocation2 + $0x14e8] sm:$0xff]
    %v779 = vld [vmem:[#allocation2 + $0x14f0] sm:$0xff]
    %v780 = vld [vmem:[#allocation2 + $0x14f8] sm:$0xff]
    %v781 = vld [vmem:[#allocation2 + $0x1500] sm:$0xff]
    %v782 = vld [vmem:[#allocation2 + $0x1508] sm:$0xff]
    %v783 = vld [vmem:[#allocation2 + $0x1510] sm:$0xff]
    %v784 = vld [vmem:[#allocation2 + $0x1518] sm:$0xff]
    %v785 = vld [vmem:[#allocation2 + $0x1520] sm:$0xff]
    %v786 = vld [vmem:[#allocation2 + $0x1528] sm:$0xff]
    %v787 = vld [vmem:[#allocation2 + $0x1530] sm:$0xf]
    %v788 = vld [vmem:[#allocation2 + $0x1534] sm:$0xff]
    %v789 = vld [vmem:[#allocation2 + $0x153c] sm:$0xff]
    %v790 = vld [vmem:[#allocation2 + $0x1544] sm:$0xff]
    %v791 = vld [vmem:[#allocation2 + $0x154c] sm:$0xff]
    %v792 = vld [vmem:[#allocation2 + $0x1554] sm:$0xff]
    %v793 = vld [vmem:[#allocation2 + $0x155c] sm:$0xff]
    %v794 = vld [vmem:[#allocation2 + $0x1564] sm:$0xff]
    %v795 = vld [vmem:[#allocation2 + $0x156c] sm:$0xff]
    %v796 = vld [vmem:[#allocation2 + $0x1574] sm:$0xff]
    %v797 = vld [vmem:[#allocation2 + $0x157c] sm:$0xff]
    %v798 = vld [vmem:[#allocation2 + $0x1584] sm:$0xff]
    %v799 = vld [vmem:[#allocation2 + $0x158c] sm:$0xf]
    %v800 = vld [vmem:[#allocation2 + $0x1590] sm:$0xff]
    %v801 = vld [vmem:[#allocation2 + $0x1598] sm:$0xff]
    %v802 = vld [vmem:[#allocation2 + $0x15a0] sm:$0xff]
    %v803 = vld [vmem:[#allocation2 + $0x15a8] sm:$0xff]
    %v804 = vld [vmem:[#allocation2 + $0x15b0] sm:$0xff]
    %v805 = vld [vmem:[#allocation2 + $0x15b8] sm:$0xff]
    %v806 = vld [vmem:[#allocation2 + $0x15c0] sm:$0xff]
    %v807 = vld [vmem:[#allocation2 + $0x15c8] sm:$0xff]
    %v808 = vld [vmem:[#allocation2 + $0x15d0] sm:$0xff]
    %v809 = vld [vmem:[#allocation2 + $0x15d8] sm:$0xff]
    %v810 = vld [vmem:[#allocation2 + $0x15e0] sm:$0xff]
    %v811 = vld [vmem:[#allocation2 + $0x15e8] sm:$0xf]
    %v812 = vld [vmem:[#allocation2 + $0x15ec] sm:$0xff]
    %v813 = vld [vmem:[#allocation2 + $0x15f4] sm:$0xff]
    %v814 = vld [vmem:[#allocation2 + $0x15fc] sm:$0xff]
    %v815 = vld [vmem:[#allocation2 + $0x1604] sm:$0xff]
    %v816 = vld [vmem:[#allocation2 + $0x160c] sm:$0xff]
    %v817 = vld [vmem:[#allocation2 + $0x1614] sm:$0xff]
    %v818 = vld [vmem:[#allocation2 + $0x161c] sm:$0xff]
    %v819 = vld [vmem:[#allocation2 + $0x1624] sm:$0xff]
    %v820 = vld [vmem:[#allocation2 + $0x162c] sm:$0xff]
    %v821 = vld [vmem:[#allocation2 + $0x1634] sm:$0xff]
    %v822 = vld [vmem:[#allocation2 + $0x163c] sm:$0xff]
    %v823 = vld [vmem:[#allocation2 + $0x1644] sm:$0xf]
    %v824 = vld [vmem:[#allocation2 + $0x1648] sm:$0xff]
    %v825 = vld [vmem:[#allocation2 + $0x1650] sm:$0xff]
    %v826 = vld [vmem:[#allocation2 + $0x1658] sm:$0xff]
    %v827 = vld [vmem:[#allocation2 + $0x1660] sm:$0xff]
    %v828 = vld [vmem:[#allocation2 + $0x1668] sm:$0xff]
    %v829 = vld [vmem:[#allocation2 + $0x1670] sm:$0xff]
    %v830 = vld [vmem:[#allocation2 + $0x1678] sm:$0xff]
    %v831 = vld [vmem:[#allocation2 + $0x1680] sm:$0xff]
    %v832 = vld [vmem:[#allocation2 + $0x1688] sm:$0xff]
    %v833 = vld [vmem:[#allocation2 + $0x1690] sm:$0xff]
    %v834 = vld [vmem:[#allocation2 + $0x1698] sm:$0xff]
    %v835 = vld [vmem:[#allocation2 + $0x16a0] sm:$0xf]
    %v836 = vld [vmem:[#allocation2 + $0x16a4] sm:$0xff]
    %v837 = vld [vmem:[#allocation2 + $0x16ac] sm:$0xff]
    %v838 = vld [vmem:[#allocation2 + $0x16b4] sm:$0xff]
    %v839 = vld [vmem:[#allocation2 + $0x16bc] sm:$0xff]
    %v840 = vld [vmem:[#allocation2 + $0x16c4] sm:$0xff]
    %v841 = vld [vmem:[#allocation2 + $0x16cc] sm:$0xff]
    %v842 = vld [vmem:[#allocation2 + $0x16d4] sm:$0xff]
    %v843 = vld [vmem:[#allocation2 + $0x16dc] sm:$0xff]
    %v844 = vld [vmem:[#allocation2 + $0x16e4] sm:$0xff]
    %v845 = vld [vmem:[#allocation2 + $0x16ec] sm:$0xff]
    %v846 = vld [vmem:[#allocation2 + $0x16f4] sm:$0xff]
    %v847 = vld [vmem:[#allocation2 + $0x16fc] sm:$0xf]
    %v848 = vld [vmem:[#allocation2 + $0x1700] sm:$0xff]
    %v849 = vld [vmem:[#allocation2 + $0x1708] sm:$0xff]
    %v850 = vld [vmem:[#allocation2 + $0x1710] sm:$0xff]
    %v851 = vld [vmem:[#allocation2 + $0x1718] sm:$0xff]
    %v852 = vld [vmem:[#allocation2 + $0x1720] sm:$0xff]
    %v853 = vld [vmem:[#allocation2 + $0x1728] sm:$0xff]
    %v854 = vld [vmem:[#allocation2 + $0x1730] sm:$0xff]
    %v855 = vld [vmem:[#allocation2 + $0x1738] sm:$0xff]
    %v856 = vld [vmem:[#allocation2 + $0x1740] sm:$0xff]
    %v857 = vld [vmem:[#allocation2 + $0x1748] sm:$0xff]
    %v858 = vld [vmem:[#allocation2 + $0x1750] sm:$0xff]
    %v859 = vld [vmem:[#allocation2 + $0x1758] sm:$0xf]
    %v860 = vld [vmem:[#allocation2 + $0x175c] sm:$0xff]
    %v861 = vld [vmem:[#allocation2 + $0x1764] sm:$0xff]
    %v862 = vld [vmem:[#allocation2 + $0x176c] sm:$0xff]
    %v863 = vld [vmem:[#allocation2 + $0x1774] sm:$0xff]
    %v864 = vld [vmem:[#allocation2 + $0x177c] sm:$0xff]
    %v865 = vld [vmem:[#allocation2 + $0x1784] sm:$0xff]
    %v866 = vld [vmem:[#allocation2 + $0x178c] sm:$0xff]
    %v867 = vld [vmem:[#allocation2 + $0x1794] sm:$0xff]
    %v868 = vld [vmem:[#allocation2 + $0x179c] sm:$0xff]
    %v869 = vld [vmem:[#allocation2 + $0x17a4] sm:$0xff]
    %v870 = vld [vmem:[#allocation2 + $0x17ac] sm:$0xff]
    %v871 = vld [vmem:[#allocation2 + $0x17b4] sm:$0xf]
    %v872 = vld [vmem:[#allocation2 + $0x17b8] sm:$0xff]
    %v873 = vld [vmem:[#allocation2 + $0x17c0] sm:$0xff]
    %v874 = vld [vmem:[#allocation2 + $0x17c8] sm:$0xff]
    %v875 = vld [vmem:[#allocation2 + $0x17d0] sm:$0xff]
    %v876 = vld [vmem:[#allocation2 + $0x17d8] sm:$0xff]
    %v877 = vld [vmem:[#allocation2 + $0x17e0] sm:$0xff]
    %v878 = vld [vmem:[#allocation2 + $0x17e8] sm:$0xff]
    %v879 = vld [vmem:[#allocation2 + $0x17f0] sm:$0xff]
    %v880 = vld [vmem:[#allocation2 + $0x17f8] sm:$0xff]
    %v881 = vld [vmem:[#allocation2 + $0x1800] sm:$0xff]
    %v882 = vld [vmem:[#allocation2 + $0x1808] sm:$0xff]
    %v883 = vld [vmem:[#allocation2 + $0x1810] sm:$0xf]
    %v884 = vld [vmem:[#allocation2 + $0x1814] sm:$0xff]
    %v885 = vld [vmem:[#allocation2 + $0x181c] sm:$0xff]
    %v886 = vld [vmem:[#allocation2 + $0x1824] sm:$0xff]
    %v887 = vld [vmem:[#allocation2 + $0x182c] sm:$0xff]
    %v888 = vld [vmem:[#allocation2 + $0x1834] sm:$0xff]
    %v889 = vld [vmem:[#allocation2 + $0x183c] sm:$0xff]
    %v890 = vld [vmem:[#allocation2 + $0x1844] sm:$0xff]
    %v891 = vld [vmem:[#allocation2 + $0x184c] sm:$0xff]
    %v892 = vld [vmem:[#allocation2 + $0x1854] sm:$0xff]
    %v893 = vld [vmem:[#allocation2 + $0x185c] sm:$0xff]
    %v894 = vld [vmem:[#allocation2 + $0x1864] sm:$0xff]
    %v895 = vld [vmem:[#allocation2 + $0x186c] sm:$0xf]
    %v896 = vld [vmem:[#allocation2 + $0x1870] sm:$0xff]
    %v897 = vld [vmem:[#allocation2 + $0x1878] sm:$0xff]
    %v898 = vld [vmem:[#allocation2 + $0x1880] sm:$0xff]
    %v899 = vld [vmem:[#allocation2 + $0x1888] sm:$0xff]
    %v900 = vld [vmem:[#allocation2 + $0x1890] sm:$0xff]
    %v901 = vld [vmem:[#allocation2 + $0x1898] sm:$0xff]
    %v902 = vld [vmem:[#allocation2 + $0x18a0] sm:$0xff]
    %v903 = vld [vmem:[#allocation2 + $0x18a8] sm:$0xff]
    %v904 = vld [vmem:[#allocation2 + $0x18b0] sm:$0xff]
    %v905 = vld [vmem:[#allocation2 + $0x18b8] sm:$0xff]
    %v906 = vld [vmem:[#allocation2 + $0x18c0] sm:$0xff]
    %v907 = vld [vmem:[#allocation2 + $0x18c8] sm:$0xf]
    %v908 = vld [vmem:[#allocation2 + $0x18cc] sm:$0xff]
    %v909 = vld [vmem:[#allocation2 + $0x18d4] sm:$0xff]
    %v910 = vld [vmem:[#allocation2 + $0x18dc] sm:$0xff]
    %v911 = vld [vmem:[#allocation2 + $0x18e4] sm:$0xff]
    %v912 = vld [vmem:[#allocation2 + $0x18ec] sm:$0xff]
    %v913 = vld [vmem:[#allocation2 + $0x18f4] sm:$0xff]
    %v914 = vld [vmem:[#allocation2 + $0x18fc] sm:$0xff]
    %v915 = vld [vmem:[#allocation2 + $0x1904] sm:$0xff]
    %v916 = vld [vmem:[#allocation2 + $0x190c] sm:$0xff]
    %v917 = vld [vmem:[#allocation2 + $0x1914] sm:$0xff]
    %v918 = vld [vmem:[#allocation2 + $0x191c] sm:$0xff]
    %v919 = vld [vmem:[#allocation2 + $0x1924] sm:$0xf]
    %v920 = vld [vmem:[#allocation2 + $0x1928] sm:$0xff]
    %v921 = vld [vmem:[#allocation2 + $0x1930] sm:$0xff]
    %v922 = vld [vmem:[#allocation2 + $0x1938] sm:$0xff]
    %v923 = vld [vmem:[#allocation2 + $0x1940] sm:$0xff]
    %v924 = vld [vmem:[#allocation2 + $0x1948] sm:$0xff]
    %v925 = vld [vmem:[#allocation2 + $0x1950] sm:$0xff]
    %v926 = vld [vmem:[#allocation2 + $0x1958] sm:$0xff]
    %v927 = vld [vmem:[#allocation2 + $0x1960] sm:$0xff]
    %v928 = vld [vmem:[#allocation2 + $0x1968] sm:$0xff]
    %v929 = vld [vmem:[#allocation2 + $0x1970] sm:$0xff]
    %v930 = vld [vmem:[#allocation2 + $0x1978] sm:$0xff]
    %v931 = vld [vmem:[#allocation2 + $0x1980] sm:$0xf]
    %v932 = vld [vmem:[#allocation2 + $0x1984] sm:$0xff]
    %v933 = vld [vmem:[#allocation2 + $0x198c] sm:$0xff]
    %v934 = vld [vmem:[#allocation2 + $0x1994] sm:$0xff]
    %v935 = vld [vmem:[#allocation2 + $0x199c] sm:$0xff]
    %v936 = vld [vmem:[#allocation2 + $0x19a4] sm:$0xff]
    %v937 = vld [vmem:[#allocation2 + $0x19ac] sm:$0xff]
    %v938 = vld [vmem:[#allocation2 + $0x19b4] sm:$0xff]
    %v939 = vld [vmem:[#allocation2 + $0x19bc] sm:$0xff]
    %v940 = vld [vmem:[#allocation2 + $0x19c4] sm:$0xff]
    %v941 = vld [vmem:[#allocation2 + $0x19cc] sm:$0xff]
    %v942 = vld [vmem:[#allocation2 + $0x19d4] sm:$0xff]
    %v943 = vld [vmem:[#allocation2 + $0x19dc] sm:$0xf]
    %v944 = vld [vmem:[#allocation2 + $0x19e0] sm:$0xff]
    %v945 = vld [vmem:[#allocation2 + $0x19e8] sm:$0xff]
    %v946 = vld [vmem:[#allocation2 + $0x19f0] sm:$0xff]
    %v947 = vld [vmem:[#allocation2 + $0x19f8] sm:$0xff]
    %v948 = vld [vmem:[#allocation2 + $0x1a00] sm:$0xff]
    %v949 = vld [vmem:[#allocation2 + $0x1a08] sm:$0xff]
    %v950 = vld [vmem:[#allocation2 + $0x1a10] sm:$0xff]
    %v951 = vld [vmem:[#allocation2 + $0x1a18] sm:$0xff]
    %v952 = vld [vmem:[#allocation2 + $0x1a20] sm:$0xff]
    %v953 = vld [vmem:[#allocation2 + $0x1a28] sm:$0xff]
    %v954 = vld [vmem:[#allocation2 + $0x1a30] sm:$0xff]
    %v955 = vld [vmem:[#allocation2 + $0x1a38] sm:$0xf]
    %v956 = vld [vmem:[#allocation2 + $0x1a3c] sm:$0xff]
    %v957 = vld [vmem:[#allocation2 + $0x1a44] sm:$0xff]
    %v958 = vld [vmem:[#allocation2 + $0x1a4c] sm:$0xff]
    %v959 = vld [vmem:[#allocation2 + $0x1a54] sm:$0xff]
    %v960 = vld [vmem:[#allocation2 + $0x1a5c] sm:$0xff]
    %v961 = vld [vmem:[#allocation2 + $0x1a64] sm:$0xff]
    %v962 = vld [vmem:[#allocation2 + $0x1a6c] sm:$0xff]
    %v963 = vld [vmem:[#allocation2 + $0x1a74] sm:$0xff]
    %v964 = vld [vmem:[#allocation2 + $0x1a7c] sm:$0xff]
    %v965 = vld [vmem:[#allocation2 + $0x1a84] sm:$0xff]
    %v966 = vld [vmem:[#allocation2 + $0x1a8c] sm:$0xff]
    %v967 = vld [vmem:[#allocation2 + $0x1a94] sm:$0xf]
    %v968 = vld [vmem:[#allocation2 + $0x1a98] sm:$0xff]
    %v969 = vld [vmem:[#allocation2 + $0x1aa0] sm:$0xff]
    %v970 = vld [vmem:[#allocation2 + $0x1aa8] sm:$0xff]
    %v971 = vld [vmem:[#allocation2 + $0x1ab0] sm:$0xff]
    %v972 = vld [vmem:[#allocation2 + $0x1ab8] sm:$0xff]
    %v973 = vld [vmem:[#allocation2 + $0x1ac0] sm:$0xff]
    %v974 = vld [vmem:[#allocation2 + $0x1ac8] sm:$0xff]
    %v975 = vld [vmem:[#allocation2 + $0x1ad0] sm:$0xff]
    %v976 = vld [vmem:[#allocation2 + $0x1ad8] sm:$0xff]
    %v977 = vld [vmem:[#allocation2 + $0x1ae0] sm:$0xff]
    %v978 = vld [vmem:[#allocation2 + $0x1ae8] sm:$0xff]
    %v979 = vld [vmem:[#allocation2 + $0x1af0] sm:$0xf]
    %v980 = vld [vmem:[#allocation2 + $0x1af4] sm:$0xff]
    %v981 = vld [vmem:[#allocation2 + $0x1afc] sm:$0xff]
    %v982 = vld [vmem:[#allocation2 + $0x1b04] sm:$0xff]
    %v983 = vld [vmem:[#allocation2 + $0x1b0c] sm:$0xff]
    %v984 = vld [vmem:[#allocation2 + $0x1b14] sm:$0xff]
    %v985 = vld [vmem:[#allocation2 + $0x1b1c] sm:$0xff]
    %v986 = vld [vmem:[#allocation2 + $0x1b24] sm:$0xff]
    %v987 = vld [vmem:[#allocation2 + $0x1b2c] sm:$0xff]
    %v988 = vld [vmem:[#allocation2 + $0x1b34] sm:$0xff]
    %v989 = vld [vmem:[#allocation2 + $0x1b3c] sm:$0xff]
    %v990 = vld [vmem:[#allocation2 + $0x1b44] sm:$0xff]
    %v991 = vld [vmem:[#allocation2 + $0x1b4c] sm:$0xf]
    %v992 = vld [vmem:[#allocation2 + $0x1b50] sm:$0xff]
    %v993 = vld [vmem:[#allocation2 + $0x1b58] sm:$0xff]
    %v994 = vld [vmem:[#allocation2 + $0x1b60] sm:$0xff]
    %v995 = vld [vmem:[#allocation2 + $0x1b68] sm:$0xff]
    %v996 = vld [vmem:[#allocation2 + $0x1b70] sm:$0xff]
    %v997 = vld [vmem:[#allocation2 + $0x1b78] sm:$0xff]
    %v998 = vld [vmem:[#allocation2 + $0x1b80] sm:$0xff]
    %v999 = vld [vmem:[#allocation2 + $0x1b88] sm:$0xff]
    %v1000 = vld [vmem:[#allocation2 + $0x1b90] sm:$0xff]
    %v1001 = vld [vmem:[#allocation2 + $0x1b98] sm:$0xff]
    %v1002 = vld [vmem:[#allocation2 + $0x1ba0] sm:$0xff]
    %v1003 = vld [vmem:[#allocation2 + $0x1ba8] sm:$0xf]
    %v1004 = vld [vmem:[#allocation2 + $0x1bac] sm:$0xff]
    %v1005 = vld [vmem:[#allocation2 + $0x1bb4] sm:$0xff]
    %v1006 = vld [vmem:[#allocation2 + $0x1bbc] sm:$0xff]
    %v1007 = vld [vmem:[#allocation2 + $0x1bc4] sm:$0xff]
    %v1008 = vld [vmem:[#allocation2 + $0x1bcc] sm:$0xff]
    %v1009 = vld [vmem:[#allocation2 + $0x1bd4] sm:$0xff]
    %v1010 = vld [vmem:[#allocation2 + $0x1bdc] sm:$0xff]
    %v1011 = vld [vmem:[#allocation2 + $0x1be4] sm:$0xff]
    %v1012 = vld [vmem:[#allocation2 + $0x1bec] sm:$0xff]
    %v1013 = vld [vmem:[#allocation2 + $0x1bf4] sm:$0xff]
    %v1014 = vld [vmem:[#allocation2 + $0x1bfc] sm:$0xff]
    %v1015 = vld [vmem:[#allocation2 + $0x1c04] sm:$0xf]
    %v1016 = vld [vmem:[#allocation2 + $0x1c08] sm:$0xff]
    %v1017 = vld [vmem:[#allocation2 + $0x1c10] sm:$0xff]
    %v1018 = vld [vmem:[#allocation2 + $0x1c18] sm:$0xff]
    %v1019 = vld [vmem:[#allocation2 + $0x1c20] sm:$0xff]
    %v1020 = vld [vmem:[#allocation2 + $0x1c28] sm:$0xff]
    %v1021 = vld [vmem:[#allocation2 + $0x1c30] sm:$0xff]
    %v1022 = vld [vmem:[#allocation2 + $0x1c38] sm:$0xff]
    %v1023 = vld [vmem:[#allocation2 + $0x1c40] sm:$0xff]
    %v1024 = vld [vmem:[#allocation2 + $0x1c48] sm:$0xff]
    %v1025 = vld [vmem:[#allocation2 + $0x1c50] sm:$0xff]
    %v1026 = vld [vmem:[#allocation2 + $0x1c58] sm:$0xff]
    %v1027 = vld [vmem:[#allocation2 + $0x1c60] sm:$0xf]
    %v1028 = vld [vmem:[#allocation2 + $0x1c64] sm:$0xff]
    %v1029 = vld [vmem:[#allocation2 + $0x1c6c] sm:$0xff]
    %v1030 = vld [vmem:[#allocation2 + $0x1c74] sm:$0xff]
    %v1031 = vld [vmem:[#allocation2 + $0x1c7c] sm:$0xff]
    %v1032 = vld [vmem:[#allocation2 + $0x1c84] sm:$0xff]
    %v1033 = vld [vmem:[#allocation2 + $0x1c8c] sm:$0xff]
    %v1034 = vld [vmem:[#allocation2 + $0x1c94] sm:$0xff]
    %v1035 = vld [vmem:[#allocation2 + $0x1c9c] sm:$0xff]
    %v1036 = vld [vmem:[#allocation2 + $0x1ca4] sm:$0xff]
    %v1037 = vld [vmem:[#allocation2 + $0x1cac] sm:$0xff]
    %v1038 = vld [vmem:[#allocation2 + $0x1cb4] sm:$0xff]
    %v1039 = vld [vmem:[#allocation2 + $0x1cbc] sm:$0xf]
    %v1040 = vld [vmem:[#allocation2 + $0x1cc0] sm:$0xff]
    %v1041 = vld [vmem:[#allocation2 + $0x1cc8] sm:$0xff]
    %v1042 = vld [vmem:[#allocation2 + $0x1cd0] sm:$0xff]
    %v1043 = vld [vmem:[#allocation2 + $0x1cd8] sm:$0xff]
    %v1044 = vld [vmem:[#allocation2 + $0x1ce0] sm:$0xff]
    %v1045 = vld [vmem:[#allocation2 + $0x1ce8] sm:$0xff]
    %v1046 = vld [vmem:[#allocation2 + $0x1cf0] sm:$0xff]
    %v1047 = vld [vmem:[#allocation2 + $0x1cf8] sm:$0xff]
    %v1048 = vld [vmem:[#allocation2 + $0x1d00] sm:$0xff]
    %v1049 = vld [vmem:[#allocation2 + $0x1d08] sm:$0xff]
    %v1050 = vld [vmem:[#allocation2 + $0x1d10] sm:$0xff]
    %v1051 = vld [vmem:[#allocation2 + $0x1d18] sm:$0xf]
    %v1052 = vld [vmem:[#allocation2 + $0x1d1c] sm:$0xff]
    %v1053 = vld [vmem:[#allocation2 + $0x1d24] sm:$0xff]
    %v1054 = vld [vmem:[#allocation2 + $0x1d2c] sm:$0xff]
    %v1055 = vld [vmem:[#allocation2 + $0x1d34] sm:$0xff]
    %v1056 = vld [vmem:[#allocation2 + $0x1d3c] sm:$0xff]
    %v1057 = vld [vmem:[#allocation2 + $0x1d44] sm:$0xff]
    %v1058 = vld [vmem:[#allocation2 + $0x1d4c] sm:$0xff]
    %v1059 = vld [vmem:[#allocation2 + $0x1d54] sm:$0xff]
    %v1060 = vld [vmem:[#allocation2 + $0x1d5c] sm:$0xff]
    %v1061 = vld [vmem:[#allocation2 + $0x1d64] sm:$0xff]
    %v1062 = vld [vmem:[#allocation2 + $0x1d6c] sm:$0xff]
    %v1063 = vld [vmem:[#allocation2 + $0x1d74] sm:$0xf]
    %v1064 = vld [vmem:[#allocation2 + $0x1d78] sm:$0xff]
    %v1065 = vld [vmem:[#allocation2 + $0x1d80] sm:$0xff]
    %v1066 = vld [vmem:[#allocation2 + $0x1d88] sm:$0xff]
    %v1067 = vld [vmem:[#allocation2 + $0x1d90] sm:$0xff]
    %v1068 = vld [vmem:[#allocation2 + $0x1d98] sm:$0xff]
    %v1069 = vld [vmem:[#allocation2 + $0x1da0] sm:$0xff]
    %v1070 = vld [vmem:[#allocation2 + $0x1da8] sm:$0xff]
    %v1071 = vld [vmem:[#allocation2 + $0x1db0] sm:$0xff]
    %v1072 = vld [vmem:[#allocation2 + $0x1db8] sm:$0xff]
    %v1073 = vld [vmem:[#allocation2 + $0x1dc0] sm:$0xff]
    %v1074 = vld [vmem:[#allocation2 + $0x1dc8] sm:$0xff]
    %v1075 = vld [vmem:[#allocation2 + $0x1dd0] sm:$0xf]
    %v1076 = vld [vmem:[#allocation2 + $0x1dd4] sm:$0xff]
    %v1077 = vld [vmem:[#allocation2 + $0x1ddc] sm:$0xff]
    %v1078 = vld [vmem:[#allocation2 + $0x1de4] sm:$0xff]
    %v1079 = vld [vmem:[#allocation2 + $0x1dec] sm:$0xff]
    %v1080 = vld [vmem:[#allocation2 + $0x1df4] sm:$0xff]
    %v1081 = vld [vmem:[#allocation2 + $0x1dfc] sm:$0xff]
    %v1082 = vld [vmem:[#allocation2 + $0x1e04] sm:$0xff]
    %v1083 = vld [vmem:[#allocation2 + $0x1e0c] sm:$0xff]
    %v1084 = vld [vmem:[#allocation2 + $0x1e14] sm:$0xff]
    %v1085 = vld [vmem:[#allocation2 + $0x1e1c] sm:$0xff]
    %v1086 = vld [vmem:[#allocation2 + $0x1e24] sm:$0xff]
    %v1087 = vld [vmem:[#allocation2 + $0x1e2c] sm:$0xf]
    %v1088 = vld [vmem:[#allocation2 + $0x1e30] sm:$0xff]
    %v1089 = vld [vmem:[#allocation2 + $0x1e38] sm:$0xff]
    %v1090 = vld [vmem:[#allocation2 + $0x1e40] sm:$0xff]
    %v1091 = vld [vmem:[#allocation2 + $0x1e48] sm:$0xff]
    %v1092 = vld [vmem:[#allocation2 + $0x1e50] sm:$0xff]
    %v1093 = vld [vmem:[#allocation2 + $0x1e58] sm:$0xff]
    %v1094 = vld [vmem:[#allocation2 + $0x1e60] sm:$0xff]
    %v1095 = vld [vmem:[#allocation2 + $0x1e68] sm:$0xff]
    %v1096 = vld [vmem:[#allocation2 + $0x1e70] sm:$0xff]
    %v1097 = vld [vmem:[#allocation2 + $0x1e78] sm:$0xff]
    %v1098 = vld [vmem:[#allocation2 + $0x1e80] sm:$0xff]
    %v1099 = vld [vmem:[#allocation2 + $0x1e88] sm:$0xf]
    %v1100 = vld [vmem:[#allocation2 + $0x1e8c] sm:$0xff]
    %v1101 = vld [vmem:[#allocation2 + $0x1e94] sm:$0xff]
    %v1102 = vld [vmem:[#allocation2 + $0x1e9c] sm:$0xff]
    %v1103 = vld [vmem:[#allocation2 + $0x1ea4] sm:$0xff]
    %v1104 = vld [vmem:[#allocation2 + $0x1eac] sm:$0xff]
    %v1105 = vld [vmem:[#allocation2 + $0x1eb4] sm:$0xff]
    %v1106 = vld [vmem:[#allocation2 + $0x1ebc] sm:$0xff]
    %v1107 = vld [vmem:[#allocation2 + $0x1ec4] sm:$0xff]
    %v1108 = vld [vmem:[#allocation2 + $0x1ecc] sm:$0xff]
    %v1109 = vld [vmem:[#allocation2 + $0x1ed4] sm:$0xff]
    %v1110 = vld [vmem:[#allocation2 + $0x1edc] sm:$0xff]
    %v1111 = vld [vmem:[#allocation2 + $0x1ee4] sm:$0xf]
    %v1112 = vld [vmem:[#allocation2 + $0x1ee8] sm:$0xff]
    %v1113 = vld [vmem:[#allocation2 + $0x1ef0] sm:$0xff]
    %v1114 = vld [vmem:[#allocation2 + $0x1ef8] sm:$0xff]
    %v1115 = vld [vmem:[#allocation2 + $0x1f00] sm:$0xff]
    %v1116 = vld [vmem:[#allocation2 + $0x1f08] sm:$0xff]
    %v1117 = vld [vmem:[#allocation2 + $0x1f10] sm:$0xff]
    %v1118 = vld [vmem:[#allocation2 + $0x1f18] sm:$0xff]
    %v1119 = vld [vmem:[#allocation2 + $0x1f20] sm:$0xff]
    %v1120 = vld [vmem:[#allocation2 + $0x1f28] sm:$0xff]
    %v1121 = vld [vmem:[#allocation2 + $0x1f30] sm:$0xff]
    %v1122 = vld [vmem:[#allocation2 + $0x1f38] sm:$0xff]
    %v1123 = vld [vmem:[#allocation2 + $0x1f40] sm:$0xf]
    %v1124 = vld [vmem:[#allocation2 + $0x1f44] sm:$0xff]
    %v1125 = vld [vmem:[#allocation2 + $0x1f4c] sm:$0xff]
    %v1126 = vld [vmem:[#allocation2 + $0x1f54] sm:$0xff]
    %v1127 = vld [vmem:[#allocation2 + $0x1f5c] sm:$0xff]
    %v1128 = vld [vmem:[#allocation2 + $0x1f64] sm:$0xff]
    %v1129 = vld [vmem:[#allocation2 + $0x1f6c] sm:$0xff]
    %v1130 = vld [vmem:[#allocation2 + $0x1f74] sm:$0xff]
    %v1131 = vld [vmem:[#allocation2 + $0x1f7c] sm:$0xff]
    %v1132 = vld [vmem:[#allocation2 + $0x1f84] sm:$0xff]
    %v1133 = vld [vmem:[#allocation2 + $0x1f8c] sm:$0xff]
    %v1134 = vld [vmem:[#allocation2 + $0x1f94] sm:$0xff]
    %v1135 = vld [vmem:[#allocation2 + $0x1f9c] sm:$0xf]
    %v1136 = vld [vmem:[#allocation2 + $0x1fa0] sm:$0xff]
    %v1137 = vld [vmem:[#allocation2 + $0x1fa8] sm:$0xff]
    %v1138 = vld [vmem:[#allocation2 + $0x1fb0] sm:$0xff]
    %v1139 = vld [vmem:[#allocation2 + $0x1fb8] sm:$0xff]
    %v1140 = vld [vmem:[#allocation2 + $0x1fc0] sm:$0xff]
    %v1141 = vld [vmem:[#allocation2 + $0x1fc8] sm:$0xff]
    %v1142 = vld [vmem:[#allocation2 + $0x1fd0] sm:$0xff]
    %v1143 = vld [vmem:[#allocation2 + $0x1fd8] sm:$0xff]
    %v1144 = vld [vmem:[#allocation2 + $0x1fe0] sm:$0xff]
    %v1145 = vld [vmem:[#allocation2 + $0x1fe8] sm:$0xff]
    %v1146 = vld [vmem:[#allocation2 + $0x1ff0] sm:$0xff]
    %v1147 = vld [vmem:[#allocation2 + $0x1ff8] sm:$0xf]
    %v1148 = vld [vmem:[#allocation2 + $0x1ffc] sm:$0xff]
    %v1149 = vld [vmem:[#allocation2 + $0x2004] sm:$0xff]
    %v1150 = vld [vmem:[#allocation2 + $0x200c] sm:$0xff]
    %v1151 = vld [vmem:[#allocation2 + $0x2014] sm:$0xff]
    %v1152 = vld [vmem:[#allocation2 + $0x201c] sm:$0xff]
    %v1153 = vld [vmem:[#allocation2 + $0x2024] sm:$0xff]
    %v1154 = vld [vmem:[#allocation2 + $0x202c] sm:$0xff]
    %v1155 = vld [vmem:[#allocation2 + $0x2034] sm:$0xff]
    %v1156 = vld [vmem:[#allocation2 + $0x203c] sm:$0xff]
    %v1157 = vld [vmem:[#allocation2 + $0x2044] sm:$0xff]
    %v1158 = vld [vmem:[#allocation2 + $0x204c] sm:$0xff]
    %v1159 = vld [vmem:[#allocation2 + $0x2054] sm:$0xf]
    %v1160 = vld [vmem:[#allocation2 + $0x2058] sm:$0xff]
    %v1161 = vld [vmem:[#allocation2 + $0x2060] sm:$0xff]
    %v1162 = vld [vmem:[#allocation2 + $0x2068] sm:$0xff]
    %v1163 = vld [vmem:[#allocation2 + $0x2070] sm:$0xff]
    %v1164 = vld [vmem:[#allocation2 + $0x2078] sm:$0xff]
    %v1165 = vld [vmem:[#allocation2 + $0x2080] sm:$0xff]
    %v1166 = vld [vmem:[#allocation2 + $0x2088] sm:$0xff]
    %v1167 = vld [vmem:[#allocation2 + $0x2090] sm:$0xff]
    %v1168 = vld [vmem:[#allocation2 + $0x2098] sm:$0xff]
    %v1169 = vld [vmem:[#allocation2 + $0x20a0] sm:$0xff]
    %v1170 = vld [vmem:[#allocation2 + $0x20a8] sm:$0xff]
    %v1171 = vld [vmem:[#allocation2 + $0x20b0] sm:$0xf]
    %v1172 = vld [vmem:[#allocation2 + $0x20b4] sm:$0xff]
    %v1173 = vld [vmem:[#allocation2 + $0x20bc] sm:$0xff]
    %v1174 = vld [vmem:[#allocation2 + $0x20c4] sm:$0xff]
    %v1175 = vld [vmem:[#allocation2 + $0x20cc] sm:$0xff]
    %v1176 = vld [vmem:[#allocation2 + $0x20d4] sm:$0xff]
    %v1177 = vld [vmem:[#allocation2 + $0x20dc] sm:$0xff]
    %v1178 = vld [vmem:[#allocation2 + $0x20e4] sm:$0xff]
    %v1179 = vld [vmem:[#allocation2 + $0x20ec] sm:$0xff]
    %v1180 = vld [vmem:[#allocation2 + $0x20f4] sm:$0xff]
    %v1181 = vld [vmem:[#allocation2 + $0x20fc] sm:$0xff]
    %v1182 = vld [vmem:[#allocation2 + $0x2104] sm:$0xff]
    %v1183 = vld [vmem:[#allocation2 + $0x210c] sm:$0xf]
    %v1184 = vld [vmem:[#allocation4] sm:$0xff]
    %v1185 = vld [vmem:[#allocation4 + $0x8] sm:$0xff]
    %v1186 = vld [vmem:[#allocation4 + $0x10] sm:$0xff]
    %v2291 = vunpack.c.l.b16 %v80
    %v2292 = vunpack.c.h.b16 %v80
    %v2293 = vunpack.c.l.b16 %v81
    %v2294 = vunpack.c.h.b16 %v81
    %v2295 = vunpack.c.l.b16 %v82
    %v2296 = vunpack.c.h.b16 %v82
    %v2297 = vunpack.c.l.b16 %v83
    %v2298 = vunpack.c.h.b16 %v83
    %v2299 = vunpack.c.l.b16 %v84
    %v2300 = vunpack.c.h.b16 %v84
    %v2301 = vunpack.c.l.b16 %v85
    %v2302 = vunpack.c.h.b16 %v85
    %v2303 = vunpack.c.l.b16 %v86
    %v2304 = vunpack.c.h.b16 %v86
    %v2305 = vunpack.c.l.b16 %v87
    %v2306 = vunpack.c.h.b16 %v87
    %v2307 = vunpack.c.l.b16 %v88
    %v2308 = vunpack.c.h.b16 %v88
    %v2309 = vunpack.c.l.b16 %v89
    %v2310 = vunpack.c.h.b16 %v89
    %v2311 = vunpack.c.l.b16 %v90
    %v2312 = vunpack.c.h.b16 %v90
    %v2313 = vunpack.c.l.b16 %v91
    %v2314 = vunpack.c.l.b16 %v92
    %v2315 = vunpack.c.h.b16 %v92
    %v2316 = vunpack.c.l.b16 %v93
    %v2317 = vunpack.c.h.b16 %v93
    %v2318 = vunpack.c.l.b16 %v94
    %v2319 = vunpack.c.h.b16 %v94
    %v2320 = vunpack.c.l.b16 %v95
    %v2321 = vunpack.c.h.b16 %v95
    %v2322 = vunpack.c.l.b16 %v96
    %v2323 = vunpack.c.h.b16 %v96
    %v2324 = vunpack.c.l.b16 %v97
    %v2325 = vunpack.c.h.b16 %v97
    %v2326 = vunpack.c.l.b16 %v98
    %v2327 = vunpack.c.h.b16 %v98
    %v2328 = vunpack.c.l.b16 %v99
    %v2329 = vunpack.c.h.b16 %v99
    %v2330 = vunpack.c.l.b16 %v100
    %v2331 = vunpack.c.h.b16 %v100
    %v2332 = vunpack.c.l.b16 %v101
    %v2333 = vunpack.c.h.b16 %v101
    %v2334 = vunpack.c.l.b16 %v102
    %v2335 = vunpack.c.h.b16 %v102
    %v2336 = vunpack.c.l.b16 %v103
    %v2337 = vunpack.c.l.b16 %v104
    %v2338 = vunpack.c.h.b16 %v104
    %v2339 = vunpack.c.l.b16 %v105
    %v2340 = vunpack.c.h.b16 %v105
    %v2341 = vunpack.c.l.b16 %v106
    %v2342 = vunpack.c.h.b16 %v106
    %v2343 = vunpack.c.l.b16 %v107
    %v2344 = vunpack.c.h.b16 %v107
    %v2345 = vunpack.c.l.b16 %v108
    %v2346 = vunpack.c.h.b16 %v108
    %v2347 = vunpack.c.l.b16 %v109
    %v2348 = vunpack.c.h.b16 %v109
    %v2349 = vunpack.c.l.b16 %v110
    %v2350 = vunpack.c.h.b16 %v110
    %v2351 = vunpack.c.l.b16 %v111
    %v2352 = vunpack.c.h.b16 %v111
    %v2353 = vunpack.c.l.b16 %v112
    %v2354 = vunpack.c.h.b16 %v112
    %v2355 = vunpack.c.l.b16 %v113
    %v2356 = vunpack.c.h.b16 %v113
    %v2357 = vunpack.c.l.b16 %v114
    %v2358 = vunpack.c.h.b16 %v114
    %v2359 = vunpack.c.l.b16 %v115
    %v2360 = vunpack.c.l.b16 %v116
    %v2361 = vunpack.c.h.b16 %v116
    %v2362 = vunpack.c.l.b16 %v117
    %v2363 = vunpack.c.h.b16 %v117
    %v2364 = vunpack.c.l.b16 %v118
    %v2365 = vunpack.c.h.b16 %v118
    %v2366 = vunpack.c.l.b16 %v119
    %v2367 = vunpack.c.h.b16 %v119
    %v2368 = vunpack.c.l.b16 %v120
    %v2369 = vunpack.c.h.b16 %v120
    %v2370 = vunpack.c.l.b16 %v121
    %v2371 = vunpack.c.h.b16 %v121
    %v2372 = vunpack.c.l.b16 %v122
    %v2373 = vunpack.c.h.b16 %v122
    %v2374 = vunpack.c.l.b16 %v123
    %v2375 = vunpack.c.h.b16 %v123
    %v2376 = vunpack.c.l.b16 %v124
    %v2377 = vunpack.c.h.b16 %v124
    %v2378 = vunpack.c.l.b16 %v125
    %v2379 = vunpack.c.h.b16 %v125
    %v2380 = vunpack.c.l.b16 %v126
    %v2381 = vunpack.c.h.b16 %v126
    %v2382 = vunpack.c.l.b16 %v127
    %v2383 = vunpack.c.l.b16 %v128
    %v2384 = vunpack.c.h.b16 %v128
    %v2385 = vunpack.c.l.b16 %v129
    %v2386 = vunpack.c.h.b16 %v129
    %v2387 = vunpack.c.l.b16 %v130
    %v2388 = vunpack.c.h.b16 %v130
    %v2389 = vunpack.c.l.b16 %v131
    %v2390 = vunpack.c.h.b16 %v131
    %v2391 = vunpack.c.l.b16 %v132
    %v2392 = vunpack.c.h.b16 %v132
    %v2393 = vunpack.c.l.b16 %v133
    %v2394 = vunpack.c.h.b16 %v133
    %v2395 = vunpack.c.l.b16 %v134
    %v2396 = vunpack.c.h.b16 %v134
    %v2397 = vunpack.c.l.b16 %v135
    %v2398 = vunpack.c.h.b16 %v135
    %v2399 = vunpack.c.l.b16 %v136
    %v2400 = vunpack.c.h.b16 %v136
    %v2401 = vunpack.c.l.b16 %v137
    %v2402 = vunpack.c.h.b16 %v137
    %v2403 = vunpack.c.l.b16 %v138
    %v2404 = vunpack.c.h.b16 %v138
    %v2405 = vunpack.c.l.b16 %v139
    %v2406 = vunpack.c.l.b16 %v140
    %v2407 = vunpack.c.h.b16 %v140
    %v2408 = vunpack.c.l.b16 %v141
    %v2409 = vunpack.c.h.b16 %v141
    %v2410 = vunpack.c.l.b16 %v142
    %v2411 = vunpack.c.h.b16 %v142
    %v2412 = vunpack.c.l.b16 %v143
    %v2413 = vunpack.c.h.b16 %v143
    %v2414 = vunpack.c.l.b16 %v144
    %v2415 = vunpack.c.h.b16 %v144
    %v2416 = vunpack.c.l.b16 %v145
    %v2417 = vunpack.c.h.b16 %v145
    %v2418 = vunpack.c.l.b16 %v146
    %v2419 = vunpack.c.h.b16 %v146
    %v2420 = vunpack.c.l.b16 %v147
    %v2421 = vunpack.c.h.b16 %v147
    %v2422 = vunpack.c.l.b16 %v148
    %v2423 = vunpack.c.h.b16 %v148
    %v2424 = vunpack.c.l.b16 %v149
    %v2425 = vunpack.c.h.b16 %v149
    %v2426 = vunpack.c.l.b16 %v150
    %v2427 = vunpack.c.h.b16 %v150
    %v2428 = vunpack.c.l.b16 %v151
    %v2429 = vunpack.c.l.b16 %v152
    %v2430 = vunpack.c.h.b16 %v152
    %v2431 = vunpack.c.l.b16 %v153
    %v2432 = vunpack.c.h.b16 %v153
    %v2433 = vunpack.c.l.b16 %v154
    %v2434 = vunpack.c.h.b16 %v154
    %v2435 = vunpack.c.l.b16 %v155
    %v2436 = vunpack.c.h.b16 %v155
    %v2437 = vunpack.c.l.b16 %v156
    %v2438 = vunpack.c.h.b16 %v156
    %v2439 = vunpack.c.l.b16 %v157
    %v2440 = vunpack.c.h.b16 %v157
    %v2441 = vunpack.c.l.b16 %v158
    %v2442 = vunpack.c.h.b16 %v158
    %v2443 = vunpack.c.l.b16 %v159
    %v2444 = vunpack.c.h.b16 %v159
    %v2445 = vunpack.c.l.b16 %v160
    %v2446 = vunpack.c.h.b16 %v160
    %v2447 = vunpack.c.l.b16 %v161
    %v2448 = vunpack.c.h.b16 %v161
    %v2449 = vunpack.c.l.b16 %v162
    %v2450 = vunpack.c.h.b16 %v162
    %v2451 = vunpack.c.l.b16 %v163
    %v2452 = vunpack.c.l.b16 %v164
    %v2453 = vunpack.c.h.b16 %v164
    %v2454 = vunpack.c.l.b16 %v165
    %v2455 = vunpack.c.h.b16 %v165
    %v2456 = vunpack.c.l.b16 %v166
    %v2457 = vunpack.c.h.b16 %v166
    %v2458 = vunpack.c.l.b16 %v167
    %v2459 = vunpack.c.h.b16 %v167
    %v2460 = vunpack.c.l.b16 %v168
    %v2461 = vunpack.c.h.b16 %v168
    %v2462 = vunpack.c.l.b16 %v169
    %v2463 = vunpack.c.h.b16 %v169
    %v2464 = vunpack.c.l.b16 %v170
    %v2465 = vunpack.c.h.b16 %v170
    %v2466 = vunpack.c.l.b16 %v171
    %v2467 = vunpack.c.h.b16 %v171
    %v2468 = vunpack.c.l.b16 %v172
    %v2469 = vunpack.c.h.b16 %v172
    %v2470 = vunpack.c.l.b16 %v173
    %v2471 = vunpack.c.h.b16 %v173
    %v2472 = vunpack.c.l.b16 %v174
    %v2473 = vunpack.c.h.b16 %v174
    %v2474 = vunpack.c.l.b16 %v175
    %v2475 = vunpack.c.l.b16 %v176
    %v2476 = vunpack.c.h.b16 %v176
    %v2477 = vunpack.c.l.b16 %v177
    %v2478 = vunpack.c.h.b16 %v177
    %v2479 = vunpack.c.l.b16 %v178
    %v2480 = vunpack.c.h.b16 %v178
    %v2481 = vunpack.c.l.b16 %v179
    %v2482 = vunpack.c.h.b16 %v179
    %v2483 = vunpack.c.l.b16 %v180
    %v2484 = vunpack.c.h.b16 %v180
    %v2485 = vunpack.c.l.b16 %v181
    %v2486 = vunpack.c.h.b16 %v181
    %v2487 = vunpack.c.l.b16 %v182
    %v2488 = vunpack.c.h.b16 %v182
    %v2489 = vunpack.c.l.b16 %v183
    %v2490 = vunpack.c.h.b16 %v183
    %v2491 = vunpack.c.l.b16 %v184
    %v2492 = vunpack.c.h.b16 %v184
    %v2493 = vunpack.c.l.b16 %v185
    %v2494 = vunpack.c.h.b16 %v185
    %v2495 = vunpack.c.l.b16 %v186
    %v2496 = vunpack.c.h.b16 %v186
    %v2497 = vunpack.c.l.b16 %v187
    %v2498 = vunpack.c.l.b16 %v188
    %v2499 = vunpack.c.h.b16 %v188
    %v2500 = vunpack.c.l.b16 %v189
    %v2501 = vunpack.c.h.b16 %v189
    %v2502 = vunpack.c.l.b16 %v190
    %v2503 = vunpack.c.h.b16 %v190
    %v2504 = vunpack.c.l.b16 %v191
    %v2505 = vunpack.c.h.b16 %v191
    %v2506 = vunpack.c.l.b16 %v192
    %v2507 = vunpack.c.h.b16 %v192
    %v2508 = vunpack.c.l.b16 %v193
    %v2509 = vunpack.c.h.b16 %v193
    %v2510 = vunpack.c.l.b16 %v194
    %v2511 = vunpack.c.h.b16 %v194
    %v2512 = vunpack.c.l.b16 %v195
    %v2513 = vunpack.c.h.b16 %v195
    %v2514 = vunpack.c.l.b16 %v196
    %v2515 = vunpack.c.h.b16 %v196
    %v2516 = vunpack.c.l.b16 %v197
    %v2517 = vunpack.c.h.b16 %v197
    %v2518 = vunpack.c.l.b16 %v198
    %v2519 = vunpack.c.h.b16 %v198
    %v2520 = vunpack.c.l.b16 %v199
    %v2521 = vunpack.c.l.b16 %v200
    %v2522 = vunpack.c.h.b16 %v200
    %v2523 = vunpack.c.l.b16 %v201
    %v2524 = vunpack.c.h.b16 %v201
    %v2525 = vunpack.c.l.b16 %v202
    %v2526 = vunpack.c.h.b16 %v202
    %v2527 = vunpack.c.l.b16 %v203
    %v2528 = vunpack.c.h.b16 %v203
    %v2529 = vunpack.c.l.b16 %v204
    %v2530 = vunpack.c.h.b16 %v204
    %v2531 = vunpack.c.l.b16 %v205
    %v2532 = vunpack.c.h.b16 %v205
    %v2533 = vunpack.c.l.b16 %v206
    %v2534 = vunpack.c.h.b16 %v206
    %v2535 = vunpack.c.l.b16 %v207
    %v2536 = vunpack.c.h.b16 %v207
    %v2537 = vunpack.c.l.b16 %v208
    %v2538 = vunpack.c.h.b16 %v208
    %v2539 = vunpack.c.l.b16 %v209
    %v2540 = vunpack.c.h.b16 %v209
    %v2541 = vunpack.c.l.b16 %v210
    %v2542 = vunpack.c.h.b16 %v210
    %v2543 = vunpack.c.l.b16 %v211
    %v2544 = vunpack.c.l.b16 %v212
    %v2545 = vunpack.c.h.b16 %v212
    %v2546 = vunpack.c.l.b16 %v213
    %v2547 = vunpack.c.h.b16 %v213
    %v2548 = vunpack.c.l.b16 %v214
    %v2549 = vunpack.c.h.b16 %v214
    %v2550 = vunpack.c.l.b16 %v215
    %v2551 = vunpack.c.h.b16 %v215
    %v2552 = vunpack.c.l.b16 %v216
    %v2553 = vunpack.c.h.b16 %v216
    %v2554 = vunpack.c.l.b16 %v217
    %v2555 = vunpack.c.h.b16 %v217
    %v2556 = vunpack.c.l.b16 %v218
    %v2557 = vunpack.c.h.b16 %v218
    %v2558 = vunpack.c.l.b16 %v219
    %v2559 = vunpack.c.h.b16 %v219
    %v2560 = vunpack.c.l.b16 %v220
    %v2561 = vunpack.c.h.b16 %v220
    %v2562 = vunpack.c.l.b16 %v221
    %v2563 = vunpack.c.h.b16 %v221
    %v2564 = vunpack.c.l.b16 %v222
    %v2565 = vunpack.c.h.b16 %v222
    %v2566 = vunpack.c.l.b16 %v223
    %v2567 = vunpack.c.l.b16 %v224
    %v2568 = vunpack.c.h.b16 %v224
    %v2569 = vunpack.c.l.b16 %v225
    %v2570 = vunpack.c.h.b16 %v225
    %v2571 = vunpack.c.l.b16 %v226
    %v2572 = vunpack.c.h.b16 %v226
    %v2573 = vunpack.c.l.b16 %v227
    %v2574 = vunpack.c.h.b16 %v227
    %v2575 = vunpack.c.l.b16 %v228
    %v2576 = vunpack.c.h.b16 %v228
    %v2577 = vunpack.c.l.b16 %v229
    %v2578 = vunpack.c.h.b16 %v229
    %v2579 = vunpack.c.l.b16 %v230
    %v2580 = vunpack.c.h.b16 %v230
    %v2581 = vunpack.c.l.b16 %v231
    %v2582 = vunpack.c.h.b16 %v231
    %v2583 = vunpack.c.l.b16 %v232
    %v2584 = vunpack.c.h.b16 %v232
    %v2585 = vunpack.c.l.b16 %v233
    %v2586 = vunpack.c.h.b16 %v233
    %v2587 = vunpack.c.l.b16 %v234
    %v2588 = vunpack.c.h.b16 %v234
    %v2589 = vunpack.c.l.b16 %v235
    %v2590 = vunpack.c.l.b16 %v236
    %v2591 = vunpack.c.h.b16 %v236
    %v2592 = vunpack.c.l.b16 %v237
    %v2593 = vunpack.c.h.b16 %v237
    %v2594 = vunpack.c.l.b16 %v238
    %v2595 = vunpack.c.h.b16 %v238
    %v2596 = vunpack.c.l.b16 %v239
    %v2597 = vunpack.c.h.b16 %v239
    %v2598 = vunpack.c.l.b16 %v240
    %v2599 = vunpack.c.h.b16 %v240
    %v2600 = vunpack.c.l.b16 %v241
    %v2601 = vunpack.c.h.b16 %v241
    %v2602 = vunpack.c.l.b16 %v242
    %v2603 = vunpack.c.h.b16 %v242
    %v2604 = vunpack.c.l.b16 %v243
    %v2605 = vunpack.c.h.b16 %v243
    %v2606 = vunpack.c.l.b16 %v244
    %v2607 = vunpack.c.h.b16 %v244
    %v2608 = vunpack.c.l.b16 %v245
    %v2609 = vunpack.c.h.b16 %v245
    %v2610 = vunpack.c.l.b16 %v246
    %v2611 = vunpack.c.h.b16 %v246
    %v2612 = vunpack.c.l.b16 %v247
    %v2613 = vunpack.c.l.b16 %v248
    %v2614 = vunpack.c.h.b16 %v248
    %v2615 = vunpack.c.l.b16 %v249
    %v2616 = vunpack.c.h.b16 %v249
    %v2617 = vunpack.c.l.b16 %v250
    %v2618 = vunpack.c.h.b16 %v250
    %v2619 = vunpack.c.l.b16 %v251
    %v2620 = vunpack.c.h.b16 %v251
    %v2621 = vunpack.c.l.b16 %v252
    %v2622 = vunpack.c.h.b16 %v252
    %v2623 = vunpack.c.l.b16 %v253
    %v2624 = vunpack.c.h.b16 %v253
    %v2625 = vunpack.c.l.b16 %v254
    %v2626 = vunpack.c.h.b16 %v254
    %v2627 = vunpack.c.l.b16 %v255
    %v2628 = vunpack.c.h.b16 %v255
    %v2629 = vunpack.c.l.b16 %v256
    %v2630 = vunpack.c.h.b16 %v256
    %v2631 = vunpack.c.l.b16 %v257
    %v2632 = vunpack.c.h.b16 %v257
    %v2633 = vunpack.c.l.b16 %v258
    %v2634 = vunpack.c.h.b16 %v258
    %v2635 = vunpack.c.l.b16 %v259
    %v2636 = vunpack.c.l.b16 %v260
    %v2637 = vunpack.c.h.b16 %v260
    %v2638 = vunpack.c.l.b16 %v261
    %v2639 = vunpack.c.h.b16 %v261
    %v2640 = vunpack.c.l.b16 %v262
    %v2641 = vunpack.c.h.b16 %v262
    %v2642 = vunpack.c.l.b16 %v263
    %v2643 = vunpack.c.h.b16 %v263
    %v2644 = vunpack.c.l.b16 %v264
    %v2645 = vunpack.c.h.b16 %v264
    %v2646 = vunpack.c.l.b16 %v265
    %v2647 = vunpack.c.h.b16 %v265
    %v2648 = vunpack.c.l.b16 %v266
    %v2649 = vunpack.c.h.b16 %v266
    %v2650 = vunpack.c.l.b16 %v267
    %v2651 = vunpack.c.h.b16 %v267
    %v2652 = vunpack.c.l.b16 %v268
    %v2653 = vunpack.c.h.b16 %v268
    %v2654 = vunpack.c.l.b16 %v269
    %v2655 = vunpack.c.h.b16 %v269
    %v2656 = vunpack.c.l.b16 %v270
    %v2657 = vunpack.c.h.b16 %v270
    %v2658 = vunpack.c.l.b16 %v271
    %v2659 = vunpack.c.l.b16 %v272
    %v2660 = vunpack.c.h.b16 %v272
    %v2661 = vunpack.c.l.b16 %v273
    %v2662 = vunpack.c.h.b16 %v273
    %v2663 = vunpack.c.l.b16 %v274
    %v2664 = vunpack.c.h.b16 %v274
    %v2665 = vunpack.c.l.b16 %v275
    %v2666 = vunpack.c.h.b16 %v275
    %v2667 = vunpack.c.l.b16 %v276
    %v2668 = vunpack.c.h.b16 %v276
    %v2669 = vunpack.c.l.b16 %v277
    %v2670 = vunpack.c.h.b16 %v277
    %v2671 = vunpack.c.l.b16 %v278
    %v2672 = vunpack.c.h.b16 %v278
    %v2673 = vunpack.c.l.b16 %v279
    %v2674 = vunpack.c.h.b16 %v279
    %v2675 = vunpack.c.l.b16 %v280
    %v2676 = vunpack.c.h.b16 %v280
    %v2677 = vunpack.c.l.b16 %v281
    %v2678 = vunpack.c.h.b16 %v281
    %v2679 = vunpack.c.l.b16 %v282
    %v2680 = vunpack.c.h.b16 %v282
    %v2681 = vunpack.c.l.b16 %v283
    %v2682 = vunpack.c.l.b16 %v284
    %v2683 = vunpack.c.h.b16 %v284
    %v2684 = vunpack.c.l.b16 %v285
    %v2685 = vunpack.c.h.b16 %v285
    %v2686 = vunpack.c.l.b16 %v286
    %v2687 = vunpack.c.h.b16 %v286
    %v2688 = vunpack.c.l.b16 %v287
    %v2689 = vunpack.c.h.b16 %v287
    %v2690 = vunpack.c.l.b16 %v288
    %v2691 = vunpack.c.h.b16 %v288
    %v2692 = vunpack.c.l.b16 %v289
    %v2693 = vunpack.c.h.b16 %v289
    %v2694 = vunpack.c.l.b16 %v290
    %v2695 = vunpack.c.h.b16 %v290
    %v2696 = vunpack.c.l.b16 %v291
    %v2697 = vunpack.c.h.b16 %v291
    %v2698 = vunpack.c.l.b16 %v292
    %v2699 = vunpack.c.h.b16 %v292
    %v2700 = vunpack.c.l.b16 %v293
    %v2701 = vunpack.c.h.b16 %v293
    %v2702 = vunpack.c.l.b16 %v294
    %v2703 = vunpack.c.h.b16 %v294
    %v2704 = vunpack.c.l.b16 %v295
    %v2705 = vunpack.c.l.b16 %v296
    %v2706 = vunpack.c.h.b16 %v296
    %v2707 = vunpack.c.l.b16 %v297
    %v2708 = vunpack.c.h.b16 %v297
    %v2709 = vunpack.c.l.b16 %v298
    %v2710 = vunpack.c.h.b16 %v298
    %v2711 = vunpack.c.l.b16 %v299
    %v2712 = vunpack.c.h.b16 %v299
    %v2713 = vunpack.c.l.b16 %v300
    %v2714 = vunpack.c.h.b16 %v300
    %v2715 = vunpack.c.l.b16 %v301
    %v2716 = vunpack.c.h.b16 %v301
    %v2717 = vunpack.c.l.b16 %v302
    %v2718 = vunpack.c.h.b16 %v302
    %v2719 = vunpack.c.l.b16 %v303
    %v2720 = vunpack.c.h.b16 %v303
    %v2721 = vunpack.c.l.b16 %v304
    %v2722 = vunpack.c.h.b16 %v304
    %v2723 = vunpack.c.l.b16 %v305
    %v2724 = vunpack.c.h.b16 %v305
    %v2725 = vunpack.c.l.b16 %v306
    %v2726 = vunpack.c.h.b16 %v306
    %v2727 = vunpack.c.l.b16 %v307
    %v2728 = vunpack.c.l.b16 %v308
    %v2729 = vunpack.c.h.b16 %v308
    %v2730 = vunpack.c.l.b16 %v309
    %v2731 = vunpack.c.h.b16 %v309
    %v2732 = vunpack.c.l.b16 %v310
    %v2733 = vunpack.c.h.b16 %v310
    %v2734 = vunpack.c.l.b16 %v311
    %v2735 = vunpack.c.h.b16 %v311
    %v2736 = vunpack.c.l.b16 %v312
    %v2737 = vunpack.c.h.b16 %v312
    %v2738 = vunpack.c.l.b16 %v313
    %v2739 = vunpack.c.h.b16 %v313
    %v2740 = vunpack.c.l.b16 %v314
    %v2741 = vunpack.c.h.b16 %v314
    %v2742 = vunpack.c.l.b16 %v315
    %v2743 = vunpack.c.h.b16 %v315
    %v2744 = vunpack.c.l.b16 %v316
    %v2745 = vunpack.c.h.b16 %v316
    %v2746 = vunpack.c.l.b16 %v317
    %v2747 = vunpack.c.h.b16 %v317
    %v2748 = vunpack.c.l.b16 %v318
    %v2749 = vunpack.c.h.b16 %v318
    %v2750 = vunpack.c.l.b16 %v319
    %v2751 = vunpack.c.l.b16 %v320
    %v2752 = vunpack.c.h.b16 %v320
    %v2753 = vunpack.c.l.b16 %v321
    %v2754 = vunpack.c.h.b16 %v321
    %v2755 = vunpack.c.l.b16 %v322
    %v2756 = vunpack.c.h.b16 %v322
    %v2757 = vunpack.c.l.b16 %v323
    %v2758 = vunpack.c.h.b16 %v323
    %v2759 = vunpack.c.l.b16 %v324
    %v2760 = vunpack.c.h.b16 %v324
    %v2761 = vunpack.c.l.b16 %v325
    %v2762 = vunpack.c.h.b16 %v325
    %v2763 = vunpack.c.l.b16 %v326
    %v2764 = vunpack.c.h.b16 %v326
    %v2765 = vunpack.c.l.b16 %v327
    %v2766 = vunpack.c.h.b16 %v327
    %v2767 = vunpack.c.l.b16 %v328
    %v2768 = vunpack.c.h.b16 %v328
    %v2769 = vunpack.c.l.b16 %v329
    %v2770 = vunpack.c.h.b16 %v329
    %v2771 = vunpack.c.l.b16 %v330
    %v2772 = vunpack.c.h.b16 %v330
    %v2773 = vunpack.c.l.b16 %v331
    %v2774 = vunpack.c.l.b16 %v332
    %v2775 = vunpack.c.h.b16 %v332
    %v2776 = vunpack.c.l.b16 %v333
    %v2777 = vunpack.c.h.b16 %v333
    %v2778 = vunpack.c.l.b16 %v334
    %v2779 = vunpack.c.h.b16 %v334
    %v2780 = vunpack.c.l.b16 %v335
    %v2781 = vunpack.c.h.b16 %v335
    %v2782 = vunpack.c.l.b16 %v336
    %v2783 = vunpack.c.h.b16 %v336
    %v2784 = vunpack.c.l.b16 %v337
    %v2785 = vunpack.c.h.b16 %v337
    %v2786 = vunpack.c.l.b16 %v338
    %v2787 = vunpack.c.h.b16 %v338
    %v2788 = vunpack.c.l.b16 %v339
    %v2789 = vunpack.c.h.b16 %v339
    %v2790 = vunpack.c.l.b16 %v340
    %v2791 = vunpack.c.h.b16 %v340
    %v2792 = vunpack.c.l.b16 %v341
    %v2793 = vunpack.c.h.b16 %v341
    %v2794 = vunpack.c.l.b16 %v342
    %v2795 = vunpack.c.h.b16 %v342
    %v2796 = vunpack.c.l.b16 %v343
    %v2797 = vunpack.c.l.b16 %v344
    %v2798 = vunpack.c.h.b16 %v344
    %v2799 = vunpack.c.l.b16 %v345
    %v2800 = vunpack.c.h.b16 %v345
    %v2801 = vunpack.c.l.b16 %v346
    %v2802 = vunpack.c.h.b16 %v346
    %v2803 = vunpack.c.l.b16 %v347
    %v2804 = vunpack.c.h.b16 %v347
    %v2805 = vunpack.c.l.b16 %v348
    %v2806 = vunpack.c.h.b16 %v348
    %v2807 = vunpack.c.l.b16 %v349
    %v2808 = vunpack.c.h.b16 %v349
    %v2809 = vunpack.c.l.b16 %v350
    %v2810 = vunpack.c.h.b16 %v350
    %v2811 = vunpack.c.l.b16 %v351
    %v2812 = vunpack.c.h.b16 %v351
    %v2813 = vunpack.c.l.b16 %v352
    %v2814 = vunpack.c.h.b16 %v352
    %v2815 = vunpack.c.l.b16 %v353
    %v2816 = vunpack.c.h.b16 %v353
    %v2817 = vunpack.c.l.b16 %v354
    %v2818 = vunpack.c.h.b16 %v354
    %v2819 = vunpack.c.l.b16 %v355
    %v2820 = vunpack.c.l.b16 %v356
    %v2821 = vunpack.c.h.b16 %v356
    %v2822 = vunpack.c.l.b16 %v357
    %v2823 = vunpack.c.h.b16 %v357
    %v2824 = vunpack.c.l.b16 %v358
    %v2825 = vunpack.c.h.b16 %v358
    %v2826 = vunpack.c.l.b16 %v359
    %v2827 = vunpack.c.h.b16 %v359
    %v2828 = vunpack.c.l.b16 %v360
    %v2829 = vunpack.c.h.b16 %v360
    %v2830 = vunpack.c.l.b16 %v361
    %v2831 = vunpack.c.h.b16 %v361
    %v2832 = vunpack.c.l.b16 %v362
    %v2833 = vunpack.c.h.b16 %v362
    %v2834 = vunpack.c.l.b16 %v363
    %v2835 = vunpack.c.h.b16 %v363
    %v2836 = vunpack.c.l.b16 %v364
    %v2837 = vunpack.c.h.b16 %v364
    %v2838 = vunpack.c.l.b16 %v365
    %v2839 = vunpack.c.h.b16 %v365
    %v2840 = vunpack.c.l.b16 %v366
    %v2841 = vunpack.c.h.b16 %v366
    %v2842 = vunpack.c.l.b16 %v367
    %v2843 = vunpack.c.l.b16 %v368
    %v2844 = vunpack.c.h.b16 %v368
    %v2845 = vunpack.c.l.b16 %v369
    %v2846 = vunpack.c.h.b16 %v369
    %v2847 = vunpack.c.l.b16 %v370
    %v2848 = vunpack.c.h.b16 %v370
    %v2849 = vunpack.c.l.b16 %v371
    %v2850 = vunpack.c.h.b16 %v371
    %v2851 = vunpack.c.l.b16 %v372
    %v2852 = vunpack.c.h.b16 %v372
    %v2853 = vunpack.c.l.b16 %v373
    %v2854 = vunpack.c.h.b16 %v373
    %v2855 = vunpack.c.l.b16 %v374
    %v2856 = vunpack.c.h.b16 %v374
    %v2857 = vunpack.c.l.b16 %v375
    %v2858 = vunpack.c.h.b16 %v375
    %v2859 = vunpack.c.l.b16 %v376
    %v2860 = vunpack.c.h.b16 %v376
    %v2861 = vunpack.c.l.b16 %v377
    %v2862 = vunpack.c.h.b16 %v377
    %v2863 = vunpack.c.l.b16 %v378
    %v2864 = vunpack.c.h.b16 %v378
    %v2865 = vunpack.c.l.b16 %v379
    %v2866 = vunpack.c.l.b16 %v380
    %v2867 = vunpack.c.h.b16 %v380
    %v2868 = vunpack.c.l.b16 %v381
    %v2869 = vunpack.c.h.b16 %v381
    %v2870 = vunpack.c.l.b16 %v382
    %v2871 = vunpack.c.h.b16 %v382
    %v2872 = vunpack.c.l.b16 %v383
    %v2873 = vunpack.c.h.b16 %v383
    %v2874 = vunpack.c.l.b16 %v384
    %v2875 = vunpack.c.h.b16 %v384
    %v2876 = vunpack.c.l.b16 %v385
    %v2877 = vunpack.c.h.b16 %v385
    %v2878 = vunpack.c.l.b16 %v386
    %v2879 = vunpack.c.h.b16 %v386
    %v2880 = vunpack.c.l.b16 %v387
    %v2881 = vunpack.c.h.b16 %v387
    %v2882 = vunpack.c.l.b16 %v388
    %v2883 = vunpack.c.h.b16 %v388
    %v2884 = vunpack.c.l.b16 %v389
    %v2885 = vunpack.c.h.b16 %v389
    %v2886 = vunpack.c.l.b16 %v390
    %v2887 = vunpack.c.h.b16 %v390
    %v2888 = vunpack.c.l.b16 %v391
    %v2889 = vunpack.c.l.b16 %v392
    %v2890 = vunpack.c.h.b16 %v392
    %v2891 = vunpack.c.l.b16 %v393
    %v2892 = vunpack.c.h.b16 %v393
    %v2893 = vunpack.c.l.b16 %v394
    %v2894 = vunpack.c.h.b16 %v394
    %v2895 = vunpack.c.l.b16 %v395
    %v2896 = vunpack.c.h.b16 %v395
    %v2897 = vunpack.c.l.b16 %v396
    %v2898 = vunpack.c.h.b16 %v396
    %v2899 = vunpack.c.l.b16 %v397
    %v2900 = vunpack.c.h.b16 %v397
    %v2901 = vunpack.c.l.b16 %v398
    %v2902 = vunpack.c.h.b16 %v398
    %v2903 = vunpack.c.l.b16 %v399
    %v2904 = vunpack.c.h.b16 %v399
    %v2905 = vunpack.c.l.b16 %v400
    %v2906 = vunpack.c.h.b16 %v400
    %v2907 = vunpack.c.l.b16 %v401
    %v2908 = vunpack.c.h.b16 %v401
    %v2909 = vunpack.c.l.b16 %v402
    %v2910 = vunpack.c.h.b16 %v402
    %v2911 = vunpack.c.l.b16 %v403
    %v2912 = vunpack.c.l.b16 %v404
    %v2913 = vunpack.c.h.b16 %v404
    %v2914 = vunpack.c.l.b16 %v405
    %v2915 = vunpack.c.h.b16 %v405
    %v2916 = vunpack.c.l.b16 %v406
    %v2917 = vunpack.c.h.b16 %v406
    %v2918 = vunpack.c.l.b16 %v407
    %v2919 = vunpack.c.h.b16 %v407
    %v2920 = vunpack.c.l.b16 %v408
    %v2921 = vunpack.c.h.b16 %v408
    %v2922 = vunpack.c.l.b16 %v409
    %v2923 = vunpack.c.h.b16 %v409
    %v2924 = vunpack.c.l.b16 %v410
    %v2925 = vunpack.c.h.b16 %v410
    %v2926 = vunpack.c.l.b16 %v411
    %v2927 = vunpack.c.h.b16 %v411
    %v2928 = vunpack.c.l.b16 %v412
    %v2929 = vunpack.c.h.b16 %v412
    %v2930 = vunpack.c.l.b16 %v413
    %v2931 = vunpack.c.h.b16 %v413
    %v2932 = vunpack.c.l.b16 %v414
    %v2933 = vunpack.c.h.b16 %v414
    %v2934 = vunpack.c.l.b16 %v415
    %v2935 = vunpack.c.l.b16 %v416
    %v2936 = vunpack.c.h.b16 %v416
    %v2937 = vunpack.c.l.b16 %v417
    %v2938 = vunpack.c.h.b16 %v417
    %v2939 = vunpack.c.l.b16 %v418
    %v2940 = vunpack.c.h.b16 %v418
    %v2941 = vunpack.c.l.b16 %v419
    %v2942 = vunpack.c.h.b16 %v419
    %v2943 = vunpack.c.l.b16 %v420
    %v2944 = vunpack.c.h.b16 %v420
    %v2945 = vunpack.c.l.b16 %v421
    %v2946 = vunpack.c.h.b16 %v421
    %v2947 = vunpack.c.l.b16 %v422
    %v2948 = vunpack.c.h.b16 %v422
    %v2949 = vunpack.c.l.b16 %v423
    %v2950 = vunpack.c.h.b16 %v423
    %v2951 = vunpack.c.l.b16 %v424
    %v2952 = vunpack.c.h.b16 %v424
    %v2953 = vunpack.c.l.b16 %v425
    %v2954 = vunpack.c.h.b16 %v425
    %v2955 = vunpack.c.l.b16 %v426
    %v2956 = vunpack.c.h.b16 %v426
    %v2957 = vunpack.c.l.b16 %v427
    %v2958 = vunpack.c.l.b16 %v428
    %v2959 = vunpack.c.h.b16 %v428
    %v2960 = vunpack.c.l.b16 %v429
    %v2961 = vunpack.c.h.b16 %v429
    %v2962 = vunpack.c.l.b16 %v430
    %v2963 = vunpack.c.h.b16 %v430
    %v2964 = vunpack.c.l.b16 %v431
    %v2965 = vunpack.c.h.b16 %v431
    %v2966 = vunpack.c.l.b16 %v432
    %v2967 = vunpack.c.h.b16 %v432
    %v2968 = vunpack.c.l.b16 %v433
    %v2969 = vunpack.c.h.b16 %v433
    %v2970 = vunpack.c.l.b16 %v434
    %v2971 = vunpack.c.h.b16 %v434
    %v2972 = vunpack.c.l.b16 %v435
    %v2973 = vunpack.c.h.b16 %v435
    %v2974 = vunpack.c.l.b16 %v436
    %v2975 = vunpack.c.h.b16 %v436
    %v2976 = vunpack.c.l.b16 %v437
    %v2977 = vunpack.c.h.b16 %v437
    %v2978 = vunpack.c.l.b16 %v438
    %v2979 = vunpack.c.h.b16 %v438
    %v2980 = vunpack.c.l.b16 %v439
    %v2981 = vunpack.c.l.b16 %v440
    %v2982 = vunpack.c.h.b16 %v440
    %v2983 = vunpack.c.l.b16 %v441
    %v2984 = vunpack.c.h.b16 %v441
    %v2985 = vunpack.c.l.b16 %v442
    %v2986 = vunpack.c.h.b16 %v442
    %v2987 = vunpack.c.l.b16 %v443
    %v2988 = vunpack.c.h.b16 %v443
    %v2989 = vunpack.c.l.b16 %v444
    %v2990 = vunpack.c.h.b16 %v444
    %v2991 = vunpack.c.l.b16 %v445
    %v2992 = vunpack.c.h.b16 %v445
    %v2993 = vunpack.c.l.b16 %v446
    %v2994 = vunpack.c.h.b16 %v446
    %v2995 = vunpack.c.l.b16 %v447
    %v2996 = vunpack.c.h.b16 %v447
    %v2997 = vunpack.c.l.b16 %v448
    %v2998 = vunpack.c.h.b16 %v448
    %v2999 = vunpack.c.l.b16 %v449
    %v3000 = vunpack.c.h.b16 %v449
    %v3001 = vunpack.c.l.b16 %v450
    %v3002 = vunpack.c.h.b16 %v450
    %v3003 = vunpack.c.l.b16 %v451
    %v3004 = vunpack.c.l.b16 %v452
    %v3005 = vunpack.c.h.b16 %v452
    %v3006 = vunpack.c.l.b16 %v453
    %v3007 = vunpack.c.h.b16 %v453
    %v3008 = vunpack.c.l.b16 %v454
    %v3009 = vunpack.c.h.b16 %v454
    %v3010 = vunpack.c.l.b16 %v455
    %v3011 = vunpack.c.h.b16 %v455
    %v3012 = vunpack.c.l.b16 %v456
    %v3013 = vunpack.c.h.b16 %v456
    %v3014 = vunpack.c.l.b16 %v457
    %v3015 = vunpack.c.h.b16 %v457
    %v3016 = vunpack.c.l.b16 %v458
    %v3017 = vunpack.c.h.b16 %v458
    %v3018 = vunpack.c.l.b16 %v459
    %v3019 = vunpack.c.h.b16 %v459
    %v3020 = vunpack.c.l.b16 %v460
    %v3021 = vunpack.c.h.b16 %v460
    %v3022 = vunpack.c.l.b16 %v461
    %v3023 = vunpack.c.h.b16 %v461
    %v3024 = vunpack.c.l.b16 %v462
    %v3025 = vunpack.c.h.b16 %v462
    %v3026 = vunpack.c.l.b16 %v463
    %v3027 = vunpack.c.l.b16 %v464
    %v3028 = vunpack.c.h.b16 %v464
    %v3029 = vunpack.c.l.b16 %v465
    %v3030 = vunpack.c.h.b16 %v465
    %v3031 = vunpack.c.l.b16 %v466
    %v3032 = vunpack.c.h.b16 %v466
    %v3033 = vunpack.c.l.b16 %v467
    %v3034 = vunpack.c.h.b16 %v467
    %v3035 = vunpack.c.l.b16 %v468
    %v3036 = vunpack.c.h.b16 %v468
    %v3037 = vunpack.c.l.b16 %v469
    %v3038 = vunpack.c.h.b16 %v469
    %v3039 = vunpack.c.l.b16 %v470
    %v3040 = vunpack.c.h.b16 %v470
    %v3041 = vunpack.c.l.b16 %v471
    %v3042 = vunpack.c.h.b16 %v471
    %v3043 = vunpack.c.l.b16 %v472
    %v3044 = vunpack.c.h.b16 %v472
    %v3045 = vunpack.c.l.b16 %v473
    %v3046 = vunpack.c.h.b16 %v473
    %v3047 = vunpack.c.l.b16 %v474
    %v3048 = vunpack.c.h.b16 %v474
    %v3049 = vunpack.c.l.b16 %v475
    %v3050 = vunpack.c.l.b16 %v476
    %v3051 = vunpack.c.h.b16 %v476
    %v3052 = vunpack.c.l.b16 %v477
    %v3053 = vunpack.c.h.b16 %v477
    %v3054 = vunpack.c.l.b16 %v478
    %v3055 = vunpack.c.h.b16 %v478
    %v3056 = vunpack.c.l.b16 %v479
    %v3057 = vunpack.c.h.b16 %v479
    %v3058 = vunpack.c.l.b16 %v480
    %v3059 = vunpack.c.h.b16 %v480
    %v3060 = vunpack.c.l.b16 %v481
    %v3061 = vunpack.c.h.b16 %v481
    %v3062 = vunpack.c.l.b16 %v482
    %v3063 = vunpack.c.h.b16 %v482
    %v3064 = vunpack.c.l.b16 %v483
    %v3065 = vunpack.c.h.b16 %v483
    %v3066 = vunpack.c.l.b16 %v484
    %v3067 = vunpack.c.h.b16 %v484
    %v3068 = vunpack.c.l.b16 %v485
    %v3069 = vunpack.c.h.b16 %v485
    %v3070 = vunpack.c.l.b16 %v486
    %v3071 = vunpack.c.h.b16 %v486
    %v3072 = vunpack.c.l.b16 %v487
    %v3073 = vunpack.c.l.b16 %v488
    %v3074 = vunpack.c.h.b16 %v488
    %v3075 = vunpack.c.l.b16 %v489
    %v3076 = vunpack.c.h.b16 %v489
    %v3077 = vunpack.c.l.b16 %v490
    %v3078 = vunpack.c.h.b16 %v490
    %v3079 = vunpack.c.l.b16 %v491
    %v3080 = vunpack.c.h.b16 %v491
    %v3081 = vunpack.c.l.b16 %v492
    %v3082 = vunpack.c.h.b16 %v492
    %v3083 = vunpack.c.l.b16 %v493
    %v3084 = vunpack.c.h.b16 %v493
    %v3085 = vunpack.c.l.b16 %v494
    %v3086 = vunpack.c.h.b16 %v494
    %v3087 = vunpack.c.l.b16 %v495
    %v3088 = vunpack.c.h.b16 %v495
    %v3089 = vunpack.c.l.b16 %v496
    %v3090 = vunpack.c.h.b16 %v496
    %v3091 = vunpack.c.l.b16 %v497
    %v3092 = vunpack.c.h.b16 %v497
    %v3093 = vunpack.c.l.b16 %v498
    %v3094 = vunpack.c.h.b16 %v498
    %v3095 = vunpack.c.l.b16 %v499
    %v3096 = vunpack.c.l.b16 %v500
    %v3097 = vunpack.c.h.b16 %v500
    %v3098 = vunpack.c.l.b16 %v501
    %v3099 = vunpack.c.h.b16 %v501
    %v3100 = vunpack.c.l.b16 %v502
    %v3101 = vunpack.c.h.b16 %v502
    %v3102 = vunpack.c.l.b16 %v503
    %v3103 = vunpack.c.h.b16 %v503
    %v3104 = vunpack.c.l.b16 %v504
    %v3105 = vunpack.c.h.b16 %v504
    %v3106 = vunpack.c.l.b16 %v505
    %v3107 = vunpack.c.h.b16 %v505
    %v3108 = vunpack.c.l.b16 %v506
    %v3109 = vunpack.c.h.b16 %v506
    %v3110 = vunpack.c.l.b16 %v507
    %v3111 = vunpack.c.h.b16 %v507
    %v3112 = vunpack.c.l.b16 %v508
    %v3113 = vunpack.c.h.b16 %v508
    %v3114 = vunpack.c.l.b16 %v509
    %v3115 = vunpack.c.h.b16 %v509
    %v3116 = vunpack.c.l.b16 %v510
    %v3117 = vunpack.c.h.b16 %v510
    %v3118 = vunpack.c.l.b16 %v511
    %v3119 = vunpack.c.l.b16 %v512
    %v3120 = vunpack.c.h.b16 %v512
    %v3121 = vunpack.c.l.b16 %v513
    %v3122 = vunpack.c.h.b16 %v513
    %v3123 = vunpack.c.l.b16 %v514
    %v3124 = vunpack.c.h.b16 %v514
    %v3125 = vunpack.c.l.b16 %v515
    %v3126 = vunpack.c.h.b16 %v515
    %v3127 = vunpack.c.l.b16 %v516
    %v3128 = vunpack.c.h.b16 %v516
    %v3129 = vunpack.c.l.b16 %v517
    %v3130 = vunpack.c.h.b16 %v517
    %v3131 = vunpack.c.l.b16 %v518
    %v3132 = vunpack.c.h.b16 %v518
    %v3133 = vunpack.c.l.b16 %v519
    %v3134 = vunpack.c.h.b16 %v519
    %v3135 = vunpack.c.l.b16 %v520
    %v3136 = vunpack.c.h.b16 %v520
    %v3137 = vunpack.c.l.b16 %v521
    %v3138 = vunpack.c.h.b16 %v521
    %v3139 = vunpack.c.l.b16 %v522
    %v3140 = vunpack.c.h.b16 %v522
    %v3141 = vunpack.c.l.b16 %v523
    %v3142 = vunpack.c.l.b16 %v524
    %v3143 = vunpack.c.h.b16 %v524
    %v3144 = vunpack.c.l.b16 %v525
    %v3145 = vunpack.c.h.b16 %v525
    %v3146 = vunpack.c.l.b16 %v526
    %v3147 = vunpack.c.h.b16 %v526
    %v3148 = vunpack.c.l.b16 %v527
    %v3149 = vunpack.c.h.b16 %v527
    %v3150 = vunpack.c.l.b16 %v528
    %v3151 = vunpack.c.h.b16 %v528
    %v3152 = vunpack.c.l.b16 %v529
    %v3153 = vunpack.c.h.b16 %v529
    %v3154 = vunpack.c.l.b16 %v530
    %v3155 = vunpack.c.h.b16 %v530
    %v3156 = vunpack.c.l.b16 %v531
    %v3157 = vunpack.c.h.b16 %v531
    %v3158 = vunpack.c.l.b16 %v532
    %v3159 = vunpack.c.h.b16 %v532
    %v3160 = vunpack.c.l.b16 %v533
    %v3161 = vunpack.c.h.b16 %v533
    %v3162 = vunpack.c.l.b16 %v534
    %v3163 = vunpack.c.h.b16 %v534
    %v3164 = vunpack.c.l.b16 %v535
    %v3165 = vunpack.c.l.b16 %v536
    %v3166 = vunpack.c.h.b16 %v536
    %v3167 = vunpack.c.l.b16 %v537
    %v3168 = vunpack.c.h.b16 %v537
    %v3169 = vunpack.c.l.b16 %v538
    %v3170 = vunpack.c.h.b16 %v538
    %v3171 = vunpack.c.l.b16 %v539
    %v3172 = vunpack.c.h.b16 %v539
    %v3173 = vunpack.c.l.b16 %v540
    %v3174 = vunpack.c.h.b16 %v540
    %v3175 = vunpack.c.l.b16 %v541
    %v3176 = vunpack.c.h.b16 %v541
    %v3177 = vunpack.c.l.b16 %v542
    %v3178 = vunpack.c.h.b16 %v542
    %v3179 = vunpack.c.l.b16 %v543
    %v3180 = vunpack.c.h.b16 %v543
    %v3181 = vunpack.c.l.b16 %v544
    %v3182 = vunpack.c.h.b16 %v544
    %v3183 = vunpack.c.l.b16 %v545
    %v3184 = vunpack.c.h.b16 %v545
    %v3185 = vunpack.c.l.b16 %v546
    %v3186 = vunpack.c.h.b16 %v546
    %v3187 = vunpack.c.l.b16 %v547
    %v3188 = vunpack.c.l.b16 %v548
    %v3189 = vunpack.c.h.b16 %v548
    %v3190 = vunpack.c.l.b16 %v549
    %v3191 = vunpack.c.h.b16 %v549
    %v3192 = vunpack.c.l.b16 %v550
    %v3193 = vunpack.c.h.b16 %v550
    %v3194 = vunpack.c.l.b16 %v551
    %v3195 = vunpack.c.h.b16 %v551
    %v3196 = vunpack.c.l.b16 %v552
    %v3197 = vunpack.c.h.b16 %v552
    %v3198 = vunpack.c.l.b16 %v553
    %v3199 = vunpack.c.h.b16 %v553
    %v3200 = vunpack.c.l.b16 %v554
    %v3201 = vunpack.c.h.b16 %v554
    %v3202 = vunpack.c.l.b16 %v555
    %v3203 = vunpack.c.h.b16 %v555
    %v3204 = vunpack.c.l.b16 %v556
    %v3205 = vunpack.c.h.b16 %v556
    %v3206 = vunpack.c.l.b16 %v557
    %v3207 = vunpack.c.h.b16 %v557
    %v3208 = vunpack.c.l.b16 %v558
    %v3209 = vunpack.c.h.b16 %v558
    %v3210 = vunpack.c.l.b16 %v559
    %v3211 = vunpack.c.l.b16 %v560
    %v3212 = vunpack.c.h.b16 %v560
    %v3213 = vunpack.c.l.b16 %v561
    %v3214 = vunpack.c.h.b16 %v561
    %v3215 = vunpack.c.l.b16 %v562
    %v3216 = vunpack.c.h.b16 %v562
    %v3217 = vunpack.c.l.b16 %v563
    %v3218 = vunpack.c.h.b16 %v563
    %v3219 = vunpack.c.l.b16 %v564
    %v3220 = vunpack.c.h.b16 %v564
    %v3221 = vunpack.c.l.b16 %v565
    %v3222 = vunpack.c.h.b16 %v565
    %v3223 = vunpack.c.l.b16 %v566
    %v3224 = vunpack.c.h.b16 %v566
    %v3225 = vunpack.c.l.b16 %v567
    %v3226 = vunpack.c.h.b16 %v567
    %v3227 = vunpack.c.l.b16 %v568
    %v3228 = vunpack.c.h.b16 %v568
    %v3229 = vunpack.c.l.b16 %v569
    %v3230 = vunpack.c.h.b16 %v569
    %v3231 = vunpack.c.l.b16 %v570
    %v3232 = vunpack.c.h.b16 %v570
    %v3233 = vunpack.c.l.b16 %v571
    %v3234 = vunpack.c.l.b16 %v572
    %v3235 = vunpack.c.h.b16 %v572
    %v3236 = vunpack.c.l.b16 %v573
    %v3237 = vunpack.c.h.b16 %v573
    %v3238 = vunpack.c.l.b16 %v574
    %v3239 = vunpack.c.h.b16 %v574
    %v3240 = vunpack.c.l.b16 %v575
    %v3241 = vunpack.c.h.b16 %v575
    %v3242 = vunpack.c.l.b16 %v576
    %v3243 = vunpack.c.h.b16 %v576
    %v3244 = vunpack.c.l.b16 %v577
    %v3245 = vunpack.c.h.b16 %v577
    %v3246 = vunpack.c.l.b16 %v578
    %v3247 = vunpack.c.h.b16 %v578
    %v3248 = vunpack.c.l.b16 %v579
    %v3249 = vunpack.c.h.b16 %v579
    %v3250 = vunpack.c.l.b16 %v580
    %v3251 = vunpack.c.h.b16 %v580
    %v3252 = vunpack.c.l.b16 %v581
    %v3253 = vunpack.c.h.b16 %v581
    %v3254 = vunpack.c.l.b16 %v582
    %v3255 = vunpack.c.h.b16 %v582
    %v3256 = vunpack.c.l.b16 %v583
    %v3257 = vunpack.c.l.b16 %v584
    %v3258 = vunpack.c.h.b16 %v584
    %v3259 = vunpack.c.l.b16 %v585
    %v3260 = vunpack.c.h.b16 %v585
    %v3261 = vunpack.c.l.b16 %v586
    %v3262 = vunpack.c.h.b16 %v586
    %v3263 = vunpack.c.l.b16 %v587
    %v3264 = vunpack.c.h.b16 %v587
    %v3265 = vunpack.c.l.b16 %v588
    %v3266 = vunpack.c.h.b16 %v588
    %v3267 = vunpack.c.l.b16 %v589
    %v3268 = vunpack.c.h.b16 %v589
    %v3269 = vunpack.c.l.b16 %v590
    %v3270 = vunpack.c.h.b16 %v590
    %v3271 = vunpack.c.l.b16 %v591
    %v3272 = vunpack.c.h.b16 %v591
    %v3273 = vunpack.c.l.b16 %v592
    %v3274 = vunpack.c.h.b16 %v592
    %v3275 = vunpack.c.l.b16 %v593
    %v3276 = vunpack.c.h.b16 %v593
    %v3277 = vunpack.c.l.b16 %v594
    %v3278 = vunpack.c.h.b16 %v594
    %v3279 = vunpack.c.l.b16 %v595
    %v3280 = vunpack.c.l.b16 %v596
    %v3281 = vunpack.c.h.b16 %v596
    %v3282 = vunpack.c.l.b16 %v597
    %v3283 = vunpack.c.h.b16 %v597
    %v3284 = vunpack.c.l.b16 %v598
    %v3285 = vunpack.c.h.b16 %v598
    %v3286 = vunpack.c.l.b16 %v599
    %v3287 = vunpack.c.h.b16 %v599
    %v3288 = vunpack.c.l.b16 %v600
    %v3289 = vunpack.c.h.b16 %v600
    %v3290 = vunpack.c.l.b16 %v601
    %v3291 = vunpack.c.h.b16 %v601
    %v3292 = vunpack.c.l.b16 %v602
    %v3293 = vunpack.c.h.b16 %v602
    %v3294 = vunpack.c.l.b16 %v603
    %v3295 = vunpack.c.h.b16 %v603
    %v3296 = vunpack.c.l.b16 %v604
    %v3297 = vunpack.c.h.b16 %v604
    %v3298 = vunpack.c.l.b16 %v605
    %v3299 = vunpack.c.h.b16 %v605
    %v3300 = vunpack.c.l.b16 %v606
    %v3301 = vunpack.c.h.b16 %v606
    %v3302 = vunpack.c.l.b16 %v607
    %v3303 = vunpack.c.l.b16 %v608
    %v3304 = vunpack.c.h.b16 %v608
    %v3305 = vunpack.c.l.b16 %v609
    %v3306 = vunpack.c.h.b16 %v609
    %v3307 = vunpack.c.l.b16 %v610
    %v3308 = vunpack.c.h.b16 %v610
    %v3309 = vunpack.c.l.b16 %v611
    %v3310 = vunpack.c.h.b16 %v611
    %v3311 = vunpack.c.l.b16 %v612
    %v3312 = vunpack.c.h.b16 %v612
    %v3313 = vunpack.c.l.b16 %v613
    %v3314 = vunpack.c.h.b16 %v613
    %v3315 = vunpack.c.l.b16 %v614
    %v3316 = vunpack.c.h.b16 %v614
    %v3317 = vunpack.c.l.b16 %v615
    %v3318 = vunpack.c.h.b16 %v615
    %v3319 = vunpack.c.l.b16 %v616
    %v3320 = vunpack.c.h.b16 %v616
    %v3321 = vunpack.c.l.b16 %v617
    %v3322 = vunpack.c.h.b16 %v617
    %v3323 = vunpack.c.l.b16 %v618
    %v3324 = vunpack.c.h.b16 %v618
    %v3325 = vunpack.c.l.b16 %v619
    %v3326 = vunpack.c.l.b16 %v620
    %v3327 = vunpack.c.h.b16 %v620
    %v3328 = vunpack.c.l.b16 %v621
    %v3329 = vunpack.c.h.b16 %v621
    %v3330 = vunpack.c.l.b16 %v622
    %v3331 = vunpack.c.h.b16 %v622
    %v3332 = vunpack.c.l.b16 %v623
    %v3333 = vunpack.c.h.b16 %v623
    %v3334 = vunpack.c.l.b16 %v624
    %v3335 = vunpack.c.h.b16 %v624
    %v3336 = vunpack.c.l.b16 %v625
    %v3337 = vunpack.c.h.b16 %v625
    %v3338 = vunpack.c.l.b16 %v626
    %v3339 = vunpack.c.h.b16 %v626
    %v3340 = vunpack.c.l.b16 %v627
    %v3341 = vunpack.c.h.b16 %v627
    %v3342 = vunpack.c.l.b16 %v628
    %v3343 = vunpack.c.h.b16 %v628
    %v3344 = vunpack.c.l.b16 %v629
    %v3345 = vunpack.c.h.b16 %v629
    %v3346 = vunpack.c.l.b16 %v630
    %v3347 = vunpack.c.h.b16 %v630
    %v3348 = vunpack.c.l.b16 %v631
    %v3349 = vunpack.c.l.b16 %v632
    %v3350 = vunpack.c.h.b16 %v632
    %v3351 = vunpack.c.l.b16 %v633
    %v3352 = vunpack.c.h.b16 %v633
    %v3353 = vunpack.c.l.b16 %v634
    %v3354 = vunpack.c.h.b16 %v634
    %v3355 = vunpack.c.l.b16 %v635
    %v3356 = vunpack.c.h.b16 %v635
    %v3357 = vunpack.c.l.b16 %v636
    %v3358 = vunpack.c.h.b16 %v636
    %v3359 = vunpack.c.l.b16 %v637
    %v3360 = vunpack.c.h.b16 %v637
    %v3361 = vunpack.c.l.b16 %v638
    %v3362 = vunpack.c.h.b16 %v638
    %v3363 = vunpack.c.l.b16 %v639
    %v3364 = vunpack.c.h.b16 %v639
    %v3365 = vunpack.c.l.b16 %v640
    %v3366 = vunpack.c.h.b16 %v640
    %v3367 = vunpack.c.l.b16 %v641
    %v3368 = vunpack.c.h.b16 %v641
    %v3369 = vunpack.c.l.b16 %v642
    %v3370 = vunpack.c.h.b16 %v642
    %v3371 = vunpack.c.l.b16 %v643
    %v3372 = vunpack.c.l.b16 %v644
    %v3373 = vunpack.c.h.b16 %v644
    %v3374 = vunpack.c.l.b16 %v645
    %v3375 = vunpack.c.h.b16 %v645
    %v3376 = vunpack.c.l.b16 %v646
    %v3377 = vunpack.c.h.b16 %v646
    %v3378 = vunpack.c.l.b16 %v647
    %v3379 = vunpack.c.h.b16 %v647
    %v3380 = vunpack.c.l.b16 %v648
    %v3381 = vunpack.c.h.b16 %v648
    %v3382 = vunpack.c.l.b16 %v649
    %v3383 = vunpack.c.h.b16 %v649
    %v3384 = vunpack.c.l.b16 %v650
    %v3385 = vunpack.c.h.b16 %v650
    %v3386 = vunpack.c.l.b16 %v651
    %v3387 = vunpack.c.h.b16 %v651
    %v3388 = vunpack.c.l.b16 %v652
    %v3389 = vunpack.c.h.b16 %v652
    %v3390 = vunpack.c.l.b16 %v653
    %v3391 = vunpack.c.h.b16 %v653
    %v3392 = vunpack.c.l.b16 %v654
    %v3393 = vunpack.c.h.b16 %v654
    %v3394 = vunpack.c.l.b16 %v655
    %v3395 = vunpack.c.l.b16 %v656
    %v3396 = vunpack.c.h.b16 %v656
    %v3397 = vunpack.c.l.b16 %v657
    %v3398 = vunpack.c.h.b16 %v657
    %v3399 = vunpack.c.l.b16 %v658
    %v3400 = vunpack.c.h.b16 %v658
    %v3401 = vunpack.c.l.b16 %v659
    %v3402 = vunpack.c.h.b16 %v659
    %v3403 = vunpack.c.l.b16 %v660
    %v3404 = vunpack.c.h.b16 %v660
    %v3405 = vunpack.c.l.b16 %v661
    %v3406 = vunpack.c.h.b16 %v661
    %v3407 = vunpack.c.l.b16 %v662
    %v3408 = vunpack.c.h.b16 %v662
    %v3409 = vunpack.c.l.b16 %v663
    %v3410 = vunpack.c.h.b16 %v663
    %v3411 = vunpack.c.l.b16 %v664
    %v3412 = vunpack.c.h.b16 %v664
    %v3413 = vunpack.c.l.b16 %v665
    %v3414 = vunpack.c.h.b16 %v665
    %v3415 = vunpack.c.l.b16 %v666
    %v3416 = vunpack.c.h.b16 %v666
    %v3417 = vunpack.c.l.b16 %v667
    %v3418 = vunpack.c.l.b16 %v668
    %v3419 = vunpack.c.h.b16 %v668
    %v3420 = vunpack.c.l.b16 %v669
    %v3421 = vunpack.c.h.b16 %v669
    %v3422 = vunpack.c.l.b16 %v670
    %v3423 = vunpack.c.h.b16 %v670
    %v3424 = vunpack.c.l.b16 %v671
    %v3425 = vunpack.c.h.b16 %v671
    %v3426 = vunpack.c.l.b16 %v672
    %v3427 = vunpack.c.h.b16 %v672
    %v3428 = vunpack.c.l.b16 %v673
    %v3429 = vunpack.c.h.b16 %v673
    %v3430 = vunpack.c.l.b16 %v674
    %v3431 = vunpack.c.h.b16 %v674
    %v3432 = vunpack.c.l.b16 %v675
    %v3433 = vunpack.c.h.b16 %v675
    %v3434 = vunpack.c.l.b16 %v676
    %v3435 = vunpack.c.h.b16 %v676
    %v3436 = vunpack.c.l.b16 %v677
    %v3437 = vunpack.c.h.b16 %v677
    %v3438 = vunpack.c.l.b16 %v678
    %v3439 = vunpack.c.h.b16 %v678
    %v3440 = vunpack.c.l.b16 %v679
    %v3441 = vunpack.c.l.b16 %v680
    %v3442 = vunpack.c.h.b16 %v680
    %v3443 = vunpack.c.l.b16 %v681
    %v3444 = vunpack.c.h.b16 %v681
    %v3445 = vunpack.c.l.b16 %v682
    %v3446 = vunpack.c.h.b16 %v682
    %v3447 = vunpack.c.l.b16 %v683
    %v3448 = vunpack.c.h.b16 %v683
    %v3449 = vunpack.c.l.b16 %v684
    %v3450 = vunpack.c.h.b16 %v684
    %v3451 = vunpack.c.l.b16 %v685
    %v3452 = vunpack.c.h.b16 %v685
    %v3453 = vunpack.c.l.b16 %v686
    %v3454 = vunpack.c.h.b16 %v686
    %v3455 = vunpack.c.l.b16 %v687
    %v3456 = vunpack.c.h.b16 %v687
    %v3457 = vunpack.c.l.b16 %v688
    %v3458 = vunpack.c.h.b16 %v688
    %v3459 = vunpack.c.l.b16 %v689
    %v3460 = vunpack.c.h.b16 %v689
    %v3461 = vunpack.c.l.b16 %v690
    %v3462 = vunpack.c.h.b16 %v690
    %v3463 = vunpack.c.l.b16 %v691
    %v3464 = vunpack.c.l.b16 %v692
    %v3465 = vunpack.c.h.b16 %v692
    %v3466 = vunpack.c.l.b16 %v693
    %v3467 = vunpack.c.h.b16 %v693
    %v3468 = vunpack.c.l.b16 %v694
    %v3469 = vunpack.c.h.b16 %v694
    %v3470 = vunpack.c.l.b16 %v695
    %v3471 = vunpack.c.h.b16 %v695
    %v3472 = vunpack.c.l.b16 %v696
    %v3473 = vunpack.c.h.b16 %v696
    %v3474 = vunpack.c.l.b16 %v697
    %v3475 = vunpack.c.h.b16 %v697
    %v3476 = vunpack.c.l.b16 %v698
    %v3477 = vunpack.c.h.b16 %v698
    %v3478 = vunpack.c.l.b16 %v699
    %v3479 = vunpack.c.h.b16 %v699
    %v3480 = vunpack.c.l.b16 %v700
    %v3481 = vunpack.c.h.b16 %v700
    %v3482 = vunpack.c.l.b16 %v701
    %v3483 = vunpack.c.h.b16 %v701
    %v3484 = vunpack.c.l.b16 %v702
    %v3485 = vunpack.c.h.b16 %v702
    %v3486 = vunpack.c.l.b16 %v703
    %v3487 = vunpack.c.l.b16 %v704
    %v3488 = vunpack.c.h.b16 %v704
    %v3489 = vunpack.c.l.b16 %v705
    %v3490 = vunpack.c.h.b16 %v705
    %v3491 = vunpack.c.l.b16 %v706
    %v3492 = vunpack.c.h.b16 %v706
    %v3493 = vunpack.c.l.b16 %v707
    %v3494 = vunpack.c.h.b16 %v707
    %v3495 = vunpack.c.l.b16 %v708
    %v3496 = vunpack.c.h.b16 %v708
    %v3497 = vunpack.c.l.b16 %v709
    %v3498 = vunpack.c.h.b16 %v709
    %v3499 = vunpack.c.l.b16 %v710
    %v3500 = vunpack.c.h.b16 %v710
    %v3501 = vunpack.c.l.b16 %v711
    %v3502 = vunpack.c.h.b16 %v711
    %v3503 = vunpack.c.l.b16 %v712
    %v3504 = vunpack.c.h.b16 %v712
    %v3505 = vunpack.c.l.b16 %v713
    %v3506 = vunpack.c.h.b16 %v713
    %v3507 = vunpack.c.l.b16 %v714
    %v3508 = vunpack.c.h.b16 %v714
    %v3509 = vunpack.c.l.b16 %v715
    %v3510 = vunpack.c.l.b16 %v716
    %v3511 = vunpack.c.h.b16 %v716
    %v3512 = vunpack.c.l.b16 %v717
    %v3513 = vunpack.c.h.b16 %v717
    %v3514 = vunpack.c.l.b16 %v718
    %v3515 = vunpack.c.h.b16 %v718
    %v3516 = vunpack.c.l.b16 %v719
    %v3517 = vunpack.c.h.b16 %v719
    %v3518 = vunpack.c.l.b16 %v720
    %v3519 = vunpack.c.h.b16 %v720
    %v3520 = vunpack.c.l.b16 %v721
    %v3521 = vunpack.c.h.b16 %v721
    %v3522 = vunpack.c.l.b16 %v722
    %v3523 = vunpack.c.h.b16 %v722
    %v3524 = vunpack.c.l.b16 %v723
    %v3525 = vunpack.c.h.b16 %v723
    %v3526 = vunpack.c.l.b16 %v724
    %v3527 = vunpack.c.h.b16 %v724
    %v3528 = vunpack.c.l.b16 %v725
    %v3529 = vunpack.c.h.b16 %v725
    %v3530 = vunpack.c.l.b16 %v726
    %v3531 = vunpack.c.h.b16 %v726
    %v3532 = vunpack.c.l.b16 %v727
    %v3533 = vunpack.c.l.b16 %v728
    %v3534 = vunpack.c.h.b16 %v728
    %v3535 = vunpack.c.l.b16 %v729
    %v3536 = vunpack.c.h.b16 %v729
    %v3537 = vunpack.c.l.b16 %v730
    %v3538 = vunpack.c.h.b16 %v730
    %v3539 = vunpack.c.l.b16 %v731
    %v3540 = vunpack.c.h.b16 %v731
    %v3541 = vunpack.c.l.b16 %v732
    %v3542 = vunpack.c.h.b16 %v732
    %v3543 = vunpack.c.l.b16 %v733
    %v3544 = vunpack.c.h.b16 %v733
    %v3545 = vunpack.c.l.b16 %v734
    %v3546 = vunpack.c.h.b16 %v734
    %v3547 = vunpack.c.l.b16 %v735
    %v3548 = vunpack.c.h.b16 %v735
    %v3549 = vunpack.c.l.b16 %v736
    %v3550 = vunpack.c.h.b16 %v736
    %v3551 = vunpack.c.l.b16 %v737
    %v3552 = vunpack.c.h.b16 %v737
    %v3553 = vunpack.c.l.b16 %v738
    %v3554 = vunpack.c.h.b16 %v738
    %v3555 = vunpack.c.l.b16 %v739
    %v3556 = vunpack.c.l.b16 %v740
    %v3557 = vunpack.c.h.b16 %v740
    %v3558 = vunpack.c.l.b16 %v741
    %v3559 = vunpack.c.h.b16 %v741
    %v3560 = vunpack.c.l.b16 %v742
    %v3561 = vunpack.c.h.b16 %v742
    %v3562 = vunpack.c.l.b16 %v743
    %v3563 = vunpack.c.h.b16 %v743
    %v3564 = vunpack.c.l.b16 %v744
    %v3565 = vunpack.c.h.b16 %v744
    %v3566 = vunpack.c.l.b16 %v745
    %v3567 = vunpack.c.h.b16 %v745
    %v3568 = vunpack.c.l.b16 %v746
    %v3569 = vunpack.c.h.b16 %v746
    %v3570 = vunpack.c.l.b16 %v747
    %v3571 = vunpack.c.h.b16 %v747
    %v3572 = vunpack.c.l.b16 %v748
    %v3573 = vunpack.c.h.b16 %v748
    %v3574 = vunpack.c.l.b16 %v749
    %v3575 = vunpack.c.h.b16 %v749
    %v3576 = vunpack.c.l.b16 %v750
    %v3577 = vunpack.c.h.b16 %v750
    %v3578 = vunpack.c.l.b16 %v751
    %v3579 = vunpack.c.l.b16 %v752
    %v3580 = vunpack.c.h.b16 %v752
    %v3581 = vunpack.c.l.b16 %v753
    %v3582 = vunpack.c.h.b16 %v753
    %v3583 = vunpack.c.l.b16 %v754
    %v3584 = vunpack.c.h.b16 %v754
    %v3585 = vunpack.c.l.b16 %v755
    %v3586 = vunpack.c.h.b16 %v755
    %v3587 = vunpack.c.l.b16 %v756
    %v3588 = vunpack.c.h.b16 %v756
    %v3589 = vunpack.c.l.b16 %v757
    %v3590 = vunpack.c.h.b16 %v757
    %v3591 = vunpack.c.l.b16 %v758
    %v3592 = vunpack.c.h.b16 %v758
    %v3593 = vunpack.c.l.b16 %v759
    %v3594 = vunpack.c.h.b16 %v759
    %v3595 = vunpack.c.l.b16 %v760
    %v3596 = vunpack.c.h.b16 %v760
    %v3597 = vunpack.c.l.b16 %v761
    %v3598 = vunpack.c.h.b16 %v761
    %v3599 = vunpack.c.l.b16 %v762
    %v3600 = vunpack.c.h.b16 %v762
    %v3601 = vunpack.c.l.b16 %v763
    %v3602 = vunpack.c.l.b16 %v764
    %v3603 = vunpack.c.h.b16 %v764
    %v3604 = vunpack.c.l.b16 %v765
    %v3605 = vunpack.c.h.b16 %v765
    %v3606 = vunpack.c.l.b16 %v766
    %v3607 = vunpack.c.h.b16 %v766
    %v3608 = vunpack.c.l.b16 %v767
    %v3609 = vunpack.c.h.b16 %v767
    %v3610 = vunpack.c.l.b16 %v768
    %v3611 = vunpack.c.h.b16 %v768
    %v3612 = vunpack.c.l.b16 %v769
    %v3613 = vunpack.c.h.b16 %v769
    %v3614 = vunpack.c.l.b16 %v770
    %v3615 = vunpack.c.h.b16 %v770
    %v3616 = vunpack.c.l.b16 %v771
    %v3617 = vunpack.c.h.b16 %v771
    %v3618 = vunpack.c.l.b16 %v772
    %v3619 = vunpack.c.h.b16 %v772
    %v3620 = vunpack.c.l.b16 %v773
    %v3621 = vunpack.c.h.b16 %v773
    %v3622 = vunpack.c.l.b16 %v774
    %v3623 = vunpack.c.h.b16 %v774
    %v3624 = vunpack.c.l.b16 %v775
    %v3625 = vunpack.c.l.b16 %v776
    %v3626 = vunpack.c.h.b16 %v776
    %v3627 = vunpack.c.l.b16 %v777
    %v3628 = vunpack.c.h.b16 %v777
    %v3629 = vunpack.c.l.b16 %v778
    %v3630 = vunpack.c.h.b16 %v778
    %v3631 = vunpack.c.l.b16 %v779
    %v3632 = vunpack.c.h.b16 %v779
    %v3633 = vunpack.c.l.b16 %v780
    %v3634 = vunpack.c.h.b16 %v780
    %v3635 = vunpack.c.l.b16 %v781
    %v3636 = vunpack.c.h.b16 %v781
    %v3637 = vunpack.c.l.b16 %v782
    %v3638 = vunpack.c.h.b16 %v782
    %v3639 = vunpack.c.l.b16 %v783
    %v3640 = vunpack.c.h.b16 %v783
    %v3641 = vunpack.c.l.b16 %v784
    %v3642 = vunpack.c.h.b16 %v784
    %v3643 = vunpack.c.l.b16 %v785
    %v3644 = vunpack.c.h.b16 %v785
    %v3645 = vunpack.c.l.b16 %v786
    %v3646 = vunpack.c.h.b16 %v786
    %v3647 = vunpack.c.l.b16 %v787
    %v3648 = vunpack.c.l.b16 %v788
    %v3649 = vunpack.c.h.b16 %v788
    %v3650 = vunpack.c.l.b16 %v789
    %v3651 = vunpack.c.h.b16 %v789
    %v3652 = vunpack.c.l.b16 %v790
    %v3653 = vunpack.c.h.b16 %v790
    %v3654 = vunpack.c.l.b16 %v791
    %v3655 = vunpack.c.h.b16 %v791
    %v3656 = vunpack.c.l.b16 %v792
    %v3657 = vunpack.c.h.b16 %v792
    %v3658 = vunpack.c.l.b16 %v793
    %v3659 = vunpack.c.h.b16 %v793
    %v3660 = vunpack.c.l.b16 %v794
    %v3661 = vunpack.c.h.b16 %v794
    %v3662 = vunpack.c.l.b16 %v795
    %v3663 = vunpack.c.h.b16 %v795
    %v3664 = vunpack.c.l.b16 %v796
    %v3665 = vunpack.c.h.b16 %v796
    %v3666 = vunpack.c.l.b16 %v797
    %v3667 = vunpack.c.h.b16 %v797
    %v3668 = vunpack.c.l.b16 %v798
    %v3669 = vunpack.c.h.b16 %v798
    %v3670 = vunpack.c.l.b16 %v799
    %v3671 = vunpack.c.l.b16 %v800
    %v3672 = vunpack.c.h.b16 %v800
    %v3673 = vunpack.c.l.b16 %v801
    %v3674 = vunpack.c.h.b16 %v801
    %v3675 = vunpack.c.l.b16 %v802
    %v3676 = vunpack.c.h.b16 %v802
    %v3677 = vunpack.c.l.b16 %v803
    %v3678 = vunpack.c.h.b16 %v803
    %v3679 = vunpack.c.l.b16 %v804
    %v3680 = vunpack.c.h.b16 %v804
    %v3681 = vunpack.c.l.b16 %v805
    %v3682 = vunpack.c.h.b16 %v805
    %v3683 = vunpack.c.l.b16 %v806
    %v3684 = vunpack.c.h.b16 %v806
    %v3685 = vunpack.c.l.b16 %v807
    %v3686 = vunpack.c.h.b16 %v807
    %v3687 = vunpack.c.l.b16 %v808
    %v3688 = vunpack.c.h.b16 %v808
    %v3689 = vunpack.c.l.b16 %v809
    %v3690 = vunpack.c.h.b16 %v809
    %v3691 = vunpack.c.l.b16 %v810
    %v3692 = vunpack.c.h.b16 %v810
    %v3693 = vunpack.c.l.b16 %v811
    %v3694 = vunpack.c.l.b16 %v812
    %v3695 = vunpack.c.h.b16 %v812
    %v3696 = vunpack.c.l.b16 %v813
    %v3697 = vunpack.c.h.b16 %v813
    %v3698 = vunpack.c.l.b16 %v814
    %v3699 = vunpack.c.h.b16 %v814
    %v3700 = vunpack.c.l.b16 %v815
    %v3701 = vunpack.c.h.b16 %v815
    %v3702 = vunpack.c.l.b16 %v816
    %v3703 = vunpack.c.h.b16 %v816
    %v3704 = vunpack.c.l.b16 %v817
    %v3705 = vunpack.c.h.b16 %v817
    %v3706 = vunpack.c.l.b16 %v818
    %v3707 = vunpack.c.h.b16 %v818
    %v3708 = vunpack.c.l.b16 %v819
    %v3709 = vunpack.c.h.b16 %v819
    %v3710 = vunpack.c.l.b16 %v820
    %v3711 = vunpack.c.h.b16 %v820
    %v3712 = vunpack.c.l.b16 %v821
    %v3713 = vunpack.c.h.b16 %v821
    %v3714 = vunpack.c.l.b16 %v822
    %v3715 = vunpack.c.h.b16 %v822
    %v3716 = vunpack.c.l.b16 %v823
    %v3717 = vunpack.c.l.b16 %v824
    %v3718 = vunpack.c.h.b16 %v824
    %v3719 = vunpack.c.l.b16 %v825
    %v3720 = vunpack.c.h.b16 %v825
    %v3721 = vunpack.c.l.b16 %v826
    %v3722 = vunpack.c.h.b16 %v826
    %v3723 = vunpack.c.l.b16 %v827
    %v3724 = vunpack.c.h.b16 %v827
    %v3725 = vunpack.c.l.b16 %v828
    %v3726 = vunpack.c.h.b16 %v828
    %v3727 = vunpack.c.l.b16 %v829
    %v3728 = vunpack.c.h.b16 %v829
    %v3729 = vunpack.c.l.b16 %v830
    %v3730 = vunpack.c.h.b16 %v830
    %v3731 = vunpack.c.l.b16 %v831
    %v3732 = vunpack.c.h.b16 %v831
    %v3733 = vunpack.c.l.b16 %v832
    %v3734 = vunpack.c.h.b16 %v832
    %v3735 = vunpack.c.l.b16 %v833
    %v3736 = vunpack.c.h.b16 %v833
    %v3737 = vunpack.c.l.b16 %v834
    %v3738 = vunpack.c.h.b16 %v834
    %v3739 = vunpack.c.l.b16 %v835
    %v3740 = vunpack.c.l.b16 %v836
    %v3741 = vunpack.c.h.b16 %v836
    %v3742 = vunpack.c.l.b16 %v837
    %v3743 = vunpack.c.h.b16 %v837
    %v3744 = vunpack.c.l.b16 %v838
    %v3745 = vunpack.c.h.b16 %v838
    %v3746 = vunpack.c.l.b16 %v839
    %v3747 = vunpack.c.h.b16 %v839
    %v3748 = vunpack.c.l.b16 %v840
    %v3749 = vunpack.c.h.b16 %v840
    %v3750 = vunpack.c.l.b16 %v841
    %v3751 = vunpack.c.h.b16 %v841
    %v3752 = vunpack.c.l.b16 %v842
    %v3753 = vunpack.c.h.b16 %v842
    %v3754 = vunpack.c.l.b16 %v843
    %v3755 = vunpack.c.h.b16 %v843
    %v3756 = vunpack.c.l.b16 %v844
    %v3757 = vunpack.c.h.b16 %v844
    %v3758 = vunpack.c.l.b16 %v845
    %v3759 = vunpack.c.h.b16 %v845
    %v3760 = vunpack.c.l.b16 %v846
    %v3761 = vunpack.c.h.b16 %v846
    %v3762 = vunpack.c.l.b16 %v847
    %v3763 = vunpack.c.l.b16 %v848
    %v3764 = vunpack.c.h.b16 %v848
    %v3765 = vunpack.c.l.b16 %v849
    %v3766 = vunpack.c.h.b16 %v849
    %v3767 = vunpack.c.l.b16 %v850
    %v3768 = vunpack.c.h.b16 %v850
    %v3769 = vunpack.c.l.b16 %v851
    %v3770 = vunpack.c.h.b16 %v851
    %v3771 = vunpack.c.l.b16 %v852
    %v3772 = vunpack.c.h.b16 %v852
    %v3773 = vunpack.c.l.b16 %v853
    %v3774 = vunpack.c.h.b16 %v853
    %v3775 = vunpack.c.l.b16 %v854
    %v3776 = vunpack.c.h.b16 %v854
    %v3777 = vunpack.c.l.b16 %v855
    %v3778 = vunpack.c.h.b16 %v855
    %v3779 = vunpack.c.l.b16 %v856
    %v3780 = vunpack.c.h.b16 %v856
    %v3781 = vunpack.c.l.b16 %v857
    %v3782 = vunpack.c.h.b16 %v857
    %v3783 = vunpack.c.l.b16 %v858
    %v3784 = vunpack.c.h.b16 %v858
    %v3785 = vunpack.c.l.b16 %v859
    %v3786 = vunpack.c.l.b16 %v860
    %v3787 = vunpack.c.h.b16 %v860
    %v3788 = vunpack.c.l.b16 %v861
    %v3789 = vunpack.c.h.b16 %v861
    %v3790 = vunpack.c.l.b16 %v862
    %v3791 = vunpack.c.h.b16 %v862
    %v3792 = vunpack.c.l.b16 %v863
    %v3793 = vunpack.c.h.b16 %v863
    %v3794 = vunpack.c.l.b16 %v864
    %v3795 = vunpack.c.h.b16 %v864
    %v3796 = vunpack.c.l.b16 %v865
    %v3797 = vunpack.c.h.b16 %v865
    %v3798 = vunpack.c.l.b16 %v866
    %v3799 = vunpack.c.h.b16 %v866
    %v3800 = vunpack.c.l.b16 %v867
    %v3801 = vunpack.c.h.b16 %v867
    %v3802 = vunpack.c.l.b16 %v868
    %v3803 = vunpack.c.h.b16 %v868
    %v3804 = vunpack.c.l.b16 %v869
    %v3805 = vunpack.c.h.b16 %v869
    %v3806 = vunpack.c.l.b16 %v870
    %v3807 = vunpack.c.h.b16 %v870
    %v3808 = vunpack.c.l.b16 %v871
    %v3809 = vunpack.c.l.b16 %v872
    %v3810 = vunpack.c.h.b16 %v872
    %v3811 = vunpack.c.l.b16 %v873
    %v3812 = vunpack.c.h.b16 %v873
    %v3813 = vunpack.c.l.b16 %v874
    %v3814 = vunpack.c.h.b16 %v874
    %v3815 = vunpack.c.l.b16 %v875
    %v3816 = vunpack.c.h.b16 %v875
    %v3817 = vunpack.c.l.b16 %v876
    %v3818 = vunpack.c.h.b16 %v876
    %v3819 = vunpack.c.l.b16 %v877
    %v3820 = vunpack.c.h.b16 %v877
    %v3821 = vunpack.c.l.b16 %v878
    %v3822 = vunpack.c.h.b16 %v878
    %v3823 = vunpack.c.l.b16 %v879
    %v3824 = vunpack.c.h.b16 %v879
    %v3825 = vunpack.c.l.b16 %v880
    %v3826 = vunpack.c.h.b16 %v880
    %v3827 = vunpack.c.l.b16 %v881
    %v3828 = vunpack.c.h.b16 %v881
    %v3829 = vunpack.c.l.b16 %v882
    %v3830 = vunpack.c.h.b16 %v882
    %v3831 = vunpack.c.l.b16 %v883
    %v3832 = vunpack.c.l.b16 %v884
    %v3833 = vunpack.c.h.b16 %v884
    %v3834 = vunpack.c.l.b16 %v885
    %v3835 = vunpack.c.h.b16 %v885
    %v3836 = vunpack.c.l.b16 %v886
    %v3837 = vunpack.c.h.b16 %v886
    %v3838 = vunpack.c.l.b16 %v887
    %v3839 = vunpack.c.h.b16 %v887
    %v3840 = vunpack.c.l.b16 %v888
    %v3841 = vunpack.c.h.b16 %v888
    %v3842 = vunpack.c.l.b16 %v889
    %v3843 = vunpack.c.h.b16 %v889
    %v3844 = vunpack.c.l.b16 %v890
    %v3845 = vunpack.c.h.b16 %v890
    %v3846 = vunpack.c.l.b16 %v891
    %v3847 = vunpack.c.h.b16 %v891
    %v3848 = vunpack.c.l.b16 %v892
    %v3849 = vunpack.c.h.b16 %v892
    %v3850 = vunpack.c.l.b16 %v893
    %v3851 = vunpack.c.h.b16 %v893
    %v3852 = vunpack.c.l.b16 %v894
    %v3853 = vunpack.c.h.b16 %v894
    %v3854 = vunpack.c.l.b16 %v895
    %v3855 = vunpack.c.l.b16 %v896
    %v3856 = vunpack.c.h.b16 %v896
    %v3857 = vunpack.c.l.b16 %v897
    %v3858 = vunpack.c.h.b16 %v897
    %v3859 = vunpack.c.l.b16 %v898
    %v3860 = vunpack.c.h.b16 %v898
    %v3861 = vunpack.c.l.b16 %v899
    %v3862 = vunpack.c.h.b16 %v899
    %v3863 = vunpack.c.l.b16 %v900
    %v3864 = vunpack.c.h.b16 %v900
    %v3865 = vunpack.c.l.b16 %v901
    %v3866 = vunpack.c.h.b16 %v901
    %v3867 = vunpack.c.l.b16 %v902
    %v3868 = vunpack.c.h.b16 %v902
    %v3869 = vunpack.c.l.b16 %v903
    %v3870 = vunpack.c.h.b16 %v903
    %v3871 = vunpack.c.l.b16 %v904
    %v3872 = vunpack.c.h.b16 %v904
    %v3873 = vunpack.c.l.b16 %v905
    %v3874 = vunpack.c.h.b16 %v905
    %v3875 = vunpack.c.l.b16 %v906
    %v3876 = vunpack.c.h.b16 %v906
    %v3877 = vunpack.c.l.b16 %v907
    %v3878 = vunpack.c.l.b16 %v908
    %v3879 = vunpack.c.h.b16 %v908
    %v3880 = vunpack.c.l.b16 %v909
    %v3881 = vunpack.c.h.b16 %v909
    %v3882 = vunpack.c.l.b16 %v910
    %v3883 = vunpack.c.h.b16 %v910
    %v3884 = vunpack.c.l.b16 %v911
    %v3885 = vunpack.c.h.b16 %v911
    %v3886 = vunpack.c.l.b16 %v912
    %v3887 = vunpack.c.h.b16 %v912
    %v3888 = vunpack.c.l.b16 %v913
    %v3889 = vunpack.c.h.b16 %v913
    %v3890 = vunpack.c.l.b16 %v914
    %v3891 = vunpack.c.h.b16 %v914
    %v3892 = vunpack.c.l.b16 %v915
    %v3893 = vunpack.c.h.b16 %v915
    %v3894 = vunpack.c.l.b16 %v916
    %v3895 = vunpack.c.h.b16 %v916
    %v3896 = vunpack.c.l.b16 %v917
    %v3897 = vunpack.c.h.b16 %v917
    %v3898 = vunpack.c.l.b16 %v918
    %v3899 = vunpack.c.h.b16 %v918
    %v3900 = vunpack.c.l.b16 %v919
    %v3901 = vunpack.c.l.b16 %v920
    %v3902 = vunpack.c.h.b16 %v920
    %v3903 = vunpack.c.l.b16 %v921
    %v3904 = vunpack.c.h.b16 %v921
    %v3905 = vunpack.c.l.b16 %v922
    %v3906 = vunpack.c.h.b16 %v922
    %v3907 = vunpack.c.l.b16 %v923
    %v3908 = vunpack.c.h.b16 %v923
    %v3909 = vunpack.c.l.b16 %v924
    %v3910 = vunpack.c.h.b16 %v924
    %v3911 = vunpack.c.l.b16 %v925
    %v3912 = vunpack.c.h.b16 %v925
    %v3913 = vunpack.c.l.b16 %v926
    %v3914 = vunpack.c.h.b16 %v926
    %v3915 = vunpack.c.l.b16 %v927
    %v3916 = vunpack.c.h.b16 %v927
    %v3917 = vunpack.c.l.b16 %v928
    %v3918 = vunpack.c.h.b16 %v928
    %v3919 = vunpack.c.l.b16 %v929
    %v3920 = vunpack.c.h.b16 %v929
    %v3921 = vunpack.c.l.b16 %v930
    %v3922 = vunpack.c.h.b16 %v930
    %v3923 = vunpack.c.l.b16 %v931
    %v3924 = vunpack.c.l.b16 %v932
    %v3925 = vunpack.c.h.b16 %v932
    %v3926 = vunpack.c.l.b16 %v933
    %v3927 = vunpack.c.h.b16 %v933
    %v3928 = vunpack.c.l.b16 %v934
    %v3929 = vunpack.c.h.b16 %v934
    %v3930 = vunpack.c.l.b16 %v935
    %v3931 = vunpack.c.h.b16 %v935
    %v3932 = vunpack.c.l.b16 %v936
    %v3933 = vunpack.c.h.b16 %v936
    %v3934 = vunpack.c.l.b16 %v937
    %v3935 = vunpack.c.h.b16 %v937
    %v3936 = vunpack.c.l.b16 %v938
    %v3937 = vunpack.c.h.b16 %v938
    %v3938 = vunpack.c.l.b16 %v939
    %v3939 = vunpack.c.h.b16 %v939
    %v3940 = vunpack.c.l.b16 %v940
    %v3941 = vunpack.c.h.b16 %v940
    %v3942 = vunpack.c.l.b16 %v941
    %v3943 = vunpack.c.h.b16 %v941
    %v3944 = vunpack.c.l.b16 %v942
    %v3945 = vunpack.c.h.b16 %v942
    %v3946 = vunpack.c.l.b16 %v943
    %v3947 = vunpack.c.l.b16 %v944
    %v3948 = vunpack.c.h.b16 %v944
    %v3949 = vunpack.c.l.b16 %v945
    %v3950 = vunpack.c.h.b16 %v945
    %v3951 = vunpack.c.l.b16 %v946
    %v3952 = vunpack.c.h.b16 %v946
    %v3953 = vunpack.c.l.b16 %v947
    %v3954 = vunpack.c.h.b16 %v947
    %v3955 = vunpack.c.l.b16 %v948
    %v3956 = vunpack.c.h.b16 %v948
    %v3957 = vunpack.c.l.b16 %v949
    %v3958 = vunpack.c.h.b16 %v949
    %v3959 = vunpack.c.l.b16 %v950
    %v3960 = vunpack.c.h.b16 %v950
    %v3961 = vunpack.c.l.b16 %v951
    %v3962 = vunpack.c.h.b16 %v951
    %v3963 = vunpack.c.l.b16 %v952
    %v3964 = vunpack.c.h.b16 %v952
    %v3965 = vunpack.c.l.b16 %v953
    %v3966 = vunpack.c.h.b16 %v953
    %v3967 = vunpack.c.l.b16 %v954
    %v3968 = vunpack.c.h.b16 %v954
    %v3969 = vunpack.c.l.b16 %v955
    %v3970 = vunpack.c.l.b16 %v956
    %v3971 = vunpack.c.h.b16 %v956
    %v3972 = vunpack.c.l.b16 %v957
    %v3973 = vunpack.c.h.b16 %v957
    %v3974 = vunpack.c.l.b16 %v958
    %v3975 = vunpack.c.h.b16 %v958
    %v3976 = vunpack.c.l.b16 %v959
    %v3977 = vunpack.c.h.b16 %v959
    %v3978 = vunpack.c.l.b16 %v960
    %v3979 = vunpack.c.h.b16 %v960
    %v3980 = vunpack.c.l.b16 %v961
    %v3981 = vunpack.c.h.b16 %v961
    %v3982 = vunpack.c.l.b16 %v962
    %v3983 = vunpack.c.h.b16 %v962
    %v3984 = vunpack.c.l.b16 %v963
    %v3985 = vunpack.c.h.b16 %v963
    %v3986 = vunpack.c.l.b16 %v964
    %v3987 = vunpack.c.h.b16 %v964
    %v3988 = vunpack.c.l.b16 %v965
    %v3989 = vunpack.c.h.b16 %v965
    %v3990 = vunpack.c.l.b16 %v966
    %v3991 = vunpack.c.h.b16 %v966
    %v3992 = vunpack.c.l.b16 %v967
    %v3993 = vunpack.c.l.b16 %v968
    %v3994 = vunpack.c.h.b16 %v968
    %v3995 = vunpack.c.l.b16 %v969
    %v3996 = vunpack.c.h.b16 %v969
    %v3997 = vunpack.c.l.b16 %v970
    %v3998 = vunpack.c.h.b16 %v970
    %v3999 = vunpack.c.l.b16 %v971
    %v4000 = vunpack.c.h.b16 %v971
    %v4001 = vunpack.c.l.b16 %v972
    %v4002 = vunpack.c.h.b16 %v972
    %v4003 = vunpack.c.l.b16 %v973
    %v4004 = vunpack.c.h.b16 %v973
    %v4005 = vunpack.c.l.b16 %v974
    %v4006 = vunpack.c.h.b16 %v974
    %v4007 = vunpack.c.l.b16 %v975
    %v4008 = vunpack.c.h.b16 %v975
    %v4009 = vunpack.c.l.b16 %v976
    %v4010 = vunpack.c.h.b16 %v976
    %v4011 = vunpack.c.l.b16 %v977
    %v4012 = vunpack.c.h.b16 %v977
    %v4013 = vunpack.c.l.b16 %v978
    %v4014 = vunpack.c.h.b16 %v978
    %v4015 = vunpack.c.l.b16 %v979
    %v4016 = vunpack.c.l.b16 %v980
    %v4017 = vunpack.c.h.b16 %v980
    %v4018 = vunpack.c.l.b16 %v981
    %v4019 = vunpack.c.h.b16 %v981
    %v4020 = vunpack.c.l.b16 %v982
    %v4021 = vunpack.c.h.b16 %v982
    %v4022 = vunpack.c.l.b16 %v983
    %v4023 = vunpack.c.h.b16 %v983
    %v4024 = vunpack.c.l.b16 %v984
    %v4025 = vunpack.c.h.b16 %v984
    %v4026 = vunpack.c.l.b16 %v985
    %v4027 = vunpack.c.h.b16 %v985
    %v4028 = vunpack.c.l.b16 %v986
    %v4029 = vunpack.c.h.b16 %v986
    %v4030 = vunpack.c.l.b16 %v987
    %v4031 = vunpack.c.h.b16 %v987
    %v4032 = vunpack.c.l.b16 %v988
    %v4033 = vunpack.c.h.b16 %v988
    %v4034 = vunpack.c.l.b16 %v989
    %v4035 = vunpack.c.h.b16 %v989
    %v4036 = vunpack.c.l.b16 %v990
    %v4037 = vunpack.c.h.b16 %v990
    %v4038 = vunpack.c.l.b16 %v991
    %v4039 = vunpack.c.l.b16 %v992
    %v4040 = vunpack.c.h.b16 %v992
    %v4041 = vunpack.c.l.b16 %v993
    %v4042 = vunpack.c.h.b16 %v993
    %v4043 = vunpack.c.l.b16 %v994
    %v4044 = vunpack.c.h.b16 %v994
    %v4045 = vunpack.c.l.b16 %v995
    %v4046 = vunpack.c.h.b16 %v995
    %v4047 = vunpack.c.l.b16 %v996
    %v4048 = vunpack.c.h.b16 %v996
    %v4049 = vunpack.c.l.b16 %v997
    %v4050 = vunpack.c.h.b16 %v997
    %v4051 = vunpack.c.l.b16 %v998
    %v4052 = vunpack.c.h.b16 %v998
    %v4053 = vunpack.c.l.b16 %v999
    %v4054 = vunpack.c.h.b16 %v999
    %v4055 = vunpack.c.l.b16 %v1000
    %v4056 = vunpack.c.h.b16 %v1000
    %v4057 = vunpack.c.l.b16 %v1001
    %v4058 = vunpack.c.h.b16 %v1001
    %v4059 = vunpack.c.l.b16 %v1002
    %v4060 = vunpack.c.h.b16 %v1002
    %v4061 = vunpack.c.l.b16 %v1003
    %v4062 = vunpack.c.l.b16 %v1004
    %v4063 = vunpack.c.h.b16 %v1004
    %v4064 = vunpack.c.l.b16 %v1005
    %v4065 = vunpack.c.h.b16 %v1005
    %v4066 = vunpack.c.l.b16 %v1006
    %v4067 = vunpack.c.h.b16 %v1006
    %v4068 = vunpack.c.l.b16 %v1007
    %v4069 = vunpack.c.h.b16 %v1007
    %v4070 = vunpack.c.l.b16 %v1008
    %v4071 = vunpack.c.h.b16 %v1008
    %v4072 = vunpack.c.l.b16 %v1009
    %v4073 = vunpack.c.h.b16 %v1009
    %v4074 = vunpack.c.l.b16 %v1010
    %v4075 = vunpack.c.h.b16 %v1010
    %v4076 = vunpack.c.l.b16 %v1011
    %v4077 = vunpack.c.h.b16 %v1011
    %v4078 = vunpack.c.l.b16 %v1012
    %v4079 = vunpack.c.h.b16 %v1012
    %v4080 = vunpack.c.l.b16 %v1013
    %v4081 = vunpack.c.h.b16 %v1013
    %v4082 = vunpack.c.l.b16 %v1014
    %v4083 = vunpack.c.h.b16 %v1014
    %v4084 = vunpack.c.l.b16 %v1015
    %v4085 = vunpack.c.l.b16 %v1016
    %v4086 = vunpack.c.h.b16 %v1016
    %v4087 = vunpack.c.l.b16 %v1017
    %v4088 = vunpack.c.h.b16 %v1017
    %v4089 = vunpack.c.l.b16 %v1018
    %v4090 = vunpack.c.h.b16 %v1018
    %v4091 = vunpack.c.l.b16 %v1019
    %v4092 = vunpack.c.h.b16 %v1019
    %v4093 = vunpack.c.l.b16 %v1020
    %v4094 = vunpack.c.h.b16 %v1020
    %v4095 = vunpack.c.l.b16 %v1021
    %v4096 = vunpack.c.h.b16 %v1021
    %v4097 = vunpack.c.l.b16 %v1022
    %v4098 = vunpack.c.h.b16 %v1022
    %v4099 = vunpack.c.l.b16 %v1023
    %v4100 = vunpack.c.h.b16 %v1023
    %v4101 = vunpack.c.l.b16 %v1024
    %v4102 = vunpack.c.h.b16 %v1024
    %v4103 = vunpack.c.l.b16 %v1025
    %v4104 = vunpack.c.h.b16 %v1025
    %v4105 = vunpack.c.l.b16 %v1026
    %v4106 = vunpack.c.h.b16 %v1026
    %v4107 = vunpack.c.l.b16 %v1027
    %v4108 = vunpack.c.l.b16 %v1028
    %v4109 = vunpack.c.h.b16 %v1028
    %v4110 = vunpack.c.l.b16 %v1029
    %v4111 = vunpack.c.h.b16 %v1029
    %v4112 = vunpack.c.l.b16 %v1030
    %v4113 = vunpack.c.h.b16 %v1030
    %v4114 = vunpack.c.l.b16 %v1031
    %v4115 = vunpack.c.h.b16 %v1031
    %v4116 = vunpack.c.l.b16 %v1032
    %v4117 = vunpack.c.h.b16 %v1032
    %v4118 = vunpack.c.l.b16 %v1033
    %v4119 = vunpack.c.h.b16 %v1033
    %v4120 = vunpack.c.l.b16 %v1034
    %v4121 = vunpack.c.h.b16 %v1034
    %v4122 = vunpack.c.l.b16 %v1035
    %v4123 = vunpack.c.h.b16 %v1035
    %v4124 = vunpack.c.l.b16 %v1036
    %v4125 = vunpack.c.h.b16 %v1036
    %v4126 = vunpack.c.l.b16 %v1037
    %v4127 = vunpack.c.h.b16 %v1037
    %v4128 = vunpack.c.l.b16 %v1038
    %v4129 = vunpack.c.h.b16 %v1038
    %v4130 = vunpack.c.l.b16 %v1039
    %v4131 = vunpack.c.l.b16 %v1040
    %v4132 = vunpack.c.h.b16 %v1040
    %v4133 = vunpack.c.l.b16 %v1041
    %v4134 = vunpack.c.h.b16 %v1041
    %v4135 = vunpack.c.l.b16 %v1042
    %v4136 = vunpack.c.h.b16 %v1042
    %v4137 = vunpack.c.l.b16 %v1043
    %v4138 = vunpack.c.h.b16 %v1043
    %v4139 = vunpack.c.l.b16 %v1044
    %v4140 = vunpack.c.h.b16 %v1044
    %v4141 = vunpack.c.l.b16 %v1045
    %v4142 = vunpack.c.h.b16 %v1045
    %v4143 = vunpack.c.l.b16 %v1046
    %v4144 = vunpack.c.h.b16 %v1046
    %v4145 = vunpack.c.l.b16 %v1047
    %v4146 = vunpack.c.h.b16 %v1047
    %v4147 = vunpack.c.l.b16 %v1048
    %v4148 = vunpack.c.h.b16 %v1048
    %v4149 = vunpack.c.l.b16 %v1049
    %v4150 = vunpack.c.h.b16 %v1049
    %v4151 = vunpack.c.l.b16 %v1050
    %v4152 = vunpack.c.h.b16 %v1050
    %v4153 = vunpack.c.l.b16 %v1051
    %v4154 = vunpack.c.l.b16 %v1052
    %v4155 = vunpack.c.h.b16 %v1052
    %v4156 = vunpack.c.l.b16 %v1053
    %v4157 = vunpack.c.h.b16 %v1053
    %v4158 = vunpack.c.l.b16 %v1054
    %v4159 = vunpack.c.h.b16 %v1054
    %v4160 = vunpack.c.l.b16 %v1055
    %v4161 = vunpack.c.h.b16 %v1055
    %v4162 = vunpack.c.l.b16 %v1056
    %v4163 = vunpack.c.h.b16 %v1056
    %v4164 = vunpack.c.l.b16 %v1057
    %v4165 = vunpack.c.h.b16 %v1057
    %v4166 = vunpack.c.l.b16 %v1058
    %v4167 = vunpack.c.h.b16 %v1058
    %v4168 = vunpack.c.l.b16 %v1059
    %v4169 = vunpack.c.h.b16 %v1059
    %v4170 = vunpack.c.l.b16 %v1060
    %v4171 = vunpack.c.h.b16 %v1060
    %v4172 = vunpack.c.l.b16 %v1061
    %v4173 = vunpack.c.h.b16 %v1061
    %v4174 = vunpack.c.l.b16 %v1062
    %v4175 = vunpack.c.h.b16 %v1062
    %v4176 = vunpack.c.l.b16 %v1063
    %v4177 = vunpack.c.l.b16 %v1064
    %v4178 = vunpack.c.h.b16 %v1064
    %v4179 = vunpack.c.l.b16 %v1065
    %v4180 = vunpack.c.h.b16 %v1065
    %v4181 = vunpack.c.l.b16 %v1066
    %v4182 = vunpack.c.h.b16 %v1066
    %v4183 = vunpack.c.l.b16 %v1067
    %v4184 = vunpack.c.h.b16 %v1067
    %v4185 = vunpack.c.l.b16 %v1068
    %v4186 = vunpack.c.h.b16 %v1068
    %v4187 = vunpack.c.l.b16 %v1069
    %v4188 = vunpack.c.h.b16 %v1069
    %v4189 = vunpack.c.l.b16 %v1070
    %v4190 = vunpack.c.h.b16 %v1070
    %v4191 = vunpack.c.l.b16 %v1071
    %v4192 = vunpack.c.h.b16 %v1071
    %v4193 = vunpack.c.l.b16 %v1072
    %v4194 = vunpack.c.h.b16 %v1072
    %v4195 = vunpack.c.l.b16 %v1073
    %v4196 = vunpack.c.h.b16 %v1073
    %v4197 = vunpack.c.l.b16 %v1074
    %v4198 = vunpack.c.h.b16 %v1074
    %v4199 = vunpack.c.l.b16 %v1075
    %v4200 = vunpack.c.l.b16 %v1076
    %v4201 = vunpack.c.h.b16 %v1076
    %v4202 = vunpack.c.l.b16 %v1077
    %v4203 = vunpack.c.h.b16 %v1077
    %v4204 = vunpack.c.l.b16 %v1078
    %v4205 = vunpack.c.h.b16 %v1078
    %v4206 = vunpack.c.l.b16 %v1079
    %v4207 = vunpack.c.h.b16 %v1079
    %v4208 = vunpack.c.l.b16 %v1080
    %v4209 = vunpack.c.h.b16 %v1080
    %v4210 = vunpack.c.l.b16 %v1081
    %v4211 = vunpack.c.h.b16 %v1081
    %v4212 = vunpack.c.l.b16 %v1082
    %v4213 = vunpack.c.h.b16 %v1082
    %v4214 = vunpack.c.l.b16 %v1083
    %v4215 = vunpack.c.h.b16 %v1083
    %v4216 = vunpack.c.l.b16 %v1084
    %v4217 = vunpack.c.h.b16 %v1084
    %v4218 = vunpack.c.l.b16 %v1085
    %v4219 = vunpack.c.h.b16 %v1085
    %v4220 = vunpack.c.l.b16 %v1086
    %v4221 = vunpack.c.h.b16 %v1086
    %v4222 = vunpack.c.l.b16 %v1087
    %v4223 = vunpack.c.l.b16 %v1088
    %v4224 = vunpack.c.h.b16 %v1088
    %v4225 = vunpack.c.l.b16 %v1089
    %v4226 = vunpack.c.h.b16 %v1089
    %v4227 = vunpack.c.l.b16 %v1090
    %v4228 = vunpack.c.h.b16 %v1090
    %v4229 = vunpack.c.l.b16 %v1091
    %v4230 = vunpack.c.h.b16 %v1091
    %v4231 = vunpack.c.l.b16 %v1092
    %v4232 = vunpack.c.h.b16 %v1092
    %v4233 = vunpack.c.l.b16 %v1093
    %v4234 = vunpack.c.h.b16 %v1093
    %v4235 = vunpack.c.l.b16 %v1094
    %v4236 = vunpack.c.h.b16 %v1094
    %v4237 = vunpack.c.l.b16 %v1095
    %v4238 = vunpack.c.h.b16 %v1095
    %v4239 = vunpack.c.l.b16 %v1096
    %v4240 = vunpack.c.h.b16 %v1096
    %v4241 = vunpack.c.l.b16 %v1097
    %v4242 = vunpack.c.h.b16 %v1097
    %v4243 = vunpack.c.l.b16 %v1098
    %v4244 = vunpack.c.h.b16 %v1098
    %v4245 = vunpack.c.l.b16 %v1099
    %v4246 = vunpack.c.l.b16 %v1100
    %v4247 = vunpack.c.h.b16 %v1100
    %v4248 = vunpack.c.l.b16 %v1101
    %v4249 = vunpack.c.h.b16 %v1101
    %v4250 = vunpack.c.l.b16 %v1102
    %v4251 = vunpack.c.h.b16 %v1102
    %v4252 = vunpack.c.l.b16 %v1103
    %v4253 = vunpack.c.h.b16 %v1103
    %v4254 = vunpack.c.l.b16 %v1104
    %v4255 = vunpack.c.h.b16 %v1104
    %v4256 = vunpack.c.l.b16 %v1105
    %v4257 = vunpack.c.h.b16 %v1105
    %v4258 = vunpack.c.l.b16 %v1106
    %v4259 = vunpack.c.h.b16 %v1106
    %v4260 = vunpack.c.l.b16 %v1107
    %v4261 = vunpack.c.h.b16 %v1107
    %v4262 = vunpack.c.l.b16 %v1108
    %v4263 = vunpack.c.h.b16 %v1108
    %v4264 = vunpack.c.l.b16 %v1109
    %v4265 = vunpack.c.h.b16 %v1109
    %v4266 = vunpack.c.l.b16 %v1110
    %v4267 = vunpack.c.h.b16 %v1110
    %v4268 = vunpack.c.l.b16 %v1111
    %v4269 = vunpack.c.l.b16 %v1112
    %v4270 = vunpack.c.h.b16 %v1112
    %v4271 = vunpack.c.l.b16 %v1113
    %v4272 = vunpack.c.h.b16 %v1113
    %v4273 = vunpack.c.l.b16 %v1114
    %v4274 = vunpack.c.h.b16 %v1114
    %v4275 = vunpack.c.l.b16 %v1115
    %v4276 = vunpack.c.h.b16 %v1115
    %v4277 = vunpack.c.l.b16 %v1116
    %v4278 = vunpack.c.h.b16 %v1116
    %v4279 = vunpack.c.l.b16 %v1117
    %v4280 = vunpack.c.h.b16 %v1117
    %v4281 = vunpack.c.l.b16 %v1118
    %v4282 = vunpack.c.h.b16 %v1118
    %v4283 = vunpack.c.l.b16 %v1119
    %v4284 = vunpack.c.h.b16 %v1119
    %v4285 = vunpack.c.l.b16 %v1120
    %v4286 = vunpack.c.h.b16 %v1120
    %v4287 = vunpack.c.l.b16 %v1121
    %v4288 = vunpack.c.h.b16 %v1121
    %v4289 = vunpack.c.l.b16 %v1122
    %v4290 = vunpack.c.h.b16 %v1122
    %v4291 = vunpack.c.l.b16 %v1123
    %v4292 = vunpack.c.l.b16 %v1124
    %v4293 = vunpack.c.h.b16 %v1124
    %v4294 = vunpack.c.l.b16 %v1125
    %v4295 = vunpack.c.h.b16 %v1125
    %v4296 = vunpack.c.l.b16 %v1126
    %v4297 = vunpack.c.h.b16 %v1126
    %v4298 = vunpack.c.l.b16 %v1127
    %v4299 = vunpack.c.h.b16 %v1127
    %v4300 = vunpack.c.l.b16 %v1128
    %v4301 = vunpack.c.h.b16 %v1128
    %v4302 = vunpack.c.l.b16 %v1129
    %v4303 = vunpack.c.h.b16 %v1129
    %v4304 = vunpack.c.l.b16 %v1130
    %v4305 = vunpack.c.h.b16 %v1130
    %v4306 = vunpack.c.l.b16 %v1131
    %v4307 = vunpack.c.h.b16 %v1131
    %v4308 = vunpack.c.l.b16 %v1132
    %v4309 = vunpack.c.h.b16 %v1132
    %v4310 = vunpack.c.l.b16 %v1133
    %v4311 = vunpack.c.h.b16 %v1133
    %v4312 = vunpack.c.l.b16 %v1134
    %v4313 = vunpack.c.h.b16 %v1134
    %v4314 = vunpack.c.l.b16 %v1135
    %v4315 = vunpack.c.l.b16 %v1136
    %v4316 = vunpack.c.h.b16 %v1136
    %v4317 = vunpack.c.l.b16 %v1137
    %v4318 = vunpack.c.h.b16 %v1137
    %v4319 = vunpack.c.l.b16 %v1138
    %v4320 = vunpack.c.h.b16 %v1138
    %v4321 = vunpack.c.l.b16 %v1139
    %v4322 = vunpack.c.h.b16 %v1139
    %v4323 = vunpack.c.l.b16 %v1140
    %v4324 = vunpack.c.h.b16 %v1140
    %v4325 = vunpack.c.l.b16 %v1141
    %v4326 = vunpack.c.h.b16 %v1141
    %v4327 = vunpack.c.l.b16 %v1142
    %v4328 = vunpack.c.h.b16 %v1142
    %v4329 = vunpack.c.l.b16 %v1143
    %v4330 = vunpack.c.h.b16 %v1143
    %v4331 = vunpack.c.l.b16 %v1144
    %v4332 = vunpack.c.h.b16 %v1144
    %v4333 = vunpack.c.l.b16 %v1145
    %v4334 = vunpack.c.h.b16 %v1145
    %v4335 = vunpack.c.l.b16 %v1146
    %v4336 = vunpack.c.h.b16 %v1146
    %v4337 = vunpack.c.l.b16 %v1147
    %v4338 = vunpack.c.l.b16 %v1148
    %v4339 = vunpack.c.h.b16 %v1148
    %v4340 = vunpack.c.l.b16 %v1149
    %v4341 = vunpack.c.h.b16 %v1149
    %v4342 = vunpack.c.l.b16 %v1150
    %v4343 = vunpack.c.h.b16 %v1150
    %v4344 = vunpack.c.l.b16 %v1151
    %v4345 = vunpack.c.h.b16 %v1151
    %v4346 = vunpack.c.l.b16 %v1152
    %v4347 = vunpack.c.h.b16 %v1152
    %v4348 = vunpack.c.l.b16 %v1153
    %v4349 = vunpack.c.h.b16 %v1153
    %v4350 = vunpack.c.l.b16 %v1154
    %v4351 = vunpack.c.h.b16 %v1154
    %v4352 = vunpack.c.l.b16 %v1155
    %v4353 = vunpack.c.h.b16 %v1155
    %v4354 = vunpack.c.l.b16 %v1156
    %v4355 = vunpack.c.h.b16 %v1156
    %v4356 = vunpack.c.l.b16 %v1157
    %v4357 = vunpack.c.h.b16 %v1157
    %v4358 = vunpack.c.l.b16 %v1158
    %v4359 = vunpack.c.h.b16 %v1158
    %v4360 = vunpack.c.l.b16 %v1159
    %v4361 = vunpack.c.l.b16 %v1160
    %v4362 = vunpack.c.h.b16 %v1160
    %v4363 = vunpack.c.l.b16 %v1161
    %v4364 = vunpack.c.h.b16 %v1161
    %v4365 = vunpack.c.l.b16 %v1162
    %v4366 = vunpack.c.h.b16 %v1162
    %v4367 = vunpack.c.l.b16 %v1163
    %v4368 = vunpack.c.h.b16 %v1163
    %v4369 = vunpack.c.l.b16 %v1164
    %v4370 = vunpack.c.h.b16 %v1164
    %v4371 = vunpack.c.l.b16 %v1165
    %v4372 = vunpack.c.h.b16 %v1165
    %v4373 = vunpack.c.l.b16 %v1166
    %v4374 = vunpack.c.h.b16 %v1166
    %v4375 = vunpack.c.l.b16 %v1167
    %v4376 = vunpack.c.h.b16 %v1167
    %v4377 = vunpack.c.l.b16 %v1168
    %v4378 = vunpack.c.h.b16 %v1168
    %v4379 = vunpack.c.l.b16 %v1169
    %v4380 = vunpack.c.h.b16 %v1169
    %v4381 = vunpack.c.l.b16 %v1170
    %v4382 = vunpack.c.h.b16 %v1170
    %v4383 = vunpack.c.l.b16 %v1171
    %v4384 = vunpack.c.l.b16 %v1172
    %v4385 = vunpack.c.h.b16 %v1172
    %v4386 = vunpack.c.l.b16 %v1173
    %v4387 = vunpack.c.h.b16 %v1173
    %v4388 = vunpack.c.l.b16 %v1174
    %v4389 = vunpack.c.h.b16 %v1174
    %v4390 = vunpack.c.l.b16 %v1175
    %v4391 = vunpack.c.h.b16 %v1175
    %v4392 = vunpack.c.l.b16 %v1176
    %v4393 = vunpack.c.h.b16 %v1176
    %v4394 = vunpack.c.l.b16 %v1177
    %v4395 = vunpack.c.h.b16 %v1177
    %v4396 = vunpack.c.l.b16 %v1178
    %v4397 = vunpack.c.h.b16 %v1178
    %v4398 = vunpack.c.l.b16 %v1179
    %v4399 = vunpack.c.h.b16 %v1179
    %v4400 = vunpack.c.l.b16 %v1180
    %v4401 = vunpack.c.h.b16 %v1180
    %v4402 = vunpack.c.l.b16 %v1181
    %v4403 = vunpack.c.h.b16 %v1181
    %v4404 = vunpack.c.l.b16 %v1182
    %v4405 = vunpack.c.h.b16 %v1182
    %v4406 = vunpack.c.l.b16 %v1183
    %v4407 = vpack.c.b16 %v2314, %v2291
    %v4408 = vpack.c.b16 %v2315, %v2292
    %v4409 = vpack.c.b16 %v2316, %v2293
    %v4410 = vpack.c.b16 %v2317, %v2294
    %v4411 = vpack.c.b16 %v2318, %v2295
    %v4412 = vpack.c.b16 %v2319, %v2296
    %v4413 = vpack.c.b16 %v2320, %v2297
    %v4414 = vpack.c.b16 %v2321, %v2298
    %v4415 = vpack.c.b16 %v2322, %v2299
    %v4416 = vpack.c.b16 %v2323, %v2300
    %v4417 = vpack.c.b16 %v2324, %v2301
    %v4418 = vpack.c.b16 %v2325, %v2302
    %v4419 = vpack.c.b16 %v2326, %v2303
    %v4420 = vpack.c.b16 %v2327, %v2304
    %v4421 = vpack.c.b16 %v2328, %v2305
    %v4422 = vpack.c.b16 %v2329, %v2306
    %v4423 = vpack.c.b16 %v2330, %v2307
    %v4424 = vpack.c.b16 %v2331, %v2308
    %v4425 = vpack.c.b16 %v2332, %v2309
    %v4426 = vpack.c.b16 %v2333, %v2310
    %v4427 = vpack.c.b16 %v2334, %v2311
    %v4428 = vpack.c.b16 %v2335, %v2312
    %v4429 = vpack.c.b16 %v2336, %v2313
    %v4430 = vpack.c.b16 %v2360, %v2337
    %v4431 = vpack.c.b16 %v2361, %v2338
    %v4432 = vpack.c.b16 %v2362, %v2339
    %v4433 = vpack.c.b16 %v2363, %v2340
    %v4434 = vpack.c.b16 %v2364, %v2341
    %v4435 = vpack.c.b16 %v2365, %v2342
    %v4436 = vpack.c.b16 %v2366, %v2343
    %v4437 = vpack.c.b16 %v2367, %v2344
    %v4438 = vpack.c.b16 %v2368, %v2345
    %v4439 = vpack.c.b16 %v2369, %v2346
    %v4440 = vpack.c.b16 %v2370, %v2347
    %v4441 = vpack.c.b16 %v2371, %v2348
    %v4442 = vpack.c.b16 %v2372, %v2349
    %v4443 = vpack.c.b16 %v2373, %v2350
    %v4444 = vpack.c.b16 %v2374, %v2351
    %v4445 = vpack.c.b16 %v2375, %v2352
    %v4446 = vpack.c.b16 %v2376, %v2353
    %v4447 = vpack.c.b16 %v2377, %v2354
    %v4448 = vpack.c.b16 %v2378, %v2355
    %v4449 = vpack.c.b16 %v2379, %v2356
    %v4450 = vpack.c.b16 %v2380, %v2357
    %v4451 = vpack.c.b16 %v2381, %v2358
    %v4452 = vpack.c.b16 %v2382, %v2359
    %v4453 = vpack.c.b16 %v2406, %v2383
    %v4454 = vpack.c.b16 %v2407, %v2384
    %v4455 = vpack.c.b16 %v2408, %v2385
    %v4456 = vpack.c.b16 %v2409, %v2386
    %v4457 = vpack.c.b16 %v2410, %v2387
    %v4458 = vpack.c.b16 %v2411, %v2388
    %v4459 = vpack.c.b16 %v2412, %v2389
    %v4460 = vpack.c.b16 %v2413, %v2390
    %v4461 = vpack.c.b16 %v2414, %v2391
    %v4462 = vpack.c.b16 %v2415, %v2392
    %v4463 = vpack.c.b16 %v2416, %v2393
    %v4464 = vpack.c.b16 %v2417, %v2394
    %v4465 = vpack.c.b16 %v2418, %v2395
    %v4466 = vpack.c.b16 %v2419, %v2396
    %v4467 = vpack.c.b16 %v2420, %v2397
    %v4468 = vpack.c.b16 %v2421, %v2398
    %v4469 = vpack.c.b16 %v2422, %v2399
    %v4470 = vpack.c.b16 %v2423, %v2400
    %v4471 = vpack.c.b16 %v2424, %v2401
    %v4472 = vpack.c.b16 %v2425, %v2402
    %v4473 = vpack.c.b16 %v2426, %v2403
    %v4474 = vpack.c.b16 %v2427, %v2404
    %v4475 = vpack.c.b16 %v2428, %v2405
    %v4476 = vpack.c.b16 %v2452, %v2429
    %v4477 = vpack.c.b16 %v2453, %v2430
    %v4478 = vpack.c.b16 %v2454, %v2431
    %v4479 = vpack.c.b16 %v2455, %v2432
    %v4480 = vpack.c.b16 %v2456, %v2433
    %v4481 = vpack.c.b16 %v2457, %v2434
    %v4482 = vpack.c.b16 %v2458, %v2435
    %v4483 = vpack.c.b16 %v2459, %v2436
    %v4484 = vpack.c.b16 %v2460, %v2437
    %v4485 = vpack.c.b16 %v2461, %v2438
    %v4486 = vpack.c.b16 %v2462, %v2439
    %v4487 = vpack.c.b16 %v2463, %v2440
    %v4488 = vpack.c.b16 %v2464, %v2441
    %v4489 = vpack.c.b16 %v2465, %v2442
    %v4490 = vpack.c.b16 %v2466, %v2443
    %v4491 = vpack.c.b16 %v2467, %v2444
    %v4492 = vpack.c.b16 %v2468, %v2445
    %v4493 = vpack.c.b16 %v2469, %v2446
    %v4494 = vpack.c.b16 %v2470, %v2447
    %v4495 = vpack.c.b16 %v2471, %v2448
    %v4496 = vpack.c.b16 %v2472, %v2449
    %v4497 = vpack.c.b16 %v2473, %v2450
    %v4498 = vpack.c.b16 %v2474, %v2451
    %v4499 = vpack.c.b16 %v2498, %v2475
    %v4500 = vpack.c.b16 %v2499, %v2476
    %v4501 = vpack.c.b16 %v2500, %v2477
    %v4502 = vpack.c.b16 %v2501, %v2478
    %v4503 = vpack.c.b16 %v2502, %v2479
    %v4504 = vpack.c.b16 %v2503, %v2480
    %v4505 = vpack.c.b16 %v2504, %v2481
    %v4506 = vpack.c.b16 %v2505, %v2482
    %v4507 = vpack.c.b16 %v2506, %v2483
    %v4508 = vpack.c.b16 %v2507, %v2484
    %v4509 = vpack.c.b16 %v2508, %v2485
    %v4510 = vpack.c.b16 %v2509, %v2486
    %v4511 = vpack.c.b16 %v2510, %v2487
    %v4512 = vpack.c.b16 %v2511, %v2488
    %v4513 = vpack.c.b16 %v2512, %v2489
    %v4514 = vpack.c.b16 %v2513, %v2490
    %v4515 = vpack.c.b16 %v2514, %v2491
    %v4516 = vpack.c.b16 %v2515, %v2492
    %v4517 = vpack.c.b16 %v2516, %v2493
    %v4518 = vpack.c.b16 %v2517, %v2494
    %v4519 = vpack.c.b16 %v2518, %v2495
    %v4520 = vpack.c.b16 %v2519, %v2496
    %v4521 = vpack.c.b16 %v2520, %v2497
    %v4522 = vpack.c.b16 %v2544, %v2521
    %v4523 = vpack.c.b16 %v2545, %v2522
    %v4524 = vpack.c.b16 %v2546, %v2523
    %v4525 = vpack.c.b16 %v2547, %v2524
    %v4526 = vpack.c.b16 %v2548, %v2525
    %v4527 = vpack.c.b16 %v2549, %v2526
    %v4528 = vpack.c.b16 %v2550, %v2527
    %v4529 = vpack.c.b16 %v2551, %v2528
    %v4530 = vpack.c.b16 %v2552, %v2529
    %v4531 = vpack.c.b16 %v2553, %v2530
    %v4532 = vpack.c.b16 %v2554, %v2531
    %v4533 = vpack.c.b16 %v2555, %v2532
    %v4534 = vpack.c.b16 %v2556, %v2533
    %v4535 = vpack.c.b16 %v2557, %v2534
    %v4536 = vpack.c.b16 %v2558, %v2535
    %v4537 = vpack.c.b16 %v2559, %v2536
    %v4538 = vpack.c.b16 %v2560, %v2537
    %v4539 = vpack.c.b16 %v2561, %v2538
    %v4540 = vpack.c.b16 %v2562, %v2539
    %v4541 = vpack.c.b16 %v2563, %v2540
    %v4542 = vpack.c.b16 %v2564, %v2541
    %v4543 = vpack.c.b16 %v2565, %v2542
    %v4544 = vpack.c.b16 %v2566, %v2543
    %v4545 = vpack.c.b16 %v2590, %v2567
    %v4546 = vpack.c.b16 %v2591, %v2568
    %v4547 = vpack.c.b16 %v2592, %v2569
    %v4548 = vpack.c.b16 %v2593, %v2570
    %v4549 = vpack.c.b16 %v2594, %v2571
    %v4550 = vpack.c.b16 %v2595, %v2572
    %v4551 = vpack.c.b16 %v2596, %v2573
    %v4552 = vpack.c.b16 %v2597, %v2574
    %v4553 = vpack.c.b16 %v2598, %v2575
    %v4554 = vpack.c.b16 %v2599, %v2576
    %v4555 = vpack.c.b16 %v2600, %v2577
    %v4556 = vpack.c.b16 %v2601, %v2578
    %v4557 = vpack.c.b16 %v2602, %v2579
    %v4558 = vpack.c.b16 %v2603, %v2580
    %v4559 = vpack.c.b16 %v2604, %v2581
    %v4560 = vpack.c.b16 %v2605, %v2582
    %v4561 = vpack.c.b16 %v2606, %v2583
    %v4562 = vpack.c.b16 %v2607, %v2584
    %v4563 = vpack.c.b16 %v2608, %v2585
    %v4564 = vpack.c.b16 %v2609, %v2586
    %v4565 = vpack.c.b16 %v2610, %v2587
    %v4566 = vpack.c.b16 %v2611, %v2588
    %v4567 = vpack.c.b16 %v2612, %v2589
    %v4568 = vpack.c.b16 %v2636, %v2613
    %v4569 = vpack.c.b16 %v2637, %v2614
    %v4570 = vpack.c.b16 %v2638, %v2615
    %v4571 = vpack.c.b16 %v2639, %v2616
    %v4572 = vpack.c.b16 %v2640, %v2617
    %v4573 = vpack.c.b16 %v2641, %v2618
    %v4574 = vpack.c.b16 %v2642, %v2619
    %v4575 = vpack.c.b16 %v2643, %v2620
    %v4576 = vpack.c.b16 %v2644, %v2621
    %v4577 = vpack.c.b16 %v2645, %v2622
    %v4578 = vpack.c.b16 %v2646, %v2623
    %v4579 = vpack.c.b16 %v2647, %v2624
    %v4580 = vpack.c.b16 %v2648, %v2625
    %v4581 = vpack.c.b16 %v2649, %v2626
    %v4582 = vpack.c.b16 %v2650, %v2627
    %v4583 = vpack.c.b16 %v2651, %v2628
    %v4584 = vpack.c.b16 %v2652, %v2629
    %v4585 = vpack.c.b16 %v2653, %v2630
    %v4586 = vpack.c.b16 %v2654, %v2631
    %v4587 = vpack.c.b16 %v2655, %v2632
    %v4588 = vpack.c.b16 %v2656, %v2633
    %v4589 = vpack.c.b16 %v2657, %v2634
    %v4590 = vpack.c.b16 %v2658, %v2635
    %v4591 = vpack.c.b16 %v2682, %v2659
    %v4592 = vpack.c.b16 %v2683, %v2660
    %v4593 = vpack.c.b16 %v2684, %v2661
    %v4594 = vpack.c.b16 %v2685, %v2662
    %v4595 = vpack.c.b16 %v2686, %v2663
    %v4596 = vpack.c.b16 %v2687, %v2664
    %v4597 = vpack.c.b16 %v2688, %v2665
    %v4598 = vpack.c.b16 %v2689, %v2666
    %v4599 = vpack.c.b16 %v2690, %v2667
    %v4600 = vpack.c.b16 %v2691, %v2668
    %v4601 = vpack.c.b16 %v2692, %v2669
    %v4602 = vpack.c.b16 %v2693, %v2670
    %v4603 = vpack.c.b16 %v2694, %v2671
    %v4604 = vpack.c.b16 %v2695, %v2672
    %v4605 = vpack.c.b16 %v2696, %v2673
    %v4606 = vpack.c.b16 %v2697, %v2674
    %v4607 = vpack.c.b16 %v2698, %v2675
    %v4608 = vpack.c.b16 %v2699, %v2676
    %v4609 = vpack.c.b16 %v2700, %v2677
    %v4610 = vpack.c.b16 %v2701, %v2678
    %v4611 = vpack.c.b16 %v2702, %v2679
    %v4612 = vpack.c.b16 %v2703, %v2680
    %v4613 = vpack.c.b16 %v2704, %v2681
    %v4614 = vpack.c.b16 %v2728, %v2705
    %v4615 = vpack.c.b16 %v2729, %v2706
    %v4616 = vpack.c.b16 %v2730, %v2707
    %v4617 = vpack.c.b16 %v2731, %v2708
    %v4618 = vpack.c.b16 %v2732, %v2709
    %v4619 = vpack.c.b16 %v2733, %v2710
    %v4620 = vpack.c.b16 %v2734, %v2711
    %v4621 = vpack.c.b16 %v2735, %v2712
    %v4622 = vpack.c.b16 %v2736, %v2713
    %v4623 = vpack.c.b16 %v2737, %v2714
    %v4624 = vpack.c.b16 %v2738, %v2715
    %v4625 = vpack.c.b16 %v2739, %v2716
    %v4626 = vpack.c.b16 %v2740, %v2717
    %v4627 = vpack.c.b16 %v2741, %v2718
    %v4628 = vpack.c.b16 %v2742, %v2719
    %v4629 = vpack.c.b16 %v2743, %v2720
    %v4630 = vpack.c.b16 %v2744, %v2721
    %v4631 = vpack.c.b16 %v2745, %v2722
    %v4632 = vpack.c.b16 %v2746, %v2723
    %v4633 = vpack.c.b16 %v2747, %v2724
    %v4634 = vpack.c.b16 %v2748, %v2725
    %v4635 = vpack.c.b16 %v2749, %v2726
    %v4636 = vpack.c.b16 %v2750, %v2727
    %v4637 = vpack.c.b16 %v2774, %v2751
    %v4638 = vpack.c.b16 %v2775, %v2752
    %v4639 = vpack.c.b16 %v2776, %v2753
    %v4640 = vpack.c.b16 %v2777, %v2754
    %v4641 = vpack.c.b16 %v2778, %v2755
    %v4642 = vpack.c.b16 %v2779, %v2756
    %v4643 = vpack.c.b16 %v2780, %v2757
    %v4644 = vpack.c.b16 %v2781, %v2758
    %v4645 = vpack.c.b16 %v2782, %v2759
    %v4646 = vpack.c.b16 %v2783, %v2760
    %v4647 = vpack.c.b16 %v2784, %v2761
    %v4648 = vpack.c.b16 %v2785, %v2762
    %v4649 = vpack.c.b16 %v2786, %v2763
    %v4650 = vpack.c.b16 %v2787, %v2764
    %v4651 = vpack.c.b16 %v2788, %v2765
    %v4652 = vpack.c.b16 %v2789, %v2766
    %v4653 = vpack.c.b16 %v2790, %v2767
    %v4654 = vpack.c.b16 %v2791, %v2768
    %v4655 = vpack.c.b16 %v2792, %v2769
    %v4656 = vpack.c.b16 %v2793, %v2770
    %v4657 = vpack.c.b16 %v2794, %v2771
    %v4658 = vpack.c.b16 %v2795, %v2772
    %v4659 = vpack.c.b16 %v2796, %v2773
    %v4660 = vpack.c.b16 %v2820, %v2797
    %v4661 = vpack.c.b16 %v2821, %v2798
    %v4662 = vpack.c.b16 %v2822, %v2799
    %v4663 = vpack.c.b16 %v2823, %v2800
    %v4664 = vpack.c.b16 %v2824, %v2801
    %v4665 = vpack.c.b16 %v2825, %v2802
    %v4666 = vpack.c.b16 %v2826, %v2803
    %v4667 = vpack.c.b16 %v2827, %v2804
    %v4668 = vpack.c.b16 %v2828, %v2805
    %v4669 = vpack.c.b16 %v2829, %v2806
    %v4670 = vpack.c.b16 %v2830, %v2807
    %v4671 = vpack.c.b16 %v2831, %v2808
    %v4672 = vpack.c.b16 %v2832, %v2809
    %v4673 = vpack.c.b16 %v2833, %v2810
    %v4674 = vpack.c.b16 %v2834, %v2811
    %v4675 = vpack.c.b16 %v2835, %v2812
    %v4676 = vpack.c.b16 %v2836, %v2813
    %v4677 = vpack.c.b16 %v2837, %v2814
    %v4678 = vpack.c.b16 %v2838, %v2815
    %v4679 = vpack.c.b16 %v2839, %v2816
    %v4680 = vpack.c.b16 %v2840, %v2817
    %v4681 = vpack.c.b16 %v2841, %v2818
    %v4682 = vpack.c.b16 %v2842, %v2819
    %v4683 = vpack.c.b16 %v2866, %v2843
    %v4684 = vpack.c.b16 %v2867, %v2844
    %v4685 = vpack.c.b16 %v2868, %v2845
    %v4686 = vpack.c.b16 %v2869, %v2846
    %v4687 = vpack.c.b16 %v2870, %v2847
    %v4688 = vpack.c.b16 %v2871, %v2848
    %v4689 = vpack.c.b16 %v2872, %v2849
    %v4690 = vpack.c.b16 %v2873, %v2850
    %v4691 = vpack.c.b16 %v2874, %v2851
    %v4692 = vpack.c.b16 %v2875, %v2852
    %v4693 = vpack.c.b16 %v2876, %v2853
    %v4694 = vpack.c.b16 %v2877, %v2854
    %v4695 = vpack.c.b16 %v2878, %v2855
    %v4696 = vpack.c.b16 %v2879, %v2856
    %v4697 = vpack.c.b16 %v2880, %v2857
    %v4698 = vpack.c.b16 %v2881, %v2858
    %v4699 = vpack.c.b16 %v2882, %v2859
    %v4700 = vpack.c.b16 %v2883, %v2860
    %v4701 = vpack.c.b16 %v2884, %v2861
    %v4702 = vpack.c.b16 %v2885, %v2862
    %v4703 = vpack.c.b16 %v2886, %v2863
    %v4704 = vpack.c.b16 %v2887, %v2864
    %v4705 = vpack.c.b16 %v2888, %v2865
    %v4706 = vpack.c.b16 %v2912, %v2889
    %v4707 = vpack.c.b16 %v2913, %v2890
    %v4708 = vpack.c.b16 %v2914, %v2891
    %v4709 = vpack.c.b16 %v2915, %v2892
    %v4710 = vpack.c.b16 %v2916, %v2893
    %v4711 = vpack.c.b16 %v2917, %v2894
    %v4712 = vpack.c.b16 %v2918, %v2895
    %v4713 = vpack.c.b16 %v2919, %v2896
    %v4714 = vpack.c.b16 %v2920, %v2897
    %v4715 = vpack.c.b16 %v2921, %v2898
    %v4716 = vpack.c.b16 %v2922, %v2899
    %v4717 = vpack.c.b16 %v2923, %v2900
    %v4718 = vpack.c.b16 %v2924, %v2901
    %v4719 = vpack.c.b16 %v2925, %v2902
    %v4720 = vpack.c.b16 %v2926, %v2903
    %v4721 = vpack.c.b16 %v2927, %v2904
    %v4722 = vpack.c.b16 %v2928, %v2905
    %v4723 = vpack.c.b16 %v2929, %v2906
    %v4724 = vpack.c.b16 %v2930, %v2907
    %v4725 = vpack.c.b16 %v2931, %v2908
    %v4726 = vpack.c.b16 %v2932, %v2909
    %v4727 = vpack.c.b16 %v2933, %v2910
    %v4728 = vpack.c.b16 %v2934, %v2911
    %v4729 = vpack.c.b16 %v2958, %v2935
    %v4730 = vpack.c.b16 %v2959, %v2936
    %v4731 = vpack.c.b16 %v2960, %v2937
    %v4732 = vpack.c.b16 %v2961, %v2938
    %v4733 = vpack.c.b16 %v2962, %v2939
    %v4734 = vpack.c.b16 %v2963, %v2940
    %v4735 = vpack.c.b16 %v2964, %v2941
    %v4736 = vpack.c.b16 %v2965, %v2942
    %v4737 = vpack.c.b16 %v2966, %v2943
    %v4738 = vpack.c.b16 %v2967, %v2944
    %v4739 = vpack.c.b16 %v2968, %v2945
    %v4740 = vpack.c.b16 %v2969, %v2946
    %v4741 = vpack.c.b16 %v2970, %v2947
    %v4742 = vpack.c.b16 %v2971, %v2948
    %v4743 = vpack.c.b16 %v2972, %v2949
    %v4744 = vpack.c.b16 %v2973, %v2950
    %v4745 = vpack.c.b16 %v2974, %v2951
    %v4746 = vpack.c.b16 %v2975, %v2952
    %v4747 = vpack.c.b16 %v2976, %v2953
    %v4748 = vpack.c.b16 %v2977, %v2954
    %v4749 = vpack.c.b16 %v2978, %v2955
    %v4750 = vpack.c.b16 %v2979, %v2956
    %v4751 = vpack.c.b16 %v2980, %v2957
    %v4752 = vpack.c.b16 %v3004, %v2981
    %v4753 = vpack.c.b16 %v3005, %v2982
    %v4754 = vpack.c.b16 %v3006, %v2983
    %v4755 = vpack.c.b16 %v3007, %v2984
    %v4756 = vpack.c.b16 %v3008, %v2985
    %v4757 = vpack.c.b16 %v3009, %v2986
    %v4758 = vpack.c.b16 %v3010, %v2987
    %v4759 = vpack.c.b16 %v3011, %v2988
    %v4760 = vpack.c.b16 %v3012, %v2989
    %v4761 = vpack.c.b16 %v3013, %v2990
    %v4762 = vpack.c.b16 %v3014, %v2991
    %v4763 = vpack.c.b16 %v3015, %v2992
    %v4764 = vpack.c.b16 %v3016, %v2993
    %v4765 = vpack.c.b16 %v3017, %v2994
    %v4766 = vpack.c.b16 %v3018, %v2995
    %v4767 = vpack.c.b16 %v3019, %v2996
    %v4768 = vpack.c.b16 %v3020, %v2997
    %v4769 = vpack.c.b16 %v3021, %v2998
    %v4770 = vpack.c.b16 %v3022, %v2999
    %v4771 = vpack.c.b16 %v3023, %v3000
    %v4772 = vpack.c.b16 %v3024, %v3001
    %v4773 = vpack.c.b16 %v3025, %v3002
    %v4774 = vpack.c.b16 %v3026, %v3003
    %v4775 = vpack.c.b16 %v3050, %v3027
    %v4776 = vpack.c.b16 %v3051, %v3028
    %v4777 = vpack.c.b16 %v3052, %v3029
    %v4778 = vpack.c.b16 %v3053, %v3030
    %v4779 = vpack.c.b16 %v3054, %v3031
    %v4780 = vpack.c.b16 %v3055, %v3032
    %v4781 = vpack.c.b16 %v3056, %v3033
    %v4782 = vpack.c.b16 %v3057, %v3034
    %v4783 = vpack.c.b16 %v3058, %v3035
    %v4784 = vpack.c.b16 %v3059, %v3036
    %v4785 = vpack.c.b16 %v3060, %v3037
    %v4786 = vpack.c.b16 %v3061, %v3038
    %v4787 = vpack.c.b16 %v3062, %v3039
    %v4788 = vpack.c.b16 %v3063, %v3040
    %v4789 = vpack.c.b16 %v3064, %v3041
    %v4790 = vpack.c.b16 %v3065, %v3042
    %v4791 = vpack.c.b16 %v3066, %v3043
    %v4792 = vpack.c.b16 %v3067, %v3044
    %v4793 = vpack.c.b16 %v3068, %v3045
    %v4794 = vpack.c.b16 %v3069, %v3046
    %v4795 = vpack.c.b16 %v3070, %v3047
    %v4796 = vpack.c.b16 %v3071, %v3048
    %v4797 = vpack.c.b16 %v3072, %v3049
    %v4798 = vpack.c.b16 %v3096, %v3073
    %v4799 = vpack.c.b16 %v3097, %v3074
    %v4800 = vpack.c.b16 %v3098, %v3075
    %v4801 = vpack.c.b16 %v3099, %v3076
    %v4802 = vpack.c.b16 %v3100, %v3077
    %v4803 = vpack.c.b16 %v3101, %v3078
    %v4804 = vpack.c.b16 %v3102, %v3079
    %v4805 = vpack.c.b16 %v3103, %v3080
    %v4806 = vpack.c.b16 %v3104, %v3081
    %v4807 = vpack.c.b16 %v3105, %v3082
    %v4808 = vpack.c.b16 %v3106, %v3083
    %v4809 = vpack.c.b16 %v3107, %v3084
    %v4810 = vpack.c.b16 %v3108, %v3085
    %v4811 = vpack.c.b16 %v3109, %v3086
    %v4812 = vpack.c.b16 %v3110, %v3087
    %v4813 = vpack.c.b16 %v3111, %v3088
    %v4814 = vpack.c.b16 %v3112, %v3089
    %v4815 = vpack.c.b16 %v3113, %v3090
    %v4816 = vpack.c.b16 %v3114, %v3091
    %v4817 = vpack.c.b16 %v3115, %v3092
    %v4818 = vpack.c.b16 %v3116, %v3093
    %v4819 = vpack.c.b16 %v3117, %v3094
    %v4820 = vpack.c.b16 %v3118, %v3095
    %v4821 = vpack.c.b16 %v3142, %v3119
    %v4822 = vpack.c.b16 %v3143, %v3120
    %v4823 = vpack.c.b16 %v3144, %v3121
    %v4824 = vpack.c.b16 %v3145, %v3122
    %v4825 = vpack.c.b16 %v3146, %v3123
    %v4826 = vpack.c.b16 %v3147, %v3124
    %v4827 = vpack.c.b16 %v3148, %v3125
    %v4828 = vpack.c.b16 %v3149, %v3126
    %v4829 = vpack.c.b16 %v3150, %v3127
    %v4830 = vpack.c.b16 %v3151, %v3128
    %v4831 = vpack.c.b16 %v3152, %v3129
    %v4832 = vpack.c.b16 %v3153, %v3130
    %v4833 = vpack.c.b16 %v3154, %v3131
    %v4834 = vpack.c.b16 %v3155, %v3132
    %v4835 = vpack.c.b16 %v3156, %v3133
    %v4836 = vpack.c.b16 %v3157, %v3134
    %v4837 = vpack.c.b16 %v3158, %v3135
    %v4838 = vpack.c.b16 %v3159, %v3136
    %v4839 = vpack.c.b16 %v3160, %v3137
    %v4840 = vpack.c.b16 %v3161, %v3138
    %v4841 = vpack.c.b16 %v3162, %v3139
    %v4842 = vpack.c.b16 %v3163, %v3140
    %v4843 = vpack.c.b16 %v3164, %v3141
    %v4844 = vpack.c.b16 %v3188, %v3165
    %v4845 = vpack.c.b16 %v3189, %v3166
    %v4846 = vpack.c.b16 %v3190, %v3167
    %v4847 = vpack.c.b16 %v3191, %v3168
    %v4848 = vpack.c.b16 %v3192, %v3169
    %v4849 = vpack.c.b16 %v3193, %v3170
    %v4850 = vpack.c.b16 %v3194, %v3171
    %v4851 = vpack.c.b16 %v3195, %v3172
    %v4852 = vpack.c.b16 %v3196, %v3173
    %v4853 = vpack.c.b16 %v3197, %v3174
    %v4854 = vpack.c.b16 %v3198, %v3175
    %v4855 = vpack.c.b16 %v3199, %v3176
    %v4856 = vpack.c.b16 %v3200, %v3177
    %v4857 = vpack.c.b16 %v3201, %v3178
    %v4858 = vpack.c.b16 %v3202, %v3179
    %v4859 = vpack.c.b16 %v3203, %v3180
    %v4860 = vpack.c.b16 %v3204, %v3181
    %v4861 = vpack.c.b16 %v3205, %v3182
    %v4862 = vpack.c.b16 %v3206, %v3183
    %v4863 = vpack.c.b16 %v3207, %v3184
    %v4864 = vpack.c.b16 %v3208, %v3185
    %v4865 = vpack.c.b16 %v3209, %v3186
    %v4866 = vpack.c.b16 %v3210, %v3187
    %v4867 = vpack.c.b16 %v3234, %v3211
    %v4868 = vpack.c.b16 %v3235, %v3212
    %v4869 = vpack.c.b16 %v3236, %v3213
    %v4870 = vpack.c.b16 %v3237, %v3214
    %v4871 = vpack.c.b16 %v3238, %v3215
    %v4872 = vpack.c.b16 %v3239, %v3216
    %v4873 = vpack.c.b16 %v3240, %v3217
    %v4874 = vpack.c.b16 %v3241, %v3218
    %v4875 = vpack.c.b16 %v3242, %v3219
    %v4876 = vpack.c.b16 %v3243, %v3220
    %v4877 = vpack.c.b16 %v3244, %v3221
    %v4878 = vpack.c.b16 %v3245, %v3222
    %v4879 = vpack.c.b16 %v3246, %v3223
    %v4880 = vpack.c.b16 %v3247, %v3224
    %v4881 = vpack.c.b16 %v3248, %v3225
    %v4882 = vpack.c.b16 %v3249, %v3226
    %v4883 = vpack.c.b16 %v3250, %v3227
    %v4884 = vpack.c.b16 %v3251, %v3228
    %v4885 = vpack.c.b16 %v3252, %v3229
    %v4886 = vpack.c.b16 %v3253, %v3230
    %v4887 = vpack.c.b16 %v3254, %v3231
    %v4888 = vpack.c.b16 %v3255, %v3232
    %v4889 = vpack.c.b16 %v3256, %v3233
    %v4890 = vpack.c.b16 %v3280, %v3257
    %v4891 = vpack.c.b16 %v3281, %v3258
    %v4892 = vpack.c.b16 %v3282, %v3259
    %v4893 = vpack.c.b16 %v3283, %v3260
    %v4894 = vpack.c.b16 %v3284, %v3261
    %v4895 = vpack.c.b16 %v3285, %v3262
    %v4896 = vpack.c.b16 %v3286, %v3263
    %v4897 = vpack.c.b16 %v3287, %v3264
    %v4898 = vpack.c.b16 %v3288, %v3265
    %v4899 = vpack.c.b16 %v3289, %v3266
    %v4900 = vpack.c.b16 %v3290, %v3267
    %v4901 = vpack.c.b16 %v3291, %v3268
    %v4902 = vpack.c.b16 %v3292, %v3269
    %v4903 = vpack.c.b16 %v3293, %v3270
    %v4904 = vpack.c.b16 %v3294, %v3271
    %v4905 = vpack.c.b16 %v3295, %v3272
    %v4906 = vpack.c.b16 %v3296, %v3273
    %v4907 = vpack.c.b16 %v3297, %v3274
    %v4908 = vpack.c.b16 %v3298, %v3275
    %v4909 = vpack.c.b16 %v3299, %v3276
    %v4910 = vpack.c.b16 %v3300, %v3277
    %v4911 = vpack.c.b16 %v3301, %v3278
    %v4912 = vpack.c.b16 %v3302, %v3279
    %v4913 = vpack.c.b16 %v3326, %v3303
    %v4914 = vpack.c.b16 %v3327, %v3304
    %v4915 = vpack.c.b16 %v3328, %v3305
    %v4916 = vpack.c.b16 %v3329, %v3306
    %v4917 = vpack.c.b16 %v3330, %v3307
    %v4918 = vpack.c.b16 %v3331, %v3308
    %v4919 = vpack.c.b16 %v3332, %v3309
    %v4920 = vpack.c.b16 %v3333, %v3310
    %v4921 = vpack.c.b16 %v3334, %v3311
    %v4922 = vpack.c.b16 %v3335, %v3312
    %v4923 = vpack.c.b16 %v3336, %v3313
    %v4924 = vpack.c.b16 %v3337, %v3314
    %v4925 = vpack.c.b16 %v3338, %v3315
    %v4926 = vpack.c.b16 %v3339, %v3316
    %v4927 = vpack.c.b16 %v3340, %v3317
    %v4928 = vpack.c.b16 %v3341, %v3318
    %v4929 = vpack.c.b16 %v3342, %v3319
    %v4930 = vpack.c.b16 %v3343, %v3320
    %v4931 = vpack.c.b16 %v3344, %v3321
    %v4932 = vpack.c.b16 %v3345, %v3322
    %v4933 = vpack.c.b16 %v3346, %v3323
    %v4934 = vpack.c.b16 %v3347, %v3324
    %v4935 = vpack.c.b16 %v3348, %v3325
    %v4936 = vpack.c.b16 %v3372, %v3349
    %v4937 = vpack.c.b16 %v3373, %v3350
    %v4938 = vpack.c.b16 %v3374, %v3351
    %v4939 = vpack.c.b16 %v3375, %v3352
    %v4940 = vpack.c.b16 %v3376, %v3353
    %v4941 = vpack.c.b16 %v3377, %v3354
    %v4942 = vpack.c.b16 %v3378, %v3355
    %v4943 = vpack.c.b16 %v3379, %v3356
    %v4944 = vpack.c.b16 %v3380, %v3357
    %v4945 = vpack.c.b16 %v3381, %v3358
    %v4946 = vpack.c.b16 %v3382, %v3359
    %v4947 = vpack.c.b16 %v3383, %v3360
    %v4948 = vpack.c.b16 %v3384, %v3361
    %v4949 = vpack.c.b16 %v3385, %v3362
    %v4950 = vpack.c.b16 %v3386, %v3363
    %v4951 = vpack.c.b16 %v3387, %v3364
    %v4952 = vpack.c.b16 %v3388, %v3365
    %v4953 = vpack.c.b16 %v3389, %v3366
    %v4954 = vpack.c.b16 %v3390, %v3367
    %v4955 = vpack.c.b16 %v3391, %v3368
    %v4956 = vpack.c.b16 %v3392, %v3369
    %v4957 = vpack.c.b16 %v3393, %v3370
    %v4958 = vpack.c.b16 %v3394, %v3371
    %v4959 = vpack.c.b16 %v3418, %v3395
    %v4960 = vpack.c.b16 %v3419, %v3396
    %v4961 = vpack.c.b16 %v3420, %v3397
    %v4962 = vpack.c.b16 %v3421, %v3398
    %v4963 = vpack.c.b16 %v3422, %v3399
    %v4964 = vpack.c.b16 %v3423, %v3400
    %v4965 = vpack.c.b16 %v3424, %v3401
    %v4966 = vpack.c.b16 %v3425, %v3402
    %v4967 = vpack.c.b16 %v3426, %v3403
    %v4968 = vpack.c.b16 %v3427, %v3404
    %v4969 = vpack.c.b16 %v3428, %v3405
    %v4970 = vpack.c.b16 %v3429, %v3406
    %v4971 = vpack.c.b16 %v3430, %v3407
    %v4972 = vpack.c.b16 %v3431, %v3408
    %v4973 = vpack.c.b16 %v3432, %v3409
    %v4974 = vpack.c.b16 %v3433, %v3410
    %v4975 = vpack.c.b16 %v3434, %v3411
    %v4976 = vpack.c.b16 %v3435, %v3412
    %v4977 = vpack.c.b16 %v3436, %v3413
    %v4978 = vpack.c.b16 %v3437, %v3414
    %v4979 = vpack.c.b16 %v3438, %v3415
    %v4980 = vpack.c.b16 %v3439, %v3416
    %v4981 = vpack.c.b16 %v3440, %v3417
    %v4982 = vpack.c.b16 %v3464, %v3441
    %v4983 = vpack.c.b16 %v3465, %v3442
    %v4984 = vpack.c.b16 %v3466, %v3443
    %v4985 = vpack.c.b16 %v3467, %v3444
    %v4986 = vpack.c.b16 %v3468, %v3445
    %v4987 = vpack.c.b16 %v3469, %v3446
    %v4988 = vpack.c.b16 %v3470, %v3447
    %v4989 = vpack.c.b16 %v3471, %v3448
    %v4990 = vpack.c.b16 %v3472, %v3449
    %v4991 = vpack.c.b16 %v3473, %v3450
    %v4992 = vpack.c.b16 %v3474, %v3451
    %v4993 = vpack.c.b16 %v3475, %v3452
    %v4994 = vpack.c.b16 %v3476, %v3453
    %v4995 = vpack.c.b16 %v3477, %v3454
    %v4996 = vpack.c.b16 %v3478, %v3455
    %v4997 = vpack.c.b16 %v3479, %v3456
    %v4998 = vpack.c.b16 %v3480, %v3457
    %v4999 = vpack.c.b16 %v3481, %v3458
    %v5000 = vpack.c.b16 %v3482, %v3459
    %v5001 = vpack.c.b16 %v3483, %v3460
    %v5002 = vpack.c.b16 %v3484, %v3461
    %v5003 = vpack.c.b16 %v3485, %v3462
    %v5004 = vpack.c.b16 %v3486, %v3463
    %v5005 = vpack.c.b16 %v3510, %v3487
    %v5006 = vpack.c.b16 %v3511, %v3488
    %v5007 = vpack.c.b16 %v3512, %v3489
    %v5008 = vpack.c.b16 %v3513, %v3490
    %v5009 = vpack.c.b16 %v3514, %v3491
    %v5010 = vpack.c.b16 %v3515, %v3492
    %v5011 = vpack.c.b16 %v3516, %v3493
    %v5012 = vpack.c.b16 %v3517, %v3494
    %v5013 = vpack.c.b16 %v3518, %v3495
    %v5014 = vpack.c.b16 %v3519, %v3496
    %v5015 = vpack.c.b16 %v3520, %v3497
    %v5016 = vpack.c.b16 %v3521, %v3498
    %v5017 = vpack.c.b16 %v3522, %v3499
    %v5018 = vpack.c.b16 %v3523, %v3500
    %v5019 = vpack.c.b16 %v3524, %v3501
    %v5020 = vpack.c.b16 %v3525, %v3502
    %v5021 = vpack.c.b16 %v3526, %v3503
    %v5022 = vpack.c.b16 %v3527, %v3504
    %v5023 = vpack.c.b16 %v3528, %v3505
    %v5024 = vpack.c.b16 %v3529, %v3506
    %v5025 = vpack.c.b16 %v3530, %v3507
    %v5026 = vpack.c.b16 %v3531, %v3508
    %v5027 = vpack.c.b16 %v3532, %v3509
    %v5028 = vpack.c.b16 %v3556, %v3533
    %v5029 = vpack.c.b16 %v3557, %v3534
    %v5030 = vpack.c.b16 %v3558, %v3535
    %v5031 = vpack.c.b16 %v3559, %v3536
    %v5032 = vpack.c.b16 %v3560, %v3537
    %v5033 = vpack.c.b16 %v3561, %v3538
    %v5034 = vpack.c.b16 %v3562, %v3539
    %v5035 = vpack.c.b16 %v3563, %v3540
    %v5036 = vpack.c.b16 %v3564, %v3541
    %v5037 = vpack.c.b16 %v3565, %v3542
    %v5038 = vpack.c.b16 %v3566, %v3543
    %v5039 = vpack.c.b16 %v3567, %v3544
    %v5040 = vpack.c.b16 %v3568, %v3545
    %v5041 = vpack.c.b16 %v3569, %v3546
    %v5042 = vpack.c.b16 %v3570, %v3547
    %v5043 = vpack.c.b16 %v3571, %v3548
    %v5044 = vpack.c.b16 %v3572, %v3549
    %v5045 = vpack.c.b16 %v3573, %v3550
    %v5046 = vpack.c.b16 %v3574, %v3551
    %v5047 = vpack.c.b16 %v3575, %v3552
    %v5048 = vpack.c.b16 %v3576, %v3553
    %v5049 = vpack.c.b16 %v3577, %v3554
    %v5050 = vpack.c.b16 %v3578, %v3555
    %v5051 = vpack.c.b16 %v3602, %v3579
    %v5052 = vpack.c.b16 %v3603, %v3580
    %v5053 = vpack.c.b16 %v3604, %v3581
    %v5054 = vpack.c.b16 %v3605, %v3582
    %v5055 = vpack.c.b16 %v3606, %v3583
    %v5056 = vpack.c.b16 %v3607, %v3584
    %v5057 = vpack.c.b16 %v3608, %v3585
    %v5058 = vpack.c.b16 %v3609, %v3586
    %v5059 = vpack.c.b16 %v3610, %v3587
    %v5060 = vpack.c.b16 %v3611, %v3588
    %v5061 = vpack.c.b16 %v3612, %v3589
    %v5062 = vpack.c.b16 %v3613, %v3590
    %v5063 = vpack.c.b16 %v3614, %v3591
    %v5064 = vpack.c.b16 %v3615, %v3592
    %v5065 = vpack.c.b16 %v3616, %v3593
    %v5066 = vpack.c.b16 %v3617, %v3594
    %v5067 = vpack.c.b16 %v3618, %v3595
    %v5068 = vpack.c.b16 %v3619, %v3596
    %v5069 = vpack.c.b16 %v3620, %v3597
    %v5070 = vpack.c.b16 %v3621, %v3598
    %v5071 = vpack.c.b16 %v3622, %v3599
    %v5072 = vpack.c.b16 %v3623, %v3600
    %v5073 = vpack.c.b16 %v3624, %v3601
    %v5074 = vpack.c.b16 %v3648, %v3625
    %v5075 = vpack.c.b16 %v3649, %v3626
    %v5076 = vpack.c.b16 %v3650, %v3627
    %v5077 = vpack.c.b16 %v3651, %v3628
    %v5078 = vpack.c.b16 %v3652, %v3629
    %v5079 = vpack.c.b16 %v3653, %v3630
    %v5080 = vpack.c.b16 %v3654, %v3631
    %v5081 = vpack.c.b16 %v3655, %v3632
    %v5082 = vpack.c.b16 %v3656, %v3633
    %v5083 = vpack.c.b16 %v3657, %v3634
    %v5084 = vpack.c.b16 %v3658, %v3635
    %v5085 = vpack.c.b16 %v3659, %v3636
    %v5086 = vpack.c.b16 %v3660, %v3637
    %v5087 = vpack.c.b16 %v3661, %v3638
    %v5088 = vpack.c.b16 %v3662, %v3639
    %v5089 = vpack.c.b16 %v3663, %v3640
    %v5090 = vpack.c.b16 %v3664, %v3641
    %v5091 = vpack.c.b16 %v3665, %v3642
    %v5092 = vpack.c.b16 %v3666, %v3643
    %v5093 = vpack.c.b16 %v3667, %v3644
    %v5094 = vpack.c.b16 %v3668, %v3645
    %v5095 = vpack.c.b16 %v3669, %v3646
    %v5096 = vpack.c.b16 %v3670, %v3647
    %v5097 = vpack.c.b16 %v3694, %v3671
    %v5098 = vpack.c.b16 %v3695, %v3672
    %v5099 = vpack.c.b16 %v3696, %v3673
    %v5100 = vpack.c.b16 %v3697, %v3674
    %v5101 = vpack.c.b16 %v3698, %v3675
    %v5102 = vpack.c.b16 %v3699, %v3676
    %v5103 = vpack.c.b16 %v3700, %v3677
    %v5104 = vpack.c.b16 %v3701, %v3678
    %v5105 = vpack.c.b16 %v3702, %v3679
    %v5106 = vpack.c.b16 %v3703, %v3680
    %v5107 = vpack.c.b16 %v3704, %v3681
    %v5108 = vpack.c.b16 %v3705, %v3682
    %v5109 = vpack.c.b16 %v3706, %v3683
    %v5110 = vpack.c.b16 %v3707, %v3684
    %v5111 = vpack.c.b16 %v3708, %v3685
    %v5112 = vpack.c.b16 %v3709, %v3686
    %v5113 = vpack.c.b16 %v3710, %v3687
    %v5114 = vpack.c.b16 %v3711, %v3688
    %v5115 = vpack.c.b16 %v3712, %v3689
    %v5116 = vpack.c.b16 %v3713, %v3690
    %v5117 = vpack.c.b16 %v3714, %v3691
    %v5118 = vpack.c.b16 %v3715, %v3692
    %v5119 = vpack.c.b16 %v3716, %v3693
    %v5120 = vpack.c.b16 %v3740, %v3717
    %v5121 = vpack.c.b16 %v3741, %v3718
    %v5122 = vpack.c.b16 %v3742, %v3719
    %v5123 = vpack.c.b16 %v3743, %v3720
    %v5124 = vpack.c.b16 %v3744, %v3721
    %v5125 = vpack.c.b16 %v3745, %v3722
    %v5126 = vpack.c.b16 %v3746, %v3723
    %v5127 = vpack.c.b16 %v3747, %v3724
    %v5128 = vpack.c.b16 %v3748, %v3725
    %v5129 = vpack.c.b16 %v3749, %v3726
    %v5130 = vpack.c.b16 %v3750, %v3727
    %v5131 = vpack.c.b16 %v3751, %v3728
    %v5132 = vpack.c.b16 %v3752, %v3729
    %v5133 = vpack.c.b16 %v3753, %v3730
    %v5134 = vpack.c.b16 %v3754, %v3731
    %v5135 = vpack.c.b16 %v3755, %v3732
    %v5136 = vpack.c.b16 %v3756, %v3733
    %v5137 = vpack.c.b16 %v3757, %v3734
    %v5138 = vpack.c.b16 %v3758, %v3735
    %v5139 = vpack.c.b16 %v3759, %v3736
    %v5140 = vpack.c.b16 %v3760, %v3737
    %v5141 = vpack.c.b16 %v3761, %v3738
    %v5142 = vpack.c.b16 %v3762, %v3739
    %v5143 = vpack.c.b16 %v3786, %v3763
    %v5144 = vpack.c.b16 %v3787, %v3764
    %v5145 = vpack.c.b16 %v3788, %v3765
    %v5146 = vpack.c.b16 %v3789, %v3766
    %v5147 = vpack.c.b16 %v3790, %v3767
    %v5148 = vpack.c.b16 %v3791, %v3768
    %v5149 = vpack.c.b16 %v3792, %v3769
    %v5150 = vpack.c.b16 %v3793, %v3770
    %v5151 = vpack.c.b16 %v3794, %v3771
    %v5152 = vpack.c.b16 %v3795, %v3772
    %v5153 = vpack.c.b16 %v3796, %v3773
    %v5154 = vpack.c.b16 %v3797, %v3774
    %v5155 = vpack.c.b16 %v3798, %v3775
    %v5156 = vpack.c.b16 %v3799, %v3776
    %v5157 = vpack.c.b16 %v3800, %v3777
    %v5158 = vpack.c.b16 %v3801, %v3778
    %v5159 = vpack.c.b16 %v3802, %v3779
    %v5160 = vpack.c.b16 %v3803, %v3780
    %v5161 = vpack.c.b16 %v3804, %v3781
    %v5162 = vpack.c.b16 %v3805, %v3782
    %v5163 = vpack.c.b16 %v3806, %v3783
    %v5164 = vpack.c.b16 %v3807, %v3784
    %v5165 = vpack.c.b16 %v3808, %v3785
    %v5166 = vpack.c.b16 %v3832, %v3809
    %v5167 = vpack.c.b16 %v3833, %v3810
    %v5168 = vpack.c.b16 %v3834, %v3811
    %v5169 = vpack.c.b16 %v3835, %v3812
    %v5170 = vpack.c.b16 %v3836, %v3813
    %v5171 = vpack.c.b16 %v3837, %v3814
    %v5172 = vpack.c.b16 %v3838, %v3815
    %v5173 = vpack.c.b16 %v3839, %v3816
    %v5174 = vpack.c.b16 %v3840, %v3817
    %v5175 = vpack.c.b16 %v3841, %v3818
    %v5176 = vpack.c.b16 %v3842, %v3819
    %v5177 = vpack.c.b16 %v3843, %v3820
    %v5178 = vpack.c.b16 %v3844, %v3821
    %v5179 = vpack.c.b16 %v3845, %v3822
    %v5180 = vpack.c.b16 %v3846, %v3823
    %v5181 = vpack.c.b16 %v3847, %v3824
    %v5182 = vpack.c.b16 %v3848, %v3825
    %v5183 = vpack.c.b16 %v3849, %v3826
    %v5184 = vpack.c.b16 %v3850, %v3827
    %v5185 = vpack.c.b16 %v3851, %v3828
    %v5186 = vpack.c.b16 %v3852, %v3829
    %v5187 = vpack.c.b16 %v3853, %v3830
    %v5188 = vpack.c.b16 %v3854, %v3831
    %v5189 = vpack.c.b16 %v3878, %v3855
    %v5190 = vpack.c.b16 %v3879, %v3856
    %v5191 = vpack.c.b16 %v3880, %v3857
    %v5192 = vpack.c.b16 %v3881, %v3858
    %v5193 = vpack.c.b16 %v3882, %v3859
    %v5194 = vpack.c.b16 %v3883, %v3860
    %v5195 = vpack.c.b16 %v3884, %v3861
    %v5196 = vpack.c.b16 %v3885, %v3862
    %v5197 = vpack.c.b16 %v3886, %v3863
    %v5198 = vpack.c.b16 %v3887, %v3864
    %v5199 = vpack.c.b16 %v3888, %v3865
    %v5200 = vpack.c.b16 %v3889, %v3866
    %v5201 = vpack.c.b16 %v3890, %v3867
    %v5202 = vpack.c.b16 %v3891, %v3868
    %v5203 = vpack.c.b16 %v3892, %v3869
    %v5204 = vpack.c.b16 %v3893, %v3870
    %v5205 = vpack.c.b16 %v3894, %v3871
    %v5206 = vpack.c.b16 %v3895, %v3872
    %v5207 = vpack.c.b16 %v3896, %v3873
    %v5208 = vpack.c.b16 %v3897, %v3874
    %v5209 = vpack.c.b16 %v3898, %v3875
    %v5210 = vpack.c.b16 %v3899, %v3876
    %v5211 = vpack.c.b16 %v3900, %v3877
    %v5212 = vpack.c.b16 %v3924, %v3901
    %v5213 = vpack.c.b16 %v3925, %v3902
    %v5214 = vpack.c.b16 %v3926, %v3903
    %v5215 = vpack.c.b16 %v3927, %v3904
    %v5216 = vpack.c.b16 %v3928, %v3905
    %v5217 = vpack.c.b16 %v3929, %v3906
    %v5218 = vpack.c.b16 %v3930, %v3907
    %v5219 = vpack.c.b16 %v3931, %v3908
    %v5220 = vpack.c.b16 %v3932, %v3909
    %v5221 = vpack.c.b16 %v3933, %v3910
    %v5222 = vpack.c.b16 %v3934, %v3911
    %v5223 = vpack.c.b16 %v3935, %v3912
    %v5224 = vpack.c.b16 %v3936, %v3913
    %v5225 = vpack.c.b16 %v3937, %v3914
    %v5226 = vpack.c.b16 %v3938, %v3915
    %v5227 = vpack.c.b16 %v3939, %v3916
    %v5228 = vpack.c.b16 %v3940, %v3917
    %v5229 = vpack.c.b16 %v3941, %v3918
    %v5230 = vpack.c.b16 %v3942, %v3919
    %v5231 = vpack.c.b16 %v3943, %v3920
    %v5232 = vpack.c.b16 %v3944, %v3921
    %v5233 = vpack.c.b16 %v3945, %v3922
    %v5234 = vpack.c.b16 %v3946, %v3923
    %v5235 = vpack.c.b16 %v3970, %v3947
    %v5236 = vpack.c.b16 %v3971, %v3948
    %v5237 = vpack.c.b16 %v3972, %v3949
    %v5238 = vpack.c.b16 %v3973, %v3950
    %v5239 = vpack.c.b16 %v3974, %v3951
    %v5240 = vpack.c.b16 %v3975, %v3952
    %v5241 = vpack.c.b16 %v3976, %v3953
    %v5242 = vpack.c.b16 %v3977, %v3954
    %v5243 = vpack.c.b16 %v3978, %v3955
    %v5244 = vpack.c.b16 %v3979, %v3956
    %v5245 = vpack.c.b16 %v3980, %v3957
    %v5246 = vpack.c.b16 %v3981, %v3958
    %v5247 = vpack.c.b16 %v3982, %v3959
    %v5248 = vpack.c.b16 %v3983, %v3960
    %v5249 = vpack.c.b16 %v3984, %v3961
    %v5250 = vpack.c.b16 %v3985, %v3962
    %v5251 = vpack.c.b16 %v3986, %v3963
    %v5252 = vpack.c.b16 %v3987, %v3964
    %v5253 = vpack.c.b16 %v3988, %v3965
    %v5254 = vpack.c.b16 %v3989, %v3966
    %v5255 = vpack.c.b16 %v3990, %v3967
    %v5256 = vpack.c.b16 %v3991, %v3968
    %v5257 = vpack.c.b16 %v3992, %v3969
    %v5258 = vpack.c.b16 %v4016, %v3993
    %v5259 = vpack.c.b16 %v4017, %v3994
    %v5260 = vpack.c.b16 %v4018, %v3995
    %v5261 = vpack.c.b16 %v4019, %v3996
    %v5262 = vpack.c.b16 %v4020, %v3997
    %v5263 = vpack.c.b16 %v4021, %v3998
    %v5264 = vpack.c.b16 %v4022, %v3999
    %v5265 = vpack.c.b16 %v4023, %v4000
    %v5266 = vpack.c.b16 %v4024, %v4001
    %v5267 = vpack.c.b16 %v4025, %v4002
    %v5268 = vpack.c.b16 %v4026, %v4003
    %v5269 = vpack.c.b16 %v4027, %v4004
    %v5270 = vpack.c.b16 %v4028, %v4005
    %v5271 = vpack.c.b16 %v4029, %v4006
    %v5272 = vpack.c.b16 %v4030, %v4007
    %v5273 = vpack.c.b16 %v4031, %v4008
    %v5274 = vpack.c.b16 %v4032, %v4009
    %v5275 = vpack.c.b16 %v4033, %v4010
    %v5276 = vpack.c.b16 %v4034, %v4011
    %v5277 = vpack.c.b16 %v4035, %v4012
    %v5278 = vpack.c.b16 %v4036, %v4013
    %v5279 = vpack.c.b16 %v4037, %v4014
    %v5280 = vpack.c.b16 %v4038, %v4015
    %v5281 = vpack.c.b16 %v4062, %v4039
    %v5282 = vpack.c.b16 %v4063, %v4040
    %v5283 = vpack.c.b16 %v4064, %v4041
    %v5284 = vpack.c.b16 %v4065, %v4042
    %v5285 = vpack.c.b16 %v4066, %v4043
    %v5286 = vpack.c.b16 %v4067, %v4044
    %v5287 = vpack.c.b16 %v4068, %v4045
    %v5288 = vpack.c.b16 %v4069, %v4046
    %v5289 = vpack.c.b16 %v4070, %v4047
    %v5290 = vpack.c.b16 %v4071, %v4048
    %v5291 = vpack.c.b16 %v4072, %v4049
    %v5292 = vpack.c.b16 %v4073, %v4050
    %v5293 = vpack.c.b16 %v4074, %v4051
    %v5294 = vpack.c.b16 %v4075, %v4052
    %v5295 = vpack.c.b16 %v4076, %v4053
    %v5296 = vpack.c.b16 %v4077, %v4054
    %v5297 = vpack.c.b16 %v4078, %v4055
    %v5298 = vpack.c.b16 %v4079, %v4056
    %v5299 = vpack.c.b16 %v4080, %v4057
    %v5300 = vpack.c.b16 %v4081, %v4058
    %v5301 = vpack.c.b16 %v4082, %v4059
    %v5302 = vpack.c.b16 %v4083, %v4060
    %v5303 = vpack.c.b16 %v4084, %v4061
    %v5304 = vpack.c.b16 %v4108, %v4085
    %v5305 = vpack.c.b16 %v4109, %v4086
    %v5306 = vpack.c.b16 %v4110, %v4087
    %v5307 = vpack.c.b16 %v4111, %v4088
    %v5308 = vpack.c.b16 %v4112, %v4089
    %v5309 = vpack.c.b16 %v4113, %v4090
    %v5310 = vpack.c.b16 %v4114, %v4091
    %v5311 = vpack.c.b16 %v4115, %v4092
    %v5312 = vpack.c.b16 %v4116, %v4093
    %v5313 = vpack.c.b16 %v4117, %v4094
    %v5314 = vpack.c.b16 %v4118, %v4095
    %v5315 = vpack.c.b16 %v4119, %v4096
    %v5316 = vpack.c.b16 %v4120, %v4097
    %v5317 = vpack.c.b16 %v4121, %v4098
    %v5318 = vpack.c.b16 %v4122, %v4099
    %v5319 = vpack.c.b16 %v4123, %v4100
    %v5320 = vpack.c.b16 %v4124, %v4101
    %v5321 = vpack.c.b16 %v4125, %v4102
    %v5322 = vpack.c.b16 %v4126, %v4103
    %v5323 = vpack.c.b16 %v4127, %v4104
    %v5324 = vpack.c.b16 %v4128, %v4105
    %v5325 = vpack.c.b16 %v4129, %v4106
    %v5326 = vpack.c.b16 %v4130, %v4107
    %v5327 = vpack.c.b16 %v4154, %v4131
    %v5328 = vpack.c.b16 %v4155, %v4132
    %v5329 = vpack.c.b16 %v4156, %v4133
    %v5330 = vpack.c.b16 %v4157, %v4134
    %v5331 = vpack.c.b16 %v4158, %v4135
    %v5332 = vpack.c.b16 %v4159, %v4136
    %v5333 = vpack.c.b16 %v4160, %v4137
    %v5334 = vpack.c.b16 %v4161, %v4138
    %v5335 = vpack.c.b16 %v4162, %v4139
    %v5336 = vpack.c.b16 %v4163, %v4140
    %v5337 = vpack.c.b16 %v4164, %v4141
    %v5338 = vpack.c.b16 %v4165, %v4142
    %v5339 = vpack.c.b16 %v4166, %v4143
    %v5340 = vpack.c.b16 %v4167, %v4144
    %v5341 = vpack.c.b16 %v4168, %v4145
    %v5342 = vpack.c.b16 %v4169, %v4146
    %v5343 = vpack.c.b16 %v4170, %v4147
    %v5344 = vpack.c.b16 %v4171, %v4148
    %v5345 = vpack.c.b16 %v4172, %v4149
    %v5346 = vpack.c.b16 %v4173, %v4150
    %v5347 = vpack.c.b16 %v4174, %v4151
    %v5348 = vpack.c.b16 %v4175, %v4152
    %v5349 = vpack.c.b16 %v4176, %v4153
    %v5350 = vpack.c.b16 %v4200, %v4177
    %v5351 = vpack.c.b16 %v4201, %v4178
    %v5352 = vpack.c.b16 %v4202, %v4179
    %v5353 = vpack.c.b16 %v4203, %v4180
    %v5354 = vpack.c.b16 %v4204, %v4181
    %v5355 = vpack.c.b16 %v4205, %v4182
    %v5356 = vpack.c.b16 %v4206, %v4183
    %v5357 = vpack.c.b16 %v4207, %v4184
    %v5358 = vpack.c.b16 %v4208, %v4185
    %v5359 = vpack.c.b16 %v4209, %v4186
    %v5360 = vpack.c.b16 %v4210, %v4187
    %v5361 = vpack.c.b16 %v4211, %v4188
    %v5362 = vpack.c.b16 %v4212, %v4189
    %v5363 = vpack.c.b16 %v4213, %v4190
    %v5364 = vpack.c.b16 %v4214, %v4191
    %v5365 = vpack.c.b16 %v4215, %v4192
    %v5366 = vpack.c.b16 %v4216, %v4193
    %v5367 = vpack.c.b16 %v4217, %v4194
    %v5368 = vpack.c.b16 %v4218, %v4195
    %v5369 = vpack.c.b16 %v4219, %v4196
    %v5370 = vpack.c.b16 %v4220, %v4197
    %v5371 = vpack.c.b16 %v4221, %v4198
    %v5372 = vpack.c.b16 %v4222, %v4199
    %v5373 = vpack.c.b16 %v4246, %v4223
    %v5374 = vpack.c.b16 %v4247, %v4224
    %v5375 = vpack.c.b16 %v4248, %v4225
    %v5376 = vpack.c.b16 %v4249, %v4226
    %v5377 = vpack.c.b16 %v4250, %v4227
    %v5378 = vpack.c.b16 %v4251, %v4228
    %v5379 = vpack.c.b16 %v4252, %v4229
    %v5380 = vpack.c.b16 %v4253, %v4230
    %v5381 = vpack.c.b16 %v4254, %v4231
    %v5382 = vpack.c.b16 %v4255, %v4232
    %v5383 = vpack.c.b16 %v4256, %v4233
    %v5384 = vpack.c.b16 %v4257, %v4234
    %v5385 = vpack.c.b16 %v4258, %v4235
    %v5386 = vpack.c.b16 %v4259, %v4236
    %v5387 = vpack.c.b16 %v4260, %v4237
    %v5388 = vpack.c.b16 %v4261, %v4238
    %v5389 = vpack.c.b16 %v4262, %v4239
    %v5390 = vpack.c.b16 %v4263, %v4240
    %v5391 = vpack.c.b16 %v4264, %v4241
    %v5392 = vpack.c.b16 %v4265, %v4242
    %v5393 = vpack.c.b16 %v4266, %v4243
    %v5394 = vpack.c.b16 %v4267, %v4244
    %v5395 = vpack.c.b16 %v4268, %v4245
    %v5396 = vpack.c.b16 %v4292, %v4269
    %v5397 = vpack.c.b16 %v4293, %v4270
    %v5398 = vpack.c.b16 %v4294, %v4271
    %v5399 = vpack.c.b16 %v4295, %v4272
    %v5400 = vpack.c.b16 %v4296, %v4273
    %v5401 = vpack.c.b16 %v4297, %v4274
    %v5402 = vpack.c.b16 %v4298, %v4275
    %v5403 = vpack.c.b16 %v4299, %v4276
    %v5404 = vpack.c.b16 %v4300, %v4277
    %v5405 = vpack.c.b16 %v4301, %v4278
    %v5406 = vpack.c.b16 %v4302, %v4279
    %v5407 = vpack.c.b16 %v4303, %v4280
    %v5408 = vpack.c.b16 %v4304, %v4281
    %v5409 = vpack.c.b16 %v4305, %v4282
    %v5410 = vpack.c.b16 %v4306, %v4283
    %v5411 = vpack.c.b16 %v4307, %v4284
    %v5412 = vpack.c.b16 %v4308, %v4285
    %v5413 = vpack.c.b16 %v4309, %v4286
    %v5414 = vpack.c.b16 %v4310, %v4287
    %v5415 = vpack.c.b16 %v4311, %v4288
    %v5416 = vpack.c.b16 %v4312, %v4289
    %v5417 = vpack.c.b16 %v4313, %v4290
    %v5418 = vpack.c.b16 %v4314, %v4291
    %v5419 = vpack.c.b16 %v4338, %v4315
    %v5420 = vpack.c.b16 %v4339, %v4316
    %v5421 = vpack.c.b16 %v4340, %v4317
    %v5422 = vpack.c.b16 %v4341, %v4318
    %v5423 = vpack.c.b16 %v4342, %v4319
    %v5424 = vpack.c.b16 %v4343, %v4320
    %v5425 = vpack.c.b16 %v4344, %v4321
    %v5426 = vpack.c.b16 %v4345, %v4322
    %v5427 = vpack.c.b16 %v4346, %v4323
    %v5428 = vpack.c.b16 %v4347, %v4324
    %v5429 = vpack.c.b16 %v4348, %v4325
    %v5430 = vpack.c.b16 %v4349, %v4326
    %v5431 = vpack.c.b16 %v4350, %v4327
    %v5432 = vpack.c.b16 %v4351, %v4328
    %v5433 = vpack.c.b16 %v4352, %v4329
    %v5434 = vpack.c.b16 %v4353, %v4330
    %v5435 = vpack.c.b16 %v4354, %v4331
    %v5436 = vpack.c.b16 %v4355, %v4332
    %v5437 = vpack.c.b16 %v4356, %v4333
    %v5438 = vpack.c.b16 %v4357, %v4334
    %v5439 = vpack.c.b16 %v4358, %v4335
    %v5440 = vpack.c.b16 %v4359, %v4336
    %v5441 = vpack.c.b16 %v4360, %v4337
    %v5442 = vpack.c.b16 %v4384, %v4361
    %v5443 = vpack.c.b16 %v4385, %v4362
    %v5444 = vpack.c.b16 %v4386, %v4363
    %v5445 = vpack.c.b16 %v4387, %v4364
    %v5446 = vpack.c.b16 %v4388, %v4365
    %v5447 = vpack.c.b16 %v4389, %v4366
    %v5448 = vpack.c.b16 %v4390, %v4367
    %v5449 = vpack.c.b16 %v4391, %v4368
    %v5450 = vpack.c.b16 %v4392, %v4369
    %v5451 = vpack.c.b16 %v4393, %v4370
    %v5452 = vpack.c.b16 %v4394, %v4371
    %v5453 = vpack.c.b16 %v4395, %v4372
    %v5454 = vpack.c.b16 %v4396, %v4373
    %v5455 = vpack.c.b16 %v4397, %v4374
    %v5456 = vpack.c.b16 %v4398, %v4375
    %v5457 = vpack.c.b16 %v4399, %v4376
    %v5458 = vpack.c.b16 %v4400, %v4377
    %v5459 = vpack.c.b16 %v4401, %v4378
    %v5460 = vpack.c.b16 %v4402, %v4379
    %v5461 = vpack.c.b16 %v4403, %v4380
    %v5462 = vpack.c.b16 %v4404, %v4381
    %v5463 = vpack.c.b16 %v4405, %v4382
    %v5464 = vpack.c.b16 %v4406, %v4383
    %v6526 = vlaneseq
    %v6527 = vshrl.u32 %v6526, 7
    %v6528 = vsub.s32 0, %v6527
    %v6529 = vrot.slane %v1184, %v6528
    %v6530 = vlaneseq
    %v6531 = vshrl.u32 %v6530, 7
    %v6532 = vsub.s32 1, %v6531
    %v6533 = vrot.slane %v1184, %v6532
    %v6534 = vlaneseq
    %v6535 = vshrl.u32 %v6534, 7
    %v6536 = vsub.s32 2, %v6535
    %v6537 = vrot.slane %v1184, %v6536
    %v6538 = vlaneseq
    %v6539 = vshrl.u32 %v6538, 7
    %v6540 = vsub.s32 3, %v6539
    %v6541 = vrot.slane %v1184, %v6540
    %v6542 = vlaneseq
    %v6543 = vshrl.u32 %v6542, 7
    %v6544 = vsub.s32 4, %v6543
    %v6545 = vrot.slane %v1184, %v6544
    %v6546 = vlaneseq
    %v6547 = vshrl.u32 %v6546, 7
    %v6548 = vsub.s32 5, %v6547
    %v6549 = vrot.slane %v1184, %v6548
    %v6550 = vlaneseq
    %v6551 = vshrl.u32 %v6550, 7
    %v6552 = vsub.s32 6, %v6551
    %v6553 = vrot.slane %v1184, %v6552
    %v6554 = vlaneseq
    %v6555 = vshrl.u32 %v6554, 7
    %v6556 = vsub.s32 7, %v6555
    %v6557 = vrot.slane %v1184, %v6556
    %v6558 = vlaneseq
    %v6559 = vshrl.u32 %v6558, 7
    %v6560 = vsub.s32 0, %v6559
    %v6561 = vrot.slane %v1185, %v6560
    %v6562 = vlaneseq
    %v6563 = vshrl.u32 %v6562, 7
    %v6564 = vsub.s32 1, %v6563
    %v6565 = vrot.slane %v1185, %v6564
    %v6566 = vlaneseq
    %v6567 = vshrl.u32 %v6566, 7
    %v6568 = vsub.s32 2, %v6567
    %v6569 = vrot.slane %v1185, %v6568
    %v6570 = vlaneseq
    %v6571 = vshrl.u32 %v6570, 7
    %v6572 = vsub.s32 3, %v6571
    %v6573 = vrot.slane %v1185, %v6572
    %v6574 = vlaneseq
    %v6575 = vshrl.u32 %v6574, 7
    %v6576 = vsub.s32 4, %v6575
    %v6577 = vrot.slane %v1185, %v6576
    %v6578 = vlaneseq
    %v6579 = vshrl.u32 %v6578, 7
    %v6580 = vsub.s32 5, %v6579
    %v6581 = vrot.slane %v1185, %v6580
    %v6582 = vlaneseq
    %v6583 = vshrl.u32 %v6582, 7
    %v6584 = vsub.s32 6, %v6583
    %v6585 = vrot.slane %v1185, %v6584
    %v6586 = vlaneseq
    %v6587 = vshrl.u32 %v6586, 7
    %v6588 = vsub.s32 7, %v6587
    %v6589 = vrot.slane %v1185, %v6588
    %v6590 = vlaneseq
    %v6591 = vshrl.u32 %v6590, 7
    %v6592 = vsub.s32 0, %v6591
    %v6593 = vrot.slane %v1186, %v6592
    %v6594 = vlaneseq
    %v6595 = vshrl.u32 %v6594, 7
    %v6596 = vsub.s32 1, %v6595
    %v6597 = vrot.slane %v1186, %v6596
    %v6598 = vlaneseq
    %v6599 = vshrl.u32 %v6598, 7
    %v6600 = vsub.s32 2, %v6599
    %v6601 = vrot.slane %v1186, %v6600
    %v6602 = vlaneseq
    %v6603 = vshrl.u32 %v6602, 7
    %v6604 = vsub.s32 3, %v6603
    %v6605 = vrot.slane %v1186, %v6604
    %v6606 = vlaneseq
    %v6607 = vshrl.u32 %v6606, 7
    %v6608 = vsub.s32 4, %v6607
    %v6609 = vrot.slane %v1186, %v6608
    %v6610 = vlaneseq
    %v6611 = vshrl.u32 %v6610, 7
    %v6612 = vsub.s32 5, %v6611
    %v6613 = vrot.slane %v1186, %v6612
    %v6614 = vlaneseq
    %v6615 = vshrl.u32 %v6614, 7
    %v6616 = vsub.s32 6, %v6615
    %v6617 = vrot.slane %v1186, %v6616
    %vm6641 = vcmask 785408
    %v6643 = vsel %vm6641, %v79, 0
    %6645 = vmatprep.subr.bf16.mxu0 %v4569
    %6646 = vmatpush1.bf16.msra.mxu0 %v4568
    %6647 = vmatprep.subr.bf16.mxu0 %v4546
    %6648 = vmatpush1.bf16.msra.mxu0 %v4545
    %6649 = vmatprep.subr.bf16.mxu0 %v4523
    %6650 = vmatpush1.bf16.msra.mxu0 %v4522
    %6651 = vmatprep.subr.bf16.mxu0 %v4500
    %6652 = vmatpush1.bf16.msra.mxu0 %v4499
    %6653 = vmatprep.subr.bf16.mxu0 %v4477
    %6654 = vmatpush1.bf16.msra.mxu0 %v4476
    %6655 = vmatprep.subr.bf16.mxu0 %v4454
    %6656 = vmatpush1.bf16.msra.mxu0 %v4453
    %6657 = vmatprep.subr.bf16.mxu0 %v4431
    %6658 = vmatpush1.bf16.msra.mxu0 %v4430
    %6659 = vmatprep.subr.bf16.mxu0 %v4408
    %6660 = vmatpush1.bf16.msra.mxu0 %v4407
    %6661 = vmatprep.subr.bf16.mxu0 %v4753
    %6662 = vmatpush2.bf16.msra.mxu0 %v4752
    %6663 = vmatprep.subr.bf16.mxu0 %v4730
    %6664 = vmatpush2.bf16.msra.mxu0 %v4729
    %6665 = vmatprep.subr.bf16.mxu0 %v4707
    %6666 = vmatpush2.bf16.msra.mxu0 %v4706
    %6667 = vmatprep.subr.bf16.mxu0 %v4684
    %6668 = vmatpush2.bf16.msra.mxu0 %v4683
    %6669 = vmatprep.subr.bf16.mxu0 %v4661
    %6670 = vmatpush2.bf16.msra.mxu0 %v4660
    %6671 = vmatprep.subr.bf16.mxu0 %v4638
    %6672 = vmatpush2.bf16.msra.mxu0 %v4637
    %6673 = vmatprep.subr.bf16.mxu0 %v4615
    %6674 = vmatpush2.bf16.msra.mxu0 %v4614
    %6675 = vmatprep.subr.bf16.mxu0 %v4592
    %6676 = vmatpush2.bf16.msra.mxu0 %v4591
    %6677 = vmatprep.mubr.bf16.mxu0 %v75
    %6678 = vmatmul.mubr.bf16.gmra.mxu0 %v74
    %v6679 = vpop.f32.mrf.mxu0
    %v6680 = vadd.f32 %v6529, %v6679
    %v6681 = vpop.f32.mrf.mxu0
    %v6682 = vadd.f32 %v6533, %v6681
    %v6683 = vpop.f32.mrf.mxu0
    %v6684 = vpop.f32.mrf.mxu0
    %6685 = vdwg.mxu0
    %6686 = vmatprep.subr.bf16.mxu0 %v4937
    %6687 = vmatpush1.bf16.msra.mxu0 %v4936
    %6688 = vmatprep.subr.bf16.mxu0 %v4914
    %6689 = vmatpush1.bf16.msra.mxu0 %v4913
    %6690 = vmatprep.subr.bf16.mxu0 %v4891
    %6691 = vmatpush1.bf16.msra.mxu0 %v4890
    %6692 = vmatprep.subr.bf16.mxu0 %v4868
    %6693 = vmatpush1.bf16.msra.mxu0 %v4867
    %6694 = vmatprep.subr.bf16.mxu0 %v4845
    %6695 = vmatpush1.bf16.msra.mxu0 %v4844
    %6696 = vmatprep.subr.bf16.mxu0 %v4822
    %6697 = vmatpush1.bf16.msra.mxu0 %v4821
    %6698 = vmatprep.subr.bf16.mxu0 %v4799
    %6699 = vmatpush1.bf16.msra.mxu0 %v4798
    %6700 = vmatprep.subr.bf16.mxu0 %v4776
    %6701 = vmatpush1.bf16.msra.mxu0 %v4775
    %6702 = vmatprep.subr.bf16.mxu0 %v5121
    %6703 = vmatpush2.bf16.msra.mxu0 %v5120
    %6704 = vmatprep.subr.bf16.mxu0 %v5098
    %6705 = vmatpush2.bf16.msra.mxu0 %v5097
    %6706 = vmatprep.subr.bf16.mxu0 %v5075
    %6707 = vmatpush2.bf16.msra.mxu0 %v5074
    %6708 = vmatprep.subr.bf16.mxu0 %v5052
    %6709 = vmatpush2.bf16.msra.mxu0 %v5051
    %6710 = vmatprep.subr.bf16.mxu0 %v5029
    %6711 = vmatpush2.bf16.msra.mxu0 %v5028
    %6712 = vmatprep.subr.bf16.mxu0 %v5006
    %6713 = vmatpush2.bf16.msra.mxu0 %v5005
    %6714 = vmatprep.subr.bf16.mxu0 %v4983
    %6715 = vmatpush2.bf16.msra.mxu0 %v4982
    %6716 = vmatprep.subr.bf16.mxu0 %v4960
    %6717 = vmatpush2.bf16.msra.mxu0 %v4959
    %6718 = vmatprep.mubr.bf16.mxu0 %v77
    %6719 = vmatmul.mubr.bf16.gmra.mxu0 %v76
    %v6720 = vpop.f32.mrf.mxu0
    %v6721 = vadd.f32 %v6680, %v6720
    %v6722 = vpop.f32.mrf.mxu0
    %v6723 = vadd.f32 %v6682, %v6722
    %v6724 = vpop.f32.mrf.mxu0
    %v6725 = vpop.f32.mrf.mxu0
    %6726 = vdwg.mxu0
    %6727 = vmatprep.subr.bf16.mxu0 %v5305
    %6728 = vmatpush1.bf16.msra.mxu0 %v5304
    %6729 = vmatprep.subr.bf16.mxu0 %v5282
    %6730 = vmatpush1.bf16.msra.mxu0 %v5281
    %6731 = vmatprep.subr.bf16.mxu0 %v5259
    %6732 = vmatpush1.bf16.msra.mxu0 %v5258
    %6733 = vmatprep.subr.bf16.mxu0 %v5236
    %6734 = vmatpush1.bf16.msra.mxu0 %v5235
    %6735 = vmatprep.subr.bf16.mxu0 %v5213
    %6736 = vmatpush1.bf16.msra.mxu0 %v5212
    %6737 = vmatprep.subr.bf16.mxu0 %v5190
    %6738 = vmatpush1.bf16.msra.mxu0 %v5189
    %6739 = vmatprep.subr.bf16.mxu0 %v5167
    %6740 = vmatpush1.bf16.msra.mxu0 %v5166
    %6741 = vmatprep.subr.bf16.mxu0 %v5144
    %6742 = vmatpush1.bf16.msra.mxu0 %v5143
    %6743 = vmatprep.subr.bf16.mxu0 0
    %6744 = vmatpush2.bf16.msra.mxu0 0
    %6745 = vmatprep.subr.bf16.mxu0 0
    %6746 = vmatpush2.bf16.msra.mxu0 0
    %6747 = vmatprep.subr.bf16.mxu0 %v5443
    %6748 = vmatpush2.bf16.msra.mxu0 %v5442
    %6749 = vmatprep.subr.bf16.mxu0 %v5420
    %6750 = vmatpush2.bf16.msra.mxu0 %v5419
    %6751 = vmatprep.subr.bf16.mxu0 %v5397
    %6752 = vmatpush2.bf16.msra.mxu0 %v5396
    %6753 = vmatprep.subr.bf16.mxu0 %v5374
    %6754 = vmatpush2.bf16.msra.mxu0 %v5373
    %6755 = vmatprep.subr.bf16.mxu0 %v5351
    %6756 = vmatpush2.bf16.msra.mxu0 %v5350
    %6757 = vmatprep.subr.bf16.mxu0 %v5328
    %6758 = vmatpush2.bf16.msra.mxu0 %v5327
    %6759 = vmatprep.mubr.bf16.mxu0 %v6643
    %6760 = vmatmul.mubr.bf16.gmra.mxu0 %v78
    %v6761 = vpop.f32.mrf.mxu0
    %v6762 = vadd.f32 %v6721, %v6761
    %v6763 = vpop.f32.mrf.mxu0
    %v6764 = vadd.f32 %v6723, %v6763
    %v6765 = vpop.f32.mrf.mxu0
    %v6766 = vpop.f32.mrf.mxu0
    %6767 = vdwg.mxu0
    %6768 = vmatprep.subr.bf16.mxu0 %v4571
    %6769 = vmatpush1.bf16.msra.mxu0 %v4570
    %6770 = vmatprep.subr.bf16.mxu0 %v4548
    %6771 = vmatpush1.bf16.msra.mxu0 %v4547
    %6772 = vmatprep.subr.bf16.mxu0 %v4525
    %6773 = vmatpush1.bf16.msra.mxu0 %v4524
    %6774 = vmatprep.subr.bf16.mxu0 %v4502
    %6775 = vmatpush1.bf16.msra.mxu0 %v4501
    %6776 = vmatprep.subr.bf16.mxu0 %v4479
    %6777 = vmatpush1.bf16.msra.mxu0 %v4478
    %6778 = vmatprep.subr.bf16.mxu0 %v4456
    %6779 = vmatpush1.bf16.msra.mxu0 %v4455
    %6780 = vmatprep.subr.bf16.mxu0 %v4433
    %6781 = vmatpush1.bf16.msra.mxu0 %v4432
    %6782 = vmatprep.subr.bf16.mxu0 %v4410
    %6783 = vmatpush1.bf16.msra.mxu0 %v4409
    %6784 = vmatprep.subr.bf16.mxu0 %v4755
    %6785 = vmatpush2.bf16.msra.mxu0 %v4754
    %6786 = vmatprep.subr.bf16.mxu0 %v4732
    %6787 = vmatpush2.bf16.msra.mxu0 %v4731
    %6788 = vmatprep.subr.bf16.mxu0 %v4709
    %6789 = vmatpush2.bf16.msra.mxu0 %v4708
    %6790 = vmatprep.subr.bf16.mxu0 %v4686
    %6791 = vmatpush2.bf16.msra.mxu0 %v4685
    %6792 = vmatprep.subr.bf16.mxu0 %v4663
    %6793 = vmatpush2.bf16.msra.mxu0 %v4662
    %6794 = vmatprep.subr.bf16.mxu0 %v4640
    %6795 = vmatpush2.bf16.msra.mxu0 %v4639
    %6796 = vmatprep.subr.bf16.mxu0 %v4617
    %6797 = vmatpush2.bf16.msra.mxu0 %v4616
    %6798 = vmatprep.subr.bf16.mxu0 %v4594
    %6799 = vmatpush2.bf16.msra.mxu0 %v4593
    %6800 = vmatprep.mubr.bf16.mxu0 %v75
    %6801 = vmatmul.mubr.bf16.gmra.mxu0 %v74
    %v6802 = vpop.f32.mrf.mxu0
    %v6803 = vadd.f32 %v6537, %v6802
    %v6804 = vpop.f32.mrf.mxu0
    %v6805 = vadd.f32 %v6541, %v6804
    %v6806 = vpop.f32.mrf.mxu0
    %v6807 = vpop.f32.mrf.mxu0
    %6808 = vdwg.mxu0
    %6809 = vmatprep.subr.bf16.mxu0 %v4939
    %6810 = vmatpush1.bf16.msra.mxu0 %v4938
    %6811 = vmatprep.subr.bf16.mxu0 %v4916
    %6812 = vmatpush1.bf16.msra.mxu0 %v4915
    %6813 = vmatprep.subr.bf16.mxu0 %v4893
    %6814 = vmatpush1.bf16.msra.mxu0 %v4892
    %6815 = vmatprep.subr.bf16.mxu0 %v4870
    %6816 = vmatpush1.bf16.msra.mxu0 %v4869
    %6817 = vmatprep.subr.bf16.mxu0 %v4847
    %6818 = vmatpush1.bf16.msra.mxu0 %v4846
    %6819 = vmatprep.subr.bf16.mxu0 %v4824
    %6820 = vmatpush1.bf16.msra.mxu0 %v4823
    %6821 = vmatprep.subr.bf16.mxu0 %v4801
    %6822 = vmatpush1.bf16.msra.mxu0 %v4800
    %6823 = vmatprep.subr.bf16.mxu0 %v4778
    %6824 = vmatpush1.bf16.msra.mxu0 %v4777
    %6825 = vmatprep.subr.bf16.mxu0 %v5123
    %6826 = vmatpush2.bf16.msra.mxu0 %v5122
    %6827 = vmatprep.subr.bf16.mxu0 %v5100
    %6828 = vmatpush2.bf16.msra.mxu0 %v5099
    %6829 = vmatprep.subr.bf16.mxu0 %v5077
    %6830 = vmatpush2.bf16.msra.mxu0 %v5076
    %6831 = vmatprep.subr.bf16.mxu0 %v5054
    %6832 = vmatpush2.bf16.msra.mxu0 %v5053
    %6833 = vmatprep.subr.bf16.mxu0 %v5031
    %6834 = vmatpush2.bf16.msra.mxu0 %v5030
    %6835 = vmatprep.subr.bf16.mxu0 %v5008
    %6836 = vmatpush2.bf16.msra.mxu0 %v5007
    %6837 = vmatprep.subr.bf16.mxu0 %v4985
    %6838 = vmatpush2.bf16.msra.mxu0 %v4984
    %6839 = vmatprep.subr.bf16.mxu0 %v4962
    %6840 = vmatpush2.bf16.msra.mxu0 %v4961
    %6841 = vmatprep.mubr.bf16.mxu0 %v77
    %6842 = vmatmul.mubr.bf16.gmra.mxu0 %v76
    %v6843 = vpop.f32.mrf.mxu0
    %v6844 = vadd.f32 %v6803, %v6843
    %v6845 = vpop.f32.mrf.mxu0
    %v6846 = vadd.f32 %v6805, %v6845
    %v6847 = vpop.f32.mrf.mxu0
    %v6848 = vpop.f32.mrf.mxu0
    %6849 = vdwg.mxu0
    %6850 = vmatprep.subr.bf16.mxu0 %v5307
    %6851 = vmatpush1.bf16.msra.mxu0 %v5306
    %6852 = vmatprep.subr.bf16.mxu0 %v5284
    %6853 = vmatpush1.bf16.msra.mxu0 %v5283
    %6854 = vmatprep.subr.bf16.mxu0 %v5261
    %6855 = vmatpush1.bf16.msra.mxu0 %v5260
    %6856 = vmatprep.subr.bf16.mxu0 %v5238
    %6857 = vmatpush1.bf16.msra.mxu0 %v5237
    %6858 = vmatprep.subr.bf16.mxu0 %v5215
    %6859 = vmatpush1.bf16.msra.mxu0 %v5214
    %6860 = vmatprep.subr.bf16.mxu0 %v5192
    %6861 = vmatpush1.bf16.msra.mxu0 %v5191
    %6862 = vmatprep.subr.bf16.mxu0 %v5169
    %6863 = vmatpush1.bf16.msra.mxu0 %v5168
    %6864 = vmatprep.subr.bf16.mxu0 %v5146
    %6865 = vmatpush1.bf16.msra.mxu0 %v5145
    %6866 = vmatprep.subr.bf16.mxu0 0
    %6867 = vmatpush2.bf16.msra.mxu0 0
    %6868 = vmatprep.subr.bf16.mxu0 0
    %6869 = vmatpush2.bf16.msra.mxu0 0
    %6870 = vmatprep.subr.bf16.mxu0 %v5445
    %6871 = vmatpush2.bf16.msra.mxu0 %v5444
    %6872 = vmatprep.subr.bf16.mxu0 %v5422
    %6873 = vmatpush2.bf16.msra.mxu0 %v5421
    %6874 = vmatprep.subr.bf16.mxu0 %v5399
    %6875 = vmatpush2.bf16.msra.mxu0 %v5398
    %6876 = vmatprep.subr.bf16.mxu0 %v5376
    %6877 = vmatpush2.bf16.msra.mxu0 %v5375
    %6878 = vmatprep.subr.bf16.mxu0 %v5353
    %6879 = vmatpush2.bf16.msra.mxu0 %v5352
    %6880 = vmatprep.subr.bf16.mxu0 %v5330
    %6881 = vmatpush2.bf16.msra.mxu0 %v5329
    %6882 = vmatprep.mubr.bf16.mxu0 %v6643
    %6883 = vmatmul.mubr.bf16.gmra.mxu0 %v78
    %v6884 = vpop.f32.mrf.mxu0
    %v6885 = vadd.f32 %v6844, %v6884
    %v6886 = vpop.f32.mrf.mxu0
    %v6887 = vadd.f32 %v6846, %v6886
    %v6888 = vpop.f32.mrf.mxu0
    %v6889 = vpop.f32.mrf.mxu0
    %6890 = vdwg.mxu0
    %6891 = vmatprep.subr.bf16.mxu0 %v4573
    %6892 = vmatpush1.bf16.msra.mxu0 %v4572
    %6893 = vmatprep.subr.bf16.mxu0 %v4550
    %6894 = vmatpush1.bf16.msra.mxu0 %v4549
    %6895 = vmatprep.subr.bf16.mxu0 %v4527
    %6896 = vmatpush1.bf16.msra.mxu0 %v4526
    %6897 = vmatprep.subr.bf16.mxu0 %v4504
    %6898 = vmatpush1.bf16.msra.mxu0 %v4503
    %6899 = vmatprep.subr.bf16.mxu0 %v4481
    %6900 = vmatpush1.bf16.msra.mxu0 %v4480
    %6901 = vmatprep.subr.bf16.mxu0 %v4458
    %6902 = vmatpush1.bf16.msra.mxu0 %v4457
    %6903 = vmatprep.subr.bf16.mxu0 %v4435
    %6904 = vmatpush1.bf16.msra.mxu0 %v4434
    %6905 = vmatprep.subr.bf16.mxu0 %v4412
    %6906 = vmatpush1.bf16.msra.mxu0 %v4411
    %6907 = vmatprep.subr.bf16.mxu0 %v4757
    %6908 = vmatpush2.bf16.msra.mxu0 %v4756
    %6909 = vmatprep.subr.bf16.mxu0 %v4734
    %6910 = vmatpush2.bf16.msra.mxu0 %v4733
    %6911 = vmatprep.subr.bf16.mxu0 %v4711
    %6912 = vmatpush2.bf16.msra.mxu0 %v4710
    %6913 = vmatprep.subr.bf16.mxu0 %v4688
    %6914 = vmatpush2.bf16.msra.mxu0 %v4687
    %6915 = vmatprep.subr.bf16.mxu0 %v4665
    %6916 = vmatpush2.bf16.msra.mxu0 %v4664
    %6917 = vmatprep.subr.bf16.mxu0 %v4642
    %6918 = vmatpush2.bf16.msra.mxu0 %v4641
    %6919 = vmatprep.subr.bf16.mxu0 %v4619
    %6920 = vmatpush2.bf16.msra.mxu0 %v4618
    %6921 = vmatprep.subr.bf16.mxu0 %v4596
    %6922 = vmatpush2.bf16.msra.mxu0 %v4595
    %6923 = vmatprep.mubr.bf16.mxu0 %v75
    %6924 = vmatmul.mubr.bf16.gmra.mxu0 %v74
    %v6925 = vpop.f32.mrf.mxu0
    %v6926 = vadd.f32 %v6545, %v6925
    %v6927 = vpop.f32.mrf.mxu0
    %v6928 = vadd.f32 %v6549, %v6927
    %v6929 = vpop.f32.mrf.mxu0
    %v6930 = vpop.f32.mrf.mxu0
    %6931 = vdwg.mxu0
    %6932 = vmatprep.subr.bf16.mxu0 %v4941
    %6933 = vmatpush1.bf16.msra.mxu0 %v4940
    %6934 = vmatprep.subr.bf16.mxu0 %v4918
    %6935 = vmatpush1.bf16.msra.mxu0 %v4917
    %6936 = vmatprep.subr.bf16.mxu0 %v4895
    %6937 = vmatpush1.bf16.msra.mxu0 %v4894
    %6938 = vmatprep.subr.bf16.mxu0 %v4872
    %6939 = vmatpush1.bf16.msra.mxu0 %v4871
    %6940 = vmatprep.subr.bf16.mxu0 %v4849
    %6941 = vmatpush1.bf16.msra.mxu0 %v4848
    %6942 = vmatprep.subr.bf16.mxu0 %v4826
    %6943 = vmatpush1.bf16.msra.mxu0 %v4825
    %6944 = vmatprep.subr.bf16.mxu0 %v4803
    %6945 = vmatpush1.bf16.msra.mxu0 %v4802
    %6946 = vmatprep.subr.bf16.mxu0 %v4780
    %6947 = vmatpush1.bf16.msra.mxu0 %v4779
    %6948 = vmatprep.subr.bf16.mxu0 %v5125
    %6949 = vmatpush2.bf16.msra.mxu0 %v5124
    %6950 = vmatprep.subr.bf16.mxu0 %v5102
    %6951 = vmatpush2.bf16.msra.mxu0 %v5101
    %6952 = vmatprep.subr.bf16.mxu0 %v5079
    %6953 = vmatpush2.bf16.msra.mxu0 %v5078
    %6954 = vmatprep.subr.bf16.mxu0 %v5056
    %6955 = vmatpush2.bf16.msra.mxu0 %v5055
    %6956 = vmatprep.subr.bf16.mxu0 %v5033
    %6957 = vmatpush2.bf16.msra.mxu0 %v5032
    %6958 = vmatprep.subr.bf16.mxu0 %v5010
    %6959 = vmatpush2.bf16.msra.mxu0 %v5009
    %6960 = vmatprep.subr.bf16.mxu0 %v4987
    %6961 = vmatpush2.bf16.msra.mxu0 %v4986
    %6962 = vmatprep.subr.bf16.mxu0 %v4964
    %6963 = vmatpush2.bf16.msra.mxu0 %v4963
    %6964 = vmatprep.mubr.bf16.mxu0 %v77
    %6965 = vmatmul.mubr.bf16.gmra.mxu0 %v76
    %v6966 = vpop.f32.mrf.mxu0
    %v6967 = vadd.f32 %v6926, %v6966
    %v6968 = vpop.f32.mrf.mxu0
    %v6969 = vadd.f32 %v6928, %v6968
    %v6970 = vpop.f32.mrf.mxu0
    %v6971 = vpop.f32.mrf.mxu0
    %6972 = vdwg.mxu0
    %6973 = vmatprep.subr.bf16.mxu0 %v5309
    %6974 = vmatpush1.bf16.msra.mxu0 %v5308
    %6975 = vmatprep.subr.bf16.mxu0 %v5286
    %6976 = vmatpush1.bf16.msra.mxu0 %v5285
    %6977 = vmatprep.subr.bf16.mxu0 %v5263
    %6978 = vmatpush1.bf16.msra.mxu0 %v5262
    %6979 = vmatprep.subr.bf16.mxu0 %v5240
    %6980 = vmatpush1.bf16.msra.mxu0 %v5239
    %6981 = vmatprep.subr.bf16.mxu0 %v5217
    %6982 = vmatpush1.bf16.msra.mxu0 %v5216
    %6983 = vmatprep.subr.bf16.mxu0 %v5194
    %6984 = vmatpush1.bf16.msra.mxu0 %v5193
    %6985 = vmatprep.subr.bf16.mxu0 %v5171
    %6986 = vmatpush1.bf16.msra.mxu0 %v5170
    %6987 = vmatprep.subr.bf16.mxu0 %v5148
    %6988 = vmatpush1.bf16.msra.mxu0 %v5147
    %6989 = vmatprep.subr.bf16.mxu0 0
    %6990 = vmatpush2.bf16.msra.mxu0 0
    %6991 = vmatprep.subr.bf16.mxu0 0
    %6992 = vmatpush2.bf16.msra.mxu0 0
    %6993 = vmatprep.subr.bf16.mxu0 %v5447
    %6994 = vmatpush2.bf16.msra.mxu0 %v5446
    %6995 = vmatprep.subr.bf16.mxu0 %v5424
    %6996 = vmatpush2.bf16.msra.mxu0 %v5423
    %6997 = vmatprep.subr.bf16.mxu0 %v5401
    %6998 = vmatpush2.bf16.msra.mxu0 %v5400
    %6999 = vmatprep.subr.bf16.mxu0 %v5378
    %7000 = vmatpush2.bf16.msra.mxu0 %v5377
    %7001 = vmatprep.subr.bf16.mxu0 %v5355
    %7002 = vmatpush2.bf16.msra.mxu0 %v5354
    %7003 = vmatprep.subr.bf16.mxu0 %v5332
    %7004 = vmatpush2.bf16.msra.mxu0 %v5331
    %7005 = vmatprep.mubr.bf16.mxu0 %v6643
    %7006 = vmatmul.mubr.bf16.gmra.mxu0 %v78
    %v7007 = vpop.f32.mrf.mxu0
    %v7008 = vadd.f32 %v6967, %v7007
    %v7009 = vpop.f32.mrf.mxu0
    %v7010 = vadd.f32 %v6969, %v7009
    %v7011 = vpop.f32.mrf.mxu0
    %v7012 = vpop.f32.mrf.mxu0
    %7013 = vdwg.mxu0
    %7014 = vmatprep.subr.bf16.mxu0 %v4575
    %7015 = vmatpush1.bf16.msra.mxu0 %v4574
    %7016 = vmatprep.subr.bf16.mxu0 %v4552
    %7017 = vmatpush1.bf16.msra.mxu0 %v4551
    %7018 = vmatprep.subr.bf16.mxu0 %v4529
    %7019 = vmatpush1.bf16.msra.mxu0 %v4528
    %7020 = vmatprep.subr.bf16.mxu0 %v4506
    %7021 = vmatpush1.bf16.msra.mxu0 %v4505
    %7022 = vmatprep.subr.bf16.mxu0 %v4483
    %7023 = vmatpush1.bf16.msra.mxu0 %v4482
    %7024 = vmatprep.subr.bf16.mxu0 %v4460
    %7025 = vmatpush1.bf16.msra.mxu0 %v4459
    %7026 = vmatprep.subr.bf16.mxu0 %v4437
    %7027 = vmatpush1.bf16.msra.mxu0 %v4436
    %7028 = vmatprep.subr.bf16.mxu0 %v4414
    %7029 = vmatpush1.bf16.msra.mxu0 %v4413
    %7030 = vmatprep.subr.bf16.mxu0 %v4759
    %7031 = vmatpush2.bf16.msra.mxu0 %v4758
    %7032 = vmatprep.subr.bf16.mxu0 %v4736
    %7033 = vmatpush2.bf16.msra.mxu0 %v4735
    %7034 = vmatprep.subr.bf16.mxu0 %v4713
    %7035 = vmatpush2.bf16.msra.mxu0 %v4712
    %7036 = vmatprep.subr.bf16.mxu0 %v4690
    %7037 = vmatpush2.bf16.msra.mxu0 %v4689
    %7038 = vmatprep.subr.bf16.mxu0 %v4667
    %7039 = vmatpush2.bf16.msra.mxu0 %v4666
    %7040 = vmatprep.subr.bf16.mxu0 %v4644
    %7041 = vmatpush2.bf16.msra.mxu0 %v4643
    %7042 = vmatprep.subr.bf16.mxu0 %v4621
    %7043 = vmatpush2.bf16.msra.mxu0 %v4620
    %7044 = vmatprep.subr.bf16.mxu0 %v4598
    %7045 = vmatpush2.bf16.msra.mxu0 %v4597
    %7046 = vmatprep.mubr.bf16.mxu0 %v75
    %7047 = vmatmul.mubr.bf16.gmra.mxu0 %v74
    %v7048 = vpop.f32.mrf.mxu0
    %v7049 = vadd.f32 %v6553, %v7048
    %v7050 = vpop.f32.mrf.mxu0
    %v7051 = vadd.f32 %v6557, %v7050
    %v7052 = vpop.f32.mrf.mxu0
    %v7053 = vpop.f32.mrf.mxu0
    %7054 = vdwg.mxu0
    %7055 = vmatprep.subr.bf16.mxu0 %v4943
    %7056 = vmatpush1.bf16.msra.mxu0 %v4942
    %7057 = vmatprep.subr.bf16.mxu0 %v4920
    %7058 = vmatpush1.bf16.msra.mxu0 %v4919
    %7059 = vmatprep.subr.bf16.mxu0 %v4897
    %7060 = vmatpush1.bf16.msra.mxu0 %v4896
    %7061 = vmatprep.subr.bf16.mxu0 %v4874
    %7062 = vmatpush1.bf16.msra.mxu0 %v4873
    %7063 = vmatprep.subr.bf16.mxu0 %v4851
    %7064 = vmatpush1.bf16.msra.mxu0 %v4850
    %7065 = vmatprep.subr.bf16.mxu0 %v4828
    %7066 = vmatpush1.bf16.msra.mxu0 %v4827
    %7067 = vmatprep.subr.bf16.mxu0 %v4805
    %7068 = vmatpush1.bf16.msra.mxu0 %v4804
    %7069 = vmatprep.subr.bf16.mxu0 %v4782
    %7070 = vmatpush1.bf16.msra.mxu0 %v4781
    %7071 = vmatprep.subr.bf16.mxu0 %v5127
    %7072 = vmatpush2.bf16.msra.mxu0 %v5126
    %7073 = vmatprep.subr.bf16.mxu0 %v5104
    %7074 = vmatpush2.bf16.msra.mxu0 %v5103
    %7075 = vmatprep.subr.bf16.mxu0 %v5081
    %7076 = vmatpush2.bf16.msra.mxu0 %v5080
    %7077 = vmatprep.subr.bf16.mxu0 %v5058
    %7078 = vmatpush2.bf16.msra.mxu0 %v5057
    %7079 = vmatprep.subr.bf16.mxu0 %v5035
    %7080 = vmatpush2.bf16.msra.mxu0 %v5034
    %7081 = vmatprep.subr.bf16.mxu0 %v5012
    %7082 = vmatpush2.bf16.msra.mxu0 %v5011
    %7083 = vmatprep.subr.bf16.mxu0 %v4989
    %7084 = vmatpush2.bf16.msra.mxu0 %v4988
    %7085 = vmatprep.subr.bf16.mxu0 %v4966
    %7086 = vmatpush2.bf16.msra.mxu0 %v4965
    %7087 = vmatprep.mubr.bf16.mxu0 %v77
    %7088 = vmatmul.mubr.bf16.gmra.mxu0 %v76
    %v7089 = vpop.f32.mrf.mxu0
    %v7090 = vadd.f32 %v7049, %v7089
    %v7091 = vpop.f32.mrf.mxu0
    %v7092 = vadd.f32 %v7051, %v7091
    %v7093 = vpop.f32.mrf.mxu0
    %v7094 = vpop.f32.mrf.mxu0
    %7095 = vdwg.mxu0
    %7096 = vmatprep.subr.bf16.mxu0 %v5311
    %7097 = vmatpush1.bf16.msra.mxu0 %v5310
    %7098 = vmatprep.subr.bf16.mxu0 %v5288
    %7099 = vmatpush1.bf16.msra.mxu0 %v5287
    %7100 = vmatprep.subr.bf16.mxu0 %v5265
    %7101 = vmatpush1.bf16.msra.mxu0 %v5264
    %7102 = vmatprep.subr.bf16.mxu0 %v5242
    %7103 = vmatpush1.bf16.msra.mxu0 %v5241
    %7104 = vmatprep.subr.bf16.mxu0 %v5219
    %7105 = vmatpush1.bf16.msra.mxu0 %v5218
    %7106 = vmatprep.subr.bf16.mxu0 %v5196
    %7107 = vmatpush1.bf16.msra.mxu0 %v5195
    %7108 = vmatprep.subr.bf16.mxu0 %v5173
    %7109 = vmatpush1.bf16.msra.mxu0 %v5172
    %7110 = vmatprep.subr.bf16.mxu0 %v5150
    %7111 = vmatpush1.bf16.msra.mxu0 %v5149
    %7112 = vmatprep.subr.bf16.mxu0 0
    %7113 = vmatpush2.bf16.msra.mxu0 0
    %7114 = vmatprep.subr.bf16.mxu0 0
    %7115 = vmatpush2.bf16.msra.mxu0 0
    %7116 = vmatprep.subr.bf16.mxu0 %v5449
    %7117 = vmatpush2.bf16.msra.mxu0 %v5448
    %7118 = vmatprep.subr.bf16.mxu0 %v5426
    %7119 = vmatpush2.bf16.msra.mxu0 %v5425
    %7120 = vmatprep.subr.bf16.mxu0 %v5403
    %7121 = vmatpush2.bf16.msra.mxu0 %v5402
    %7122 = vmatprep.subr.bf16.mxu0 %v5380
    %7123 = vmatpush2.bf16.msra.mxu0 %v5379
    %7124 = vmatprep.subr.bf16.mxu0 %v5357
    %7125 = vmatpush2.bf16.msra.mxu0 %v5356
    %7126 = vmatprep.subr.bf16.mxu0 %v5334
    %7127 = vmatpush2.bf16.msra.mxu0 %v5333
    %7128 = vmatprep.mubr.bf16.mxu0 %v6643
    %7129 = vmatmul.mubr.bf16.gmra.mxu0 %v78
    %v7130 = vpop.f32.mrf.mxu0
    %v7131 = vadd.f32 %v7090, %v7130
    %v7132 = vpop.f32.mrf.mxu0
    %v7133 = vadd.f32 %v7092, %v7132
    %v7134 = vpop.f32.mrf.mxu0
    %v7135 = vpop.f32.mrf.mxu0
    %7136 = vdwg.mxu0
    %7137 = vmatprep.subr.bf16.mxu0 %v4577
    %7138 = vmatpush1.bf16.msra.mxu0 %v4576
    %7139 = vmatprep.subr.bf16.mxu0 %v4554
    %7140 = vmatpush1.bf16.msra.mxu0 %v4553
    %7141 = vmatprep.subr.bf16.mxu0 %v4531
    %7142 = vmatpush1.bf16.msra.mxu0 %v4530
    %7143 = vmatprep.subr.bf16.mxu0 %v4508
    %7144 = vmatpush1.bf16.msra.mxu0 %v4507
    %7145 = vmatprep.subr.bf16.mxu0 %v4485
    %7146 = vmatpush1.bf16.msra.mxu0 %v4484
    %7147 = vmatprep.subr.bf16.mxu0 %v4462
    %7148 = vmatpush1.bf16.msra.mxu0 %v4461
    %7149 = vmatprep.subr.bf16.mxu0 %v4439
    %7150 = vmatpush1.bf16.msra.mxu0 %v4438
    %7151 = vmatprep.subr.bf16.mxu0 %v4416
    %7152 = vmatpush1.bf16.msra.mxu0 %v4415
    %7153 = vmatprep.subr.bf16.mxu0 %v4761
    %7154 = vmatpush2.bf16.msra.mxu0 %v4760
    %7155 = vmatprep.subr.bf16.mxu0 %v4738
    %7156 = vmatpush2.bf16.msra.mxu0 %v4737
    %7157 = vmatprep.subr.bf16.mxu0 %v4715
    %7158 = vmatpush2.bf16.msra.mxu0 %v4714
    %7159 = vmatprep.subr.bf16.mxu0 %v4692
    %7160 = vmatpush2.bf16.msra.mxu0 %v4691
    %7161 = vmatprep.subr.bf16.mxu0 %v4669
    %7162 = vmatpush2.bf16.msra.mxu0 %v4668
    %7163 = vmatprep.subr.bf16.mxu0 %v4646
    %7164 = vmatpush2.bf16.msra.mxu0 %v4645
    %7165 = vmatprep.subr.bf16.mxu0 %v4623
    %7166 = vmatpush2.bf16.msra.mxu0 %v4622
    %7167 = vmatprep.subr.bf16.mxu0 %v4600
    %7168 = vmatpush2.bf16.msra.mxu0 %v4599
    %7169 = vmatprep.mubr.bf16.mxu0 %v75
    %7170 = vmatmul.mubr.bf16.gmra.mxu0 %v74
    %v7171 = vpop.f32.mrf.mxu0
    %v7172 = vadd.f32 %v6561, %v7171
    %v7173 = vpop.f32.mrf.mxu0
    %v7174 = vadd.f32 %v6565, %v7173
    %v7175 = vpop.f32.mrf.mxu0
    %v7176 = vpop.f32.mrf.mxu0
    %7177 = vdwg.mxu0
    %7178 = vmatprep.subr.bf16.mxu0 %v4945
    %7179 = vmatpush1.bf16.msra.mxu0 %v4944
    %7180 = vmatprep.subr.bf16.mxu0 %v4922
    %7181 = vmatpush1.bf16.msra.mxu0 %v4921
    %7182 = vmatprep.subr.bf16.mxu0 %v4899
    %7183 = vmatpush1.bf16.msra.mxu0 %v4898
    %7184 = vmatprep.subr.bf16.mxu0 %v4876
    %7185 = vmatpush1.bf16.msra.mxu0 %v4875
    %7186 = vmatprep.subr.bf16.mxu0 %v4853
    %7187 = vmatpush1.bf16.msra.mxu0 %v4852
    %7188 = vmatprep.subr.bf16.mxu0 %v4830
    %7189 = vmatpush1.bf16.msra.mxu0 %v4829
    %7190 = vmatprep.subr.bf16.mxu0 %v4807
    %7191 = vmatpush1.bf16.msra.mxu0 %v4806
    %7192 = vmatprep.subr.bf16.mxu0 %v4784
    %7193 = vmatpush1.bf16.msra.mxu0 %v4783
    %7194 = vmatprep.subr.bf16.mxu0 %v5129
    %7195 = vmatpush2.bf16.msra.mxu0 %v5128
    %7196 = vmatprep.subr.bf16.mxu0 %v5106
    %7197 = vmatpush2.bf16.msra.mxu0 %v5105
    %7198 = vmatprep.subr.bf16.mxu0 %v5083
    %7199 = vmatpush2.bf16.msra.mxu0 %v5082
    %7200 = vmatprep.subr.bf16.mxu0 %v5060
    %7201 = vmatpush2.bf16.msra.mxu0 %v5059
    %7202 = vmatprep.subr.bf16.mxu0 %v5037
    %7203 = vmatpush2.bf16.msra.mxu0 %v5036
    %7204 = vmatprep.subr.bf16.mxu0 %v5014
    %7205 = vmatpush2.bf16.msra.mxu0 %v5013
    %7206 = vmatprep.subr.bf16.mxu0 %v4991
    %7207 = vmatpush2.bf16.msra.mxu0 %v4990
    %7208 = vmatprep.subr.bf16.mxu0 %v4968
    %7209 = vmatpush2.bf16.msra.mxu0 %v4967
    %7210 = vmatprep.mubr.bf16.mxu0 %v77
    %7211 = vmatmul.mubr.bf16.gmra.mxu0 %v76
    %v7212 = vpop.f32.mrf.mxu0
    %v7213 = vadd.f32 %v7172, %v7212
    %v7214 = vpop.f32.mrf.mxu0
    %v7215 = vadd.f32 %v7174, %v7214
    %v7216 = vpop.f32.mrf.mxu0
    %v7217 = vpop.f32.mrf.mxu0
    %7218 = vdwg.mxu0
    %7219 = vmatprep.subr.bf16.mxu0 %v5313
    %7220 = vmatpush1.bf16.msra.mxu0 %v5312
    %7221 = vmatprep.subr.bf16.mxu0 %v5290
    %7222 = vmatpush1.bf16.msra.mxu0 %v5289
    %7223 = vmatprep.subr.bf16.mxu0 %v5267
    %7224 = vmatpush1.bf16.msra.mxu0 %v5266
    %7225 = vmatprep.subr.bf16.mxu0 %v5244
    %7226 = vmatpush1.bf16.msra.mxu0 %v5243
    %7227 = vmatprep.subr.bf16.mxu0 %v5221
    %7228 = vmatpush1.bf16.msra.mxu0 %v5220
    %7229 = vmatprep.subr.bf16.mxu0 %v5198
    %7230 = vmatpush1.bf16.msra.mxu0 %v5197
    %7231 = vmatprep.subr.bf16.mxu0 %v5175
    %7232 = vmatpush1.bf16.msra.mxu0 %v5174
    %7233 = vmatprep.subr.bf16.mxu0 %v5152
    %7234 = vmatpush1.bf16.msra.mxu0 %v5151
    %7235 = vmatprep.subr.bf16.mxu0 0
    %7236 = vmatpush2.bf16.msra.mxu0 0
    %7237 = vmatprep.subr.bf16.mxu0 0
    %7238 = vmatpush2.bf16.msra.mxu0 0
    %7239 = vmatprep.subr.bf16.mxu0 %v5451
    %7240 = vmatpush2.bf16.msra.mxu0 %v5450
    %7241 = vmatprep.subr.bf16.mxu0 %v5428
    %7242 = vmatpush2.bf16.msra.mxu0 %v5427
    %7243 = vmatprep.subr.bf16.mxu0 %v5405
    %7244 = vmatpush2.bf16.msra.mxu0 %v5404
    %7245 = vmatprep.subr.bf16.mxu0 %v5382
    %7246 = vmatpush2.bf16.msra.mxu0 %v5381
    %7247 = vmatprep.subr.bf16.mxu0 %v5359
    %7248 = vmatpush2.bf16.msra.mxu0 %v5358
    %7249 = vmatprep.subr.bf16.mxu0 %v5336
    %7250 = vmatpush2.bf16.msra.mxu0 %v5335
    %7251 = vmatprep.mubr.bf16.mxu0 %v6643
    %7252 = vmatmul.mubr.bf16.gmra.mxu0 %v78
    %v7253 = vpop.f32.mrf.mxu0
    %v7254 = vadd.f32 %v7213, %v7253
    %v7255 = vpop.f32.mrf.mxu0
    %v7256 = vadd.f32 %v7215, %v7255
    %v7257 = vpop.f32.mrf.mxu0
    %v7258 = vpop.f32.mrf.mxu0
    %7259 = vdwg.mxu0
    %7260 = vmatprep.subr.bf16.mxu0 %v4579
    %7261 = vmatpush1.bf16.msra.mxu0 %v4578
    %7262 = vmatprep.subr.bf16.mxu0 %v4556
    %7263 = vmatpush1.bf16.msra.mxu0 %v4555
    %7264 = vmatprep.subr.bf16.mxu0 %v4533
    %7265 = vmatpush1.bf16.msra.mxu0 %v4532
    %7266 = vmatprep.subr.bf16.mxu0 %v4510
    %7267 = vmatpush1.bf16.msra.mxu0 %v4509
    %7268 = vmatprep.subr.bf16.mxu0 %v4487
    %7269 = vmatpush1.bf16.msra.mxu0 %v4486
    %7270 = vmatprep.subr.bf16.mxu0 %v4464
    %7271 = vmatpush1.bf16.msra.mxu0 %v4463
    %7272 = vmatprep.subr.bf16.mxu0 %v4441
    %7273 = vmatpush1.bf16.msra.mxu0 %v4440
    %7274 = vmatprep.subr.bf16.mxu0 %v4418
    %7275 = vmatpush1.bf16.msra.mxu0 %v4417
    %7276 = vmatprep.subr.bf16.mxu0 %v4763
    %7277 = vmatpush2.bf16.msra.mxu0 %v4762
    %7278 = vmatprep.subr.bf16.mxu0 %v4740
    %7279 = vmatpush2.bf16.msra.mxu0 %v4739
    %7280 = vmatprep.subr.bf16.mxu0 %v4717
    %7281 = vmatpush2.bf16.msra.mxu0 %v4716
    %7282 = vmatprep.subr.bf16.mxu0 %v4694
    %7283 = vmatpush2.bf16.msra.mxu0 %v4693
    %7284 = vmatprep.subr.bf16.mxu0 %v4671
    %7285 = vmatpush2.bf16.msra.mxu0 %v4670
    %7286 = vmatprep.subr.bf16.mxu0 %v4648
    %7287 = vmatpush2.bf16.msra.mxu0 %v4647
    %7288 = vmatprep.subr.bf16.mxu0 %v4625
    %7289 = vmatpush2.bf16.msra.mxu0 %v4624
    %7290 = vmatprep.subr.bf16.mxu0 %v4602
    %7291 = vmatpush2.bf16.msra.mxu0 %v4601
    %7292 = vmatprep.mubr.bf16.mxu0 %v75
    %7293 = vmatmul.mubr.bf16.gmra.mxu0 %v74
    %v7294 = vpop.f32.mrf.mxu0
    %v7295 = vadd.f32 %v6569, %v7294
    %v7296 = vpop.f32.mrf.mxu0
    %v7297 = vadd.f32 %v6573, %v7296
    %v7298 = vpop.f32.mrf.mxu0
    %v7299 = vpop.f32.mrf.mxu0
    %7300 = vdwg.mxu0
    %7301 = vmatprep.subr.bf16.mxu0 %v4947
    %7302 = vmatpush1.bf16.msra.mxu0 %v4946
    %7303 = vmatprep.subr.bf16.mxu0 %v4924
    %7304 = vmatpush1.bf16.msra.mxu0 %v4923
    %7305 = vmatprep.subr.bf16.mxu0 %v4901
    %7306 = vmatpush1.bf16.msra.mxu0 %v4900
    %7307 = vmatprep.subr.bf16.mxu0 %v4878
    %7308 = vmatpush1.bf16.msra.mxu0 %v4877
    %7309 = vmatprep.subr.bf16.mxu0 %v4855
    %7310 = vmatpush1.bf16.msra.mxu0 %v4854
    %7311 = vmatprep.subr.bf16.mxu0 %v4832
    %7312 = vmatpush1.bf16.msra.mxu0 %v4831
    %7313 = vmatprep.subr.bf16.mxu0 %v4809
    %7314 = vmatpush1.bf16.msra.mxu0 %v4808
    %7315 = vmatprep.subr.bf16.mxu0 %v4786
    %7316 = vmatpush1.bf16.msra.mxu0 %v4785
    %7317 = vmatprep.subr.bf16.mxu0 %v5131
    %7318 = vmatpush2.bf16.msra.mxu0 %v5130
    %7319 = vmatprep.subr.bf16.mxu0 %v5108
    %7320 = vmatpush2.bf16.msra.mxu0 %v5107
    %7321 = vmatprep.subr.bf16.mxu0 %v5085
    %7322 = vmatpush2.bf16.msra.mxu0 %v5084
    %7323 = vmatprep.subr.bf16.mxu0 %v5062
    %7324 = vmatpush2.bf16.msra.mxu0 %v5061
    %7325 = vmatprep.subr.bf16.mxu0 %v5039
    %7326 = vmatpush2.bf16.msra.mxu0 %v5038
    %7327 = vmatprep.subr.bf16.mxu0 %v5016
    %7328 = vmatpush2.bf16.msra.mxu0 %v5015
    %7329 = vmatprep.subr.bf16.mxu0 %v4993
    %7330 = vmatpush2.bf16.msra.mxu0 %v4992
    %7331 = vmatprep.subr.bf16.mxu0 %v4970
    %7332 = vmatpush2.bf16.msra.mxu0 %v4969
    %7333 = vmatprep.mubr.bf16.mxu0 %v77
    %7334 = vmatmul.mubr.bf16.gmra.mxu0 %v76
    %v7335 = vpop.f32.mrf.mxu0
    %v7336 = vadd.f32 %v7295, %v7335
    %v7337 = vpop.f32.mrf.mxu0
    %v7338 = vadd.f32 %v7297, %v7337
    %v7339 = vpop.f32.mrf.mxu0
    %v7340 = vpop.f32.mrf.mxu0
    %7341 = vdwg.mxu0
    %7342 = vmatprep.subr.bf16.mxu0 %v5315
    %7343 = vmatpush1.bf16.msra.mxu0 %v5314
    %7344 = vmatprep.subr.bf16.mxu0 %v5292
    %7345 = vmatpush1.bf16.msra.mxu0 %v5291
    %7346 = vmatprep.subr.bf16.mxu0 %v5269
    %7347 = vmatpush1.bf16.msra.mxu0 %v5268
    %7348 = vmatprep.subr.bf16.mxu0 %v5246
    %7349 = vmatpush1.bf16.msra.mxu0 %v5245
    %7350 = vmatprep.subr.bf16.mxu0 %v5223
    %7351 = vmatpush1.bf16.msra.mxu0 %v5222
    %7352 = vmatprep.subr.bf16.mxu0 %v5200
    %7353 = vmatpush1.bf16.msra.mxu0 %v5199
    %7354 = vmatprep.subr.bf16.mxu0 %v5177
    %7355 = vmatpush1.bf16.msra.mxu0 %v5176
    %7356 = vmatprep.subr.bf16.mxu0 %v5154
    %7357 = vmatpush1.bf16.msra.mxu0 %v5153
    %7358 = vmatprep.subr.bf16.mxu0 0
    %7359 = vmatpush2.bf16.msra.mxu0 0
    %7360 = vmatprep.subr.bf16.mxu0 0
    %7361 = vmatpush2.bf16.msra.mxu0 0
    %7362 = vmatprep.subr.bf16.mxu0 %v5453
    %7363 = vmatpush2.bf16.msra.mxu0 %v5452
    %7364 = vmatprep.subr.bf16.mxu0 %v5430
    %7365 = vmatpush2.bf16.msra.mxu0 %v5429
    %7366 = vmatprep.subr.bf16.mxu0 %v5407
    %7367 = vmatpush2.bf16.msra.mxu0 %v5406
    %7368 = vmatprep.subr.bf16.mxu0 %v5384
    %7369 = vmatpush2.bf16.msra.mxu0 %v5383
    %7370 = vmatprep.subr.bf16.mxu0 %v5361
    %7371 = vmatpush2.bf16.msra.mxu0 %v5360
    %7372 = vmatprep.subr.bf16.mxu0 %v5338
    %7373 = vmatpush2.bf16.msra.mxu0 %v5337
    %7374 = vmatprep.mubr.bf16.mxu0 %v6643
    %7375 = vmatmul.mubr.bf16.gmra.mxu0 %v78
    %v7376 = vpop.f32.mrf.mxu0
    %v7377 = vadd.f32 %v7336, %v7376
    %v7378 = vpop.f32.mrf.mxu0
    %v7379 = vadd.f32 %v7338, %v7378
    %v7380 = vpop.f32.mrf.mxu0
    %v7381 = vpop.f32.mrf.mxu0
    %7382 = vdwg.mxu0
    %7383 = vmatprep.subr.bf16.mxu0 %v4581
    %7384 = vmatpush1.bf16.msra.mxu0 %v4580
    %7385 = vmatprep.subr.bf16.mxu0 %v4558
    %7386 = vmatpush1.bf16.msra.mxu0 %v4557
    %7387 = vmatprep.subr.bf16.mxu0 %v4535
    %7388 = vmatpush1.bf16.msra.mxu0 %v4534
    %7389 = vmatprep.subr.bf16.mxu0 %v4512
    %7390 = vmatpush1.bf16.msra.mxu0 %v4511
    %7391 = vmatprep.subr.bf16.mxu0 %v4489
    %7392 = vmatpush1.bf16.msra.mxu0 %v4488
    %7393 = vmatprep.subr.bf16.mxu0 %v4466
    %7394 = vmatpush1.bf16.msra.mxu0 %v4465
    %7395 = vmatprep.subr.bf16.mxu0 %v4443
    %7396 = vmatpush1.bf16.msra.mxu0 %v4442
    %7397 = vmatprep.subr.bf16.mxu0 %v4420
    %7398 = vmatpush1.bf16.msra.mxu0 %v4419
    %7399 = vmatprep.subr.bf16.mxu0 %v4765
    %7400 = vmatpush2.bf16.msra.mxu0 %v4764
    %7401 = vmatprep.subr.bf16.mxu0 %v4742
    %7402 = vmatpush2.bf16.msra.mxu0 %v4741
    %7403 = vmatprep.subr.bf16.mxu0 %v4719
    %7404 = vmatpush2.bf16.msra.mxu0 %v4718
    %7405 = vmatprep.subr.bf16.mxu0 %v4696
    %7406 = vmatpush2.bf16.msra.mxu0 %v4695
    %7407 = vmatprep.subr.bf16.mxu0 %v4673
    %7408 = vmatpush2.bf16.msra.mxu0 %v4672
    %7409 = vmatprep.subr.bf16.mxu0 %v4650
    %7410 = vmatpush2.bf16.msra.mxu0 %v4649
    %7411 = vmatprep.subr.bf16.mxu0 %v4627
    %7412 = vmatpush2.bf16.msra.mxu0 %v4626
    %7413 = vmatprep.subr.bf16.mxu0 %v4604
    %7414 = vmatpush2.bf16.msra.mxu0 %v4603
    %7415 = vmatprep.mubr.bf16.mxu0 %v75
    %7416 = vmatmul.mubr.bf16.gmra.mxu0 %v74
    %v7417 = vpop.f32.mrf.mxu0
    %v7418 = vadd.f32 %v6577, %v7417
    %v7419 = vpop.f32.mrf.mxu0
    %v7420 = vadd.f32 %v6581, %v7419
    %v7421 = vpop.f32.mrf.mxu0
    %v7422 = vpop.f32.mrf.mxu0
    %7423 = vdwg.mxu0
    %7424 = vmatprep.subr.bf16.mxu0 %v4949
    %7425 = vmatpush1.bf16.msra.mxu0 %v4948
    %7426 = vmatprep.subr.bf16.mxu0 %v4926
    %7427 = vmatpush1.bf16.msra.mxu0 %v4925
    %7428 = vmatprep.subr.bf16.mxu0 %v4903
    %7429 = vmatpush1.bf16.msra.mxu0 %v4902
    %7430 = vmatprep.subr.bf16.mxu0 %v4880
    %7431 = vmatpush1.bf16.msra.mxu0 %v4879
    %7432 = vmatprep.subr.bf16.mxu0 %v4857
    %7433 = vmatpush1.bf16.msra.mxu0 %v4856
    %7434 = vmatprep.subr.bf16.mxu0 %v4834
    %7435 = vmatpush1.bf16.msra.mxu0 %v4833
    %7436 = vmatprep.subr.bf16.mxu0 %v4811
    %7437 = vmatpush1.bf16.msra.mxu0 %v4810
    %7438 = vmatprep.subr.bf16.mxu0 %v4788
    %7439 = vmatpush1.bf16.msra.mxu0 %v4787
    %7440 = vmatprep.subr.bf16.mxu0 %v5133
    %7441 = vmatpush2.bf16.msra.mxu0 %v5132
    %7442 = vmatprep.subr.bf16.mxu0 %v5110
    %7443 = vmatpush2.bf16.msra.mxu0 %v5109
    %7444 = vmatprep.subr.bf16.mxu0 %v5087
    %7445 = vmatpush2.bf16.msra.mxu0 %v5086
    %7446 = vmatprep.subr.bf16.mxu0 %v5064
    %7447 = vmatpush2.bf16.msra.mxu0 %v5063
    %7448 = vmatprep.subr.bf16.mxu0 %v5041
    %7449 = vmatpush2.bf16.msra.mxu0 %v5040
    %7450 = vmatprep.subr.bf16.mxu0 %v5018
    %7451 = vmatpush2.bf16.msra.mxu0 %v5017
    %7452 = vmatprep.subr.bf16.mxu0 %v4995
    %7453 = vmatpush2.bf16.msra.mxu0 %v4994
    %7454 = vmatprep.subr.bf16.mxu0 %v4972
    %7455 = vmatpush2.bf16.msra.mxu0 %v4971
    %7456 = vmatprep.mubr.bf16.mxu0 %v77
    %7457 = vmatmul.mubr.bf16.gmra.mxu0 %v76
    %v7458 = vpop.f32.mrf.mxu0
    %v7459 = vadd.f32 %v7418, %v7458
    %v7460 = vpop.f32.mrf.mxu0
    %v7461 = vadd.f32 %v7420, %v7460
    %v7462 = vpop.f32.mrf.mxu0
    %v7463 = vpop.f32.mrf.mxu0
    %7464 = vdwg.mxu0
    %7465 = vmatprep.subr.bf16.mxu0 %v5317
    %7466 = vmatpush1.bf16.msra.mxu0 %v5316
    %7467 = vmatprep.subr.bf16.mxu0 %v5294
    %7468 = vmatpush1.bf16.msra.mxu0 %v5293
    %7469 = vmatprep.subr.bf16.mxu0 %v5271
    %7470 = vmatpush1.bf16.msra.mxu0 %v5270
    %7471 = vmatprep.subr.bf16.mxu0 %v5248
    %7472 = vmatpush1.bf16.msra.mxu0 %v5247
    %7473 = vmatprep.subr.bf16.mxu0 %v5225
    %7474 = vmatpush1.bf16.msra.mxu0 %v5224
    %7475 = vmatprep.subr.bf16.mxu0 %v5202
    %7476 = vmatpush1.bf16.msra.mxu0 %v5201
    %7477 = vmatprep.subr.bf16.mxu0 %v5179
    %7478 = vmatpush1.bf16.msra.mxu0 %v5178
    %7479 = vmatprep.subr.bf16.mxu0 %v5156
    %7480 = vmatpush1.bf16.msra.mxu0 %v5155
    %7481 = vmatprep.subr.bf16.mxu0 0
    %7482 = vmatpush2.bf16.msra.mxu0 0
    %7483 = vmatprep.subr.bf16.mxu0 0
    %7484 = vmatpush2.bf16.msra.mxu0 0
    %7485 = vmatprep.subr.bf16.mxu0 %v5455
    %7486 = vmatpush2.bf16.msra.mxu0 %v5454
    %7487 = vmatprep.subr.bf16.mxu0 %v5432
    %7488 = vmatpush2.bf16.msra.mxu0 %v5431
    %7489 = vmatprep.subr.bf16.mxu0 %v5409
    %7490 = vmatpush2.bf16.msra.mxu0 %v5408
    %7491 = vmatprep.subr.bf16.mxu0 %v5386
    %7492 = vmatpush2.bf16.msra.mxu0 %v5385
    %7493 = vmatprep.subr.bf16.mxu0 %v5363
    %7494 = vmatpush2.bf16.msra.mxu0 %v5362
    %7495 = vmatprep.subr.bf16.mxu0 %v5340
    %7496 = vmatpush2.bf16.msra.mxu0 %v5339
    %7497 = vmatprep.mubr.bf16.mxu0 %v6643
    %7498 = vmatmul.mubr.bf16.gmra.mxu0 %v78
    %v7499 = vpop.f32.mrf.mxu0
    %v7500 = vadd.f32 %v7459, %v7499
    %v7501 = vpop.f32.mrf.mxu0
    %v7502 = vadd.f32 %v7461, %v7501
    %v7503 = vpop.f32.mrf.mxu0
    %v7504 = vpop.f32.mrf.mxu0
    %7505 = vdwg.mxu0
    %7506 = vmatprep.subr.bf16.mxu0 %v4583
    %7507 = vmatpush1.bf16.msra.mxu0 %v4582
    %7508 = vmatprep.subr.bf16.mxu0 %v4560
    %7509 = vmatpush1.bf16.msra.mxu0 %v4559
    %7510 = vmatprep.subr.bf16.mxu0 %v4537
    %7511 = vmatpush1.bf16.msra.mxu0 %v4536
    %7512 = vmatprep.subr.bf16.mxu0 %v4514
    %7513 = vmatpush1.bf16.msra.mxu0 %v4513
    %7514 = vmatprep.subr.bf16.mxu0 %v4491
    %7515 = vmatpush1.bf16.msra.mxu0 %v4490
    %7516 = vmatprep.subr.bf16.mxu0 %v4468
    %7517 = vmatpush1.bf16.msra.mxu0 %v4467
    %7518 = vmatprep.subr.bf16.mxu0 %v4445
    %7519 = vmatpush1.bf16.msra.mxu0 %v4444
    %7520 = vmatprep.subr.bf16.mxu0 %v4422
    %7521 = vmatpush1.bf16.msra.mxu0 %v4421
    %7522 = vmatprep.subr.bf16.mxu0 %v4767
    %7523 = vmatpush2.bf16.msra.mxu0 %v4766
    %7524 = vmatprep.subr.bf16.mxu0 %v4744
    %7525 = vmatpush2.bf16.msra.mxu0 %v4743
    %7526 = vmatprep.subr.bf16.mxu0 %v4721
    %7527 = vmatpush2.bf16.msra.mxu0 %v4720
    %7528 = vmatprep.subr.bf16.mxu0 %v4698
    %7529 = vmatpush2.bf16.msra.mxu0 %v4697
    %7530 = vmatprep.subr.bf16.mxu0 %v4675
    %7531 = vmatpush2.bf16.msra.mxu0 %v4674
    %7532 = vmatprep.subr.bf16.mxu0 %v4652
    %7533 = vmatpush2.bf16.msra.mxu0 %v4651
    %7534 = vmatprep.subr.bf16.mxu0 %v4629
    %7535 = vmatpush2.bf16.msra.mxu0 %v4628
    %7536 = vmatprep.subr.bf16.mxu0 %v4606
    %7537 = vmatpush2.bf16.msra.mxu0 %v4605
    %7538 = vmatprep.mubr.bf16.mxu0 %v75
    %7539 = vmatmul.mubr.bf16.gmra.mxu0 %v74
    %v7540 = vpop.f32.mrf.mxu0
    %v7541 = vadd.f32 %v6585, %v7540
    %v7542 = vpop.f32.mrf.mxu0
    %v7543 = vadd.f32 %v6589, %v7542
    %v7544 = vpop.f32.mrf.mxu0
    %v7545 = vpop.f32.mrf.mxu0
    %7546 = vdwg.mxu0
    %7547 = vmatprep.subr.bf16.mxu0 %v4951
    %7548 = vmatpush1.bf16.msra.mxu0 %v4950
    %7549 = vmatprep.subr.bf16.mxu0 %v4928
    %7550 = vmatpush1.bf16.msra.mxu0 %v4927
    %7551 = vmatprep.subr.bf16.mxu0 %v4905
    %7552 = vmatpush1.bf16.msra.mxu0 %v4904
    %7553 = vmatprep.subr.bf16.mxu0 %v4882
    %7554 = vmatpush1.bf16.msra.mxu0 %v4881
    %7555 = vmatprep.subr.bf16.mxu0 %v4859
    %7556 = vmatpush1.bf16.msra.mxu0 %v4858
    %7557 = vmatprep.subr.bf16.mxu0 %v4836
    %7558 = vmatpush1.bf16.msra.mxu0 %v4835
    %7559 = vmatprep.subr.bf16.mxu0 %v4813
    %7560 = vmatpush1.bf16.msra.mxu0 %v4812
    %7561 = vmatprep.subr.bf16.mxu0 %v4790
    %7562 = vmatpush1.bf16.msra.mxu0 %v4789
    %7563 = vmatprep.subr.bf16.mxu0 %v5135
    %7564 = vmatpush2.bf16.msra.mxu0 %v5134
    %7565 = vmatprep.subr.bf16.mxu0 %v5112
    %7566 = vmatpush2.bf16.msra.mxu0 %v5111
    %7567 = vmatprep.subr.bf16.mxu0 %v5089
    %7568 = vmatpush2.bf16.msra.mxu0 %v5088
    %7569 = vmatprep.subr.bf16.mxu0 %v5066
    %7570 = vmatpush2.bf16.msra.mxu0 %v5065
    %7571 = vmatprep.subr.bf16.mxu0 %v5043
    %7572 = vmatpush2.bf16.msra.mxu0 %v5042
    %7573 = vmatprep.subr.bf16.mxu0 %v5020
    %7574 = vmatpush2.bf16.msra.mxu0 %v5019
    %7575 = vmatprep.subr.bf16.mxu0 %v4997
    %7576 = vmatpush2.bf16.msra.mxu0 %v4996
    %7577 = vmatprep.subr.bf16.mxu0 %v4974
    %7578 = vmatpush2.bf16.msra.mxu0 %v4973
    %7579 = vmatprep.mubr.bf16.mxu0 %v77
    %7580 = vmatmul.mubr.bf16.gmra.mxu0 %v76
    %v7581 = vpop.f32.mrf.mxu0
    %v7582 = vadd.f32 %v7541, %v7581
    %v7583 = vpop.f32.mrf.mxu0
    %v7584 = vadd.f32 %v7543, %v7583
    %v7585 = vpop.f32.mrf.mxu0
    %v7586 = vpop.f32.mrf.mxu0
    %7587 = vdwg.mxu0
    %7588 = vmatprep.subr.bf16.mxu0 %v5319
    %7589 = vmatpush1.bf16.msra.mxu0 %v5318
    %7590 = vmatprep.subr.bf16.mxu0 %v5296
    %7591 = vmatpush1.bf16.msra.mxu0 %v5295
    %7592 = vmatprep.subr.bf16.mxu0 %v5273
    %7593 = vmatpush1.bf16.msra.mxu0 %v5272
    %7594 = vmatprep.subr.bf16.mxu0 %v5250
    %7595 = vmatpush1.bf16.msra.mxu0 %v5249
    %7596 = vmatprep.subr.bf16.mxu0 %v5227
    %7597 = vmatpush1.bf16.msra.mxu0 %v5226
    %7598 = vmatprep.subr.bf16.mxu0 %v5204
    %7599 = vmatpush1.bf16.msra.mxu0 %v5203
    %7600 = vmatprep.subr.bf16.mxu0 %v5181
    %7601 = vmatpush1.bf16.msra.mxu0 %v5180
    %7602 = vmatprep.subr.bf16.mxu0 %v5158
    %7603 = vmatpush1.bf16.msra.mxu0 %v5157
    %7604 = vmatprep.subr.bf16.mxu0 0
    %7605 = vmatpush2.bf16.msra.mxu0 0
    %7606 = vmatprep.subr.bf16.mxu0 0
    %7607 = vmatpush2.bf16.msra.mxu0 0
    %7608 = vmatprep.subr.bf16.mxu0 %v5457
    %7609 = vmatpush2.bf16.msra.mxu0 %v5456
    %7610 = vmatprep.subr.bf16.mxu0 %v5434
    %7611 = vmatpush2.bf16.msra.mxu0 %v5433
    %7612 = vmatprep.subr.bf16.mxu0 %v5411
    %7613 = vmatpush2.bf16.msra.mxu0 %v5410
    %7614 = vmatprep.subr.bf16.mxu0 %v5388
    %7615 = vmatpush2.bf16.msra.mxu0 %v5387
    %7616 = vmatprep.subr.bf16.mxu0 %v5365
    %7617 = vmatpush2.bf16.msra.mxu0 %v5364
    %7618 = vmatprep.subr.bf16.mxu0 %v5342
    %7619 = vmatpush2.bf16.msra.mxu0 %v5341
    %7620 = vmatprep.mubr.bf16.mxu0 %v6643
    %7621 = vmatmul.mubr.bf16.gmra.mxu0 %v78
    %v7622 = vpop.f32.mrf.mxu0
    %v7623 = vadd.f32 %v7582, %v7622
    %v7624 = vpop.f32.mrf.mxu0
    %v7625 = vadd.f32 %v7584, %v7624
    %v7626 = vpop.f32.mrf.mxu0
    %v7627 = vpop.f32.mrf.mxu0
    %7628 = vdwg.mxu0
    %7629 = vmatprep.subr.bf16.mxu0 %v4585
    %7630 = vmatpush1.bf16.msra.mxu0 %v4584
    %7631 = vmatprep.subr.bf16.mxu0 %v4562
    %7632 = vmatpush1.bf16.msra.mxu0 %v4561
    %7633 = vmatprep.subr.bf16.mxu0 %v4539
    %7634 = vmatpush1.bf16.msra.mxu0 %v4538
    %7635 = vmatprep.subr.bf16.mxu0 %v4516
    %7636 = vmatpush1.bf16.msra.mxu0 %v4515
    %7637 = vmatprep.subr.bf16.mxu0 %v4493
    %7638 = vmatpush1.bf16.msra.mxu0 %v4492
    %7639 = vmatprep.subr.bf16.mxu0 %v4470
    %7640 = vmatpush1.bf16.msra.mxu0 %v4469
    %7641 = vmatprep.subr.bf16.mxu0 %v4447
    %7642 = vmatpush1.bf16.msra.mxu0 %v4446
    %7643 = vmatprep.subr.bf16.mxu0 %v4424
    %7644 = vmatpush1.bf16.msra.mxu0 %v4423
    %7645 = vmatprep.subr.bf16.mxu0 %v4769
    %7646 = vmatpush2.bf16.msra.mxu0 %v4768
    %7647 = vmatprep.subr.bf16.mxu0 %v4746
    %7648 = vmatpush2.bf16.msra.mxu0 %v4745
    %7649 = vmatprep.subr.bf16.mxu0 %v4723
    %7650 = vmatpush2.bf16.msra.mxu0 %v4722
    %7651 = vmatprep.subr.bf16.mxu0 %v4700
    %7652 = vmatpush2.bf16.msra.mxu0 %v4699
    %7653 = vmatprep.subr.bf16.mxu0 %v4677
    %7654 = vmatpush2.bf16.msra.mxu0 %v4676
    %7655 = vmatprep.subr.bf16.mxu0 %v4654
    %7656 = vmatpush2.bf16.msra.mxu0 %v4653
    %7657 = vmatprep.subr.bf16.mxu0 %v4631
    %7658 = vmatpush2.bf16.msra.mxu0 %v4630
    %7659 = vmatprep.subr.bf16.mxu0 %v4608
    %7660 = vmatpush2.bf16.msra.mxu0 %v4607
    %7661 = vmatprep.mubr.bf16.mxu0 %v75
    %7662 = vmatmul.mubr.bf16.gmra.mxu0 %v74
    %v7663 = vpop.f32.mrf.mxu0
    %v7664 = vadd.f32 %v6593, %v7663
    %v7665 = vpop.f32.mrf.mxu0
    %v7666 = vadd.f32 %v6597, %v7665
    %v7667 = vpop.f32.mrf.mxu0
    %v7668 = vpop.f32.mrf.mxu0
    %7669 = vdwg.mxu0
    %7670 = vmatprep.subr.bf16.mxu0 %v4953
    %7671 = vmatpush1.bf16.msra.mxu0 %v4952
    %7672 = vmatprep.subr.bf16.mxu0 %v4930
    %7673 = vmatpush1.bf16.msra.mxu0 %v4929
    %7674 = vmatprep.subr.bf16.mxu0 %v4907
    %7675 = vmatpush1.bf16.msra.mxu0 %v4906
    %7676 = vmatprep.subr.bf16.mxu0 %v4884
    %7677 = vmatpush1.bf16.msra.mxu0 %v4883
    %7678 = vmatprep.subr.bf16.mxu0 %v4861
    %7679 = vmatpush1.bf16.msra.mxu0 %v4860
    %7680 = vmatprep.subr.bf16.mxu0 %v4838
    %7681 = vmatpush1.bf16.msra.mxu0 %v4837
    %7682 = vmatprep.subr.bf16.mxu0 %v4815
    %7683 = vmatpush1.bf16.msra.mxu0 %v4814
    %7684 = vmatprep.subr.bf16.mxu0 %v4792
    %7685 = vmatpush1.bf16.msra.mxu0 %v4791
    %7686 = vmatprep.subr.bf16.mxu0 %v5137
    %7687 = vmatpush2.bf16.msra.mxu0 %v5136
    %7688 = vmatprep.subr.bf16.mxu0 %v5114
    %7689 = vmatpush2.bf16.msra.mxu0 %v5113
    %7690 = vmatprep.subr.bf16.mxu0 %v5091
    %7691 = vmatpush2.bf16.msra.mxu0 %v5090
    %7692 = vmatprep.subr.bf16.mxu0 %v5068
    %7693 = vmatpush2.bf16.msra.mxu0 %v5067
    %7694 = vmatprep.subr.bf16.mxu0 %v5045
    %7695 = vmatpush2.bf16.msra.mxu0 %v5044
    %7696 = vmatprep.subr.bf16.mxu0 %v5022
    %7697 = vmatpush2.bf16.msra.mxu0 %v5021
    %7698 = vmatprep.subr.bf16.mxu0 %v4999
    %7699 = vmatpush2.bf16.msra.mxu0 %v4998
    %7700 = vmatprep.subr.bf16.mxu0 %v4976
    %7701 = vmatpush2.bf16.msra.mxu0 %v4975
    %7702 = vmatprep.mubr.bf16.mxu0 %v77
    %7703 = vmatmul.mubr.bf16.gmra.mxu0 %v76
    %v7704 = vpop.f32.mrf.mxu0
    %v7705 = vadd.f32 %v7664, %v7704
    %v7706 = vpop.f32.mrf.mxu0
    %v7707 = vadd.f32 %v7666, %v7706
    %v7708 = vpop.f32.mrf.mxu0
    %v7709 = vpop.f32.mrf.mxu0
    %7710 = vdwg.mxu0
    %7711 = vmatprep.subr.bf16.mxu0 %v5321
    %7712 = vmatpush1.bf16.msra.mxu0 %v5320
    %7713 = vmatprep.subr.bf16.mxu0 %v5298
    %7714 = vmatpush1.bf16.msra.mxu0 %v5297
    %7715 = vmatprep.subr.bf16.mxu0 %v5275
    %7716 = vmatpush1.bf16.msra.mxu0 %v5274
    %7717 = vmatprep.subr.bf16.mxu0 %v5252
    %7718 = vmatpush1.bf16.msra.mxu0 %v5251
    %7719 = vmatprep.subr.bf16.mxu0 %v5229
    %7720 = vmatpush1.bf16.msra.mxu0 %v5228
    %7721 = vmatprep.subr.bf16.mxu0 %v5206
    %7722 = vmatpush1.bf16.msra.mxu0 %v5205
    %7723 = vmatprep.subr.bf16.mxu0 %v5183
    %7724 = vmatpush1.bf16.msra.mxu0 %v5182
    %7725 = vmatprep.subr.bf16.mxu0 %v5160
    %7726 = vmatpush1.bf16.msra.mxu0 %v5159
    %7727 = vmatprep.subr.bf16.mxu0 0
    %7728 = vmatpush2.bf16.msra.mxu0 0
    %7729 = vmatprep.subr.bf16.mxu0 0
    %7730 = vmatpush2.bf16.msra.mxu0 0
    %7731 = vmatprep.subr.bf16.mxu0 %v5459
    %7732 = vmatpush2.bf16.msra.mxu0 %v5458
    %7733 = vmatprep.subr.bf16.mxu0 %v5436
    %7734 = vmatpush2.bf16.msra.mxu0 %v5435
    %7735 = vmatprep.subr.bf16.mxu0 %v5413
    %7736 = vmatpush2.bf16.msra.mxu0 %v5412
    %7737 = vmatprep.subr.bf16.mxu0 %v5390
    %7738 = vmatpush2.bf16.msra.mxu0 %v5389
    %7739 = vmatprep.subr.bf16.mxu0 %v5367
    %7740 = vmatpush2.bf16.msra.mxu0 %v5366
    %7741 = vmatprep.subr.bf16.mxu0 %v5344
    %7742 = vmatpush2.bf16.msra.mxu0 %v5343
    %7743 = vmatprep.mubr.bf16.mxu0 %v6643
    %7744 = vmatmul.mubr.bf16.gmra.mxu0 %v78
    %v7745 = vpop.f32.mrf.mxu0
    %v7746 = vadd.f32 %v7705, %v7745
    %v7747 = vpop.f32.mrf.mxu0
    %v7748 = vadd.f32 %v7707, %v7747
    %v7749 = vpop.f32.mrf.mxu0
    %v7750 = vpop.f32.mrf.mxu0
    %7751 = vdwg.mxu0
    %7752 = vmatprep.subr.bf16.mxu0 %v4587
    %7753 = vmatpush1.bf16.msra.mxu0 %v4586
    %7754 = vmatprep.subr.bf16.mxu0 %v4564
    %7755 = vmatpush1.bf16.msra.mxu0 %v4563
    %7756 = vmatprep.subr.bf16.mxu0 %v4541
    %7757 = vmatpush1.bf16.msra.mxu0 %v4540
    %7758 = vmatprep.subr.bf16.mxu0 %v4518
    %7759 = vmatpush1.bf16.msra.mxu0 %v4517
    %7760 = vmatprep.subr.bf16.mxu0 %v4495
    %7761 = vmatpush1.bf16.msra.mxu0 %v4494
    %7762 = vmatprep.subr.bf16.mxu0 %v4472
    %7763 = vmatpush1.bf16.msra.mxu0 %v4471
    %7764 = vmatprep.subr.bf16.mxu0 %v4449
    %7765 = vmatpush1.bf16.msra.mxu0 %v4448
    %7766 = vmatprep.subr.bf16.mxu0 %v4426
    %7767 = vmatpush1.bf16.msra.mxu0 %v4425
    %7768 = vmatprep.subr.bf16.mxu0 %v4771
    %7769 = vmatpush2.bf16.msra.mxu0 %v4770
    %7770 = vmatprep.subr.bf16.mxu0 %v4748
    %7771 = vmatpush2.bf16.msra.mxu0 %v4747
    %7772 = vmatprep.subr.bf16.mxu0 %v4725
    %7773 = vmatpush2.bf16.msra.mxu0 %v4724
    %7774 = vmatprep.subr.bf16.mxu0 %v4702
    %7775 = vmatpush2.bf16.msra.mxu0 %v4701
    %7776 = vmatprep.subr.bf16.mxu0 %v4679
    %7777 = vmatpush2.bf16.msra.mxu0 %v4678
    %7778 = vmatprep.subr.bf16.mxu0 %v4656
    %7779 = vmatpush2.bf16.msra.mxu0 %v4655
    %7780 = vmatprep.subr.bf16.mxu0 %v4633
    %7781 = vmatpush2.bf16.msra.mxu0 %v4632
    %7782 = vmatprep.subr.bf16.mxu0 %v4610
    %7783 = vmatpush2.bf16.msra.mxu0 %v4609
    %7784 = vmatprep.mubr.bf16.mxu0 %v75
    %7785 = vmatmul.mubr.bf16.gmra.mxu0 %v74
    %v7786 = vpop.f32.mrf.mxu0
    %v7787 = vadd.f32 %v6601, %v7786
    %v7788 = vpop.f32.mrf.mxu0
    %v7789 = vadd.f32 %v6605, %v7788
    %v7790 = vpop.f32.mrf.mxu0
    %v7791 = vpop.f32.mrf.mxu0
    %7792 = vdwg.mxu0
    %7793 = vmatprep.subr.bf16.mxu0 %v4955
    %7794 = vmatpush1.bf16.msra.mxu0 %v4954
    %7795 = vmatprep.subr.bf16.mxu0 %v4932
    %7796 = vmatpush1.bf16.msra.mxu0 %v4931
    %7797 = vmatprep.subr.bf16.mxu0 %v4909
    %7798 = vmatpush1.bf16.msra.mxu0 %v4908
    %7799 = vmatprep.subr.bf16.mxu0 %v4886
    %7800 = vmatpush1.bf16.msra.mxu0 %v4885
    %7801 = vmatprep.subr.bf16.mxu0 %v4863
    %7802 = vmatpush1.bf16.msra.mxu0 %v4862
    %7803 = vmatprep.subr.bf16.mxu0 %v4840
    %7804 = vmatpush1.bf16.msra.mxu0 %v4839
    %7805 = vmatprep.subr.bf16.mxu0 %v4817
    %7806 = vmatpush1.bf16.msra.mxu0 %v4816
    %7807 = vmatprep.subr.bf16.mxu0 %v4794
    %7808 = vmatpush1.bf16.msra.mxu0 %v4793
    %7809 = vmatprep.subr.bf16.mxu0 %v5139
    %7810 = vmatpush2.bf16.msra.mxu0 %v5138
    %7811 = vmatprep.subr.bf16.mxu0 %v5116
    %7812 = vmatpush2.bf16.msra.mxu0 %v5115
    %7813 = vmatprep.subr.bf16.mxu0 %v5093
    %7814 = vmatpush2.bf16.msra.mxu0 %v5092
    %7815 = vmatprep.subr.bf16.mxu0 %v5070
    %7816 = vmatpush2.bf16.msra.mxu0 %v5069
    %7817 = vmatprep.subr.bf16.mxu0 %v5047
    %7818 = vmatpush2.bf16.msra.mxu0 %v5046
    %7819 = vmatprep.subr.bf16.mxu0 %v5024
    %7820 = vmatpush2.bf16.msra.mxu0 %v5023
    %7821 = vmatprep.subr.bf16.mxu0 %v5001
    %7822 = vmatpush2.bf16.msra.mxu0 %v5000
    %7823 = vmatprep.subr.bf16.mxu0 %v4978
    %7824 = vmatpush2.bf16.msra.mxu0 %v4977
    %7825 = vmatprep.mubr.bf16.mxu0 %v77
    %7826 = vmatmul.mubr.bf16.gmra.mxu0 %v76
    %v7827 = vpop.f32.mrf.mxu0
    %v7828 = vadd.f32 %v7787, %v7827
    %v7829 = vpop.f32.mrf.mxu0
    %v7830 = vadd.f32 %v7789, %v7829
    %v7831 = vpop.f32.mrf.mxu0
    %v7832 = vpop.f32.mrf.mxu0
    %7833 = vdwg.mxu0
    %7834 = vmatprep.subr.bf16.mxu0 %v5323
    %7835 = vmatpush1.bf16.msra.mxu0 %v5322
    %7836 = vmatprep.subr.bf16.mxu0 %v5300
    %7837 = vmatpush1.bf16.msra.mxu0 %v5299
    %7838 = vmatprep.subr.bf16.mxu0 %v5277
    %7839 = vmatpush1.bf16.msra.mxu0 %v5276
    %7840 = vmatprep.subr.bf16.mxu0 %v5254
    %7841 = vmatpush1.bf16.msra.mxu0 %v5253
    %7842 = vmatprep.subr.bf16.mxu0 %v5231
    %7843 = vmatpush1.bf16.msra.mxu0 %v5230
    %7844 = vmatprep.subr.bf16.mxu0 %v5208
    %7845 = vmatpush1.bf16.msra.mxu0 %v5207
    %7846 = vmatprep.subr.bf16.mxu0 %v5185
    %7847 = vmatpush1.bf16.msra.mxu0 %v5184
    %7848 = vmatprep.subr.bf16.mxu0 %v5162
    %7849 = vmatpush1.bf16.msra.mxu0 %v5161
    %7850 = vmatprep.subr.bf16.mxu0 0
    %7851 = vmatpush2.bf16.msra.mxu0 0
    %7852 = vmatprep.subr.bf16.mxu0 0
    %7853 = vmatpush2.bf16.msra.mxu0 0
    %7854 = vmatprep.subr.bf16.mxu0 %v5461
    %7855 = vmatpush2.bf16.msra.mxu0 %v5460
    %7856 = vmatprep.subr.bf16.mxu0 %v5438
    %7857 = vmatpush2.bf16.msra.mxu0 %v5437
    %7858 = vmatprep.subr.bf16.mxu0 %v5415
    %7859 = vmatpush2.bf16.msra.mxu0 %v5414
    %7860 = vmatprep.subr.bf16.mxu0 %v5392
    %7861 = vmatpush2.bf16.msra.mxu0 %v5391
    %7862 = vmatprep.subr.bf16.mxu0 %v5369
    %7863 = vmatpush2.bf16.msra.mxu0 %v5368
    %7864 = vmatprep.subr.bf16.mxu0 %v5346
    %7865 = vmatpush2.bf16.msra.mxu0 %v5345
    %7866 = vmatprep.mubr.bf16.mxu0 %v6643
    %7867 = vmatmul.mubr.bf16.gmra.mxu0 %v78
    %v7868 = vpop.f32.mrf.mxu0
    %v7869 = vadd.f32 %v7828, %v7868
    %v7870 = vpop.f32.mrf.mxu0
    %v7871 = vadd.f32 %v7830, %v7870
    %v7872 = vpop.f32.mrf.mxu0
    %v7873 = vpop.f32.mrf.mxu0
    %7874 = vdwg.mxu0
    %7875 = vmatprep.subr.bf16.mxu0 %v4589
    %7876 = vmatpush1.bf16.msra.mxu0 %v4588
    %7877 = vmatprep.subr.bf16.mxu0 %v4566
    %7878 = vmatpush1.bf16.msra.mxu0 %v4565
    %7879 = vmatprep.subr.bf16.mxu0 %v4543
    %7880 = vmatpush1.bf16.msra.mxu0 %v4542
    %7881 = vmatprep.subr.bf16.mxu0 %v4520
    %7882 = vmatpush1.bf16.msra.mxu0 %v4519
    %7883 = vmatprep.subr.bf16.mxu0 %v4497
    %7884 = vmatpush1.bf16.msra.mxu0 %v4496
    %7885 = vmatprep.subr.bf16.mxu0 %v4474
    %7886 = vmatpush1.bf16.msra.mxu0 %v4473
    %7887 = vmatprep.subr.bf16.mxu0 %v4451
    %7888 = vmatpush1.bf16.msra.mxu0 %v4450
    %7889 = vmatprep.subr.bf16.mxu0 %v4428
    %7890 = vmatpush1.bf16.msra.mxu0 %v4427
    %7891 = vmatprep.subr.bf16.mxu0 %v4773
    %7892 = vmatpush2.bf16.msra.mxu0 %v4772
    %7893 = vmatprep.subr.bf16.mxu0 %v4750
    %7894 = vmatpush2.bf16.msra.mxu0 %v4749
    %7895 = vmatprep.subr.bf16.mxu0 %v4727
    %7896 = vmatpush2.bf16.msra.mxu0 %v4726
    %7897 = vmatprep.subr.bf16.mxu0 %v4704
    %7898 = vmatpush2.bf16.msra.mxu0 %v4703
    %7899 = vmatprep.subr.bf16.mxu0 %v4681
    %7900 = vmatpush2.bf16.msra.mxu0 %v4680
    %7901 = vmatprep.subr.bf16.mxu0 %v4658
    %7902 = vmatpush2.bf16.msra.mxu0 %v4657
    %7903 = vmatprep.subr.bf16.mxu0 %v4635
    %7904 = vmatpush2.bf16.msra.mxu0 %v4634
    %7905 = vmatprep.subr.bf16.mxu0 %v4612
    %7906 = vmatpush2.bf16.msra.mxu0 %v4611
    %7907 = vmatprep.mubr.bf16.mxu0 %v75
    %7908 = vmatmul.mubr.bf16.gmra.mxu0 %v74
    %v7909 = vpop.f32.mrf.mxu0
    %v7910 = vadd.f32 %v6609, %v7909
    %v7911 = vpop.f32.mrf.mxu0
    %v7912 = vadd.f32 %v6613, %v7911
    %v7913 = vpop.f32.mrf.mxu0
    %v7914 = vpop.f32.mrf.mxu0
    %7915 = vdwg.mxu0
    %7916 = vmatprep.subr.bf16.mxu0 %v4957
    %7917 = vmatpush1.bf16.msra.mxu0 %v4956
    %7918 = vmatprep.subr.bf16.mxu0 %v4934
    %7919 = vmatpush1.bf16.msra.mxu0 %v4933
    %7920 = vmatprep.subr.bf16.mxu0 %v4911
    %7921 = vmatpush1.bf16.msra.mxu0 %v4910
    %7922 = vmatprep.subr.bf16.mxu0 %v4888
    %7923 = vmatpush1.bf16.msra.mxu0 %v4887
    %7924 = vmatprep.subr.bf16.mxu0 %v4865
    %7925 = vmatpush1.bf16.msra.mxu0 %v4864
    %7926 = vmatprep.subr.bf16.mxu0 %v4842
    %7927 = vmatpush1.bf16.msra.mxu0 %v4841
    %7928 = vmatprep.subr.bf16.mxu0 %v4819
    %7929 = vmatpush1.bf16.msra.mxu0 %v4818
    %7930 = vmatprep.subr.bf16.mxu0 %v4796
    %7931 = vmatpush1.bf16.msra.mxu0 %v4795
    %7932 = vmatprep.subr.bf16.mxu0 %v5141
    %7933 = vmatpush2.bf16.msra.mxu0 %v5140
    %7934 = vmatprep.subr.bf16.mxu0 %v5118
    %7935 = vmatpush2.bf16.msra.mxu0 %v5117
    %7936 = vmatprep.subr.bf16.mxu0 %v5095
    %7937 = vmatpush2.bf16.msra.mxu0 %v5094
    %7938 = vmatprep.subr.bf16.mxu0 %v5072
    %7939 = vmatpush2.bf16.msra.mxu0 %v5071
    %7940 = vmatprep.subr.bf16.mxu0 %v5049
    %7941 = vmatpush2.bf16.msra.mxu0 %v5048
    %7942 = vmatprep.subr.bf16.mxu0 %v5026
    %7943 = vmatpush2.bf16.msra.mxu0 %v5025
    %7944 = vmatprep.subr.bf16.mxu0 %v5003
    %7945 = vmatpush2.bf16.msra.mxu0 %v5002
    %7946 = vmatprep.subr.bf16.mxu0 %v4980
    %7947 = vmatpush2.bf16.msra.mxu0 %v4979
    %7948 = vmatprep.mubr.bf16.mxu0 %v77
    %7949 = vmatmul.mubr.bf16.gmra.mxu0 %v76
    %v7950 = vpop.f32.mrf.mxu0
    %v7951 = vadd.f32 %v7910, %v7950
    %v7952 = vpop.f32.mrf.mxu0
    %v7953 = vadd.f32 %v7912, %v7952
    %v7954 = vpop.f32.mrf.mxu0
    %v7955 = vpop.f32.mrf.mxu0
    %7956 = vdwg.mxu0
    %7957 = vmatprep.subr.bf16.mxu0 %v5325
    %7958 = vmatpush1.bf16.msra.mxu0 %v5324
    %7959 = vmatprep.subr.bf16.mxu0 %v5302
    %7960 = vmatpush1.bf16.msra.mxu0 %v5301
    %7961 = vmatprep.subr.bf16.mxu0 %v5279
    %7962 = vmatpush1.bf16.msra.mxu0 %v5278
    %7963 = vmatprep.subr.bf16.mxu0 %v5256
    %7964 = vmatpush1.bf16.msra.mxu0 %v5255
    %7965 = vmatprep.subr.bf16.mxu0 %v5233
    %7966 = vmatpush1.bf16.msra.mxu0 %v5232
    %7967 = vmatprep.subr.bf16.mxu0 %v5210
    %7968 = vmatpush1.bf16.msra.mxu0 %v5209
    %7969 = vmatprep.subr.bf16.mxu0 %v5187
    %7970 = vmatpush1.bf16.msra.mxu0 %v5186
    %7971 = vmatprep.subr.bf16.mxu0 %v5164
    %7972 = vmatpush1.bf16.msra.mxu0 %v5163
    %7973 = vmatprep.subr.bf16.mxu0 0
    %7974 = vmatpush2.bf16.msra.mxu0 0
    %7975 = vmatprep.subr.bf16.mxu0 0
    %7976 = vmatpush2.bf16.msra.mxu0 0
    %7977 = vmatprep.subr.bf16.mxu0 %v5463
    %7978 = vmatpush2.bf16.msra.mxu0 %v5462
    %7979 = vmatprep.subr.bf16.mxu0 %v5440
    %7980 = vmatpush2.bf16.msra.mxu0 %v5439
    %7981 = vmatprep.subr.bf16.mxu0 %v5417
    %7982 = vmatpush2.bf16.msra.mxu0 %v5416
    %7983 = vmatprep.subr.bf16.mxu0 %v5394
    %7984 = vmatpush2.bf16.msra.mxu0 %v5393
    %7985 = vmatprep.subr.bf16.mxu0 %v5371
    %7986 = vmatpush2.bf16.msra.mxu0 %v5370
    %7987 = vmatprep.subr.bf16.mxu0 %v5348
    %7988 = vmatpush2.bf16.msra.mxu0 %v5347
    %7989 = vmatprep.mubr.bf16.mxu0 %v6643
    %7990 = vmatmul.mubr.bf16.gmra.mxu0 %v78
    %v7991 = vpop.f32.mrf.mxu0
    %v7992 = vadd.f32 %v7951, %v7991
    %v7993 = vpop.f32.mrf.mxu0
    %v7994 = vadd.f32 %v7953, %v7993
    %v7995 = vpop.f32.mrf.mxu0
    %v7996 = vpop.f32.mrf.mxu0
    %7997 = vdwg.mxu0
    %7998 = vmatprep.subr.bf16.mxu0 0
    %7999 = vmatpush1.bf16.msra.mxu0 %v4590
    %8000 = vmatprep.subr.bf16.mxu0 0
    %8001 = vmatpush1.bf16.msra.mxu0 %v4567
    %8002 = vmatprep.subr.bf16.mxu0 0
    %8003 = vmatpush1.bf16.msra.mxu0 %v4544
    %8004 = vmatprep.subr.bf16.mxu0 0
    %8005 = vmatpush1.bf16.msra.mxu0 %v4521
    %8006 = vmatprep.subr.bf16.mxu0 0
    %8007 = vmatpush1.bf16.msra.mxu0 %v4498
    %8008 = vmatprep.subr.bf16.mxu0 0
    %8009 = vmatpush1.bf16.msra.mxu0 %v4475
    %8010 = vmatprep.subr.bf16.mxu0 0
    %8011 = vmatpush1.bf16.msra.mxu0 %v4452
    %8012 = vmatprep.subr.bf16.mxu0 0
    %8013 = vmatpush1.bf16.msra.mxu0 %v4429
    %8014 = vmatprep.subr.bf16.mxu0 0
    %8015 = vmatpush2.bf16.msra.mxu0 %v4774
    %8016 = vmatprep.subr.bf16.mxu0 0
    %8017 = vmatpush2.bf16.msra.mxu0 %v4751
    %8018 = vmatprep.subr.bf16.mxu0 0
    %8019 = vmatpush2.bf16.msra.mxu0 %v4728
    %8020 = vmatprep.subr.bf16.mxu0 0
    %8021 = vmatpush2.bf16.msra.mxu0 %v4705
    %8022 = vmatprep.subr.bf16.mxu0 0
    %8023 = vmatpush2.bf16.msra.mxu0 %v4682
    %8024 = vmatprep.subr.bf16.mxu0 0
    %8025 = vmatpush2.bf16.msra.mxu0 %v4659
    %8026 = vmatprep.subr.bf16.mxu0 0
    %8027 = vmatpush2.bf16.msra.mxu0 %v4636
    %8028 = vmatprep.subr.bf16.mxu0 0
    %8029 = vmatpush2.bf16.msra.mxu0 %v4613
    %8030 = vmatprep.mubr.bf16.mxu0 %v75
    %8031 = vmatmul.mubr.bf16.gmra.mxu0 %v74
    %v8032 = vpop.f32.mrf.mxu0
    %v8033 = vadd.f32 %v6617, %v8032
    %v8034 = vpop.f32.mrf.mxu0
    %v8035 = vpop.f32.mrf.mxu0
    %v8036 = vpop.f32.mrf.mxu0
    %8037 = vdwg.mxu0
    %8038 = vmatprep.subr.bf16.mxu0 0
    %8039 = vmatpush1.bf16.msra.mxu0 %v4958
    %8040 = vmatprep.subr.bf16.mxu0 0
    %8041 = vmatpush1.bf16.msra.mxu0 %v4935
    %8042 = vmatprep.subr.bf16.mxu0 0
    %8043 = vmatpush1.bf16.msra.mxu0 %v4912
    %8044 = vmatprep.subr.bf16.mxu0 0
    %8045 = vmatpush1.bf16.msra.mxu0 %v4889
    %8046 = vmatprep.subr.bf16.mxu0 0
    %8047 = vmatpush1.bf16.msra.mxu0 %v4866
    %8048 = vmatprep.subr.bf16.mxu0 0
    %8049 = vmatpush1.bf16.msra.mxu0 %v4843
    %8050 = vmatprep.subr.bf16.mxu0 0
    %8051 = vmatpush1.bf16.msra.mxu0 %v4820
    %8052 = vmatprep.subr.bf16.mxu0 0
    %8053 = vmatpush1.bf16.msra.mxu0 %v4797
    %8054 = vmatprep.subr.bf16.mxu0 0
    %8055 = vmatpush2.bf16.msra.mxu0 %v5142
    %8056 = vmatprep.subr.bf16.mxu0 0
    %8057 = vmatpush2.bf16.msra.mxu0 %v5119
    %8058 = vmatprep.subr.bf16.mxu0 0
    %8059 = vmatpush2.bf16.msra.mxu0 %v5096
    %8060 = vmatprep.subr.bf16.mxu0 0
    %8061 = vmatpush2.bf16.msra.mxu0 %v5073
    %8062 = vmatprep.subr.bf16.mxu0 0
    %8063 = vmatpush2.bf16.msra.mxu0 %v5050
    %8064 = vmatprep.subr.bf16.mxu0 0
    %8065 = vmatpush2.bf16.msra.mxu0 %v5027
    %8066 = vmatprep.subr.bf16.mxu0 0
    %8067 = vmatpush2.bf16.msra.mxu0 %v5004
    %8068 = vmatprep.subr.bf16.mxu0 0
    %8069 = vmatpush2.bf16.msra.mxu0 %v4981
    %8070 = vmatprep.mubr.bf16.mxu0 %v77
    %8071 = vmatmul.mubr.bf16.gmra.mxu0 %v76
    %v8072 = vpop.f32.mrf.mxu0
    %v8073 = vadd.f32 %v8033, %v8072
    %v8074 = vpop.f32.mrf.mxu0
    %v8075 = vpop.f32.mrf.mxu0
    %v8076 = vpop.f32.mrf.mxu0
    %8077 = vdwg.mxu0
    %8078 = vmatprep.subr.bf16.mxu0 0
    %8079 = vmatpush1.bf16.msra.mxu0 %v5326
    %8080 = vmatprep.subr.bf16.mxu0 0
    %8081 = vmatpush1.bf16.msra.mxu0 %v5303
    %8082 = vmatprep.subr.bf16.mxu0 0
    %8083 = vmatpush1.bf16.msra.mxu0 %v5280
    %8084 = vmatprep.subr.bf16.mxu0 0
    %8085 = vmatpush1.bf16.msra.mxu0 %v5257
    %8086 = vmatprep.subr.bf16.mxu0 0
    %8087 = vmatpush1.bf16.msra.mxu0 %v5234
    %8088 = vmatprep.subr.bf16.mxu0 0
    %8089 = vmatpush1.bf16.msra.mxu0 %v5211
    %8090 = vmatprep.subr.bf16.mxu0 0
    %8091 = vmatpush1.bf16.msra.mxu0 %v5188
    %8092 = vmatprep.subr.bf16.mxu0 0
    %8093 = vmatpush1.bf16.msra.mxu0 %v5165
    %8094 = vmatprep.subr.bf16.mxu0 0
    %8095 = vmatpush2.bf16.msra.mxu0 0
    %8096 = vmatprep.subr.bf16.mxu0 0
    %8097 = vmatpush2.bf16.msra.mxu0 0
    %8098 = vmatprep.subr.bf16.mxu0 0
    %8099 = vmatpush2.bf16.msra.mxu0 %v5464
    %8100 = vmatprep.subr.bf16.mxu0 0
    %8101 = vmatpush2.bf16.msra.mxu0 %v5441
    %8102 = vmatprep.subr.bf16.mxu0 0
    %8103 = vmatpush2.bf16.msra.mxu0 %v5418
    %8104 = vmatprep.subr.bf16.mxu0 0
    %8105 = vmatpush2.bf16.msra.mxu0 %v5395
    %8106 = vmatprep.subr.bf16.mxu0 0
    %8107 = vmatpush2.bf16.msra.mxu0 %v5372
    %8108 = vmatprep.subr.bf16.mxu0 0
    %8109 = vmatpush2.bf16.msra.mxu0 %v5349
    %8110 = vmatprep.mubr.bf16.mxu0 %v6643
    %8111 = vmatmul.mubr.bf16.gmra.mxu0 %v78
    %v8112 = vpop.f32.mrf.mxu0
    %v8113 = vadd.f32 %v8073, %v8112
    %v8114 = vpop.f32.mrf.mxu0
    %v8115 = vpop.f32.mrf.mxu0
    %v8116 = vpop.f32.mrf.mxu0
    %8117 = vdwg.mxu0
    %v8141 = vcombine.low %v6762, %v6764
    %v8142 = vcombine.low %v6885, %v6887
    %v8143 = vcombine.low %v7008, %v7010
    %v8144 = vcombine.low %v7131, %v7133
    %v8146 = vunpack.c.l.s4 1966171168
    %v8147 = vunpack.c.0.s8 %v8146
    %v8148 = vlaneseq
    %v8149 = vshrl.u32 %v8148, 7
    %v8150 = vsub.s32 %v8147, %v8149
    %v8151 = vrot.slane %v8141, %v8150
    %v8153 = vunpack.c.l.s4 1966171168
    %v8154 = vunpack.c.0.s8 %v8153
    %v8155 = vlaneseq
    %v8156 = vshrl.u32 %v8155, 7
    %v8157 = vsub.s32 %v8154, %v8156
    %v8158 = vrot.slane %v8142, %v8157
    %v8160 = vunpack.c.l.s4 1966171168
    %v8161 = vunpack.c.0.s8 %v8160
    %v8162 = vlaneseq
    %v8163 = vshrl.u32 %v8162, 7
    %v8164 = vsub.s32 %v8161, %v8163
    %v8165 = vrot.slane %v8143, %v8164
    %v8167 = vunpack.c.l.s4 1966171168
    %v8168 = vunpack.c.0.s8 %v8167
    %v8169 = vlaneseq
    %v8170 = vshrl.u32 %v8169, 7
    %v8171 = vsub.s32 %v8168, %v8170
    %v8172 = vrot.slane %v8144, %v8171
    %v8173 = vcombine.low %v8151, %v8158
    %v8174 = vcombine.low %v8165, %v8172
    %v8176 = vunpack.c.l.s4 1966171168
    %v8177 = vunpack.c.0.s8 %v8176
    %v8178 = vlaneseq
    %v8179 = vshrl.u32 %v8178, 7
    %v8180 = vsub.s32 %v8177, %v8179
    %v8181 = vrot.slane %v8173, %v8180
    %v8183 = vunpack.c.l.s4 1966171168
    %v8184 = vunpack.c.0.s8 %v8183
    %v8185 = vlaneseq
    %v8186 = vshrl.u32 %v8185, 7
    %v8187 = vsub.s32 %v8184, %v8186
    %v8188 = vrot.slane %v8174, %v8187
    %v8189 = vcombine.low %v8181, %v8188
    %v8190 = vcombine.low %v7254, %v7256
    %v8191 = vcombine.low %v7377, %v7379
    %v8192 = vcombine.low %v7500, %v7502
    %v8193 = vcombine.low %v7623, %v7625
    %v8195 = vunpack.c.l.s4 1966171168
    %v8196 = vunpack.c.0.s8 %v8195
    %v8197 = vlaneseq
    %v8198 = vshrl.u32 %v8197, 7
    %v8199 = vsub.s32 %v8196, %v8198
    %v8200 = vrot.slane %v8190, %v8199
    %v8202 = vunpack.c.l.s4 1966171168
    %v8203 = vunpack.c.0.s8 %v8202
    %v8204 = vlaneseq
    %v8205 = vshrl.u32 %v8204, 7
    %v8206 = vsub.s32 %v8203, %v8205
    %v8207 = vrot.slane %v8191, %v8206
    %v8209 = vunpack.c.l.s4 1966171168
    %v8210 = vunpack.c.0.s8 %v8209
    %v8211 = vlaneseq
    %v8212 = vshrl.u32 %v8211, 7
    %v8213 = vsub.s32 %v8210, %v8212
    %v8214 = vrot.slane %v8192, %v8213
    %v8216 = vunpack.c.l.s4 1966171168
    %v8217 = vunpack.c.0.s8 %v8216
    %v8218 = vlaneseq
    %v8219 = vshrl.u32 %v8218, 7
    %v8220 = vsub.s32 %v8217, %v8219
    %v8221 = vrot.slane %v8193, %v8220
    %v8222 = vcombine.low %v8200, %v8207
    %v8223 = vcombine.low %v8214, %v8221
    %v8225 = vunpack.c.l.s4 1966171168
    %v8226 = vunpack.c.0.s8 %v8225
    %v8227 = vlaneseq
    %v8228 = vshrl.u32 %v8227, 7
    %v8229 = vsub.s32 %v8226, %v8228
    %v8230 = vrot.slane %v8222, %v8229
    %v8232 = vunpack.c.l.s4 1966171168
    %v8233 = vunpack.c.0.s8 %v8232
    %v8234 = vlaneseq
    %v8235 = vshrl.u32 %v8234, 7
    %v8236 = vsub.s32 %v8233, %v8235
    %v8237 = vrot.slane %v8223, %v8236
    %v8238 = vcombine.low %v8230, %v8237
    %v8239 = vcombine.low %v7746, %v7748
    %v8240 = vcombine.low %v7869, %v7871
    %v8241 = vcombine.low %v7992, %v7994
    %v8243 = vunpack.c.l.s4 1966171168
    %v8244 = vunpack.c.0.s8 %v8243
    %v8245 = vlaneseq
    %v8246 = vshrl.u32 %v8245, 7
    %v8247 = vsub.s32 %v8244, %v8246
    %v8248 = vrot.slane %v8239, %v8247
    %v8250 = vunpack.c.l.s4 1966171168
    %v8251 = vunpack.c.0.s8 %v8250
    %v8252 = vlaneseq
    %v8253 = vshrl.u32 %v8252, 7
    %v8254 = vsub.s32 %v8251, %v8253
    %v8255 = vrot.slane %v8240, %v8254
    %v8257 = vunpack.c.l.s4 1966171168
    %v8258 = vunpack.c.0.s8 %v8257
    %v8259 = vlaneseq
    %v8260 = vshrl.u32 %v8259, 7
    %v8261 = vsub.s32 %v8258, %v8260
    %v8262 = vrot.slane %v8241, %v8261
    %v8264 = vunpack.c.l.s4 1966171168
    %v8265 = vunpack.c.0.s8 %v8264
    %v8266 = vlaneseq
    %v8267 = vshrl.u32 %v8266, 7
    %v8268 = vsub.s32 %v8265, %v8267
    %v8269 = vrot.slane %v8113, %v8268
    %v8270 = vcombine.low %v8248, %v8255
    %v8271 = vcombine.low %v8262, %v8269
    %v8273 = vunpack.c.l.s4 1966171168
    %v8274 = vunpack.c.0.s8 %v8273
    %v8275 = vlaneseq
    %v8276 = vshrl.u32 %v8275, 7
    %v8277 = vsub.s32 %v8274, %v8276
    %v8278 = vrot.slane %v8270, %v8277
    %v8280 = vunpack.c.l.s4 1966171168
    %v8281 = vunpack.c.0.s8 %v8280
    %v8282 = vlaneseq
    %v8283 = vshrl.u32 %v8282, 7
    %v8284 = vsub.s32 %v8281, %v8283
    %v8285 = vrot.slane %v8271, %v8284
    %v8286 = vcombine.low %v8278, %v8285
    %8290 = vst [vmem:[%s3] sm:$0xff] %v8189
    %8291 = vst [vmem:[%s3 + $0x8] sm:$0xff] %v8238
    %v8292 = vlaneseq
    %vm8293 = vcmp.ge.s32.totalorder %v8292, 0
    %vm8294 = vcmp.lt.s32.totalorder %v8292, 896
    %vm8295 = vmand %vm8293, %vm8294
    %8296 = vst.msk [vmem:[%s3 + $0x10] sm:$0x7f] %vm8295, %v8286
    // Predicated region
    $region22: #{relu_conv2d_1x1.1} parent=1 // pred_check
      _
    $region23: #{relu_conv2d_1x1.1} parent=1 // pred_check_branch
      %8298 = sbr.rel (0) target = $region25
    $region24: #{relu_conv2d_1x1.1} parent=1 // pred_region
      _
    $region25: #{relu_conv2d_1x1.1} parent=1 // pred_fallthru
      _
    // Predicated region
    $region26: #{relu_conv2d_1x1.1} parent=1 // pred_check
      _
    $region27: #{relu_conv2d_1x1.1} parent=1 // pred_check_branch
      %8300 = sbr.rel (0) target = $region29
    $region28: #{relu_conv2d_1x1.1} parent=1 // pred_region
      _
    $region29: #{relu_conv2d_1x1.1} parent=1 // pred_fallthru
      _
    %8301 = vsyncpa [#allocation3], 1
    %8302 = vsyncpa [#allocation5], 1

</llo_original>
